<compile_context>
chip_gen: v6e
topology: v6e:2x2x1
jax: 0.10.0
libtpu: 0.0.40
codegen_flags: <defaults>
</compile_context>

<pallas_src>
import numpy as np
import jax
import jax.numpy as jnp
from jax.experimental import pallas as pl
from jax.experimental.pallas import tpu as pltpu


# ----------------------------------------------------------------------------
# Small helpers
# ----------------------------------------------------------------------------
_PHASES = ((0, 0), (0, 1), (1, 0), (1, 1))


def _round_up(v, m):
    return ((v + m - 1) // m) * m


def _pick_tile(L):
    """Largest lane tile (<=512) that still gives >=2 grid steps (megacore)."""
    for t in (512, 256, 128):
        if L >= 2 * t:
            return t
    return 128


# ----------------------------------------------------------------------------
# The Pallas direct-convolution kernel (transposed GEMM, fused bias/ReLU)
# ----------------------------------------------------------------------------
def _make_conv_kernel(num_inputs, shifts, tile_n, halo, relu, has_bias):
    """Ref order: for each input (main[, halo]), then weight[, bias], then out."""

    def kernel(*refs):
        idx = 0
        rows = []
        for _ in range(num_inputs):
            xm = refs[idx][...]                      # (Ci, tile_n) bf16
            idx += 1
            if halo:
                xh = refs[idx][...]                  # (Ci, halo) bf16
                idx += 1
                xc = jnp.concatenate([xm, xh], axis=1)
            else:
                xc = xm
            for s in shifts:                         # static lane shifts
                rows.append(xc[:, s:s + tile_n])
        w = refs[idx][...]                           # (Cout, K) bf16
        idx += 1
        patch = rows[0] if len(rows) == 1 else jnp.concatenate(rows, axis=0)
        acc = jnp.dot(w, patch, preferred_element_type=jnp.float32)
        if has_bias:
            acc = acc + refs[idx][...]               # (Cout, 1) f32 bias column
        if relu:
            acc = jnp.maximum(acc, 0.0)
        refs[-1][...] = acc.astype(refs[-1].dtype)   # lane-dense (Cout, tile_n)

    return kernel


def conv_direct(xs, w, b, kh, kw, pads, relu=False):
    """Direct stride-1 convolution over a channel-concatenated list of inputs.

    xs   : list of (Ci, N, H, W) arrays (same N/H/W) — treated as one input of
           sum(Ci) channels (RDB/GRDB concats are therefore never materialized).
    w    : (Cout, kh*kw*sum(Ci)) prepared bf16 GEMM weight (see _prep_w).
    b    : optional (Cout, 1) f32 bias column.
    pads : (top, bottom, left, right) zero padding.
    Returns (Cout, N, Ho, Wo) bf16.
    """
    pt, pb, pleft, pr = pads
    _, N, H, W = xs[0].shape
    Hp, Wp = H + pt + pb, W + pleft + pr
    Ho, Wo = Hp - kh + 1, Wp - kw + 1
    L = N * Hp * Wp                                   # pixels in the padded frame

    tile_n = _pick_tile(L)
    grid = pl.cdiv(L, tile_n)
    L_out = grid * tile_n

    # Flat-frame shifts: tap (dy,dx) == lane shift dy*Wp+dx.  Reads for a valid
    # output pixel never cross its own image frame, so one flat layout works.
    shifts = tuple(dy * Wp + dx for dy in range(kh) for dx in range(kw))
    max_shift = shifts[-1]
    halo = 0 if max_shift == 0 else _round_up(max_shift, 128)
    assert halo == 0 or tile_n % halo == 0, "widen tile_n for very wide images"
    L_in = L_out + (tile_n if halo else 0)

    cout, ktot = w.shape
    assert ktot == kh * kw * sum(x.shape[0] for x in xs)

    main_map = lambda j: (0, j)
    const_map = lambda j: (0, 0)
    if halo:
        step = tile_n // halo
        halo_map = lambda j: (0, (j + 1) * step)

    args, in_specs = [], []
    for x in xs:
        ci = x.shape[0]
        xp = jnp.pad(x.astype(jnp.bfloat16),
                     ((0, 0), (0, 0), (pt, pb), (pleft, pr)))
        xf = jnp.pad(xp.reshape(ci, L), ((0, 0), (0, L_in - L)))
        args.append(xf)
        in_specs.append(pl.BlockSpec((ci, tile_n), main_map))
        if halo:
            args.append(xf)                          # same array, halo window
            in_specs.append(pl.BlockSpec((ci, halo), halo_map))
    args.append(w)
    in_specs.append(pl.BlockSpec((cout, ktot), const_map))
    if b is not None:
        args.append(b)
        in_specs.append(pl.BlockSpec((cout, 1), const_map))

    kernel = _make_conv_kernel(len(xs), shifts, tile_n, halo, relu, b is not None)

    out = pl.pallas_call(
        kernel,
        out_shape=jax.ShapeDtypeStruct((cout, L_out), jnp.bfloat16),
        grid=(grid,),
        in_specs=in_specs,
        out_specs=pl.BlockSpec((cout, tile_n), main_map),
        compiler_params=pltpu.CompilerParams(dimension_semantics=("parallel",)),
    )(*args)

    # Drop the invalid frame columns/rows and the lane-padding tail.
    return out[:, :L].reshape(cout, N, Hp, Wp)[:, :, :Ho, :Wo]


# ----------------------------------------------------------------------------
# Stride-2 conv / transposed conv via phase decomposition (all 2x2, stride 1)
# ----------------------------------------------------------------------------
def conv4x4_stride2(x, layer):
    """PyTorch Conv2d(k=4, s=2, p=1) == sum over 4 input phases of 2x2 s1 convs."""
    xp = jnp.pad(x, ((0, 0), (0, 0), (1, 1), (1, 1)))
    phases = [xp[:, :, py::2, px::2] for (py, px) in _PHASES]
    return conv_direct(phases, layer["w"], layer["b"], 2, 2, (0, 0, 0, 0))


def conv_transpose4x4_stride2(x, layer):
    """PyTorch ConvTranspose2d(k=4, s=2, p=1): one 2x2 s1 conv per output phase,
    outputs interleaved (no multiplies against zero-dilation zeros)."""
    C, N, H, W = x.shape
    cout = layer["phase_w"][0].shape[0]
    phs = []
    for i, (py, px) in enumerate(_PHASES):
        pads = ((1, 0) if py == 0 else (0, 1)) + ((1, 0) if px == 0 else (0, 1))
        phs.append(conv_direct([x], layer["phase_w"][i], layer["b"], 2, 2, pads))
    ph = jnp.stack(phs, axis=0).reshape(2, 2, cout, N, H, W)
    return jnp.transpose(ph, (2, 3, 4, 0, 5, 1)).reshape(cout, N, 2 * H, 2 * W)


# ----------------------------------------------------------------------------
# Model sub-blocks (activations are (C, N, H, W) bf16 between kernels)
# ----------------------------------------------------------------------------
def rdb_forward(x, rp):
    feats = [x]
    for w in rp["dense"]:                 # make_dense: 3x3 (bias-free) + ReLU
        y = conv_direct(feats, w, None, 3, 3, (1, 1, 1, 1), relu=True)
        feats.append(y)                   # concat handled inside the kernel
    out = conv_direct(feats, rp["conv1x1"], None, 1, 1, (0, 0, 0, 0))
    return out + x


def grdb_forward(x, gp):
    out, outs = x, []
    for rp in gp["rdbs"]:
        out = rdb_forward(out, rp)
        outs.append(out)
    return x + conv_direct(outs, gp["g1x1_w"], gp["g1x1_b"], 1, 1, (0, 0, 0, 0))


def cbam_forward(x, cp):
    # Channel gate: shared MLP over global avg- and max-pool.  (2x32 GEMMs ->
    # plain XLA; a Pallas call here would be pure launch overhead.)
    xf = x.astype(jnp.float32)
    avg_pool = jnp.mean(xf, axis=(2, 3))              # (C, N)
    max_pool = jnp.max(xf, axis=(2, 3))               # (C, N)

    def mlp(v):
        h = jnp.maximum(cp["fc1_w"] @ v + cp["fc1_b"][:, None], 0.0)
        return cp["fc2_w"] @ h + cp["fc2_b"][:, None]

    ch_gate = jax.nn.sigmoid(mlp(avg_pool) + mlp(max_pool))
    x = x * ch_gate[:, :, None, None].astype(x.dtype)

    # Spatial gate: [max_c, mean_c] -> 7x7 conv (cin=2, cout=1, no bias) ->
    # BN(1) eval default stats -> sigmoid.  Left to XLA (1-channel output).
    xf = x.astype(jnp.float32)
    comp = jnp.stack([jnp.max(xf, axis=0), jnp.mean(xf, axis=0)], axis=1)  # (N,2,H,W)
    sp = jax.lax.conv_general_dilated(
        comp, cp["sp_w"], window_strides=(1, 1), padding=((3, 3), (3, 3)),
        dimension_numbers=("NCHW", "OIHW", "NCHW"))
    # BatchNorm2d(1) in eval mode with default running stats (mean=0, var=1).
    sp = sp * np.float32(1.0 / np.sqrt(1.0 + 1e-5))
    sp_gate = jax.nn.sigmoid(sp)[:, 0]                                      # (N,H,W)
    return x * sp_gate[None].astype(x.dtype)


def forward(params, x_nchw):
    x_in = jnp.transpose(x_nchw, (1, 0, 2, 3)).astype(jnp.float32)  # (C, N, H, W)
    out = conv_direct([x_in], params["layer1"]["w"], params["layer1"]["b"],
                      3, 3, (1, 1, 1, 1))
    out = conv4x4_stride2(out, params["layer3"])
    for gp in params["grdbs"]:                       # t = 1 -> one pass per GRDB
        out = grdb_forward(out, gp)
    out = conv_transpose4x4_stride2(out, params["layer7"])
    out = cbam_forward(out, params["cbam"])
    out = conv_direct([out], params["layer9"]["w"], params["layer9"]["b"],
                      3, 3, (1, 1, 1, 1))
    out = out.astype(jnp.float32) + x_in             # global residual
    return jnp.transpose(out, (1, 0, 2, 3))          # back to NCHW


# ----------------------------------------------------------------------------
# One-time weight re-packing: PyTorch layouts -> kernel GEMM layouts
# ----------------------------------------------------------------------------
def _prep_w(w_pt, split_sizes):
    """(Cout, Cin, kh, kw) -> (Cout, kh*kw*Cin) bf16, rows ordered
    (input-chunk, dy, dx, ci) to match the kernel's in-VMEM patch layout."""
    cout, cin, kh, kw = w_pt.shape
    assert sum(split_sizes) == cin
    chunks, off = [], 0
    for s in split_sizes:
        c = w_pt[:, off:off + s]
        chunks.append(jnp.transpose(c, (0, 2, 3, 1)).reshape(cout, kh * kw * s))
        off += s
    out = chunks[0] if len(chunks) == 1 else jnp.concatenate(chunks, axis=1)
    return out.astype(jnp.bfloat16)


def _prep_b(b):
    return None if b is None else b.reshape(-1, 1).astype(jnp.float32)


def prepare_params(raw):
    F = raw["layer1_w"].shape[0]
    p = {"layer1": {"w": _prep_w(raw["layer1_w"], [raw["layer1_w"].shape[1]]),
                    "b": _prep_b(raw["layer1_b"])}}
    # layer3: 4x4 s2 -> four 2x2 sub-kernels (input phases), fused into one GEMM.
    subs = [raw["layer3_w"][:, :, py::2, px::2] for (py, px) in _PHASES]
    p["layer3"] = {"w": jnp.concatenate([_prep_w(s, [s.shape[1]]) for s in subs], axis=1),
                   "b": _prep_b(raw["layer3_b"])}
    grdbs = []
    for g in raw["grdbs"]:
        rdbs = []
        for r in g["rdbs"]:
            dense = [_prep_w(w, [F] * (j + 1)) for j, w in enumerate(r["dense"])]
            rdbs.append({"dense": dense,
                         "conv1x1": _prep_w(r["conv1x1"], [F] * (len(r["dense"]) + 1))})
        grdbs.append({"rdbs": rdbs,
                      "g1x1_w": _prep_w(g["g1x1_w"], [F] * len(g["rdbs"])),
                      "g1x1_b": _prep_b(g["g1x1_b"])})
    p["grdbs"] = grdbs
    # layer7: ConvTranspose2d weight (Cin, Cout, 4, 4) -> four conv-form 2x2
    # sub-kernels, one per output phase.
    wt = raw["layer7_w"]
    phase_w = []
    for (py, px) in _PHASES:
        ky = (3, 1) if py == 0 else (2, 0)
        kx = (3, 1) if px == 0 else (2, 0)
        sub = jnp.stack([jnp.stack([wt[:, :, ky[d], kx[e]] for e in range(2)], axis=-1)
                         for d in range(2)], axis=-2)          # (Cin, Cout, 2, 2)
        sub = jnp.transpose(sub, (1, 0, 2, 3))                 # (Cout, Cin, 2, 2)
        phase_w.append(_prep_w(sub, [sub.shape[1]]))
    p["layer7"] = {"phase_w": phase_w, "b": _prep_b(raw["layer7_b"])}
    p["cbam"] = {k: raw["cbam"][k].astype(jnp.float32)
                 for k in ("fc1_w", "fc1_b", "fc2_w", "fc2_b", "sp_w")}
    p["layer9"] = {"w": _prep_w(raw["layer9_w"], [F]), "b": _prep_b(raw["layer9_b"])}
    return p


# ----------------------------------------------------------------------------
# Deterministic synthetic parameters (PyTorch layouts, as in the nn.Module)
# ----------------------------------------------------------------------------
class _KeyGen:
    def __init__(self, key):
        self.key = key

    def __call__(self):
        self.key, sub = jax.random.split(self.key)
        return sub


def init_params(key, input_channel, numforrg, numofrdb, numofconv, numoffilters,
                reduction=16):
    kg = _KeyGen(key)

    def conv_w(cout, cin, kh, kw):
        fan_in = cin * kh * kw
        return jax.random.normal(kg(), (cout, cin, kh, kw), jnp.float32) * (0.5 / np.sqrt(fan_in))

    def bias(n):
        return jax.random.normal(kg(), (n,), jnp.float32) * 0.01

    F = numoffilters
    p = {"layer1_w": conv_w(F, input_channel, 3, 3), "layer1_b": bias(F),
         "layer3_w": conv_w(F, F, 4, 4), "layer3_b": bias(F)}
    grdbs = []
    for _ in range(numofrdb // numforrg):
        rdbs = []
        for _ in range(numforrg):
            dense, ch = [], F
            for _ in range(numofconv):
                dense.append(conv_w(F, ch, 3, 3))          # growthRate = numoffilters
                ch += F
            rdbs.append({"dense": dense, "conv1x1": conv_w(F, ch, 1, 1)})
        grdbs.append({"rdbs": rdbs,
                      "g1x1_w": conv_w(F, F * numforrg, 1, 1),
                      "g1x1_b": bias(F)})
    p["grdbs"] = grdbs
    p["layer7_w"] = jax.random.normal(kg(), (F, F, 4, 4), jnp.float32) * (0.5 / np.sqrt(F * 16))
    p["layer7_b"] = bias(F)
    hidden = F // reduction
    p["cbam"] = {
        "fc1_w": jax.random.normal(kg(), (hidden, F), jnp.float32) * (1.0 / np.sqrt(F)),
        "fc1_b": bias(hidden),
        "fc2_w": jax.random.normal(kg(), (F, hidden), jnp.float32) * (1.0 / np.sqrt(hidden)),
        "fc2_b": bias(F),
        "sp_w": conv_w(1, 2, 7, 7),                         # CBAM BasicConv: bias=False
    }
    p["layer9_w"] = conv_w(input_channel, F, 3, 3)
    p["layer9_b"] = bias(input_channel)
    return p


# ----------------------------------------------------------------------------
if __name__ == "__main__":
    input_channel = 4
    numforrg, numofrdb, numofconv, numoffilters = 2, 4, 2, 32   # 2 GRDBs x 2 RDBs x 2 dense convs

    key = jax.random.PRNGKey(0)
    pkey, xkey = jax.random.split(key)
    raw = init_params(pkey, input_channel, numforrg, numofrdb, numofconv, numoffilters)
    params = prepare_params(raw)          # one-time re-pack to kernel layouts

    x = jax.random.normal(xkey, (2, input_channel, 16, 16), jnp.float32)

    fwd = jax.jit(forward)
    y = jax.block_until_ready(fwd(params, x))

    assert y.shape == x.shape, (y.shape, x.shape)
    assert y.dtype == jnp.float32
    assert bool(jnp.all(jnp.isfinite(y)))
    print("KERNEL_OK")
</pallas_src>

<mosaic_0001>
module attributes {stable_mosaic.version = 11 : i64} {
  func.func @kernel(%arg0: i32, %arg1: memref<4x256xbf16, #tpu.memory_space<vmem>>, %arg2: memref<4x128xbf16, #tpu.memory_space<vmem>>, %arg3: memref<32x36xbf16, #tpu.memory_space<vmem>>, %arg4: memref<32x1xf32, #tpu.memory_space<vmem>>, %arg5: memref<32x256xbf16, #tpu.memory_space<vmem>>) attributes {dimension_semantics = [#tpu.dimension_semantics<parallel>], iteration_bounds = array<i64: 3>, scalar_prefetch = 0 : i64, scratch_operands = 0 : i64, tpu.core_type = #tpu.core_type<tc>, window_params = [{transform_indices = @transform_0, window_bounds = array<i64: 4, 256>}, {transform_indices = @transform_1, window_bounds = array<i64: 4, 128>}, {pipeline_mode = #tpu.pipeline_mode<synchronous>, transform_indices = @transform_2, window_bounds = array<i64: 32, 36>}, {pipeline_mode = #tpu.pipeline_mode<synchronous>, transform_indices = @transform_3, window_bounds = array<i64: 32, 1>}, {transform_indices = @transform_4, window_bounds = array<i64: 32, 256>}]} {
    %c0 = arith.constant 0 : index
    %c0_0 = arith.constant 0 : index
    %0 = vector.load %arg1[%c0, %c0_0] : memref<4x256xbf16, #tpu.memory_space<vmem>>, vector<4x256xbf16>
    %c0_1 = arith.constant 0 : index
    %c0_2 = arith.constant 0 : index
    %1 = vector.load %arg2[%c0_1, %c0_2] : memref<4x128xbf16, #tpu.memory_space<vmem>>, vector<4x128xbf16>
    %2 = tpu.concatenate %0, %1 in 1 : vector<4x256xbf16>, vector<4x128xbf16> -> vector<4x384xbf16>
    %3 = vector.extract_strided_slice %2 {offsets = [0, 0], sizes = [4, 256], strides = [1, 1]} : vector<4x384xbf16> to vector<4x256xbf16>
    %4 = vector.extract_strided_slice %2 {offsets = [0, 1], sizes = [4, 256], strides = [1, 1]} : vector<4x384xbf16> to vector<4x256xbf16>
    %5 = vector.extract_strided_slice %2 {offsets = [0, 2], sizes = [4, 256], strides = [1, 1]} : vector<4x384xbf16> to vector<4x256xbf16>
    %6 = vector.extract_strided_slice %2 {offsets = [0, 18], sizes = [4, 256], strides = [1, 1]} : vector<4x384xbf16> to vector<4x256xbf16>
    %7 = vector.extract_strided_slice %2 {offsets = [0, 19], sizes = [4, 256], strides = [1, 1]} : vector<4x384xbf16> to vector<4x256xbf16>
    %8 = vector.extract_strided_slice %2 {offsets = [0, 20], sizes = [4, 256], strides = [1, 1]} : vector<4x384xbf16> to vector<4x256xbf16>
    %9 = vector.extract_strided_slice %2 {offsets = [0, 36], sizes = [4, 256], strides = [1, 1]} : vector<4x384xbf16> to vector<4x256xbf16>
    %10 = vector.extract_strided_slice %2 {offsets = [0, 37], sizes = [4, 256], strides = [1, 1]} : vector<4x384xbf16> to vector<4x256xbf16>
    %11 = vector.extract_strided_slice %2 {offsets = [0, 38], sizes = [4, 256], strides = [1, 1]} : vector<4x384xbf16> to vector<4x256xbf16>
    %c0_3 = arith.constant 0 : index
    %c0_4 = arith.constant 0 : index
    %12 = vector.load %arg3[%c0_3, %c0_4] : memref<32x36xbf16, #tpu.memory_space<vmem>>, vector<32x36xbf16>
    %13 = tpu.concatenate %3, %4, %5, %6, %7, %8, %9, %10, %11 in 0 : vector<4x256xbf16>, vector<4x256xbf16>, vector<4x256xbf16>, vector<4x256xbf16>, vector<4x256xbf16>, vector<4x256xbf16>, vector<4x256xbf16>, vector<4x256xbf16>, vector<4x256xbf16> -> vector<36x256xbf16>
    %cst = arith.constant dense<0.000000e+00> : vector<32x256xf32>
    %14 = tpu.matmul %12, %13, %cst {dimension_numbers = #tpu.dot_dimension_numbers<[1], [0], [0], [1], [0, 0, 1, 1], [], []>} : vector<32x36xbf16>, vector<36x256xbf16>, vector<32x256xf32> -> vector<32x256xf32>
    %c0_5 = arith.constant 0 : index
    %c0_6 = arith.constant 0 : index
    %15 = vector.load %arg4[%c0_5, %c0_6] : memref<32x1xf32, #tpu.memory_space<vmem>>, vector<32x1xf32>
    %16 = vector.broadcast %15 : vector<32x1xf32> to vector<32x256xf32>
    %17 = arith.addf %14, %16 : vector<32x256xf32>
    %18 = arith.truncf %17 : vector<32x256xf32> to vector<32x256xbf16>
    %c0_7 = arith.constant 0 : index
    %c0_8 = arith.constant 0 : index
    %19 = vector.load %arg5[%c0_7, %c0_8] : memref<32x256xbf16, #tpu.memory_space<vmem>>, vector<32x256xbf16>
    tpu.vector_store %arg5[%c0_7, %c0_8], %18 {strides = array<i32>} : memref<32x256xbf16, #tpu.memory_space<vmem>>, vector<32x256xbf16>,
    return
  }
  func.func @transform_0(%arg0: i32) -> (i32, i32) {
    %c0_i32 = arith.constant 0 : i32
    %c0_i32_0 = arith.constant 0 : i32
    return %c0_i32, %arg0 : i32, i32
  }
  func.func @transform_1(%arg0: i32) -> (i32, i32) {
    %c1_i32 = arith.constant 1 : i32
    %0 = arith.addi %arg0, %c1_i32 : i32
    %c2_i32 = arith.constant 2 : i32
    %1 = arith.muli %0, %c2_i32 : i32
    %c0_i32 = arith.constant 0 : i32
    %c0_i32_0 = arith.constant 0 : i32
    return %c0_i32, %1 : i32, i32
  }
  func.func @transform_2(%arg0: i32) -> (i32, i32) {
    %c0_i32 = arith.constant 0 : i32
    %c0_i32_0 = arith.constant 0 : i32
    %c0_i32_1 = arith.constant 0 : i32
    return %c0_i32, %c0_i32_0 : i32, i32
  }
  func.func @transform_3(%arg0: i32) -> (i32, i32) {
    %c0_i32 = arith.constant 0 : i32
    %c0_i32_0 = arith.constant 0 : i32
    %c0_i32_1 = arith.constant 0 : i32
    return %c0_i32, %c0_i32_0 : i32, i32
  }
  func.func @transform_4(%arg0: i32) -> (i32, i32) {
    %c0_i32 = arith.constant 0 : i32
    %c0_i32_0 = arith.constant 0 : i32
    return %c0_i32, %arg0 : i32, i32
  }
}

module attributes {stable_mosaic.version = 11 : i64} {
  func.func @kernel(%arg0: i32, %arg1: memref<32x128xbf16, #tpu.memory_space<vmem>>, %arg2: memref<32x128xbf16, #tpu.memory_space<vmem>>, %arg3: memref<32x128xbf16, #tpu.memory_space<vmem>>, %arg4: memref<32x128xbf16, #tpu.memory_space<vmem>>, %arg5: memref<32x128xbf16, #tpu.memory_space<vmem>>, %arg6: memref<32x128xbf16, #tpu.memory_space<vmem>>, %arg7: memref<32x128xbf16, #tpu.memory_space<vmem>>, %arg8: memref<32x128xbf16, #tpu.memory_space<vmem>>, %arg9: memref<32x512xbf16, #tpu.memory_space<vmem>>, %arg10: memref<32x1xf32, #tpu.memory_space<vmem>>, %arg11: memref<32x128xbf16, #tpu.memory_space<vmem>>) attributes {dimension_semantics = [#tpu.dimension_semantics<parallel>], iteration_bounds = array<i64: 2>, scalar_prefetch = 0 : i64, scratch_operands = 0 : i64, tpu.core_type = #tpu.core_type<tc>, window_params = [{transform_indices = @transform_0, window_bounds = array<i64: 32, 128>}, {transform_indices = @transform_1, window_bounds = array<i64: 32, 128>}, {transform_indices = @transform_2, window_bounds = array<i64: 32, 128>}, {transform_indices = @transform_3, window_bounds = array<i64: 32, 128>}, {transform_indices = @transform_4, window_bounds = array<i64: 32, 128>}, {transform_indices = @transform_5, window_bounds = array<i64: 32, 128>}, {transform_indices = @transform_6, window_bounds = array<i64: 32, 128>}, {transform_indices = @transform_7, window_bounds = array<i64: 32, 128>}, {pipeline_mode = #tpu.pipeline_mode<synchronous>, transform_indices = @transform_8, window_bounds = array<i64: 32, 512>}, {pipeline_mode = #tpu.pipeline_mode<synchronous>, transform_indices = @transform_9, window_bounds = array<i64: 32, 1>}, {transform_indices = @transform_10, window_bounds = array<i64: 32, 128>}]} {
    %c0 = arith.constant 0 : index
    %c0_0 = arith.constant 0 : index
    %0 = vector.load %arg1[%c0, %c0_0] : memref<32x128xbf16, #tpu.memory_space<vmem>>, vector<32x128xbf16>
    %c0_1 = arith.constant 0 : index
    %c0_2 = arith.constant 0 : index
    %1 = vector.load %arg2[%c0_1, %c0_2] : memref<32x128xbf16, #tpu.memory_space<vmem>>, vector<32x128xbf16>
    %2 = tpu.concatenate %0, %1 in 1 : vector<32x128xbf16>, vector<32x128xbf16> -> vector<32x256xbf16>
    %3 = vector.extract_strided_slice %2 {offsets = [0, 0], sizes = [32, 128], strides = [1, 1]} : vector<32x256xbf16> to vector<32x128xbf16>
    %4 = vector.extract_strided_slice %2 {offsets = [0, 1], sizes = [32, 128], strides = [1, 1]} : vector<32x256xbf16> to vector<32x128xbf16>
    %5 = vector.extract_strided_slice %2 {offsets = [0, 9], sizes = [32, 128], strides = [1, 1]} : vector<32x256xbf16> to vector<32x128xbf16>
    %6 = vector.extract_strided_slice %2 {offsets = [0, 10], sizes = [32, 128], strides = [1, 1]} : vector<32x256xbf16> to vector<32x128xbf16>
    %c0_3 = arith.constant 0 : index
    %c0_4 = arith.constant 0 : index
    %7 = vector.load %arg3[%c0_3, %c0_4] : memref<32x128xbf16, #tpu.memory_space<vmem>>, vector<32x128xbf16>
    %c0_5 = arith.constant 0 : index
    %c0_6 = arith.constant 0 : index
    %8 = vector.load %arg4[%c0_5, %c0_6] : memref<32x128xbf16, #tpu.memory_space<vmem>>, vector<32x128xbf16>
    %9 = tpu.concatenate %7, %8 in 1 : vector<32x128xbf16>, vector<32x128xbf16> -> vector<32x256xbf16>
    %10 = vector.extract_strided_slice %9 {offsets = [0, 0], sizes = [32, 128], strides = [1, 1]} : vector<32x256xbf16> to vector<32x128xbf16>
    %11 = vector.extract_strided_slice %9 {offsets = [0, 1], sizes = [32, 128], strides = [1, 1]} : vector<32x256xbf16> to vector<32x128xbf16>
    %12 = vector.extract_strided_slice %9 {offsets = [0, 9], sizes = [32, 128], strides = [1, 1]} : vector<32x256xbf16> to vector<32x128xbf16>
    %13 = vector.extract_strided_slice %9 {offsets = [0, 10], sizes = [32, 128], strides = [1, 1]} : vector<32x256xbf16> to vector<32x128xbf16>
    %c0_7 = arith.constant 0 : index
    %c0_8 = arith.constant 0 : index
    %14 = vector.load %arg5[%c0_7, %c0_8] : memref<32x128xbf16, #tpu.memory_space<vmem>>, vector<32x128xbf16>
    %c0_9 = arith.constant 0 : index
    %c0_10 = arith.constant 0 : index
    %15 = vector.load %arg6[%c0_9, %c0_10] : memref<32x128xbf16, #tpu.memory_space<vmem>>, vector<32x128xbf16>
    %16 = tpu.concatenate %14, %15 in 1 : vector<32x128xbf16>, vector<32x128xbf16> -> vector<32x256xbf16>
    %17 = vector.extract_strided_slice %16 {offsets = [0, 0], sizes = [32, 128], strides = [1, 1]} : vector<32x256xbf16> to vector<32x128xbf16>
    %18 = vector.extract_strided_slice %16 {offsets = [0, 1], sizes = [32, 128], strides = [1, 1]} : vector<32x256xbf16> to vector<32x128xbf16>
    %19 = vector.extract_strided_slice %16 {offsets = [0, 9], sizes = [32, 128], strides = [1, 1]} : vector<32x256xbf16> to vector<32x128xbf16>
    %20 = vector.extract_strided_slice %16 {offsets = [0, 10], sizes = [32, 128], strides = [1, 1]} : vector<32x256xbf16> to vector<32x128xbf16>
    %c0_11 = arith.constant 0 : index
    %c0_12 = arith.constant 0 : index
    %21 = vector.load %arg7[%c0_11, %c0_12] : memref<32x128xbf16, #tpu.memory_space<vmem>>, vector<32x128xbf16>
    %c0_13 = arith.constant 0 : index
    %c0_14 = arith.constant 0 : index
    %22 = vector.load %arg8[%c0_13, %c0_14] : memref<32x128xbf16, #tpu.memory_space<vmem>>, vector<32x128xbf16>
    %23 = tpu.concatenate %21, %22 in 1 : vector<32x128xbf16>, vector<32x128xbf16> -> vector<32x256xbf16>
    %24 = vector.extract_strided_slice %23 {offsets = [0, 0], sizes = [32, 128], strides = [1, 1]} : vector<32x256xbf16> to vector<32x128xbf16>
    %25 = vector.extract_strided_slice %23 {offsets = [0, 1], sizes = [32, 128], strides = [1, 1]} : vector<32x256xbf16> to vector<32x128xbf16>
    %26 = vector.extract_strided_slice %23 {offsets = [0, 9], sizes = [32, 128], strides = [1, 1]} : vector<32x256xbf16> to vector<32x128xbf16>
    %27 = vector.extract_strided_slice %23 {offsets = [0, 10], sizes = [32, 128], strides = [1, 1]} : vector<32x256xbf16> to vector<32x128xbf16>
    %c0_15 = arith.constant 0 : index
    %c0_16 = arith.constant 0 : index
    %28 = vector.load %arg9[%c0_15, %c0_16] : memref<32x512xbf16, #tpu.memory_space<vmem>>, vector<32x512xbf16>
    %29 = tpu.concatenate %3, %4, %5, %6, %10, %11, %12, %13, %17, %18, %19, %20, %24, %25, %26, %27 in 0 : vector<32x128xbf16>, vector<32x128xbf16>, vector<32x128xbf16>, vector<32x128xbf16>, vector<32x128xbf16>, vector<32x128xbf16>, vector<32x128xbf16>, vector<32x128xbf16>, vector<32x128xbf16>, vector<32x128xbf16>, vector<32x128xbf16>, vector<32x128xbf16>, vector<32x128xbf16>, vector<32x128xbf16>, vector<32x128xbf16>, vector<32x128xbf16> -> vector<512x128xbf16>
    %cst = arith.constant dense<0.000000e+00> : vector<32x128xf32>
    %30 = tpu.matmul %28, %29, %cst {dimension_numbers = #tpu.dot_dimension_numbers<[1], [0], [0], [1], [0, 0, 1, 1], [], []>} : vector<32x512xbf16>, vector<512x128xbf16>, vector<32x128xf32> -> vector<32x128xf32>
    %c0_17 = arith.constant 0 : index
    %c0_18 = arith.constant 0 : index
    %31 = vector.load %arg10[%c0_17, %c0_18] : memref<32x1xf32, #tpu.memory_space<vmem>>, vector<32x1xf32>
    %32 = vector.broadcast %31 : vector<32x1xf32> to vector<32x128xf32>
    %33 = arith.addf %30, %32 : vector<32x128xf32>
    %34 = arith.truncf %33 : vector<32x128xf32> to vector<32x128xbf16>
    %c0_19 = arith.constant 0 : index
    %c0_20 = arith.constant 0 : index
    %35 = vector.load %arg11[%c0_19, %c0_20] : memref<32x128xbf16, #tpu.memory_space<vmem>>, vector<32x128xbf16>
    tpu.vector_store %arg11[%c0_19, %c0_20], %34 {strides = array<i32>} : memref<32x128xbf16, #tpu.memory_space<vmem>>, vector<32x128xbf16>,
    return
  }
  func.func @transform_0(%arg0: i32) -> (i32, i32) {
    %c0_i32 = arith.constant 0 : i32
    %c0_i32_0 = arith.constant 0 : i32
    return %c0_i32, %arg0 : i32, i32
  }
  func.func @transform_1(%arg0: i32) -> (i32, i32) {
    %c1_i32 = arith.constant 1 : i32
    %0 = arith.addi %arg0, %c1_i32 : i32
    %c1_i32_0 = arith.constant 1 : i32
    %1 = arith.muli %0, %c1_i32_0 : i32
    %c0_i32 = arith.constant 0 : i32
    %c0_i32_1 = arith.constant 0 : i32
    return %c0_i32, %1 : i32, i32
  }
  func.func @transform_2(%arg0: i32) -> (i32, i32) {
    %c0_i32 = arith.constant 0 : i32
    %c0_i32_0 = arith.constant 0 : i32
    return %c0_i32, %arg0 : i32, i32
  }
  func.func @transform_3(%arg0: i32) -> (i32, i32) {
    %c1_i32 = arith.constant 1 : i32
    %0 = arith.addi %arg0, %c1_i32 : i32
    %c1_i32_0 = arith.constant 1 : i32
    %1 = arith.muli %0, %c1_i32_0 : i32
    %c0_i32 = arith.constant 0 : i32
    %c0_i32_1 = arith.constant 0 : i32
    return %c0_i32, %1 : i32, i32
  }
  func.func @transform_4(%arg0: i32) -> (i32, i32) {
    %c0_i32 = arith.constant 0 : i32
    %c0_i32_0 = arith.constant 0 : i32
    return %c0_i32, %arg0 : i32, i32
  }
  func.func @transform_5(%arg0: i32) -> (i32, i32) {
    %c1_i32 = arith.constant 1 : i32
    %0 = arith.addi %arg0, %c1_i32 : i32
    %c1_i32_0 = arith.constant 1 : i32
    %1 = arith.muli %0, %c1_i32_0 : i32
    %c0_i32 = arith.constant 0 : i32
    %c0_i32_1 = arith.constant 0 : i32
    return %c0_i32, %1 : i32, i32
  }
  func.func @transform_6(%arg0: i32) -> (i32, i32) {
    %c0_i32 = arith.constant 0 : i32
    %c0_i32_0 = arith.constant 0 : i32
    return %c0_i32, %arg0 : i32, i32
  }
  func.func @transform_7(%arg0: i32) -> (i32, i32) {
    %c1_i32 = arith.constant 1 : i32
    %0 = arith.addi %arg0, %c1_i32 : i32
    %c1_i32_0 = arith.constant 1 : i32
    %1 = arith.muli %0, %c1_i32_0 : i32
    %c0_i32 = arith.constant 0 : i32
    %c0_i32_1 = arith.constant 0 : i32
    return %c0_i32, %1 : i32, i32
  }
  func.func @transform_8(%arg0: i32) -> (i32, i32) {
    %c0_i32 = arith.constant 0 : i32
    %c0_i32_0 = arith.constant 0 : i32
    %c0_i32_1 = arith.constant 0 : i32
    return %c0_i32, %c0_i32_0 : i32, i32
  }
  func.func @transform_9(%arg0: i32) -> (i32, i32) {
    %c0_i32 = arith.constant 0 : i32
    %c0_i32_0 = arith.constant 0 : i32
    %c0_i32_1 = arith.constant 0 : i32
    return %c0_i32, %c0_i32_0 : i32, i32
  }
  func.func @transform_10(%arg0: i32) -> (i32, i32) {
    %c0_i32 = arith.constant 0 : i32
    %c0_i32_0 = arith.constant 0 : i32
    return %c0_i32, %arg0 : i32, i32
  }
}

module attributes {stable_mosaic.version = 11 : i64} {
  func.func @kernel(%arg0: i32, %arg1: memref<32x128xbf16, #tpu.memory_space<vmem>>, %arg2: memref<32x128xbf16, #tpu.memory_space<vmem>>, %arg3: memref<32x288xbf16, #tpu.memory_space<vmem>>, %arg4: memref<32x128xbf16, #tpu.memory_space<vmem>>) attributes {dimension_semantics = [#tpu.dimension_semantics<parallel>], iteration_bounds = array<i64: 2>, scalar_prefetch = 0 : i64, scratch_operands = 0 : i64, tpu.core_type = #tpu.core_type<tc>, window_params = [{transform_indices = @transform_0, window_bounds = array<i64: 32, 128>}, {transform_indices = @transform_1, window_bounds = array<i64: 32, 128>}, {pipeline_mode = #tpu.pipeline_mode<synchronous>, transform_indices = @transform_2, window_bounds = array<i64: 32, 288>}, {transform_indices = @transform_3, window_bounds = array<i64: 32, 128>}]} {
    %c0 = arith.constant 0 : index
    %c0_0 = arith.constant 0 : index
    %0 = vector.load %arg1[%c0, %c0_0] : memref<32x128xbf16, #tpu.memory_space<vmem>>, vector<32x128xbf16>
    %c0_1 = arith.constant 0 : index
    %c0_2 = arith.constant 0 : index
    %1 = vector.load %arg2[%c0_1, %c0_2] : memref<32x128xbf16, #tpu.memory_space<vmem>>, vector<32x128xbf16>
    %2 = tpu.concatenate %0, %1 in 1 : vector<32x128xbf16>, vector<32x128xbf16> -> vector<32x256xbf16>
    %3 = vector.extract_strided_slice %2 {offsets = [0, 0], sizes = [32, 128], strides = [1, 1]} : vector<32x256xbf16> to vector<32x128xbf16>
    %4 = vector.extract_strided_slice %2 {offsets = [0, 1], sizes = [32, 128], strides = [1, 1]} : vector<32x256xbf16> to vector<32x128xbf16>
    %5 = vector.extract_strided_slice %2 {offsets = [0, 2], sizes = [32, 128], strides = [1, 1]} : vector<32x256xbf16> to vector<32x128xbf16>
    %6 = vector.extract_strided_slice %2 {offsets = [0, 10], sizes = [32, 128], strides = [1, 1]} : vector<32x256xbf16> to vector<32x128xbf16>
    %7 = vector.extract_strided_slice %2 {offsets = [0, 11], sizes = [32, 128], strides = [1, 1]} : vector<32x256xbf16> to vector<32x128xbf16>
    %8 = vector.extract_strided_slice %2 {offsets = [0, 12], sizes = [32, 128], strides = [1, 1]} : vector<32x256xbf16> to vector<32x128xbf16>
    %9 = vector.extract_strided_slice %2 {offsets = [0, 20], sizes = [32, 128], strides = [1, 1]} : vector<32x256xbf16> to vector<32x128xbf16>
    %10 = vector.extract_strided_slice %2 {offsets = [0, 21], sizes = [32, 128], strides = [1, 1]} : vector<32x256xbf16> to vector<32x128xbf16>
    %11 = vector.extract_strided_slice %2 {offsets = [0, 22], sizes = [32, 128], strides = [1, 1]} : vector<32x256xbf16> to vector<32x128xbf16>
    %c0_3 = arith.constant 0 : index
    %c0_4 = arith.constant 0 : index
    %12 = vector.load %arg3[%c0_3, %c0_4] : memref<32x288xbf16, #tpu.memory_space<vmem>>, vector<32x288xbf16>
    %13 = tpu.concatenate %3, %4, %5, %6, %7, %8, %9, %10, %11 in 0 : vector<32x128xbf16>, vector<32x128xbf16>, vector<32x128xbf16>, vector<32x128xbf16>, vector<32x128xbf16>, vector<32x128xbf16>, vector<32x128xbf16>, vector<32x128xbf16>, vector<32x128xbf16> -> vector<288x128xbf16>
    %cst = arith.constant dense<0.000000e+00> : vector<32x128xf32>
    %14 = tpu.matmul %12, %13, %cst {dimension_numbers = #tpu.dot_dimension_numbers<[1], [0], [0], [1], [0, 0, 1, 1], [], []>} : vector<32x288xbf16>, vector<288x128xbf16>, vector<32x128xf32> -> vector<32x128xf32>
    %cst_5 = arith.constant 0.000000e+00 : f32
    %15 = vector.broadcast %cst_5 : f32 to vector<32x128xf32>
    %16 = arith.maximumf %14, %15 : vector<32x128xf32>
    %17 = arith.truncf %16 : vector<32x128xf32> to vector<32x128xbf16>
    %c0_6 = arith.constant 0 : index
    %c0_7 = arith.constant 0 : index
    %18 = vector.load %arg4[%c0_6, %c0_7] : memref<32x128xbf16, #tpu.memory_space<vmem>>, vector<32x128xbf16>
    tpu.vector_store %arg4[%c0_6, %c0_7], %17 {strides = array<i32>} : memref<32x128xbf16, #tpu.memory_space<vmem>>, vector<32x128xbf16>,
    return
  }
  func.func @transform_0(%arg0: i32) -> (i32, i32) {
    %c0_i32 = arith.constant 0 : i32
    %c0_i32_0 = arith.constant 0 : i32
    return %c0_i32, %arg0 : i32, i32
  }
  func.func @transform_1(%arg0: i32) -> (i32, i32) {
    %c1_i32 = arith.constant 1 : i32
    %0 = arith.addi %arg0, %c1_i32 : i32
    %c1_i32_0 = arith.constant 1 : i32
    %1 = arith.muli %0, %c1_i32_0 : i32
    %c0_i32 = arith.constant 0 : i32
    %c0_i32_1 = arith.constant 0 : i32
    return %c0_i32, %1 : i32, i32
  }
  func.func @transform_2(%arg0: i32) -> (i32, i32) {
    %c0_i32 = arith.constant 0 : i32
    %c0_i32_0 = arith.constant 0 : i32
    %c0_i32_1 = arith.constant 0 : i32
    return %c0_i32, %c0_i32_0 : i32, i32
  }
  func.func @transform_3(%arg0: i32) -> (i32, i32) {
    %c0_i32 = arith.constant 0 : i32
    %c0_i32_0 = arith.constant 0 : i32
    return %c0_i32, %arg0 : i32, i32
  }
}

module attributes {stable_mosaic.version = 11 : i64} {
  func.func @kernel(%arg0: i32, %arg1: memref<32x128xbf16, #tpu.memory_space<vmem>>, %arg2: memref<32x128xbf16, #tpu.memory_space<vmem>>, %arg3: memref<32x128xbf16, #tpu.memory_space<vmem>>, %arg4: memref<32x128xbf16, #tpu.memory_space<vmem>>, %arg5: memref<32x576xbf16, #tpu.memory_space<vmem>>, %arg6: memref<32x128xbf16, #tpu.memory_space<vmem>>) attributes {dimension_semantics = [#tpu.dimension_semantics<parallel>], iteration_bounds = array<i64: 2>, scalar_prefetch = 0 : i64, scratch_operands = 0 : i64, tpu.core_type = #tpu.core_type<tc>, window_params = [{transform_indices = @transform_0, window_bounds = array<i64: 32, 128>}, {transform_indices = @transform_1, window_bounds = array<i64: 32, 128>}, {transform_indices = @transform_2, window_bounds = array<i64: 32, 128>}, {transform_indices = @transform_3, window_bounds = array<i64: 32, 128>}, {pipeline_mode = #tpu.pipeline_mode<synchronous>, transform_indices = @transform_4, window_bounds = array<i64: 32, 576>}, {transform_indices = @transform_5, window_bounds = array<i64: 32, 128>}]} {
    %c0 = arith.constant 0 : index
    %c0_0 = arith.constant 0 : index
    %0 = vector.load %arg1[%c0, %c0_0] : memref<32x128xbf16, #tpu.memory_space<vmem>>, vector<32x128xbf16>
    %c0_1 = arith.constant 0 : index
    %c0_2 = arith.constant 0 : index
    %1 = vector.load %arg2[%c0_1, %c0_2] : memref<32x128xbf16, #tpu.memory_space<vmem>>, vector<32x128xbf16>
    %2 = tpu.concatenate %0, %1 in 1 : vector<32x128xbf16>, vector<32x128xbf16> -> vector<32x256xbf16>
    %3 = vector.extract_strided_slice %2 {offsets = [0, 0], sizes = [32, 128], strides = [1, 1]} : vector<32x256xbf16> to vector<32x128xbf16>
    %4 = vector.extract_strided_slice %2 {offsets = [0, 1], sizes = [32, 128], strides = [1, 1]} : vector<32x256xbf16> to vector<32x128xbf16>
    %5 = vector.extract_strided_slice %2 {offsets = [0, 2], sizes = [32, 128], strides = [1, 1]} : vector<32x256xbf16> to vector<32x128xbf16>
    %6 = vector.extract_strided_slice %2 {offsets = [0, 10], sizes = [32, 128], strides = [1, 1]} : vector<32x256xbf16> to vector<32x128xbf16>
    %7 = vector.extract_strided_slice %2 {offsets = [0, 11], sizes = [32, 128], strides = [1, 1]} : vector<32x256xbf16> to vector<32x128xbf16>
    %8 = vector.extract_strided_slice %2 {offsets = [0, 12], sizes = [32, 128], strides = [1, 1]} : vector<32x256xbf16> to vector<32x128xbf16>
    %9 = vector.extract_strided_slice %2 {offsets = [0, 20], sizes = [32, 128], strides = [1, 1]} : vector<32x256xbf16> to vector<32x128xbf16>
    %10 = vector.extract_strided_slice %2 {offsets = [0, 21], sizes = [32, 128], strides = [1, 1]} : vector<32x256xbf16> to vector<32x128xbf16>
    %11 = vector.extract_strided_slice %2 {offsets = [0, 22], sizes = [32, 128], strides = [1, 1]} : vector<32x256xbf16> to vector<32x128xbf16>
    %c0_3 = arith.constant 0 : index
    %c0_4 = arith.constant 0 : index
    %12 = vector.load %arg3[%c0_3, %c0_4] : memref<32x128xbf16, #tpu.memory_space<vmem>>, vector<32x128xbf16>
    %c0_5 = arith.constant 0 : index
    %c0_6 = arith.constant 0 : index
    %13 = vector.load %arg4[%c0_5, %c0_6] : memref<32x128xbf16, #tpu.memory_space<vmem>>, vector<32x128xbf16>
    %14 = tpu.concatenate %12, %13 in 1 : vector<32x128xbf16>, vector<32x128xbf16> -> vector<32x256xbf16>
    %15 = vector.extract_strided_slice %14 {offsets = [0, 0], sizes = [32, 128], strides = [1, 1]} : vector<32x256xbf16> to vector<32x128xbf16>
    %16 = vector.extract_strided_slice %14 {offsets = [0, 1], sizes = [32, 128], strides = [1, 1]} : vector<32x256xbf16> to vector<32x128xbf16>
    %17 = vector.extract_strided_slice %14 {offsets = [0, 2], sizes = [32, 128], strides = [1, 1]} : vector<32x256xbf16> to vector<32x128xbf16>
    %18 = vector.extract_strided_slice %14 {offsets = [0, 10], sizes = [32, 128], strides = [1, 1]} : vector<32x256xbf16> to vector<32x128xbf16>
    %19 = vector.extract_strided_slice %14 {offsets = [0, 11], sizes = [32, 128], strides = [1, 1]} : vector<32x256xbf16> to vector<32x128xbf16>
    %20 = vector.extract_strided_slice %14 {offsets = [0, 12], sizes = [32, 128], strides = [1, 1]} : vector<32x256xbf16> to vector<32x128xbf16>
    %21 = vector.extract_strided_slice %14 {offsets = [0, 20], sizes = [32, 128], strides = [1, 1]} : vector<32x256xbf16> to vector<32x128xbf16>
    %22 = vector.extract_strided_slice %14 {offsets = [0, 21], sizes = [32, 128], strides = [1, 1]} : vector<32x256xbf16> to vector<32x128xbf16>
    %23 = vector.extract_strided_slice %14 {offsets = [0, 22], sizes = [32, 128], strides = [1, 1]} : vector<32x256xbf16> to vector<32x128xbf16>
    %c0_7 = arith.constant 0 : index
    %c0_8 = arith.constant 0 : index
    %24 = vector.load %arg5[%c0_7, %c0_8] : memref<32x576xbf16, #tpu.memory_space<vmem>>, vector<32x576xbf16>
    %25 = tpu.concatenate %3, %4, %5, %6, %7, %8, %9, %10, %11, %15, %16, %17, %18, %19, %20, %21 in 0 : vector<32x128xbf16>, vector<32x128xbf16>, vector<32x128xbf16>, vector<32x128xbf16>, vector<32x128xbf16>, vector<32x128xbf16>, vector<32x128xbf16>, vector<32x128xbf16>, vector<32x128xbf16>, vector<32x128xbf16>, vector<32x128xbf16>, vector<32x128xbf16>, vector<32x128xbf16>, vector<32x128xbf16>, vector<32x128xbf16>, vector<32x128xbf16> -> vector<512x128xbf16>
    %26 = tpu.concatenate %22, %23 in 0 : vector<32x128xbf16>, vector<32x128xbf16> -> vector<64x128xbf16>
    %27 = tpu.concatenate %25, %26 in 0 : vector<512x128xbf16>, vector<64x128xbf16> -> vector<576x128xbf16>
    %cst = arith.constant dense<0.000000e+00> : vector<32x128xf32>
    %28 = tpu.matmul %24, %27, %cst {dimension_numbers = #tpu.dot_dimension_numbers<[1], [0], [0], [1], [0, 0, 1, 1], [], []>} : vector<32x576xbf16>, vector<576x128xbf16>, vector<32x128xf32> -> vector<32x128xf32>
    %cst_9 = arith.constant 0.000000e+00 : f32
    %29 = vector.broadcast %cst_9 : f32 to vector<32x128xf32>
    %30 = arith.maximumf %28, %29 : vector<32x128xf32>
    %31 = arith.truncf %30 : vector<32x128xf32> to vector<32x128xbf16>
    %c0_10 = arith.constant 0 : index
    %c0_11 = arith.constant 0 : index
    %32 = vector.load %arg6[%c0_10, %c0_11] : memref<32x128xbf16, #tpu.memory_space<vmem>>, vector<32x128xbf16>
    tpu.vector_store %arg6[%c0_10, %c0_11], %31 {strides = array<i32>} : memref<32x128xbf16, #tpu.memory_space<vmem>>, vector<32x128xbf16>,
    return
  }
  func.func @transform_0(%arg0: i32) -> (i32, i32) {
    %c0_i32 = arith.constant 0 : i32
    %c0_i32_0 = arith.constant 0 : i32
    return %c0_i32, %arg0 : i32, i32
  }
  func.func @transform_1(%arg0: i32) -> (i32, i32) {
    %c1_i32 = arith.constant 1 : i32
    %0 = arith.addi %arg0, %c1_i32 : i32
    %c1_i32_0 = arith.constant 1 : i32
    %1 = arith.muli %0, %c1_i32_0 : i32
    %c0_i32 = arith.constant 0 : i32
    %c0_i32_1 = arith.constant 0 : i32
    return %c0_i32, %1 : i32, i32
  }
  func.func @transform_2(%arg0: i32) -> (i32, i32) {
    %c0_i32 = arith.constant 0 : i32
    %c0_i32_0 = arith.constant 0 : i32
    return %c0_i32, %arg0 : i32, i32
  }
  func.func @transform_3(%arg0: i32) -> (i32, i32) {
    %c1_i32 = arith.constant 1 : i32
    %0 = arith.addi %arg0, %c1_i32 : i32
    %c1_i32_0 = arith.constant 1 : i32
    %1 = arith.muli %0, %c1_i32_0 : i32
    %c0_i32 = arith.constant 0 : i32
    %c0_i32_1 = arith.constant 0 : i32
    return %c0_i32, %1 : i32, i32
  }
  func.func @transform_4(%arg0: i32) -> (i32, i32) {
    %c0_i32 = arith.constant 0 : i32
    %c0_i32_0 = arith.constant 0 : i32
    %c0_i32_1 = arith.constant 0 : i32
    return %c0_i32, %c0_i32_0 : i32, i32
  }
  func.func @transform_5(%arg0: i32) -> (i32, i32) {
    %c0_i32 = arith.constant 0 : i32
    %c0_i32_0 = arith.constant 0 : i32
    return %c0_i32, %arg0 : i32, i32
  }
}

module attributes {stable_mosaic.version = 11 : i64} {
  func.func @kernel(%arg0: i32, %arg1: memref<32x128xbf16, #tpu.memory_space<vmem>>, %arg2: memref<32x128xbf16, #tpu.memory_space<vmem>>, %arg3: memref<32x128xbf16, #tpu.memory_space<vmem>>, %arg4: memref<32x96xbf16, #tpu.memory_space<vmem>>, %arg5: memref<32x128xbf16, #tpu.memory_space<vmem>>) attributes {dimension_semantics = [#tpu.dimension_semantics<parallel>], iteration_bounds = array<i64: 1>, scalar_prefetch = 0 : i64, scratch_operands = 0 : i64, tpu.core_type = #tpu.core_type<tc>, window_params = [{transform_indices = @transform_0, window_bounds = array<i64: 32, 128>}, {transform_indices = @transform_1, window_bounds = array<i64: 32, 128>}, {transform_indices = @transform_2, window_bounds = array<i64: 32, 128>}, {pipeline_mode = #tpu.pipeline_mode<synchronous>, transform_indices = @transform_3, window_bounds = array<i64: 32, 96>}, {transform_indices = @transform_4, window_bounds = array<i64: 32, 128>}]} {
    %c0 = arith.constant 0 : index
    %c0_0 = arith.constant 0 : index
    %0 = vector.load %arg1[%c0, %c0_0] : memref<32x128xbf16, #tpu.memory_space<vmem>>, vector<32x128xbf16>
    %c0_1 = arith.constant 0 : index
    %c0_2 = arith.constant 0 : index
    %1 = vector.load %arg2[%c0_1, %c0_2] : memref<32x128xbf16, #tpu.memory_space<vmem>>, vector<32x128xbf16>
    %c0_3 = arith.constant 0 : index
    %c0_4 = arith.constant 0 : index
    %2 = vector.load %arg3[%c0_3, %c0_4] : memref<32x128xbf16, #tpu.memory_space<vmem>>, vector<32x128xbf16>
    %c0_5 = arith.constant 0 : index
    %c0_6 = arith.constant 0 : index
    %3 = vector.load %arg4[%c0_5, %c0_6] : memref<32x96xbf16, #tpu.memory_space<vmem>>, vector<32x96xbf16>
    %4 = tpu.concatenate %0, %1, %2 in 0 : vector<32x128xbf16>, vector<32x128xbf16>, vector<32x128xbf16> -> vector<96x128xbf16>
    %cst = arith.constant dense<0.000000e+00> : vector<32x128xf32>
    %5 = tpu.matmul %3, %4, %cst {dimension_numbers = #tpu.dot_dimension_numbers<[1], [0], [0], [1], [0, 0, 1, 1], [], []>} : vector<32x96xbf16>, vector<96x128xbf16>, vector<32x128xf32> -> vector<32x128xf32>
    %6 = arith.truncf %5 : vector<32x128xf32> to vector<32x128xbf16>
    %c0_7 = arith.constant 0 : index
    %c0_8 = arith.constant 0 : index
    %7 = vector.load %arg5[%c0_7, %c0_8] : memref<32x128xbf16, #tpu.memory_space<vmem>>, vector<32x128xbf16>
    tpu.vector_store %arg5[%c0_7, %c0_8], %6 {strides = array<i32>} : memref<32x128xbf16, #tpu.memory_space<vmem>>, vector<32x128xbf16>,
    return
  }
  func.func @transform_0(%arg0: i32) -> (i32, i32) {
    %c0_i32 = arith.constant 0 : i32
    %c0_i32_0 = arith.constant 0 : i32
    return %c0_i32, %arg0 : i32, i32
  }
  func.func @transform_1(%arg0: i32) -> (i32, i32) {
    %c0_i32 = arith.constant 0 : i32
    %c0_i32_0 = arith.constant 0 : i32
    return %c0_i32, %arg0 : i32, i32
  }
  func.func @transform_2(%arg0: i32) -> (i32, i32) {
    %c0_i32 = arith.constant 0 : i32
    %c0_i32_0 = arith.constant 0 : i32
    return %c0_i32, %arg0 : i32, i32
  }
  func.func @transform_3(%arg0: i32) -> (i32, i32) {
    %c0_i32 = arith.constant 0 : i32
    %c0_i32_0 = arith.constant 0 : i32
    %c0_i32_1 = arith.constant 0 : i32
    return %c0_i32, %c0_i32_0 : i32, i32
  }
  func.func @transform_4(%arg0: i32) -> (i32, i32) {
    %c0_i32 = arith.constant 0 : i32
    %c0_i32_0 = arith.constant 0 : i32
    return %c0_i32, %arg0 : i32, i32
  }
}

module attributes {stable_mosaic.version = 11 : i64} {
  func.func @kernel(%arg0: i32, %arg1: memref<32x128xbf16, #tpu.memory_space<vmem>>, %arg2: memref<32x128xbf16, #tpu.memory_space<vmem>>, %arg3: memref<32x64xbf16, #tpu.memory_space<vmem>>, %arg4: memref<32x1xf32, #tpu.memory_space<vmem>>, %arg5: memref<32x128xbf16, #tpu.memory_space<vmem>>) attributes {dimension_semantics = [#tpu.dimension_semantics<parallel>], iteration_bounds = array<i64: 1>, scalar_prefetch = 0 : i64, scratch_operands = 0 : i64, tpu.core_type = #tpu.core_type<tc>, window_params = [{transform_indices = @transform_0, window_bounds = array<i64: 32, 128>}, {transform_indices = @transform_1, window_bounds = array<i64: 32, 128>}, {pipeline_mode = #tpu.pipeline_mode<synchronous>, transform_indices = @transform_2, window_bounds = array<i64: 32, 64>}, {pipeline_mode = #tpu.pipeline_mode<synchronous>, transform_indices = @transform_3, window_bounds = array<i64: 32, 1>}, {transform_indices = @transform_4, window_bounds = array<i64: 32, 128>}]} {
    %c0 = arith.constant 0 : index
    %c0_0 = arith.constant 0 : index
    %0 = vector.load %arg1[%c0, %c0_0] : memref<32x128xbf16, #tpu.memory_space<vmem>>, vector<32x128xbf16>
    %c0_1 = arith.constant 0 : index
    %c0_2 = arith.constant 0 : index
    %1 = vector.load %arg2[%c0_1, %c0_2] : memref<32x128xbf16, #tpu.memory_space<vmem>>, vector<32x128xbf16>
    %c0_3 = arith.constant 0 : index
    %c0_4 = arith.constant 0 : index
    %2 = vector.load %arg3[%c0_3, %c0_4] : memref<32x64xbf16, #tpu.memory_space<vmem>>, vector<32x64xbf16>
    %3 = tpu.concatenate %0, %1 in 0 : vector<32x128xbf16>, vector<32x128xbf16> -> vector<64x128xbf16>
    %cst = arith.constant dense<0.000000e+00> : vector<32x128xf32>
    %4 = tpu.matmul %2, %3, %cst {dimension_numbers = #tpu.dot_dimension_numbers<[1], [0], [0], [1], [0, 0, 1, 1], [], []>} : vector<32x64xbf16>, vector<64x128xbf16>, vector<32x128xf32> -> vector<32x128xf32>
    %c0_5 = arith.constant 0 : index
    %c0_6 = arith.constant 0 : index
    %5 = vector.load %arg4[%c0_5, %c0_6] : memref<32x1xf32, #tpu.memory_space<vmem>>, vector<32x1xf32>
    %6 = vector.broadcast %5 : vector<32x1xf32> to vector<32x128xf32>
    %7 = arith.addf %4, %6 : vector<32x128xf32>
    %8 = arith.truncf %7 : vector<32x128xf32> to vector<32x128xbf16>
    %c0_7 = arith.constant 0 : index
    %c0_8 = arith.constant 0 : index
    %9 = vector.load %arg5[%c0_7, %c0_8] : memref<32x128xbf16, #tpu.memory_space<vmem>>, vector<32x128xbf16>
    tpu.vector_store %arg5[%c0_7, %c0_8], %8 {strides = array<i32>} : memref<32x128xbf16, #tpu.memory_space<vmem>>, vector<32x128xbf16>,
    return
  }
  func.func @transform_0(%arg0: i32) -> (i32, i32) {
    %c0_i32 = arith.constant 0 : i32
    %c0_i32_0 = arith.constant 0 : i32
    return %c0_i32, %arg0 : i32, i32
  }
  func.func @transform_1(%arg0: i32) -> (i32, i32) {
    %c0_i32 = arith.constant 0 : i32
    %c0_i32_0 = arith.constant 0 : i32
    return %c0_i32, %arg0 : i32, i32
  }
  func.func @transform_2(%arg0: i32) -> (i32, i32) {
    %c0_i32 = arith.constant 0 : i32
    %c0_i32_0 = arith.constant 0 : i32
    %c0_i32_1 = arith.constant 0 : i32
    return %c0_i32, %c0_i32_0 : i32, i32
  }
  func.func @transform_3(%arg0: i32) -> (i32, i32) {
    %c0_i32 = arith.constant 0 : i32
    %c0_i32_0 = arith.constant 0 : i32
    %c0_i32_1 = arith.constant 0 : i32
    return %c0_i32, %c0_i32_0 : i32, i32
  }
  func.func @transform_4(%arg0: i32) -> (i32, i32) {
    %c0_i32 = arith.constant 0 : i32
    %c0_i32_0 = arith.constant 0 : i32
    return %c0_i32, %arg0 : i32, i32
  }
}

module attributes {stable_mosaic.version = 11 : i64} {
  func.func @kernel(%arg0: i32, %arg1: memref<32x128xbf16, #tpu.memory_space<vmem>>, %arg2: memref<32x128xbf16, #tpu.memory_space<vmem>>, %arg3: memref<32x128xbf16, #tpu.memory_space<vmem>>, %arg4: memref<32x1xf32, #tpu.memory_space<vmem>>, %arg5: memref<32x128xbf16, #tpu.memory_space<vmem>>) attributes {dimension_semantics = [#tpu.dimension_semantics<parallel>], iteration_bounds = array<i64: 2>, scalar_prefetch = 0 : i64, scratch_operands = 0 : i64, tpu.core_type = #tpu.core_type<tc>, window_params = [{transform_indices = @transform_0, window_bounds = array<i64: 32, 128>}, {transform_indices = @transform_1, window_bounds = array<i64: 32, 128>}, {pipeline_mode = #tpu.pipeline_mode<synchronous>, transform_indices = @transform_2, window_bounds = array<i64: 32, 128>}, {pipeline_mode = #tpu.pipeline_mode<synchronous>, transform_indices = @transform_3, window_bounds = array<i64: 32, 1>}, {transform_indices = @transform_4, window_bounds = array<i64: 32, 128>}]} {
    %c0 = arith.constant 0 : index
    %c0_0 = arith.constant 0 : index
    %0 = vector.load %arg1[%c0, %c0_0] : memref<32x128xbf16, #tpu.memory_space<vmem>>, vector<32x128xbf16>
    %c0_1 = arith.constant 0 : index
    %c0_2 = arith.constant 0 : index
    %1 = vector.load %arg2[%c0_1, %c0_2] : memref<32x128xbf16, #tpu.memory_space<vmem>>, vector<32x128xbf16>
    %2 = tpu.concatenate %0, %1 in 1 : vector<32x128xbf16>, vector<32x128xbf16> -> vector<32x256xbf16>
    %3 = vector.extract_strided_slice %2 {offsets = [0, 0], sizes = [32, 128], strides = [1, 1]} : vector<32x256xbf16> to vector<32x128xbf16>
    %4 = vector.extract_strided_slice %2 {offsets = [0, 1], sizes = [32, 128], strides = [1, 1]} : vector<32x256xbf16> to vector<32x128xbf16>
    %5 = vector.extract_strided_slice %2 {offsets = [0, 9], sizes = [32, 128], strides = [1, 1]} : vector<32x256xbf16> to vector<32x128xbf16>
    %6 = vector.extract_strided_slice %2 {offsets = [0, 10], sizes = [32, 128], strides = [1, 1]} : vector<32x256xbf16> to vector<32x128xbf16>
    %c0_3 = arith.constant 0 : index
    %c0_4 = arith.constant 0 : index
    %7 = vector.load %arg3[%c0_3, %c0_4] : memref<32x128xbf16, #tpu.memory_space<vmem>>, vector<32x128xbf16>
    %8 = tpu.concatenate %3, %4, %5, %6 in 0 : vector<32x128xbf16>, vector<32x128xbf16>, vector<32x128xbf16>, vector<32x128xbf16> -> vector<128x128xbf16>
    %cst = arith.constant dense<0.000000e+00> : vector<32x128xf32>
    %9 = tpu.matmul %7, %8, %cst {dimension_numbers = #tpu.dot_dimension_numbers<[1], [0], [0], [1], [0, 0, 1, 1], [], []>} : vector<32x128xbf16>, vector<128x128xbf16>, vector<32x128xf32> -> vector<32x128xf32>
    %c0_5 = arith.constant 0 : index
    %c0_6 = arith.constant 0 : index
    %10 = vector.load %arg4[%c0_5, %c0_6] : memref<32x1xf32, #tpu.memory_space<vmem>>, vector<32x1xf32>
    %11 = vector.broadcast %10 : vector<32x1xf32> to vector<32x128xf32>
    %12 = arith.addf %9, %11 : vector<32x128xf32>
    %13 = arith.truncf %12 : vector<32x128xf32> to vector<32x128xbf16>
    %c0_7 = arith.constant 0 : index
    %c0_8 = arith.constant 0 : index
    %14 = vector.load %arg5[%c0_7, %c0_8] : memref<32x128xbf16, #tpu.memory_space<vmem>>, vector<32x128xbf16>
    tpu.vector_store %arg5[%c0_7, %c0_8], %13 {strides = array<i32>} : memref<32x128xbf16, #tpu.memory_space<vmem>>, vector<32x128xbf16>,
    return
  }
  func.func @transform_0(%arg0: i32) -> (i32, i32) {
    %c0_i32 = arith.constant 0 : i32
    %c0_i32_0 = arith.constant 0 : i32
    return %c0_i32, %arg0 : i32, i32
  }
  func.func @transform_1(%arg0: i32) -> (i32, i32) {
    %c1_i32 = arith.constant 1 : i32
    %0 = arith.addi %arg0, %c1_i32 : i32
    %c1_i32_0 = arith.constant 1 : i32
    %1 = arith.muli %0, %c1_i32_0 : i32
    %c0_i32 = arith.constant 0 : i32
    %c0_i32_1 = arith.constant 0 : i32
    return %c0_i32, %1 : i32, i32
  }
  func.func @transform_2(%arg0: i32) -> (i32, i32) {
    %c0_i32 = arith.constant 0 : i32
    %c0_i32_0 = arith.constant 0 : i32
    %c0_i32_1 = arith.constant 0 : i32
    return %c0_i32, %c0_i32_0 : i32, i32
  }
  func.func @transform_3(%arg0: i32) -> (i32, i32) {
    %c0_i32 = arith.constant 0 : i32
    %c0_i32_0 = arith.constant 0 : i32
    %c0_i32_1 = arith.constant 0 : i32
    return %c0_i32, %c0_i32_0 : i32, i32
  }
  func.func @transform_4(%arg0: i32) -> (i32, i32) {
    %c0_i32 = arith.constant 0 : i32
    %c0_i32_0 = arith.constant 0 : i32
    return %c0_i32, %arg0 : i32, i32
  }
}

module attributes {stable_mosaic.version = 11 : i64} {
  func.func @kernel(%arg0: i32, %arg1: memref<32x256xbf16, #tpu.memory_space<vmem>>, %arg2: memref<32x128xbf16, #tpu.memory_space<vmem>>, %arg3: memref<4x288xbf16, #tpu.memory_space<vmem>>, %arg4: memref<4x1xf32, #tpu.memory_space<vmem>>, %arg5: memref<4x256xbf16, #tpu.memory_space<vmem>>) attributes {dimension_semantics = [#tpu.dimension_semantics<parallel>], iteration_bounds = array<i64: 3>, scalar_prefetch = 0 : i64, scratch_operands = 0 : i64, tpu.core_type = #tpu.core_type<tc>, window_params = [{transform_indices = @transform_0, window_bounds = array<i64: 32, 256>}, {transform_indices = @transform_1, window_bounds = array<i64: 32, 128>}, {pipeline_mode = #tpu.pipeline_mode<synchronous>, transform_indices = @transform_2, window_bounds = array<i64: 4, 288>}, {pipeline_mode = #tpu.pipeline_mode<synchronous>, transform_indices = @transform_3, window_bounds = array<i64: 4, 1>}, {transform_indices = @transform_4, window_bounds = array<i64: 4, 256>}]} {
    %c0 = arith.constant 0 : index
    %c0_0 = arith.constant 0 : index
    %0 = vector.load %arg1[%c0, %c0_0] : memref<32x256xbf16, #tpu.memory_space<vmem>>, vector<32x256xbf16>
    %c0_1 = arith.constant 0 : index
    %c0_2 = arith.constant 0 : index
    %1 = vector.load %arg2[%c0_1, %c0_2] : memref<32x128xbf16, #tpu.memory_space<vmem>>, vector<32x128xbf16>
    %2 = tpu.concatenate %0, %1 in 1 : vector<32x256xbf16>, vector<32x128xbf16> -> vector<32x384xbf16>
    %3 = vector.extract_strided_slice %2 {offsets = [0, 0], sizes = [32, 256], strides = [1, 1]} : vector<32x384xbf16> to vector<32x256xbf16>
    %4 = vector.extract_strided_slice %2 {offsets = [0, 1], sizes = [32, 256], strides = [1, 1]} : vector<32x384xbf16> to vector<32x256xbf16>
    %5 = vector.extract_strided_slice %2 {offsets = [0, 2], sizes = [32, 256], strides = [1, 1]} : vector<32x384xbf16> to vector<32x256xbf16>
    %6 = vector.extract_strided_slice %2 {offsets = [0, 18], sizes = [32, 256], strides = [1, 1]} : vector<32x384xbf16> to vector<32x256xbf16>
    %7 = vector.extract_strided_slice %2 {offsets = [0, 19], sizes = [32, 256], strides = [1, 1]} : vector<32x384xbf16> to vector<32x256xbf16>
    %8 = vector.extract_strided_slice %2 {offsets = [0, 20], sizes = [32, 256], strides = [1, 1]} : vector<32x384xbf16> to vector<32x256xbf16>
    %9 = vector.extract_strided_slice %2 {offsets = [0, 36], sizes = [32, 256], strides = [1, 1]} : vector<32x384xbf16> to vector<32x256xbf16>
    %10 = vector.extract_strided_slice %2 {offsets = [0, 37], sizes = [32, 256], strides = [1, 1]} : vector<32x384xbf16> to vector<32x256xbf16>
    %11 = vector.extract_strided_slice %2 {offsets = [0, 38], sizes = [32, 256], strides = [1, 1]} : vector<32x384xbf16> to vector<32x256xbf16>
    %c0_3 = arith.constant 0 : index
    %c0_4 = arith.constant 0 : index
    %12 = vector.load %arg3[%c0_3, %c0_4] : memref<4x288xbf16, #tpu.memory_space<vmem>>, vector<4x288xbf16>
    %13 = tpu.concatenate %3, %4, %5, %6, %7, %8, %9, %10, %11 in 0 : vector<32x256xbf16>, vector<32x256xbf16>, vector<32x256xbf16>, vector<32x256xbf16>, vector<32x256xbf16>, vector<32x256xbf16>, vector<32x256xbf16>, vector<32x256xbf16>, vector<32x256xbf16> -> vector<288x256xbf16>
    %cst = arith.constant dense<0.000000e+00> : vector<4x256xf32>
    %14 = tpu.matmul %12, %13, %cst {dimension_numbers = #tpu.dot_dimension_numbers<[1], [0], [0], [1], [0, 0, 1, 1], [], []>} : vector<4x288xbf16>, vector<288x256xbf16>, vector<4x256xf32> -> vector<4x256xf32>
    %c0_5 = arith.constant 0 : index
    %c0_6 = arith.constant 0 : index
    %15 = vector.load %arg4[%c0_5, %c0_6] : memref<4x1xf32, #tpu.memory_space<vmem>>, vector<4x1xf32>
    %16 = vector.broadcast %15 : vector<4x1xf32> to vector<4x256xf32>
    %17 = arith.addf %14, %16 : vector<4x256xf32>
    %18 = arith.truncf %17 : vector<4x256xf32> to vector<4x256xbf16>
    %c0_7 = arith.constant 0 : index
    %c0_8 = arith.constant 0 : index
    %19 = vector.load %arg5[%c0_7, %c0_8] : memref<4x256xbf16, #tpu.memory_space<vmem>>, vector<4x256xbf16>
    tpu.vector_store %arg5[%c0_7, %c0_8], %18 {strides = array<i32>} : memref<4x256xbf16, #tpu.memory_space<vmem>>, vector<4x256xbf16>,
    return
  }
  func.func @transform_0(%arg0: i32) -> (i32, i32) {
    %c0_i32 = arith.constant 0 : i32
    %c0_i32_0 = arith.constant 0 : i32
    return %c0_i32, %arg0 : i32, i32
  }
  func.func @transform_1(%arg0: i32) -> (i32, i32) {
    %c1_i32 = arith.constant 1 : i32
    %0 = arith.addi %arg0, %c1_i32 : i32
    %c2_i32 = arith.constant 2 : i32
    %1 = arith.muli %0, %c2_i32 : i32
    %c0_i32 = arith.constant 0 : i32
    %c0_i32_0 = arith.constant 0 : i32
    return %c0_i32, %1 : i32, i32
  }
  func.func @transform_2(%arg0: i32) -> (i32, i32) {
    %c0_i32 = arith.constant 0 : i32
    %c0_i32_0 = arith.constant 0 : i32
    %c0_i32_1 = arith.constant 0 : i32
    return %c0_i32, %c0_i32_0 : i32, i32
  }
  func.func @transform_3(%arg0: i32) -> (i32, i32) {
    %c0_i32 = arith.constant 0 : i32
    %c0_i32_0 = arith.constant 0 : i32
    %c0_i32_1 = arith.constant 0 : i32
    return %c0_i32, %c0_i32_0 : i32, i32
  }
  func.func @transform_4(%arg0: i32) -> (i32, i32) {
    %c0_i32 = arith.constant 0 : i32
    %c0_i32_0 = arith.constant 0 : i32
    return %c0_i32, %arg0 : i32, i32
  }
}

</mosaic_0001>

<llo_original>
// kernel: forward.21
$region0: #{forward.21}
  #allocation0 [shape = 'u32[]', space=smem, size = 0x4, offset = 0x4, fixed_abs, tag = 'smem constant byte address 0x4 - core index']
  #allocation1 [shape = 'u32[144,128]{1,0:T(1,128)}', space=vmem, size = 0x12000, scoped, tag = 'internal scratch']
  %s0 = inlined_call_operand.vmem [shape: bf16[4,1024], index: 0, kind: input, shape index: {}, may-alias: {0,1}]
  %s1 = inlined_call_operand.vmem [shape: bf16[4,1024], index: 1, kind: input, shape index: {}, may-alias: {0,1}]
  %s2 = inlined_call_operand.vmem [shape: bf16[32,36], index: 2, kind: input, shape index: {}]
  %s3 = inlined_call_operand.vmem [shape: f32[32,1], index: 3, kind: input, shape index: {}]
  %s4 = inlined_call_operand.vmem [shape: bf16[32,768], index: 4, kind: output, shape index: {}]
  %s5 = sld [smem:[#allocation0]]
  $region83: #{forward.21} parent=0
    _
  %s7 = ssub.s32 1, %s5
  %s8 = scalar_select 0, %s7, %s5
  $region1: #{forward.21} parent=0
    #allocation2 [shape = 'u8[32768]{0}', space=vmem, size = 0x8000, scoped, tag = 'output window, operand 0']
    loop: start=0, step=1, limit=5
    $region2: #{forward.21} parent=1 // loop_pre_header
      _
    $region3: #{forward.21} parent=1 // loop_header
      %s10 = sphi 0, %s14
      %p11 = scmp.ge.s32.totalorder %s10, 5
      %s20 = sphi 0, %s22
      %s23 = sphi 0, %s20
      %s24 = sphi 0, %s23
      %s40 = sphi 0, %s24
      %s50 = sphi 0, %s52
      %s53 = sphi 0, %s50
      %s54 = sphi 0, %s53
      %s70 = sphi 0, %s54
      %s74 = sphi 0, %s74
      %s76 = sphi 0, %s74
      %s77 = sphi 0, %s76
      %s91 = sphi 0, %s77
      %s95 = sphi 0, %s95
      %s97 = sphi 0, %s95
      %s98 = sphi 0, %s97
      %s112 = sphi 0, %s98
      %s118 = sphi 0, %s120
      %s121 = sphi 0, %s118
      %s122 = sphi 0, %s121
      %s138 = sphi 0, %s122
    $region4: #{forward.21} parent=1 // loop_header_branch
      %13 = sbr.rel (%p11) target = $region8
    $region5: #{forward.21} parent=1 // loop_body
      %s15 = ssub.s32 %s10, 1
      %s16 = ssub.s32 %s10, 2
      %s17 = sadd.s32 %s10, 1
      %s18 = ssub.s32 %s10, %s17
      %p19 = scmp.eq.s32.totalorder %s18, 0
      %s21 = sadd.s32 %s20, 1
      %s22 = scalar_select %p19, %s20, %s21
      %p25 = pneg %p19
      %p26 = scmp.eq.s32.totalorder %s10, 2
      %p27 = por %p25, %p26
      %p28 = scmp.ne.s32.totalorder %s20, %s23
      %p29 = scmp.eq.s32.totalorder %s10, 0
      %p30 = por %p28, %p29
      %p31 = scmp.ne.s32.totalorder %s20, %s23
      %p32 = scmp.eq.s32.totalorder %s15, 2
      %p33 = por %p31, %p32
      %p34 = scmp.ne.s32.totalorder %s23, %s24
      %p35 = scmp.eq.s32.totalorder %s15, 0
      %p36 = por %p34, %p35
      %p37 = scmp.ne.s32.totalorder %s23, %s24
      %p38 = scmp.eq.s32.totalorder %s16, 2
      %p39 = por %p37, %p38
      %p41 = scmp.ne.s32.totalorder %s24, %s40
      %p42 = scmp.eq.s32.totalorder %s16, 0
      %p43 = por %p41, %p42
      %s44 = sadd.s32 %s10, 1
      %s45 = smul.u32 %s44, 2
      %s46 = sadd.s32 %s17, 1
      %s47 = smul.u32 %s46, 2
      %s48 = ssub.s32 %s45, %s47
      %p49 = scmp.eq.s32.totalorder %s48, 0
      %s51 = sadd.s32 %s50, 1
      %s52 = scalar_select %p49, %s50, %s51
      %p55 = pneg %p49
      %p56 = scmp.eq.s32.totalorder %s10, 2
      %p57 = por %p55, %p56
      %p58 = scmp.ne.s32.totalorder %s50, %s53
      %p59 = scmp.eq.s32.totalorder %s10, 0
      %p60 = por %p58, %p59
      %p61 = scmp.ne.s32.totalorder %s50, %s53
      %p62 = scmp.eq.s32.totalorder %s15, 2
      %p63 = por %p61, %p62
      %p64 = scmp.ne.s32.totalorder %s53, %s54
      %p65 = scmp.eq.s32.totalorder %s15, 0
      %p66 = por %p64, %p65
      %p67 = scmp.ne.s32.totalorder %s53, %s54
      %p68 = scmp.eq.s32.totalorder %s16, 2
      %p69 = por %p67, %p68
      %p71 = scmp.ne.s32.totalorder %s54, %s70
      %p72 = scmp.eq.s32.totalorder %s16, 0
      %p73 = por %p71, %p72
      %s75 = sadd.s32 %s74, 1
      %p78 = scmp.eq.s32.totalorder %s10, 2
      %p79 = scmp.ne.s32.totalorder %s74, %s76
      %p80 = scmp.eq.s32.totalorder %s10, 0
      %p81 = por %p79, %p80
      %p82 = scmp.ne.s32.totalorder %s74, %s76
      %p83 = scmp.eq.s32.totalorder %s15, 2
      %p84 = por %p82, %p83
      %p85 = scmp.ne.s32.totalorder %s76, %s77
      %p86 = scmp.eq.s32.totalorder %s15, 0
      %p87 = por %p85, %p86
      %p88 = scmp.ne.s32.totalorder %s76, %s77
      %p89 = scmp.eq.s32.totalorder %s16, 2
      %p90 = por %p88, %p89
      %p92 = scmp.ne.s32.totalorder %s77, %s91
      %p93 = scmp.eq.s32.totalorder %s16, 0
      %p94 = por %p92, %p93
      %s96 = sadd.s32 %s95, 1
      %p99 = scmp.eq.s32.totalorder %s10, 2
      %p100 = scmp.ne.s32.totalorder %s95, %s97
      %p101 = scmp.eq.s32.totalorder %s10, 0
      %p102 = por %p100, %p101
      %p103 = scmp.ne.s32.totalorder %s95, %s97
      %p104 = scmp.eq.s32.totalorder %s15, 2
      %p105 = por %p103, %p104
      %p106 = scmp.ne.s32.totalorder %s97, %s98
      %p107 = scmp.eq.s32.totalorder %s15, 0
      %p108 = por %p106, %p107
      %p109 = scmp.ne.s32.totalorder %s97, %s98
      %p110 = scmp.eq.s32.totalorder %s16, 2
      %p111 = por %p109, %p110
      %p113 = scmp.ne.s32.totalorder %s98, %s112
      %p114 = scmp.eq.s32.totalorder %s16, 0
      %p115 = por %p113, %p114
      %s116 = ssub.s32 %s10, %s17
      %p117 = scmp.eq.s32.totalorder %s116, 0
      %s119 = sadd.s32 %s118, 1
      %s120 = scalar_select %p117, %s118, %s119
      %p123 = pneg %p117
      %p124 = scmp.eq.s32.totalorder %s10, 2
      %p125 = por %p123, %p124
      %p126 = scmp.ne.s32.totalorder %s118, %s121
      %p127 = scmp.eq.s32.totalorder %s10, 0
      %p128 = por %p126, %p127
      %p129 = scmp.ne.s32.totalorder %s118, %s121
      %p130 = scmp.eq.s32.totalorder %s15, 2
      %p131 = por %p129, %p130
      %p132 = scmp.ne.s32.totalorder %s121, %s122
      %p133 = scmp.eq.s32.totalorder %s15, 0
      %p134 = por %p132, %p133
      %p135 = scmp.ne.s32.totalorder %s121, %s122
      %p136 = scmp.eq.s32.totalorder %s16, 2
      %p137 = por %p135, %p136
      %p139 = scmp.ne.s32.totalorder %s122, %s138
      %p140 = scmp.eq.s32.totalorder %s16, 0
      %p141 = por %p139, %p140
      %p142 = scmp.le.s32.totalorder 1, %s10
      %p143 = scmp.lt.s32.totalorder %s10, 4
      %p144 = pnand %p142, %p143
      %p145 = pneg %p144
      // Predicated region
      $region9: #{forward.21} parent=5 // pred_check
        _
      $region10: #{forward.21} parent=5 // pred_check_branch
        %147 = sbr.rel (%p144) target = $region12
      $region11: #{forward.21} parent=5 // pred_region
        %s148 = ssub.s32 %s10, 1
        // Predicated region
        $region13: #{forward.21} parent=11 // pred_check
          %p149 = pneg %p87
        $region14: #{forward.21} parent=11 // pred_check_branch
          %151 = sbr.rel (%p149) target = $region16
        $region15: #{forward.21} parent=11 // pred_region
          _
        $region16: #{forward.21} parent=11 // pred_fallthru
          _
        // Predicated region
        $region17: #{forward.21} parent=11 // pred_check
          %p152 = pneg %p108
        $region18: #{forward.21} parent=11 // pred_check_branch
          %154 = sbr.rel (%p152) target = $region20
        $region19: #{forward.21} parent=11 // pred_region
          _
        $region20: #{forward.21} parent=11 // pred_fallthru
          _
      $region12: #{forward.21} parent=5 // pred_fallthru
        _
      %p155 = scmp.lt.s32.totalorder %s10, 3
      // Predicated region
      $region21: #{forward.21} parent=5 // pred_check
        %p156 = pneg %p155
      $region22: #{forward.21} parent=5 // pred_check_branch
        %158 = sbr.rel (%p156) target = $region24
      $region23: #{forward.21} parent=5 // pred_region
        // Predicated region
        $region25: #{forward.21} parent=23 // pred_check
          %p159 = pneg %p30
        $region26: #{forward.21} parent=23 // pred_check_branch
          %161 = sbr.rel (%p159) target = $region28
        $region27: #{forward.21} parent=23 // pred_region
          %s162 = smul.u32 2, %s10
          %p163 = scmp.lt.s32.totalorder %s162, 7
          %s164 = scalar_select %p163, %s162, 7
          %s165 = smul.addr %s164, 2
          %s166 = scalar_lea.vmem %s0, %s165
          %s167 = smul.u32 2, %s10
        $region28: #{forward.21} parent=23 // pred_fallthru
          _
        // Predicated region
        $region29: #{forward.21} parent=23 // pred_check
          %p168 = pneg %p60
        $region30: #{forward.21} parent=23 // pred_check_branch
          %170 = sbr.rel (%p168) target = $region32
        $region31: #{forward.21} parent=23 // pred_region
          %s171 = sadd.s32 %s10, 1
          %s172 = smul.u32 %s171, 2
          %p173 = scmp.lt.s32.totalorder %s172, 7
          %s174 = scalar_select %p173, %s172, 7
          %s175 = smul.addr %s174, 2
          %s176 = scalar_lea.vmem %s1, %s175
          %s177 = sadd.s32 %s10, 1
          %s178 = smul.u32 %s177, 2
        $region32: #{forward.21} parent=23 // pred_fallthru
          _
      $region24: #{forward.21} parent=5 // pred_fallthru
        _
      %p179 = scmp.le.s32.totalorder 1, %s10
      %p180 = scmp.lt.s32.totalorder %s10, 4
      %p181 = pnand %p179, %p180
      %p182 = pneg %p181
      // Predicated region
      $region33: #{forward.21} parent=5 // pred_check
        _
      $region34: #{forward.21} parent=5 // pred_check_branch
        %184 = sbr.rel (%p181) target = $region36
      $region35: #{forward.21} parent=5 // pred_region
        %s185 = ssub.s32 %s10, 1
        %s186 = smul.u32 2, %s15
        %p187 = scmp.lt.s32.totalorder %s186, 7
        %s188 = scalar_select %p187, %s186, 7
        %s189 = smul.addr %s188, 2
        %s190 = scalar_lea.vmem %s0, %s189
        %p191 = pneg %p36
        %p192 = pneg %p33
        %s193 = sadd.s32 %s15, 1
        %s194 = smul.u32 %s193, 2
        %p195 = scmp.lt.s32.totalorder %s194, 7
        %s196 = scalar_select %p195, %s194, 7
        %s197 = smul.addr %s196, 2
        %s198 = scalar_lea.vmem %s1, %s197
        %p199 = pneg %p66
        %p200 = pneg %p63
        %p201 = pneg %p87
        %p202 = pneg %p84
        %p203 = pneg %p108
        %p204 = pneg %p105
        %p205 = pneg %p134
        %p206 = pneg %p131
        %s207 = sand.u32 %s121, 1
        %s208 = sand.u32 %s121, 1
        %s209 = smul.addr %s208, 32
        %s210 = scalar_lea.vmem [#allocation2], %s209
        %s211 = smul.u32 2, %s15
        %p212 = scmp.lt.s32.totalorder %s211, 7
        %s213 = scalar_select %p212, %s211, 7
        %s214 = smul.addr %s213, 2
        %s215 = scalar_lea.vmem %s0, %s214
        %s216 = smul.u32 2, %s15
        %s217 = sadd.s32 %s15, 1
        %s218 = smul.u32 %s217, 2
        %p219 = scmp.lt.s32.totalorder %s218, 7
        %s220 = scalar_select %p219, %s218, 7
        %s221 = smul.addr %s220, 2
        %s222 = scalar_lea.vmem %s1, %s221
        %s223 = sadd.s32 %s15, 1
        %s224 = smul.u32 %s223, 2
        %s225 = smul.u32 2, %s15
        %v227 = vld [vmem:[%s215] sm:$0xf]
        %v228 = vld [vmem:[%s222] sm:$0x3]
        %v231 = vunpack.c.l.s4 1983009808
        %v232 = vunpack.c.0.s8 %v231
        %v233 = vlaneseq
        %v234 = vshrl.u32 %v233, 7
        %v235 = vsub.s32 %v232, %v234
        %v236 = vrot.slane %v227, %v235
        %v237 = vcombine.high %v236, %v236
        %v238 = vld [vmem:[%s2] sm:$0xf]
        %v239 = vld [vmem:[%s2 + $0x4] sm:$0xf]
        %v240 = vld [vmem:[%s2 + $0x8] sm:$0xf]
        %v241 = vld [vmem:[%s2 + $0xc] sm:$0xf]
        %v243 = vrot.slane %v236, 6
        %v244 = vrot.slane %v237, 6
        %v245 = vrot.slane %v228, 6
        %246 = vrot.lane.b32.xlu0 %v243, 127
        %v247 = vpop.permute.xlu0 %246
        %248 = vrot.lane.b32.xlu0 %v244, 127
        %v249 = vpop.permute.xlu0 %248
        %250 = vrot.lane.b32.xlu0 %v245, 127
        %v251 = vpop.permute.xlu0 %250
        %vm252 = vcmask 1039360
        %v253 = vsel %vm252, %v247, %v249
        %v254 = vsel %vm252, %v249, %v251
        %v255 = vrot.slane %v236, 4
        %v256 = vrot.slane %v237, 4
        %v257 = vrot.slane %v228, 4
        %258 = vrot.lane.b32.xlu0 %v255, 126
        %v259 = vpop.permute.xlu0 %258
        %260 = vrot.lane.b32.xlu0 %v256, 126
        %v261 = vpop.permute.xlu0 %260
        %262 = vrot.lane.b32.xlu0 %v257, 126
        %v263 = vpop.permute.xlu0 %262
        %vm264 = vcmask 1031168
        %v265 = vsel %vm264, %v259, %v261
        %v266 = vsel %vm264, %v261, %v263
        %v267 = vrot.slane %v236, 2
        %v268 = vrot.slane %v237, 2
        %v269 = vrot.slane %v228, 2
        %270 = vrot.lane.b32.xlu0 %v267, 110
        %v271 = vpop.permute.xlu0 %270
        %272 = vrot.lane.b32.xlu0 %v268, 110
        %v273 = vpop.permute.xlu0 %272
        %274 = vrot.lane.b32.xlu0 %v269, 110
        %v275 = vpop.permute.xlu0 %274
        %vm276 = vcmask 900096
        %v277 = vsel %vm276, %v271, %v273
        %v278 = vsel %vm276, %v273, %v275
        %279 = vrot.lane.b32.xlu0 %v236, 109
        %v280 = vpop.permute.xlu0 %279
        %281 = vrot.lane.b32.xlu0 %v237, 109
        %v282 = vpop.permute.xlu0 %281
        %283 = vrot.lane.b32.xlu0 %v228, 109
        %v284 = vpop.permute.xlu0 %283
        %vm285 = vcmask 891904
        %v286 = vsel %vm285, %v280, %v282
        %v287 = vsel %vm285, %v282, %v284
        %288 = vrot.lane.b32.xlu0 %v243, 108
        %v289 = vpop.permute.xlu0 %288
        %290 = vrot.lane.b32.xlu0 %v244, 108
        %v291 = vpop.permute.xlu0 %290
        %292 = vrot.lane.b32.xlu0 %v245, 108
        %v293 = vpop.permute.xlu0 %292
        %vm294 = vcmask 883712
        %v295 = vsel %vm294, %v289, %v291
        %v296 = vsel %vm294, %v291, %v293
        %297 = vrot.lane.b32.xlu0 %v255, 92
        %v298 = vpop.permute.xlu0 %297
        %299 = vrot.lane.b32.xlu0 %v256, 92
        %v300 = vpop.permute.xlu0 %299
        %301 = vrot.lane.b32.xlu0 %v257, 92
        %v302 = vpop.permute.xlu0 %301
        %vm303 = vcmask 752640
        %v304 = vsel %vm303, %v298, %v300
        %v305 = vsel %vm303, %v300, %v302
        %306 = vrot.lane.b32.xlu0 %v267, 91
        %v307 = vpop.permute.xlu0 %306
        %308 = vrot.lane.b32.xlu0 %v268, 91
        %v309 = vpop.permute.xlu0 %308
        %310 = vrot.lane.b32.xlu0 %v269, 91
        %v311 = vpop.permute.xlu0 %310
        %vm312 = vcmask 744448
        %v313 = vsel %vm312, %v307, %v309
        %v314 = vsel %vm312, %v309, %v311
        %315 = vrot.lane.b32.xlu0 %v236, 90
        %v316 = vpop.permute.xlu0 %315
        %317 = vrot.lane.b32.xlu0 %v237, 90
        %v318 = vpop.permute.xlu0 %317
        %319 = vrot.lane.b32.xlu0 %v228, 90
        %v320 = vpop.permute.xlu0 %319
        %vm321 = vcmask 736256
        %v322 = vsel %vm321, %v316, %v318
        %v323 = vsel %vm321, %v318, %v320
        %vm324 = vcmask 1041408
        %v327 = vsel %vm324, %v236, %v253
        %v330 = vsel %vm324, %v237, %v254
        %vm331 = vcmask 1043456
        %v333 = vsel %vm331, %v327, %v265
        %v335 = vsel %vm331, %v330, %v266
        %vm336 = vcmask 1045504
        %v338 = vsel %vm336, %v333, %v277
        %v341 = vsel %vm336, %v335, %v278
        %v345 = vsel %vm324, %v286, %v295
        %v348 = vsel %vm324, %v287, %v296
        %v350 = vsel %vm331, %v345, %v304
        %v352 = vsel %vm331, %v348, %v305
        %v354 = vsel %vm336, %v350, %v313
        %v357 = vsel %vm336, %v352, %v314
        %v359 = vld [vmem:[%s3] sm:$0xff]
        %v360 = vld [vmem:[%s3 + $0x8] sm:$0xff]
        %v361 = vld [vmem:[%s3 + $0x10] sm:$0xff]
        %v362 = vld [vmem:[%s3 + $0x18] sm:$0xff]
        %364 = vset.pattern.permute.xlu0 0
        %365 = vperm.xlu0 %364, %v359
        %v366 = vpop.permute.xlu0 %365
        %369 = vset.pattern.permute.xlu0 0
        %370 = vperm.xlu0 %369, %v360
        %v371 = vpop.permute.xlu0 %370
        %374 = vset.pattern.permute.xlu0 0
        %375 = vperm.xlu0 %374, %v361
        %v376 = vpop.permute.xlu0 %375
        %379 = vset.pattern.permute.xlu0 0
        %380 = vperm.xlu0 %379, %v362
        %v381 = vpop.permute.xlu0 %380
        %v387 = vunpack.c.l.b16 %v238
        %v388 = vunpack.c.l.b16 %v239
        %v389 = vunpack.c.l.b16 %v240
        %v390 = vunpack.c.l.b16 %v241
        %v391 = vpack.c.b16 %v388, %v387
        %v392 = vpack.c.b16 %v390, %v389
        %vm393 = vcmask 293888
        %v395 = vsel %vm393, %v391, 0
        %v398 = vsel %vm393, %v392, 0
        %v401 = vsel %vm324, %v322, 0
        %v404 = vsel %vm324, %v323, 0
        %406 = vmatprep.subr.bf16.mxu0 0
        %407 = vmatpush1.bf16.msra.mxu0 0
        %408 = vmatprep.subr.bf16.mxu0 0
        %409 = vmatpush1.bf16.msra.mxu0 0
        %410 = vmatprep.subr.bf16.mxu0 0
        %411 = vmatpush1.bf16.msra.mxu0 0
        %412 = vmatprep.subr.bf16.mxu0 0
        %413 = vmatpush1.bf16.msra.mxu0 0
        %414 = vmatprep.subr.bf16.mxu0 0
        %415 = vmatpush1.bf16.msra.mxu0 0
        %416 = vmatprep.subr.bf16.mxu0 %v404
        %417 = vmatpush1.bf16.msra.mxu0 %v401
        %418 = vmatprep.subr.bf16.mxu0 %v357
        %419 = vmatpush1.bf16.msra.mxu0 %v354
        %420 = vmatprep.subr.bf16.mxu0 %v341
        %421 = vmatpush1.bf16.msra.mxu0 %v338
        %422 = vmatprep.subr.bf16.mxu0 0
        %423 = vmatpush2.bf16.msra.mxu0 0
        %424 = vmatprep.subr.bf16.mxu0 0
        %425 = vmatpush2.bf16.msra.mxu0 0
        %426 = vmatprep.subr.bf16.mxu0 0
        %427 = vmatpush2.bf16.msra.mxu0 0
        %428 = vmatprep.subr.bf16.mxu0 0
        %429 = vmatpush2.bf16.msra.mxu0 0
        %430 = vmatprep.subr.bf16.mxu0 0
        %431 = vmatpush2.bf16.msra.mxu0 0
        %432 = vmatprep.subr.bf16.mxu0 0
        %433 = vmatpush2.bf16.msra.mxu0 0
        %434 = vmatprep.subr.bf16.mxu0 0
        %435 = vmatpush2.bf16.msra.mxu0 0
        %436 = vmatprep.subr.bf16.mxu0 0
        %437 = vmatpush2.bf16.msra.mxu0 0
        %438 = vmatprep.mubr.bf16.mxu0 0
        %439 = vmatmul.mubr.bf16.gmra.mxu0 %v395
        %v440 = vpop.f32.mrf.mxu0
        %v441 = vadd.f32 %v366, %v440
        %v442 = vpop.f32.mrf.mxu0
        %v443 = vadd.f32 %v366, %v442
        %v444 = vpop.f32.mrf.mxu0
        %v445 = vadd.f32 %v371, %v444
        %v446 = vpop.f32.mrf.mxu0
        %v447 = vadd.f32 %v371, %v446
        %448 = vmatprep.mubr.bf16.mxu0 0
        %449 = vmatmul.mubr.bf16.gmra.mxu0 %v398
        %v450 = vpop.f32.mrf.mxu0
        %v451 = vadd.f32 %v376, %v450
        %v452 = vpop.f32.mrf.mxu0
        %v453 = vadd.f32 %v376, %v452
        %v454 = vpop.f32.mrf.mxu0
        %v455 = vadd.f32 %v381, %v454
        %v456 = vpop.f32.mrf.mxu0
        %v457 = vadd.f32 %v381, %v456
        %458 = vdwg.mxu0
        %v459 = vpack.c.bf16 %v445, %v441
        %v460 = vpack.c.bf16 %v447, %v443
        %v461 = vpack.c.bf16 %v455, %v451
        %v462 = vpack.c.bf16 %v457, %v453
        %v467 = vunpack.c.l.b16 %v459
        %v468 = vunpack.c.l.b16 %v460
        %v469 = vunpack.c.h.b16 %v459
        %v470 = vunpack.c.h.b16 %v460
        %v471 = vunpack.c.l.b16 %v461
        %v472 = vunpack.c.l.b16 %v462
        %v473 = vunpack.c.h.b16 %v461
        %v474 = vunpack.c.h.b16 %v462
        %v475 = vpack.c.b16 %v468, %v467
        %v476 = vpack.c.b16 %v470, %v469
        %v477 = vpack.c.b16 %v472, %v471
        %v478 = vpack.c.b16 %v474, %v473
        %483 = vst [vmem:[%s210] sm:$0xff] %v475
        %484 = vst [vmem:[%s210 + $0x8] sm:$0xff] %v476
        %485 = vst [vmem:[%s210 + $0x10] sm:$0xff] %v477
        %486 = vst [vmem:[%s210 + $0x18] sm:$0xff] %v478
        %s487 = sand.u32 %s121, 1
        %s488 = sand.u32 %s121, 1
        %s489 = smul.addr %s488, 32
        %s490 = scalar_lea.vmem [#allocation2], %s489
        // Predicated region
        $region37: #{forward.21} parent=35 // pred_check
          %p491 = pneg %p131
        $region38: #{forward.21} parent=35 // pred_check_branch
          %493 = sbr.rel (%p491) target = $region40
        $region39: #{forward.21} parent=35 // pred_region
          %s494 = smul.u32 2, %s15
          %s495 = smul.addr %s494, 4
          %s496 = scalar_lea.vmem %s4, %s495
          // Predicated region
          $region41: #{forward.21} parent=39 // pred_check
            _
          $region42: #{forward.21} parent=39 // pred_check_branch
            %498 = sbr.rel (0) target = $region44
          $region43: #{forward.21} parent=39 // pred_region
            // Predicated region
            $region45: #{forward.21} parent=43 // pred_check
              _
            $region46: #{forward.21} parent=43 // pred_check_branch
              %500 = sbr.rel (0) target = $region48
            $region47: #{forward.21} parent=43 // pred_region
              // Predicated region
              $region60: #{forward.21} parent=47 // pred_check
                _
              $region61: #{forward.21} parent=47 // pred_check_branch
                %522 = sbr.rel (0) target = $region63
              $region62: #{forward.21} parent=47 // pred_region
                loop: start=0, step=1, limit=1
                $region64: #{forward.21} parent=62 // loop_pre_header
                  _
                $region65: #{forward.21} parent=62 // loop_header
                  %s524 = sphi 0, %s528
                  %p525 = scmp.ge.s32.totalorder %s524, 1
                  %s529 = sphi %s490, %s490
                  %s530 = sphi %s496, %s496
                $region66: #{forward.21} parent=62 // loop_header_branch
                  %527 = sbr.rel (%p525) target = $region70
                $region67: #{forward.21} parent=62 // loop_body
                  %v531 = vld [vmem:[%s529] sm:$0xff]
                  %532 = vst [vmem:[%s530] sm:$0xff] %v531
                  %v533 = vld [vmem:[%s529 + $0x8] sm:$0xff]
                  %534 = vst [vmem:[%s530 + $0x18] sm:$0xff] %v533
                  %v535 = vld [vmem:[%s529 + $0x10] sm:$0xff]
                  %536 = vst [vmem:[%s530 + $0x30] sm:$0xff] %v535
                  %v537 = vld [vmem:[%s529 + $0x18] sm:$0xff]
                  %538 = vst [vmem:[%s530 + $0x48] sm:$0xff] %v537
                $region68: #{forward.21} parent=62 // loop_footer
                  %s528 = sadd.s32 1, %s524
                $region69: #{forward.21} parent=62 // loop_footer_branch
                  %523 = sbr.rel target = $region65
                $region70: #{forward.21} parent=62 // loop_exit
                  _
              $region63: #{forward.21} parent=47 // pred_fallthru
                _
              // Predicated region
              $region71: #{forward.21} parent=47 // pred_check
                _
              $region72: #{forward.21} parent=47 // pred_check_branch
                %540 = sbr.rel target = $region74
              $region73: #{forward.21} parent=47 // pred_region
                _
              $region74: #{forward.21} parent=47 // pred_fallthru
                _
            $region48: #{forward.21} parent=43 // pred_fallthru
              _
            // Predicated region
            $region49: #{forward.21} parent=43 // pred_check
              _
            $region50: #{forward.21} parent=43 // pred_check_branch
              %502 = sbr.rel target = $region52
            $region51: #{forward.21} parent=43 // pred_region
              %s504 = ssub.s32 256, 1
              loop: start=0, step=1, limit=1
              $region53: #{forward.21} parent=51 // loop_pre_header
                _
              $region54: #{forward.21} parent=51 // loop_header
                %s506 = sphi 0, %s510
                %p507 = scmp.ge.s32.totalorder %s506, 1
                %s511 = sphi %s490, %s490
                %s512 = sphi %s496, %s496
              $region55: #{forward.21} parent=51 // loop_header_branch
                %509 = sbr.rel (%p507) target = $region59
              $region56: #{forward.21} parent=51 // loop_body
                %v513 = vld [vmem:[%s511] sm:%s504]
                %514 = vst [vmem:[%s512] sm:%s504] %v513
                %v515 = vld [vmem:[%s511 + $0x8] sm:%s504]
                %516 = vst [vmem:[%s512 + $0x18] sm:%s504] %v515
                %v517 = vld [vmem:[%s511 + $0x10] sm:%s504]
                %518 = vst [vmem:[%s512 + $0x30] sm:%s504] %v517
                %v519 = vld [vmem:[%s511 + $0x18] sm:%s504]
                %520 = vst [vmem:[%s512 + $0x48] sm:%s504] %v519
              $region57: #{forward.21} parent=51 // loop_footer
                %s510 = sadd.s32 1, %s506
              $region58: #{forward.21} parent=51 // loop_footer_branch
                %505 = sbr.rel target = $region54
              $region59: #{forward.21} parent=51 // loop_exit
                _
            $region52: #{forward.21} parent=43 // pred_fallthru
              _
          $region44: #{forward.21} parent=39 // pred_fallthru
            _
          %541 = vnop
        $region40: #{forward.21} parent=35 // pred_fallthru
          _
      $region36: #{forward.21} parent=5 // pred_fallthru
        _
      %p542 = scmp.le.s32.totalorder 2, %s10
      // Predicated region
      $region75: #{forward.21} parent=5 // pred_check
        %p543 = pneg %p542
      $region76: #{forward.21} parent=5 // pred_check_branch
        %545 = sbr.rel (%p543) target = $region78
      $region77: #{forward.21} parent=5 // pred_region
        %s546 = ssub.s32 %s10, 2
        // Predicated region
        $region79: #{forward.21} parent=77 // pred_check
          %p547 = pneg %p137
        $region80: #{forward.21} parent=77 // pred_check_branch
          %549 = sbr.rel (%p547) target = $region82
        $region81: #{forward.21} parent=77 // pred_region
          %s550 = sand.u32 %s122, 1
          %s551 = sand.u32 %s122, 1
          %s552 = smul.addr %s551, 32
          %s553 = scalar_lea.vmem [#allocation2], %s552
        $region82: #{forward.21} parent=77 // pred_fallthru
          _
      $region78: #{forward.21} parent=5 // pred_fallthru
        _
    $region6: #{forward.21} parent=1 // loop_footer
      %s14 = sadd.s32 1, %s10
    $region7: #{forward.21} parent=1 // loop_footer_branch
      %9 = sbr.rel target = $region3
    $region8: #{forward.21} parent=1 // loop_exit
      _

// kernel: forward.22
$region0: #{forward.22}
  #allocation0 [shape = 'u32[]', space=smem, size = 0x4, offset = 0x4, fixed_abs, tag = 'smem constant byte address 0x4 - core index']
  #allocation1 [shape = 'u32[144,128]{1,0:T(1,128)}', space=vmem, size = 0x12000, scoped, tag = 'internal scratch']
  %s0 = inlined_call_operand.vmem [shape: bf16[32,384], index: 0, kind: input, shape index: {}, may-alias: {0,1}]
  %s1 = inlined_call_operand.vmem [shape: bf16[32,384], index: 1, kind: input, shape index: {}, may-alias: {0,1}]
  %s2 = inlined_call_operand.vmem [shape: bf16[32,384], index: 2, kind: input, shape index: {}, may-alias: {2,3}]
  %s3 = inlined_call_operand.vmem [shape: bf16[32,384], index: 3, kind: input, shape index: {}, may-alias: {2,3}]
  %s4 = inlined_call_operand.vmem [shape: bf16[32,384], index: 4, kind: input, shape index: {}, may-alias: {4,5}]
  %s5 = inlined_call_operand.vmem [shape: bf16[32,384], index: 5, kind: input, shape index: {}, may-alias: {4,5}]
  %s6 = inlined_call_operand.vmem [shape: bf16[32,384], index: 6, kind: input, shape index: {}, may-alias: {6,7}]
  %s7 = inlined_call_operand.vmem [shape: bf16[32,384], index: 7, kind: input, shape index: {}, may-alias: {6,7}]
  %s8 = inlined_call_operand.vmem [shape: bf16[32,512], index: 8, kind: input, shape index: {}]
  %s9 = inlined_call_operand.vmem [shape: f32[32,1], index: 9, kind: input, shape index: {}]
  %s10 = inlined_call_operand.vmem [shape: bf16[32,256], index: 10, kind: output, shape index: {}]
  %s11 = sld [smem:[#allocation0]]
  $region438: #{forward.22} parent=0
    _
  %s13 = ssub.s32 1, %s11
  %s14 = scalar_select 0, %s13, %s11
  $region1: #{forward.22} parent=0
    #allocation2 [shape = 'u8[16384]{0}', space=vmem, size = 0x4000, scoped, tag = 'input window, operand 0']
    #allocation3 [shape = 'u8[16384]{0}', space=vmem, size = 0x4000, scoped, tag = 'input window, operand 1']
    #allocation4 [shape = 'u8[16384]{0}', space=vmem, size = 0x4000, scoped, tag = 'input window, operand 2']
    #allocation5 [shape = 'u8[16384]{0}', space=vmem, size = 0x4000, scoped, tag = 'input window, operand 3']
    #allocation6 [shape = 'u8[16384]{0}', space=vmem, size = 0x4000, scoped, tag = 'input window, operand 4']
    #allocation7 [shape = 'u8[16384]{0}', space=vmem, size = 0x4000, scoped, tag = 'input window, operand 5']
    #allocation8 [shape = 'u8[16384]{0}', space=vmem, size = 0x4000, scoped, tag = 'input window, operand 6']
    #allocation9 [shape = 'u8[16384]{0}', space=vmem, size = 0x4000, scoped, tag = 'input window, operand 7']
    #allocation10 [shape = 'u8[16384]{0}', space=vmem, size = 0x4000, scoped, tag = 'output window, operand 0']
    loop: start=0, step=1, limit=4
    $region2: #{forward.22} parent=1 // loop_pre_header
      _
    $region3: #{forward.22} parent=1 // loop_header
      %s16 = sphi 0, %s20
      %p17 = scmp.ge.s32.totalorder %s16, 4
      %s26 = sphi 0, %s28
      %s29 = sphi 0, %s26
      %s30 = sphi 0, %s29
      %s46 = sphi 0, %s30
      %s54 = sphi 0, %s56
      %s57 = sphi 0, %s54
      %s58 = sphi 0, %s57
      %s74 = sphi 0, %s58
      %s80 = sphi 0, %s82
      %s83 = sphi 0, %s80
      %s84 = sphi 0, %s83
      %s100 = sphi 0, %s84
      %s108 = sphi 0, %s110
      %s111 = sphi 0, %s108
      %s112 = sphi 0, %s111
      %s128 = sphi 0, %s112
      %s134 = sphi 0, %s136
      %s137 = sphi 0, %s134
      %s138 = sphi 0, %s137
      %s154 = sphi 0, %s138
      %s162 = sphi 0, %s164
      %s165 = sphi 0, %s162
      %s166 = sphi 0, %s165
      %s182 = sphi 0, %s166
      %s188 = sphi 0, %s190
      %s191 = sphi 0, %s188
      %s192 = sphi 0, %s191
      %s208 = sphi 0, %s192
      %s216 = sphi 0, %s218
      %s219 = sphi 0, %s216
      %s220 = sphi 0, %s219
      %s236 = sphi 0, %s220
      %s240 = sphi 0, %s240
      %s242 = sphi 0, %s240
      %s243 = sphi 0, %s242
      %s257 = sphi 0, %s243
      %s261 = sphi 0, %s261
      %s263 = sphi 0, %s261
      %s264 = sphi 0, %s263
      %s278 = sphi 0, %s264
      %s284 = sphi 0, %s286
      %s287 = sphi 0, %s284
      %s288 = sphi 0, %s287
      %s304 = sphi 0, %s288
    $region4: #{forward.22} parent=1 // loop_header_branch
      %19 = sbr.rel (%p17) target = $region8
    $region5: #{forward.22} parent=1 // loop_body
      %s21 = ssub.s32 %s16, 1
      %s22 = ssub.s32 %s16, 2
      %s23 = sadd.s32 %s16, 1
      %s24 = ssub.s32 %s16, %s23
      %p25 = scmp.eq.s32.totalorder %s24, 0
      %s27 = sadd.s32 %s26, 1
      %s28 = scalar_select %p25, %s26, %s27
      %p31 = pneg %p25
      %p32 = scmp.eq.s32.totalorder %s16, 1
      %p33 = por %p31, %p32
      %p34 = scmp.ne.s32.totalorder %s26, %s29
      %p35 = scmp.eq.s32.totalorder %s16, 0
      %p36 = por %p34, %p35
      %p37 = scmp.ne.s32.totalorder %s26, %s29
      %p38 = scmp.eq.s32.totalorder %s21, 1
      %p39 = por %p37, %p38
      %p40 = scmp.ne.s32.totalorder %s29, %s30
      %p41 = scmp.eq.s32.totalorder %s21, 0
      %p42 = por %p40, %p41
      %p43 = scmp.ne.s32.totalorder %s29, %s30
      %p44 = scmp.eq.s32.totalorder %s22, 1
      %p45 = por %p43, %p44
      %p47 = scmp.ne.s32.totalorder %s30, %s46
      %p48 = scmp.eq.s32.totalorder %s22, 0
      %p49 = por %p47, %p48
      %s50 = sadd.s32 %s16, 1
      %s51 = sadd.s32 %s23, 1
      %s52 = ssub.s32 %s50, %s51
      %p53 = scmp.eq.s32.totalorder %s52, 0
      %s55 = sadd.s32 %s54, 1
      %s56 = scalar_select %p53, %s54, %s55
      %p59 = pneg %p53
      %p60 = scmp.eq.s32.totalorder %s16, 1
      %p61 = por %p59, %p60
      %p62 = scmp.ne.s32.totalorder %s54, %s57
      %p63 = scmp.eq.s32.totalorder %s16, 0
      %p64 = por %p62, %p63
      %p65 = scmp.ne.s32.totalorder %s54, %s57
      %p66 = scmp.eq.s32.totalorder %s21, 1
      %p67 = por %p65, %p66
      %p68 = scmp.ne.s32.totalorder %s57, %s58
      %p69 = scmp.eq.s32.totalorder %s21, 0
      %p70 = por %p68, %p69
      %p71 = scmp.ne.s32.totalorder %s57, %s58
      %p72 = scmp.eq.s32.totalorder %s22, 1
      %p73 = por %p71, %p72
      %p75 = scmp.ne.s32.totalorder %s58, %s74
      %p76 = scmp.eq.s32.totalorder %s22, 0
      %p77 = por %p75, %p76
      %s78 = ssub.s32 %s16, %s23
      %p79 = scmp.eq.s32.totalorder %s78, 0
      %s81 = sadd.s32 %s80, 1
      %s82 = scalar_select %p79, %s80, %s81
      %p85 = pneg %p79
      %p86 = scmp.eq.s32.totalorder %s16, 1
      %p87 = por %p85, %p86
      %p88 = scmp.ne.s32.totalorder %s80, %s83
      %p89 = scmp.eq.s32.totalorder %s16, 0
      %p90 = por %p88, %p89
      %p91 = scmp.ne.s32.totalorder %s80, %s83
      %p92 = scmp.eq.s32.totalorder %s21, 1
      %p93 = por %p91, %p92
      %p94 = scmp.ne.s32.totalorder %s83, %s84
      %p95 = scmp.eq.s32.totalorder %s21, 0
      %p96 = por %p94, %p95
      %p97 = scmp.ne.s32.totalorder %s83, %s84
      %p98 = scmp.eq.s32.totalorder %s22, 1
      %p99 = por %p97, %p98
      %p101 = scmp.ne.s32.totalorder %s84, %s100
      %p102 = scmp.eq.s32.totalorder %s22, 0
      %p103 = por %p101, %p102
      %s104 = sadd.s32 %s16, 1
      %s105 = sadd.s32 %s23, 1
      %s106 = ssub.s32 %s104, %s105
      %p107 = scmp.eq.s32.totalorder %s106, 0
      %s109 = sadd.s32 %s108, 1
      %s110 = scalar_select %p107, %s108, %s109
      %p113 = pneg %p107
      %p114 = scmp.eq.s32.totalorder %s16, 1
      %p115 = por %p113, %p114
      %p116 = scmp.ne.s32.totalorder %s108, %s111
      %p117 = scmp.eq.s32.totalorder %s16, 0
      %p118 = por %p116, %p117
      %p119 = scmp.ne.s32.totalorder %s108, %s111
      %p120 = scmp.eq.s32.totalorder %s21, 1
      %p121 = por %p119, %p120
      %p122 = scmp.ne.s32.totalorder %s111, %s112
      %p123 = scmp.eq.s32.totalorder %s21, 0
      %p124 = por %p122, %p123
      %p125 = scmp.ne.s32.totalorder %s111, %s112
      %p126 = scmp.eq.s32.totalorder %s22, 1
      %p127 = por %p125, %p126
      %p129 = scmp.ne.s32.totalorder %s112, %s128
      %p130 = scmp.eq.s32.totalorder %s22, 0
      %p131 = por %p129, %p130
      %s132 = ssub.s32 %s16, %s23
      %p133 = scmp.eq.s32.totalorder %s132, 0
      %s135 = sadd.s32 %s134, 1
      %s136 = scalar_select %p133, %s134, %s135
      %p139 = pneg %p133
      %p140 = scmp.eq.s32.totalorder %s16, 1
      %p141 = por %p139, %p140
      %p142 = scmp.ne.s32.totalorder %s134, %s137
      %p143 = scmp.eq.s32.totalorder %s16, 0
      %p144 = por %p142, %p143
      %p145 = scmp.ne.s32.totalorder %s134, %s137
      %p146 = scmp.eq.s32.totalorder %s21, 1
      %p147 = por %p145, %p146
      %p148 = scmp.ne.s32.totalorder %s137, %s138
      %p149 = scmp.eq.s32.totalorder %s21, 0
      %p150 = por %p148, %p149
      %p151 = scmp.ne.s32.totalorder %s137, %s138
      %p152 = scmp.eq.s32.totalorder %s22, 1
      %p153 = por %p151, %p152
      %p155 = scmp.ne.s32.totalorder %s138, %s154
      %p156 = scmp.eq.s32.totalorder %s22, 0
      %p157 = por %p155, %p156
      %s158 = sadd.s32 %s16, 1
      %s159 = sadd.s32 %s23, 1
      %s160 = ssub.s32 %s158, %s159
      %p161 = scmp.eq.s32.totalorder %s160, 0
      %s163 = sadd.s32 %s162, 1
      %s164 = scalar_select %p161, %s162, %s163
      %p167 = pneg %p161
      %p168 = scmp.eq.s32.totalorder %s16, 1
      %p169 = por %p167, %p168
      %p170 = scmp.ne.s32.totalorder %s162, %s165
      %p171 = scmp.eq.s32.totalorder %s16, 0
      %p172 = por %p170, %p171
      %p173 = scmp.ne.s32.totalorder %s162, %s165
      %p174 = scmp.eq.s32.totalorder %s21, 1
      %p175 = por %p173, %p174
      %p176 = scmp.ne.s32.totalorder %s165, %s166
      %p177 = scmp.eq.s32.totalorder %s21, 0
      %p178 = por %p176, %p177
      %p179 = scmp.ne.s32.totalorder %s165, %s166
      %p180 = scmp.eq.s32.totalorder %s22, 1
      %p181 = por %p179, %p180
      %p183 = scmp.ne.s32.totalorder %s166, %s182
      %p184 = scmp.eq.s32.totalorder %s22, 0
      %p185 = por %p183, %p184
      %s186 = ssub.s32 %s16, %s23
      %p187 = scmp.eq.s32.totalorder %s186, 0
      %s189 = sadd.s32 %s188, 1
      %s190 = scalar_select %p187, %s188, %s189
      %p193 = pneg %p187
      %p194 = scmp.eq.s32.totalorder %s16, 1
      %p195 = por %p193, %p194
      %p196 = scmp.ne.s32.totalorder %s188, %s191
      %p197 = scmp.eq.s32.totalorder %s16, 0
      %p198 = por %p196, %p197
      %p199 = scmp.ne.s32.totalorder %s188, %s191
      %p200 = scmp.eq.s32.totalorder %s21, 1
      %p201 = por %p199, %p200
      %p202 = scmp.ne.s32.totalorder %s191, %s192
      %p203 = scmp.eq.s32.totalorder %s21, 0
      %p204 = por %p202, %p203
      %p205 = scmp.ne.s32.totalorder %s191, %s192
      %p206 = scmp.eq.s32.totalorder %s22, 1
      %p207 = por %p205, %p206
      %p209 = scmp.ne.s32.totalorder %s192, %s208
      %p210 = scmp.eq.s32.totalorder %s22, 0
      %p211 = por %p209, %p210
      %s212 = sadd.s32 %s16, 1
      %s213 = sadd.s32 %s23, 1
      %s214 = ssub.s32 %s212, %s213
      %p215 = scmp.eq.s32.totalorder %s214, 0
      %s217 = sadd.s32 %s216, 1
      %s218 = scalar_select %p215, %s216, %s217
      %p221 = pneg %p215
      %p222 = scmp.eq.s32.totalorder %s16, 1
      %p223 = por %p221, %p222
      %p224 = scmp.ne.s32.totalorder %s216, %s219
      %p225 = scmp.eq.s32.totalorder %s16, 0
      %p226 = por %p224, %p225
      %p227 = scmp.ne.s32.totalorder %s216, %s219
      %p228 = scmp.eq.s32.totalorder %s21, 1
      %p229 = por %p227, %p228
      %p230 = scmp.ne.s32.totalorder %s219, %s220
      %p231 = scmp.eq.s32.totalorder %s21, 0
      %p232 = por %p230, %p231
      %p233 = scmp.ne.s32.totalorder %s219, %s220
      %p234 = scmp.eq.s32.totalorder %s22, 1
      %p235 = por %p233, %p234
      %p237 = scmp.ne.s32.totalorder %s220, %s236
      %p238 = scmp.eq.s32.totalorder %s22, 0
      %p239 = por %p237, %p238
      %s241 = sadd.s32 %s240, 1
      %p244 = scmp.eq.s32.totalorder %s16, 1
      %p245 = scmp.ne.s32.totalorder %s240, %s242
      %p246 = scmp.eq.s32.totalorder %s16, 0
      %p247 = por %p245, %p246
      %p248 = scmp.ne.s32.totalorder %s240, %s242
      %p249 = scmp.eq.s32.totalorder %s21, 1
      %p250 = por %p248, %p249
      %p251 = scmp.ne.s32.totalorder %s242, %s243
      %p252 = scmp.eq.s32.totalorder %s21, 0
      %p253 = por %p251, %p252
      %p254 = scmp.ne.s32.totalorder %s242, %s243
      %p255 = scmp.eq.s32.totalorder %s22, 1
      %p256 = por %p254, %p255
      %p258 = scmp.ne.s32.totalorder %s243, %s257
      %p259 = scmp.eq.s32.totalorder %s22, 0
      %p260 = por %p258, %p259
      %s262 = sadd.s32 %s261, 1
      %p265 = scmp.eq.s32.totalorder %s16, 1
      %p266 = scmp.ne.s32.totalorder %s261, %s263
      %p267 = scmp.eq.s32.totalorder %s16, 0
      %p268 = por %p266, %p267
      %p269 = scmp.ne.s32.totalorder %s261, %s263
      %p270 = scmp.eq.s32.totalorder %s21, 1
      %p271 = por %p269, %p270
      %p272 = scmp.ne.s32.totalorder %s263, %s264
      %p273 = scmp.eq.s32.totalorder %s21, 0
      %p274 = por %p272, %p273
      %p275 = scmp.ne.s32.totalorder %s263, %s264
      %p276 = scmp.eq.s32.totalorder %s22, 1
      %p277 = por %p275, %p276
      %p279 = scmp.ne.s32.totalorder %s264, %s278
      %p280 = scmp.eq.s32.totalorder %s22, 0
      %p281 = por %p279, %p280
      %s282 = ssub.s32 %s16, %s23
      %p283 = scmp.eq.s32.totalorder %s282, 0
      %s285 = sadd.s32 %s284, 1
      %s286 = scalar_select %p283, %s284, %s285
      %p289 = pneg %p283
      %p290 = scmp.eq.s32.totalorder %s16, 1
      %p291 = por %p289, %p290
      %p292 = scmp.ne.s32.totalorder %s284, %s287
      %p293 = scmp.eq.s32.totalorder %s16, 0
      %p294 = por %p292, %p293
      %p295 = scmp.ne.s32.totalorder %s284, %s287
      %p296 = scmp.eq.s32.totalorder %s21, 1
      %p297 = por %p295, %p296
      %p298 = scmp.ne.s32.totalorder %s287, %s288
      %p299 = scmp.eq.s32.totalorder %s21, 0
      %p300 = por %p298, %p299
      %p301 = scmp.ne.s32.totalorder %s287, %s288
      %p302 = scmp.eq.s32.totalorder %s22, 1
      %p303 = por %p301, %p302
      %p305 = scmp.ne.s32.totalorder %s288, %s304
      %p306 = scmp.eq.s32.totalorder %s22, 0
      %p307 = por %p305, %p306
      %p308 = scmp.le.s32.totalorder 1, %s16
      %p309 = scmp.lt.s32.totalorder %s16, 3
      %p310 = pnand %p308, %p309
      %p311 = pneg %p310
      // Predicated region
      $region9: #{forward.22} parent=5 // pred_check
        _
      $region10: #{forward.22} parent=5 // pred_check_branch
        %313 = sbr.rel (%p310) target = $region12
      $region11: #{forward.22} parent=5 // pred_region
        %s314 = ssub.s32 %s16, 1
        // Predicated region
        $region13: #{forward.22} parent=11 // pred_check
          %p315 = pneg %p253
        $region14: #{forward.22} parent=11 // pred_check_branch
          %317 = sbr.rel (%p315) target = $region16
        $region15: #{forward.22} parent=11 // pred_region
          _
        $region16: #{forward.22} parent=11 // pred_fallthru
          _
        // Predicated region
        $region17: #{forward.22} parent=11 // pred_check
          %p318 = pneg %p274
        $region18: #{forward.22} parent=11 // pred_check_branch
          %320 = sbr.rel (%p318) target = $region20
        $region19: #{forward.22} parent=11 // pred_region
          _
        $region20: #{forward.22} parent=11 // pred_fallthru
          _
      $region12: #{forward.22} parent=5 // pred_fallthru
        _
      %p321 = scmp.lt.s32.totalorder %s16, 2
      // Predicated region
      $region21: #{forward.22} parent=5 // pred_check
        %p322 = pneg %p321
      $region22: #{forward.22} parent=5 // pred_check_branch
        %324 = sbr.rel (%p322) target = $region24
      $region23: #{forward.22} parent=5 // pred_region
        // Predicated region
        $region25: #{forward.22} parent=23 // pred_check
          %p325 = pneg %p36
        $region26: #{forward.22} parent=23 // pred_check_branch
          %327 = sbr.rel (%p325) target = $region28
        $region27: #{forward.22} parent=23 // pred_region
          %s328 = sand.u32 %s26, 1
          %s329 = sand.u32 %s26, 1
          %s330 = smul.addr %s329, 16
          %s331 = scalar_lea.vmem [#allocation2], %s330
          %s332 = smul.addr %s16, 4
          %s333 = scalar_lea.vmem %s0, %s332
          // Predicated region
          $region29: #{forward.22} parent=27 // pred_check
            _
          $region30: #{forward.22} parent=27 // pred_check_branch
            %335 = sbr.rel (0) target = $region32
          $region31: #{forward.22} parent=27 // pred_region
            // Predicated region
            $region33: #{forward.22} parent=31 // pred_check
              _
            $region34: #{forward.22} parent=31 // pred_check_branch
              %337 = sbr.rel target = $region36
            $region35: #{forward.22} parent=31 // pred_region
              // Predicated region
              $region48: #{forward.22} parent=35 // pred_check
                _
              $region49: #{forward.22} parent=35 // pred_check_branch
                %359 = sbr.rel (0) target = $region51
              $region50: #{forward.22} parent=35 // pred_region
                loop: start=0, step=1, limit=1
                $region52: #{forward.22} parent=50 // loop_pre_header
                  _
                $region53: #{forward.22} parent=50 // loop_header
                  %s361 = sphi 0, %s365
                  %p362 = scmp.ge.s32.totalorder %s361, 1
                  %s366 = sphi %s333, %s333
                  %s367 = sphi %s331, %s331
                $region54: #{forward.22} parent=50 // loop_header_branch
                  %364 = sbr.rel (%p362) target = $region58
                $region55: #{forward.22} parent=50 // loop_body
                  _
                $region56: #{forward.22} parent=50 // loop_footer
                  %s365 = sadd.s32 1, %s361
                $region57: #{forward.22} parent=50 // loop_footer_branch
                  %360 = sbr.rel target = $region53
                $region58: #{forward.22} parent=50 // loop_exit
                  _
                %s369 = ssub.s32 16, 1
                loop: start=0, step=1, limit=1
                $region59: #{forward.22} parent=50 // loop_pre_header
                  _
                $region60: #{forward.22} parent=50 // loop_header
                  %s371 = sphi 0, %s375
                  %p372 = scmp.ge.s32.totalorder %s371, 1
                  %s376 = sphi %s333, %s333
                  %s377 = sphi %s331, %s331
                $region61: #{forward.22} parent=50 // loop_header_branch
                  %374 = sbr.rel (%p372) target = $region65
                $region62: #{forward.22} parent=50 // loop_body
                  %v378 = vld [vmem:[%s376] sm:%s369]
                  %379 = vst [vmem:[%s377] sm:%s369] %v378
                  %v380 = vld [vmem:[%s376 + $0xc] sm:%s369]
                  %381 = vst [vmem:[%s377 + $0x4] sm:%s369] %v380
                  %v382 = vld [vmem:[%s376 + $0x18] sm:%s369]
                  %383 = vst [vmem:[%s377 + $0x8] sm:%s369] %v382
                  %v384 = vld [vmem:[%s376 + $0x24] sm:%s369]
                  %385 = vst [vmem:[%s377 + $0xc] sm:%s369] %v384
                $region63: #{forward.22} parent=50 // loop_footer
                  %s375 = sadd.s32 1, %s371
                $region64: #{forward.22} parent=50 // loop_footer_branch
                  %370 = sbr.rel target = $region60
                $region65: #{forward.22} parent=50 // loop_exit
                  _
              $region51: #{forward.22} parent=35 // pred_fallthru
                _
            $region36: #{forward.22} parent=31 // pred_fallthru
              _
            // Predicated region
            $region37: #{forward.22} parent=31 // pred_check
              _
            $region38: #{forward.22} parent=31 // pred_check_branch
              %339 = sbr.rel (0) target = $region40
            $region39: #{forward.22} parent=31 // pred_region
              %s341 = ssub.s32 16, 1
              loop: start=0, step=1, limit=1
              $region41: #{forward.22} parent=39 // loop_pre_header
                _
              $region42: #{forward.22} parent=39 // loop_header
                %s343 = sphi 0, %s347
                %p344 = scmp.ge.s32.totalorder %s343, 1
                %s348 = sphi %s333, %s333
                %s349 = sphi %s331, %s331
              $region43: #{forward.22} parent=39 // loop_header_branch
                %346 = sbr.rel (%p344) target = $region47
              $region44: #{forward.22} parent=39 // loop_body
                %v350 = vld [vmem:[%s348] sm:%s341]
                %351 = vst [vmem:[%s349] sm:%s341] %v350
                %v352 = vld [vmem:[%s348 + $0xc] sm:%s341]
                %353 = vst [vmem:[%s349 + $0x4] sm:%s341] %v352
                %v354 = vld [vmem:[%s348 + $0x18] sm:%s341]
                %355 = vst [vmem:[%s349 + $0x8] sm:%s341] %v354
                %v356 = vld [vmem:[%s348 + $0x24] sm:%s341]
                %357 = vst [vmem:[%s349 + $0xc] sm:%s341] %v356
              $region45: #{forward.22} parent=39 // loop_footer
                %s347 = sadd.s32 1, %s343
              $region46: #{forward.22} parent=39 // loop_footer_branch
                %342 = sbr.rel target = $region42
              $region47: #{forward.22} parent=39 // loop_exit
                _
            $region40: #{forward.22} parent=31 // pred_fallthru
              _
          $region32: #{forward.22} parent=27 // pred_fallthru
            _
          %386 = vnop
        $region28: #{forward.22} parent=23 // pred_fallthru
          _
        // Predicated region
        $region66: #{forward.22} parent=23 // pred_check
          %p387 = pneg %p64
        $region67: #{forward.22} parent=23 // pred_check_branch
          %389 = sbr.rel (%p387) target = $region69
        $region68: #{forward.22} parent=23 // pred_region
          %s390 = sand.u32 %s54, 1
          %s391 = sand.u32 %s54, 1
          %s392 = smul.addr %s391, 16
          %s393 = scalar_lea.vmem [#allocation3], %s392
          %s394 = sadd.s32 %s16, 1
          %s395 = smul.addr %s394, 4
          %s396 = scalar_lea.vmem %s1, %s395
          // Predicated region
          $region70: #{forward.22} parent=68 // pred_check
            _
          $region71: #{forward.22} parent=68 // pred_check_branch
            %398 = sbr.rel (0) target = $region73
          $region72: #{forward.22} parent=68 // pred_region
            // Predicated region
            $region74: #{forward.22} parent=72 // pred_check
              _
            $region75: #{forward.22} parent=72 // pred_check_branch
              %400 = sbr.rel target = $region77
            $region76: #{forward.22} parent=72 // pred_region
              // Predicated region
              $region89: #{forward.22} parent=76 // pred_check
                _
              $region90: #{forward.22} parent=76 // pred_check_branch
                %422 = sbr.rel (0) target = $region92
              $region91: #{forward.22} parent=76 // pred_region
                loop: start=0, step=1, limit=1
                $region93: #{forward.22} parent=91 // loop_pre_header
                  _
                $region94: #{forward.22} parent=91 // loop_header
                  %s424 = sphi 0, %s428
                  %p425 = scmp.ge.s32.totalorder %s424, 1
                  %s429 = sphi %s396, %s396
                  %s430 = sphi %s393, %s393
                $region95: #{forward.22} parent=91 // loop_header_branch
                  %427 = sbr.rel (%p425) target = $region99
                $region96: #{forward.22} parent=91 // loop_body
                  _
                $region97: #{forward.22} parent=91 // loop_footer
                  %s428 = sadd.s32 1, %s424
                $region98: #{forward.22} parent=91 // loop_footer_branch
                  %423 = sbr.rel target = $region94
                $region99: #{forward.22} parent=91 // loop_exit
                  _
                %s432 = ssub.s32 16, 1
                loop: start=0, step=1, limit=1
                $region100: #{forward.22} parent=91 // loop_pre_header
                  _
                $region101: #{forward.22} parent=91 // loop_header
                  %s434 = sphi 0, %s438
                  %p435 = scmp.ge.s32.totalorder %s434, 1
                  %s439 = sphi %s396, %s396
                  %s440 = sphi %s393, %s393
                $region102: #{forward.22} parent=91 // loop_header_branch
                  %437 = sbr.rel (%p435) target = $region106
                $region103: #{forward.22} parent=91 // loop_body
                  %v441 = vld [vmem:[%s439] sm:%s432]
                  %442 = vst [vmem:[%s440] sm:%s432] %v441
                  %v443 = vld [vmem:[%s439 + $0xc] sm:%s432]
                  %444 = vst [vmem:[%s440 + $0x4] sm:%s432] %v443
                  %v445 = vld [vmem:[%s439 + $0x18] sm:%s432]
                  %446 = vst [vmem:[%s440 + $0x8] sm:%s432] %v445
                  %v447 = vld [vmem:[%s439 + $0x24] sm:%s432]
                  %448 = vst [vmem:[%s440 + $0xc] sm:%s432] %v447
                $region104: #{forward.22} parent=91 // loop_footer
                  %s438 = sadd.s32 1, %s434
                $region105: #{forward.22} parent=91 // loop_footer_branch
                  %433 = sbr.rel target = $region101
                $region106: #{forward.22} parent=91 // loop_exit
                  _
              $region92: #{forward.22} parent=76 // pred_fallthru
                _
            $region77: #{forward.22} parent=72 // pred_fallthru
              _
            // Predicated region
            $region78: #{forward.22} parent=72 // pred_check
              _
            $region79: #{forward.22} parent=72 // pred_check_branch
              %402 = sbr.rel (0) target = $region81
            $region80: #{forward.22} parent=72 // pred_region
              %s404 = ssub.s32 16, 1
              loop: start=0, step=1, limit=1
              $region82: #{forward.22} parent=80 // loop_pre_header
                _
              $region83: #{forward.22} parent=80 // loop_header
                %s406 = sphi 0, %s410
                %p407 = scmp.ge.s32.totalorder %s406, 1
                %s411 = sphi %s396, %s396
                %s412 = sphi %s393, %s393
              $region84: #{forward.22} parent=80 // loop_header_branch
                %409 = sbr.rel (%p407) target = $region88
              $region85: #{forward.22} parent=80 // loop_body
                %v413 = vld [vmem:[%s411] sm:%s404]
                %414 = vst [vmem:[%s412] sm:%s404] %v413
                %v415 = vld [vmem:[%s411 + $0xc] sm:%s404]
                %416 = vst [vmem:[%s412 + $0x4] sm:%s404] %v415
                %v417 = vld [vmem:[%s411 + $0x18] sm:%s404]
                %418 = vst [vmem:[%s412 + $0x8] sm:%s404] %v417
                %v419 = vld [vmem:[%s411 + $0x24] sm:%s404]
                %420 = vst [vmem:[%s412 + $0xc] sm:%s404] %v419
              $region86: #{forward.22} parent=80 // loop_footer
                %s410 = sadd.s32 1, %s406
              $region87: #{forward.22} parent=80 // loop_footer_branch
                %405 = sbr.rel target = $region83
              $region88: #{forward.22} parent=80 // loop_exit
                _
            $region81: #{forward.22} parent=72 // pred_fallthru
              _
          $region73: #{forward.22} parent=68 // pred_fallthru
            _
          %449 = vnop
        $region69: #{forward.22} parent=23 // pred_fallthru
          _
        // Predicated region
        $region107: #{forward.22} parent=23 // pred_check
          %p450 = pneg %p90
        $region108: #{forward.22} parent=23 // pred_check_branch
          %452 = sbr.rel (%p450) target = $region110
        $region109: #{forward.22} parent=23 // pred_region
          %s453 = sand.u32 %s80, 1
          %s454 = sand.u32 %s80, 1
          %s455 = smul.addr %s454, 16
          %s456 = scalar_lea.vmem [#allocation4], %s455
          %s457 = smul.addr %s16, 4
          %s458 = scalar_lea.vmem %s2, %s457
          // Predicated region
          $region111: #{forward.22} parent=109 // pred_check
            _
          $region112: #{forward.22} parent=109 // pred_check_branch
            %460 = sbr.rel (0) target = $region114
          $region113: #{forward.22} parent=109 // pred_region
            // Predicated region
            $region115: #{forward.22} parent=113 // pred_check
              _
            $region116: #{forward.22} parent=113 // pred_check_branch
              %462 = sbr.rel target = $region118
            $region117: #{forward.22} parent=113 // pred_region
              // Predicated region
              $region130: #{forward.22} parent=117 // pred_check
                _
              $region131: #{forward.22} parent=117 // pred_check_branch
                %484 = sbr.rel (0) target = $region133
              $region132: #{forward.22} parent=117 // pred_region
                loop: start=0, step=1, limit=1
                $region134: #{forward.22} parent=132 // loop_pre_header
                  _
                $region135: #{forward.22} parent=132 // loop_header
                  %s486 = sphi 0, %s490
                  %p487 = scmp.ge.s32.totalorder %s486, 1
                  %s491 = sphi %s458, %s458
                  %s492 = sphi %s456, %s456
                $region136: #{forward.22} parent=132 // loop_header_branch
                  %489 = sbr.rel (%p487) target = $region140
                $region137: #{forward.22} parent=132 // loop_body
                  _
                $region138: #{forward.22} parent=132 // loop_footer
                  %s490 = sadd.s32 1, %s486
                $region139: #{forward.22} parent=132 // loop_footer_branch
                  %485 = sbr.rel target = $region135
                $region140: #{forward.22} parent=132 // loop_exit
                  _
                %s494 = ssub.s32 16, 1
                loop: start=0, step=1, limit=1
                $region141: #{forward.22} parent=132 // loop_pre_header
                  _
                $region142: #{forward.22} parent=132 // loop_header
                  %s496 = sphi 0, %s500
                  %p497 = scmp.ge.s32.totalorder %s496, 1
                  %s501 = sphi %s458, %s458
                  %s502 = sphi %s456, %s456
                $region143: #{forward.22} parent=132 // loop_header_branch
                  %499 = sbr.rel (%p497) target = $region147
                $region144: #{forward.22} parent=132 // loop_body
                  %v503 = vld [vmem:[%s501] sm:%s494]
                  %504 = vst [vmem:[%s502] sm:%s494] %v503
                  %v505 = vld [vmem:[%s501 + $0xc] sm:%s494]
                  %506 = vst [vmem:[%s502 + $0x4] sm:%s494] %v505
                  %v507 = vld [vmem:[%s501 + $0x18] sm:%s494]
                  %508 = vst [vmem:[%s502 + $0x8] sm:%s494] %v507
                  %v509 = vld [vmem:[%s501 + $0x24] sm:%s494]
                  %510 = vst [vmem:[%s502 + $0xc] sm:%s494] %v509
                $region145: #{forward.22} parent=132 // loop_footer
                  %s500 = sadd.s32 1, %s496
                $region146: #{forward.22} parent=132 // loop_footer_branch
                  %495 = sbr.rel target = $region142
                $region147: #{forward.22} parent=132 // loop_exit
                  _
              $region133: #{forward.22} parent=117 // pred_fallthru
                _
            $region118: #{forward.22} parent=113 // pred_fallthru
              _
            // Predicated region
            $region119: #{forward.22} parent=113 // pred_check
              _
            $region120: #{forward.22} parent=113 // pred_check_branch
              %464 = sbr.rel (0) target = $region122
            $region121: #{forward.22} parent=113 // pred_region
              %s466 = ssub.s32 16, 1
              loop: start=0, step=1, limit=1
              $region123: #{forward.22} parent=121 // loop_pre_header
                _
              $region124: #{forward.22} parent=121 // loop_header
                %s468 = sphi 0, %s472
                %p469 = scmp.ge.s32.totalorder %s468, 1
                %s473 = sphi %s458, %s458
                %s474 = sphi %s456, %s456
              $region125: #{forward.22} parent=121 // loop_header_branch
                %471 = sbr.rel (%p469) target = $region129
              $region126: #{forward.22} parent=121 // loop_body
                %v475 = vld [vmem:[%s473] sm:%s466]
                %476 = vst [vmem:[%s474] sm:%s466] %v475
                %v477 = vld [vmem:[%s473 + $0xc] sm:%s466]
                %478 = vst [vmem:[%s474 + $0x4] sm:%s466] %v477
                %v479 = vld [vmem:[%s473 + $0x18] sm:%s466]
                %480 = vst [vmem:[%s474 + $0x8] sm:%s466] %v479
                %v481 = vld [vmem:[%s473 + $0x24] sm:%s466]
                %482 = vst [vmem:[%s474 + $0xc] sm:%s466] %v481
              $region127: #{forward.22} parent=121 // loop_footer
                %s472 = sadd.s32 1, %s468
              $region128: #{forward.22} parent=121 // loop_footer_branch
                %467 = sbr.rel target = $region124
              $region129: #{forward.22} parent=121 // loop_exit
                _
            $region122: #{forward.22} parent=113 // pred_fallthru
              _
          $region114: #{forward.22} parent=109 // pred_fallthru
            _
          %511 = vnop
        $region110: #{forward.22} parent=23 // pred_fallthru
          _
        // Predicated region
        $region148: #{forward.22} parent=23 // pred_check
          %p512 = pneg %p118
        $region149: #{forward.22} parent=23 // pred_check_branch
          %514 = sbr.rel (%p512) target = $region151
        $region150: #{forward.22} parent=23 // pred_region
          %s515 = sand.u32 %s108, 1
          %s516 = sand.u32 %s108, 1
          %s517 = smul.addr %s516, 16
          %s518 = scalar_lea.vmem [#allocation5], %s517
          %s519 = sadd.s32 %s16, 1
          %s520 = smul.addr %s519, 4
          %s521 = scalar_lea.vmem %s3, %s520
          // Predicated region
          $region152: #{forward.22} parent=150 // pred_check
            _
          $region153: #{forward.22} parent=150 // pred_check_branch
            %523 = sbr.rel (0) target = $region155
          $region154: #{forward.22} parent=150 // pred_region
            // Predicated region
            $region156: #{forward.22} parent=154 // pred_check
              _
            $region157: #{forward.22} parent=154 // pred_check_branch
              %525 = sbr.rel target = $region159
            $region158: #{forward.22} parent=154 // pred_region
              // Predicated region
              $region171: #{forward.22} parent=158 // pred_check
                _
              $region172: #{forward.22} parent=158 // pred_check_branch
                %547 = sbr.rel (0) target = $region174
              $region173: #{forward.22} parent=158 // pred_region
                loop: start=0, step=1, limit=1
                $region175: #{forward.22} parent=173 // loop_pre_header
                  _
                $region176: #{forward.22} parent=173 // loop_header
                  %s549 = sphi 0, %s553
                  %p550 = scmp.ge.s32.totalorder %s549, 1
                  %s554 = sphi %s521, %s521
                  %s555 = sphi %s518, %s518
                $region177: #{forward.22} parent=173 // loop_header_branch
                  %552 = sbr.rel (%p550) target = $region181
                $region178: #{forward.22} parent=173 // loop_body
                  _
                $region179: #{forward.22} parent=173 // loop_footer
                  %s553 = sadd.s32 1, %s549
                $region180: #{forward.22} parent=173 // loop_footer_branch
                  %548 = sbr.rel target = $region176
                $region181: #{forward.22} parent=173 // loop_exit
                  _
                %s557 = ssub.s32 16, 1
                loop: start=0, step=1, limit=1
                $region182: #{forward.22} parent=173 // loop_pre_header
                  _
                $region183: #{forward.22} parent=173 // loop_header
                  %s559 = sphi 0, %s563
                  %p560 = scmp.ge.s32.totalorder %s559, 1
                  %s564 = sphi %s521, %s521
                  %s565 = sphi %s518, %s518
                $region184: #{forward.22} parent=173 // loop_header_branch
                  %562 = sbr.rel (%p560) target = $region188
                $region185: #{forward.22} parent=173 // loop_body
                  %v566 = vld [vmem:[%s564] sm:%s557]
                  %567 = vst [vmem:[%s565] sm:%s557] %v566
                  %v568 = vld [vmem:[%s564 + $0xc] sm:%s557]
                  %569 = vst [vmem:[%s565 + $0x4] sm:%s557] %v568
                  %v570 = vld [vmem:[%s564 + $0x18] sm:%s557]
                  %571 = vst [vmem:[%s565 + $0x8] sm:%s557] %v570
                  %v572 = vld [vmem:[%s564 + $0x24] sm:%s557]
                  %573 = vst [vmem:[%s565 + $0xc] sm:%s557] %v572
                $region186: #{forward.22} parent=173 // loop_footer
                  %s563 = sadd.s32 1, %s559
                $region187: #{forward.22} parent=173 // loop_footer_branch
                  %558 = sbr.rel target = $region183
                $region188: #{forward.22} parent=173 // loop_exit
                  _
              $region174: #{forward.22} parent=158 // pred_fallthru
                _
            $region159: #{forward.22} parent=154 // pred_fallthru
              _
            // Predicated region
            $region160: #{forward.22} parent=154 // pred_check
              _
            $region161: #{forward.22} parent=154 // pred_check_branch
              %527 = sbr.rel (0) target = $region163
            $region162: #{forward.22} parent=154 // pred_region
              %s529 = ssub.s32 16, 1
              loop: start=0, step=1, limit=1
              $region164: #{forward.22} parent=162 // loop_pre_header
                _
              $region165: #{forward.22} parent=162 // loop_header
                %s531 = sphi 0, %s535
                %p532 = scmp.ge.s32.totalorder %s531, 1
                %s536 = sphi %s521, %s521
                %s537 = sphi %s518, %s518
              $region166: #{forward.22} parent=162 // loop_header_branch
                %534 = sbr.rel (%p532) target = $region170
              $region167: #{forward.22} parent=162 // loop_body
                %v538 = vld [vmem:[%s536] sm:%s529]
                %539 = vst [vmem:[%s537] sm:%s529] %v538
                %v540 = vld [vmem:[%s536 + $0xc] sm:%s529]
                %541 = vst [vmem:[%s537 + $0x4] sm:%s529] %v540
                %v542 = vld [vmem:[%s536 + $0x18] sm:%s529]
                %543 = vst [vmem:[%s537 + $0x8] sm:%s529] %v542
                %v544 = vld [vmem:[%s536 + $0x24] sm:%s529]
                %545 = vst [vmem:[%s537 + $0xc] sm:%s529] %v544
              $region168: #{forward.22} parent=162 // loop_footer
                %s535 = sadd.s32 1, %s531
              $region169: #{forward.22} parent=162 // loop_footer_branch
                %530 = sbr.rel target = $region165
              $region170: #{forward.22} parent=162 // loop_exit
                _
            $region163: #{forward.22} parent=154 // pred_fallthru
              _
          $region155: #{forward.22} parent=150 // pred_fallthru
            _
          %574 = vnop
        $region151: #{forward.22} parent=23 // pred_fallthru
          _
        // Predicated region
        $region189: #{forward.22} parent=23 // pred_check
          %p575 = pneg %p144
        $region190: #{forward.22} parent=23 // pred_check_branch
          %577 = sbr.rel (%p575) target = $region192
        $region191: #{forward.22} parent=23 // pred_region
          %s578 = sand.u32 %s134, 1
          %s579 = sand.u32 %s134, 1
          %s580 = smul.addr %s579, 16
          %s581 = scalar_lea.vmem [#allocation6], %s580
          %s582 = smul.addr %s16, 4
          %s583 = scalar_lea.vmem %s4, %s582
          // Predicated region
          $region193: #{forward.22} parent=191 // pred_check
            _
          $region194: #{forward.22} parent=191 // pred_check_branch
            %585 = sbr.rel (0) target = $region196
          $region195: #{forward.22} parent=191 // pred_region
            // Predicated region
            $region197: #{forward.22} parent=195 // pred_check
              _
            $region198: #{forward.22} parent=195 // pred_check_branch
              %587 = sbr.rel target = $region200
            $region199: #{forward.22} parent=195 // pred_region
              // Predicated region
              $region212: #{forward.22} parent=199 // pred_check
                _
              $region213: #{forward.22} parent=199 // pred_check_branch
                %609 = sbr.rel (0) target = $region215
              $region214: #{forward.22} parent=199 // pred_region
                loop: start=0, step=1, limit=1
                $region216: #{forward.22} parent=214 // loop_pre_header
                  _
                $region217: #{forward.22} parent=214 // loop_header
                  %s611 = sphi 0, %s615
                  %p612 = scmp.ge.s32.totalorder %s611, 1
                  %s616 = sphi %s583, %s583
                  %s617 = sphi %s581, %s581
                $region218: #{forward.22} parent=214 // loop_header_branch
                  %614 = sbr.rel (%p612) target = $region222
                $region219: #{forward.22} parent=214 // loop_body
                  _
                $region220: #{forward.22} parent=214 // loop_footer
                  %s615 = sadd.s32 1, %s611
                $region221: #{forward.22} parent=214 // loop_footer_branch
                  %610 = sbr.rel target = $region217
                $region222: #{forward.22} parent=214 // loop_exit
                  _
                %s619 = ssub.s32 16, 1
                loop: start=0, step=1, limit=1
                $region223: #{forward.22} parent=214 // loop_pre_header
                  _
                $region224: #{forward.22} parent=214 // loop_header
                  %s621 = sphi 0, %s625
                  %p622 = scmp.ge.s32.totalorder %s621, 1
                  %s626 = sphi %s583, %s583
                  %s627 = sphi %s581, %s581
                $region225: #{forward.22} parent=214 // loop_header_branch
                  %624 = sbr.rel (%p622) target = $region229
                $region226: #{forward.22} parent=214 // loop_body
                  %v628 = vld [vmem:[%s626] sm:%s619]
                  %629 = vst [vmem:[%s627] sm:%s619] %v628
                  %v630 = vld [vmem:[%s626 + $0xc] sm:%s619]
                  %631 = vst [vmem:[%s627 + $0x4] sm:%s619] %v630
                  %v632 = vld [vmem:[%s626 + $0x18] sm:%s619]
                  %633 = vst [vmem:[%s627 + $0x8] sm:%s619] %v632
                  %v634 = vld [vmem:[%s626 + $0x24] sm:%s619]
                  %635 = vst [vmem:[%s627 + $0xc] sm:%s619] %v634
                $region227: #{forward.22} parent=214 // loop_footer
                  %s625 = sadd.s32 1, %s621
                $region228: #{forward.22} parent=214 // loop_footer_branch
                  %620 = sbr.rel target = $region224
                $region229: #{forward.22} parent=214 // loop_exit
                  _
              $region215: #{forward.22} parent=199 // pred_fallthru
                _
            $region200: #{forward.22} parent=195 // pred_fallthru
              _
            // Predicated region
            $region201: #{forward.22} parent=195 // pred_check
              _
            $region202: #{forward.22} parent=195 // pred_check_branch
              %589 = sbr.rel (0) target = $region204
            $region203: #{forward.22} parent=195 // pred_region
              %s591 = ssub.s32 16, 1
              loop: start=0, step=1, limit=1
              $region205: #{forward.22} parent=203 // loop_pre_header
                _
              $region206: #{forward.22} parent=203 // loop_header
                %s593 = sphi 0, %s597
                %p594 = scmp.ge.s32.totalorder %s593, 1
                %s598 = sphi %s583, %s583
                %s599 = sphi %s581, %s581
              $region207: #{forward.22} parent=203 // loop_header_branch
                %596 = sbr.rel (%p594) target = $region211
              $region208: #{forward.22} parent=203 // loop_body
                %v600 = vld [vmem:[%s598] sm:%s591]
                %601 = vst [vmem:[%s599] sm:%s591] %v600
                %v602 = vld [vmem:[%s598 + $0xc] sm:%s591]
                %603 = vst [vmem:[%s599 + $0x4] sm:%s591] %v602
                %v604 = vld [vmem:[%s598 + $0x18] sm:%s591]
                %605 = vst [vmem:[%s599 + $0x8] sm:%s591] %v604
                %v606 = vld [vmem:[%s598 + $0x24] sm:%s591]
                %607 = vst [vmem:[%s599 + $0xc] sm:%s591] %v606
              $region209: #{forward.22} parent=203 // loop_footer
                %s597 = sadd.s32 1, %s593
              $region210: #{forward.22} parent=203 // loop_footer_branch
                %592 = sbr.rel target = $region206
              $region211: #{forward.22} parent=203 // loop_exit
                _
            $region204: #{forward.22} parent=195 // pred_fallthru
              _
          $region196: #{forward.22} parent=191 // pred_fallthru
            _
          %636 = vnop
        $region192: #{forward.22} parent=23 // pred_fallthru
          _
        // Predicated region
        $region230: #{forward.22} parent=23 // pred_check
          %p637 = pneg %p172
        $region231: #{forward.22} parent=23 // pred_check_branch
          %639 = sbr.rel (%p637) target = $region233
        $region232: #{forward.22} parent=23 // pred_region
          %s640 = sand.u32 %s162, 1
          %s641 = sand.u32 %s162, 1
          %s642 = smul.addr %s641, 16
          %s643 = scalar_lea.vmem [#allocation7], %s642
          %s644 = sadd.s32 %s16, 1
          %s645 = smul.addr %s644, 4
          %s646 = scalar_lea.vmem %s5, %s645
          // Predicated region
          $region234: #{forward.22} parent=232 // pred_check
            _
          $region235: #{forward.22} parent=232 // pred_check_branch
            %648 = sbr.rel (0) target = $region237
          $region236: #{forward.22} parent=232 // pred_region
            // Predicated region
            $region238: #{forward.22} parent=236 // pred_check
              _
            $region239: #{forward.22} parent=236 // pred_check_branch
              %650 = sbr.rel target = $region241
            $region240: #{forward.22} parent=236 // pred_region
              // Predicated region
              $region253: #{forward.22} parent=240 // pred_check
                _
              $region254: #{forward.22} parent=240 // pred_check_branch
                %672 = sbr.rel (0) target = $region256
              $region255: #{forward.22} parent=240 // pred_region
                loop: start=0, step=1, limit=1
                $region257: #{forward.22} parent=255 // loop_pre_header
                  _
                $region258: #{forward.22} parent=255 // loop_header
                  %s674 = sphi 0, %s678
                  %p675 = scmp.ge.s32.totalorder %s674, 1
                  %s679 = sphi %s646, %s646
                  %s680 = sphi %s643, %s643
                $region259: #{forward.22} parent=255 // loop_header_branch
                  %677 = sbr.rel (%p675) target = $region263
                $region260: #{forward.22} parent=255 // loop_body
                  _
                $region261: #{forward.22} parent=255 // loop_footer
                  %s678 = sadd.s32 1, %s674
                $region262: #{forward.22} parent=255 // loop_footer_branch
                  %673 = sbr.rel target = $region258
                $region263: #{forward.22} parent=255 // loop_exit
                  _
                %s682 = ssub.s32 16, 1
                loop: start=0, step=1, limit=1
                $region264: #{forward.22} parent=255 // loop_pre_header
                  _
                $region265: #{forward.22} parent=255 // loop_header
                  %s684 = sphi 0, %s688
                  %p685 = scmp.ge.s32.totalorder %s684, 1
                  %s689 = sphi %s646, %s646
                  %s690 = sphi %s643, %s643
                $region266: #{forward.22} parent=255 // loop_header_branch
                  %687 = sbr.rel (%p685) target = $region270
                $region267: #{forward.22} parent=255 // loop_body
                  %v691 = vld [vmem:[%s689] sm:%s682]
                  %692 = vst [vmem:[%s690] sm:%s682] %v691
                  %v693 = vld [vmem:[%s689 + $0xc] sm:%s682]
                  %694 = vst [vmem:[%s690 + $0x4] sm:%s682] %v693
                  %v695 = vld [vmem:[%s689 + $0x18] sm:%s682]
                  %696 = vst [vmem:[%s690 + $0x8] sm:%s682] %v695
                  %v697 = vld [vmem:[%s689 + $0x24] sm:%s682]
                  %698 = vst [vmem:[%s690 + $0xc] sm:%s682] %v697
                $region268: #{forward.22} parent=255 // loop_footer
                  %s688 = sadd.s32 1, %s684
                $region269: #{forward.22} parent=255 // loop_footer_branch
                  %683 = sbr.rel target = $region265
                $region270: #{forward.22} parent=255 // loop_exit
                  _
              $region256: #{forward.22} parent=240 // pred_fallthru
                _
            $region241: #{forward.22} parent=236 // pred_fallthru
              _
            // Predicated region
            $region242: #{forward.22} parent=236 // pred_check
              _
            $region243: #{forward.22} parent=236 // pred_check_branch
              %652 = sbr.rel (0) target = $region245
            $region244: #{forward.22} parent=236 // pred_region
              %s654 = ssub.s32 16, 1
              loop: start=0, step=1, limit=1
              $region246: #{forward.22} parent=244 // loop_pre_header
                _
              $region247: #{forward.22} parent=244 // loop_header
                %s656 = sphi 0, %s660
                %p657 = scmp.ge.s32.totalorder %s656, 1
                %s661 = sphi %s646, %s646
                %s662 = sphi %s643, %s643
              $region248: #{forward.22} parent=244 // loop_header_branch
                %659 = sbr.rel (%p657) target = $region252
              $region249: #{forward.22} parent=244 // loop_body
                %v663 = vld [vmem:[%s661] sm:%s654]
                %664 = vst [vmem:[%s662] sm:%s654] %v663
                %v665 = vld [vmem:[%s661 + $0xc] sm:%s654]
                %666 = vst [vmem:[%s662 + $0x4] sm:%s654] %v665
                %v667 = vld [vmem:[%s661 + $0x18] sm:%s654]
                %668 = vst [vmem:[%s662 + $0x8] sm:%s654] %v667
                %v669 = vld [vmem:[%s661 + $0x24] sm:%s654]
                %670 = vst [vmem:[%s662 + $0xc] sm:%s654] %v669
              $region250: #{forward.22} parent=244 // loop_footer
                %s660 = sadd.s32 1, %s656
              $region251: #{forward.22} parent=244 // loop_footer_branch
                %655 = sbr.rel target = $region247
              $region252: #{forward.22} parent=244 // loop_exit
                _
            $region245: #{forward.22} parent=236 // pred_fallthru
              _
          $region237: #{forward.22} parent=232 // pred_fallthru
            _
          %699 = vnop
        $region233: #{forward.22} parent=23 // pred_fallthru
          _
        // Predicated region
        $region271: #{forward.22} parent=23 // pred_check
          %p700 = pneg %p198
        $region272: #{forward.22} parent=23 // pred_check_branch
          %702 = sbr.rel (%p700) target = $region274
        $region273: #{forward.22} parent=23 // pred_region
          %s703 = sand.u32 %s188, 1
          %s704 = sand.u32 %s188, 1
          %s705 = smul.addr %s704, 16
          %s706 = scalar_lea.vmem [#allocation8], %s705
          %s707 = smul.addr %s16, 4
          %s708 = scalar_lea.vmem %s6, %s707
          // Predicated region
          $region275: #{forward.22} parent=273 // pred_check
            _
          $region276: #{forward.22} parent=273 // pred_check_branch
            %710 = sbr.rel (0) target = $region278
          $region277: #{forward.22} parent=273 // pred_region
            // Predicated region
            $region279: #{forward.22} parent=277 // pred_check
              _
            $region280: #{forward.22} parent=277 // pred_check_branch
              %712 = sbr.rel target = $region282
            $region281: #{forward.22} parent=277 // pred_region
              // Predicated region
              $region294: #{forward.22} parent=281 // pred_check
                _
              $region295: #{forward.22} parent=281 // pred_check_branch
                %734 = sbr.rel (0) target = $region297
              $region296: #{forward.22} parent=281 // pred_region
                loop: start=0, step=1, limit=1
                $region298: #{forward.22} parent=296 // loop_pre_header
                  _
                $region299: #{forward.22} parent=296 // loop_header
                  %s736 = sphi 0, %s740
                  %p737 = scmp.ge.s32.totalorder %s736, 1
                  %s741 = sphi %s708, %s708
                  %s742 = sphi %s706, %s706
                $region300: #{forward.22} parent=296 // loop_header_branch
                  %739 = sbr.rel (%p737) target = $region304
                $region301: #{forward.22} parent=296 // loop_body
                  _
                $region302: #{forward.22} parent=296 // loop_footer
                  %s740 = sadd.s32 1, %s736
                $region303: #{forward.22} parent=296 // loop_footer_branch
                  %735 = sbr.rel target = $region299
                $region304: #{forward.22} parent=296 // loop_exit
                  _
                %s744 = ssub.s32 16, 1
                loop: start=0, step=1, limit=1
                $region305: #{forward.22} parent=296 // loop_pre_header
                  _
                $region306: #{forward.22} parent=296 // loop_header
                  %s746 = sphi 0, %s750
                  %p747 = scmp.ge.s32.totalorder %s746, 1
                  %s751 = sphi %s708, %s708
                  %s752 = sphi %s706, %s706
                $region307: #{forward.22} parent=296 // loop_header_branch
                  %749 = sbr.rel (%p747) target = $region311
                $region308: #{forward.22} parent=296 // loop_body
                  %v753 = vld [vmem:[%s751] sm:%s744]
                  %754 = vst [vmem:[%s752] sm:%s744] %v753
                  %v755 = vld [vmem:[%s751 + $0xc] sm:%s744]
                  %756 = vst [vmem:[%s752 + $0x4] sm:%s744] %v755
                  %v757 = vld [vmem:[%s751 + $0x18] sm:%s744]
                  %758 = vst [vmem:[%s752 + $0x8] sm:%s744] %v757
                  %v759 = vld [vmem:[%s751 + $0x24] sm:%s744]
                  %760 = vst [vmem:[%s752 + $0xc] sm:%s744] %v759
                $region309: #{forward.22} parent=296 // loop_footer
                  %s750 = sadd.s32 1, %s746
                $region310: #{forward.22} parent=296 // loop_footer_branch
                  %745 = sbr.rel target = $region306
                $region311: #{forward.22} parent=296 // loop_exit
                  _
              $region297: #{forward.22} parent=281 // pred_fallthru
                _
            $region282: #{forward.22} parent=277 // pred_fallthru
              _
            // Predicated region
            $region283: #{forward.22} parent=277 // pred_check
              _
            $region284: #{forward.22} parent=277 // pred_check_branch
              %714 = sbr.rel (0) target = $region286
            $region285: #{forward.22} parent=277 // pred_region
              %s716 = ssub.s32 16, 1
              loop: start=0, step=1, limit=1
              $region287: #{forward.22} parent=285 // loop_pre_header
                _
              $region288: #{forward.22} parent=285 // loop_header
                %s718 = sphi 0, %s722
                %p719 = scmp.ge.s32.totalorder %s718, 1
                %s723 = sphi %s708, %s708
                %s724 = sphi %s706, %s706
              $region289: #{forward.22} parent=285 // loop_header_branch
                %721 = sbr.rel (%p719) target = $region293
              $region290: #{forward.22} parent=285 // loop_body
                %v725 = vld [vmem:[%s723] sm:%s716]
                %726 = vst [vmem:[%s724] sm:%s716] %v725
                %v727 = vld [vmem:[%s723 + $0xc] sm:%s716]
                %728 = vst [vmem:[%s724 + $0x4] sm:%s716] %v727
                %v729 = vld [vmem:[%s723 + $0x18] sm:%s716]
                %730 = vst [vmem:[%s724 + $0x8] sm:%s716] %v729
                %v731 = vld [vmem:[%s723 + $0x24] sm:%s716]
                %732 = vst [vmem:[%s724 + $0xc] sm:%s716] %v731
              $region291: #{forward.22} parent=285 // loop_footer
                %s722 = sadd.s32 1, %s718
              $region292: #{forward.22} parent=285 // loop_footer_branch
                %717 = sbr.rel target = $region288
              $region293: #{forward.22} parent=285 // loop_exit
                _
            $region286: #{forward.22} parent=277 // pred_fallthru
              _
          $region278: #{forward.22} parent=273 // pred_fallthru
            _
          %761 = vnop
        $region274: #{forward.22} parent=23 // pred_fallthru
          _
        // Predicated region
        $region312: #{forward.22} parent=23 // pred_check
          %p762 = pneg %p226
        $region313: #{forward.22} parent=23 // pred_check_branch
          %764 = sbr.rel (%p762) target = $region315
        $region314: #{forward.22} parent=23 // pred_region
          %s765 = sand.u32 %s216, 1
          %s766 = sand.u32 %s216, 1
          %s767 = smul.addr %s766, 16
          %s768 = scalar_lea.vmem [#allocation9], %s767
          %s769 = sadd.s32 %s16, 1
          %s770 = smul.addr %s769, 4
          %s771 = scalar_lea.vmem %s7, %s770
          // Predicated region
          $region316: #{forward.22} parent=314 // pred_check
            _
          $region317: #{forward.22} parent=314 // pred_check_branch
            %773 = sbr.rel (0) target = $region319
          $region318: #{forward.22} parent=314 // pred_region
            // Predicated region
            $region320: #{forward.22} parent=318 // pred_check
              _
            $region321: #{forward.22} parent=318 // pred_check_branch
              %775 = sbr.rel target = $region323
            $region322: #{forward.22} parent=318 // pred_region
              // Predicated region
              $region335: #{forward.22} parent=322 // pred_check
                _
              $region336: #{forward.22} parent=322 // pred_check_branch
                %797 = sbr.rel (0) target = $region338
              $region337: #{forward.22} parent=322 // pred_region
                loop: start=0, step=1, limit=1
                $region339: #{forward.22} parent=337 // loop_pre_header
                  _
                $region340: #{forward.22} parent=337 // loop_header
                  %s799 = sphi 0, %s803
                  %p800 = scmp.ge.s32.totalorder %s799, 1
                  %s804 = sphi %s771, %s771
                  %s805 = sphi %s768, %s768
                $region341: #{forward.22} parent=337 // loop_header_branch
                  %802 = sbr.rel (%p800) target = $region345
                $region342: #{forward.22} parent=337 // loop_body
                  _
                $region343: #{forward.22} parent=337 // loop_footer
                  %s803 = sadd.s32 1, %s799
                $region344: #{forward.22} parent=337 // loop_footer_branch
                  %798 = sbr.rel target = $region340
                $region345: #{forward.22} parent=337 // loop_exit
                  _
                %s807 = ssub.s32 16, 1
                loop: start=0, step=1, limit=1
                $region346: #{forward.22} parent=337 // loop_pre_header
                  _
                $region347: #{forward.22} parent=337 // loop_header
                  %s809 = sphi 0, %s813
                  %p810 = scmp.ge.s32.totalorder %s809, 1
                  %s814 = sphi %s771, %s771
                  %s815 = sphi %s768, %s768
                $region348: #{forward.22} parent=337 // loop_header_branch
                  %812 = sbr.rel (%p810) target = $region352
                $region349: #{forward.22} parent=337 // loop_body
                  %v816 = vld [vmem:[%s814] sm:%s807]
                  %817 = vst [vmem:[%s815] sm:%s807] %v816
                  %v818 = vld [vmem:[%s814 + $0xc] sm:%s807]
                  %819 = vst [vmem:[%s815 + $0x4] sm:%s807] %v818
                  %v820 = vld [vmem:[%s814 + $0x18] sm:%s807]
                  %821 = vst [vmem:[%s815 + $0x8] sm:%s807] %v820
                  %v822 = vld [vmem:[%s814 + $0x24] sm:%s807]
                  %823 = vst [vmem:[%s815 + $0xc] sm:%s807] %v822
                $region350: #{forward.22} parent=337 // loop_footer
                  %s813 = sadd.s32 1, %s809
                $region351: #{forward.22} parent=337 // loop_footer_branch
                  %808 = sbr.rel target = $region347
                $region352: #{forward.22} parent=337 // loop_exit
                  _
              $region338: #{forward.22} parent=322 // pred_fallthru
                _
            $region323: #{forward.22} parent=318 // pred_fallthru
              _
            // Predicated region
            $region324: #{forward.22} parent=318 // pred_check
              _
            $region325: #{forward.22} parent=318 // pred_check_branch
              %777 = sbr.rel (0) target = $region327
            $region326: #{forward.22} parent=318 // pred_region
              %s779 = ssub.s32 16, 1
              loop: start=0, step=1, limit=1
              $region328: #{forward.22} parent=326 // loop_pre_header
                _
              $region329: #{forward.22} parent=326 // loop_header
                %s781 = sphi 0, %s785
                %p782 = scmp.ge.s32.totalorder %s781, 1
                %s786 = sphi %s771, %s771
                %s787 = sphi %s768, %s768
              $region330: #{forward.22} parent=326 // loop_header_branch
                %784 = sbr.rel (%p782) target = $region334
              $region331: #{forward.22} parent=326 // loop_body
                %v788 = vld [vmem:[%s786] sm:%s779]
                %789 = vst [vmem:[%s787] sm:%s779] %v788
                %v790 = vld [vmem:[%s786 + $0xc] sm:%s779]
                %791 = vst [vmem:[%s787 + $0x4] sm:%s779] %v790
                %v792 = vld [vmem:[%s786 + $0x18] sm:%s779]
                %793 = vst [vmem:[%s787 + $0x8] sm:%s779] %v792
                %v794 = vld [vmem:[%s786 + $0x24] sm:%s779]
                %795 = vst [vmem:[%s787 + $0xc] sm:%s779] %v794
              $region332: #{forward.22} parent=326 // loop_footer
                %s785 = sadd.s32 1, %s781
              $region333: #{forward.22} parent=326 // loop_footer_branch
                %780 = sbr.rel target = $region329
              $region334: #{forward.22} parent=326 // loop_exit
                _
            $region327: #{forward.22} parent=318 // pred_fallthru
              _
          $region319: #{forward.22} parent=314 // pred_fallthru
            _
          %824 = vnop
        $region315: #{forward.22} parent=23 // pred_fallthru
          _
      $region24: #{forward.22} parent=5 // pred_fallthru
        _
      %p825 = scmp.le.s32.totalorder 1, %s16
      %p826 = scmp.lt.s32.totalorder %s16, 3
      %p827 = pnand %p825, %p826
      %p828 = pneg %p827
      // Predicated region
      $region353: #{forward.22} parent=5 // pred_check
        _
      $region354: #{forward.22} parent=5 // pred_check_branch
        %830 = sbr.rel (%p827) target = $region356
      $region355: #{forward.22} parent=5 // pred_region
        %s831 = ssub.s32 %s16, 1
        %s832 = sand.u32 %s29, 1
        %s833 = sand.u32 %s29, 1
        %s834 = smul.addr %s833, 16
        %s835 = scalar_lea.vmem [#allocation2], %s834
        // Predicated region
        $region357: #{forward.22} parent=355 // pred_check
          %p836 = pneg %p42
        $region358: #{forward.22} parent=355 // pred_check_branch
          %838 = sbr.rel (%p836) target = $region360
        $region359: #{forward.22} parent=355 // pred_region
          _
        $region360: #{forward.22} parent=355 // pred_fallthru
          _
        %s839 = sand.u32 %s57, 1
        %s840 = sand.u32 %s57, 1
        %s841 = smul.addr %s840, 16
        %s842 = scalar_lea.vmem [#allocation3], %s841
        // Predicated region
        $region361: #{forward.22} parent=355 // pred_check
          %p843 = pneg %p70
        $region362: #{forward.22} parent=355 // pred_check_branch
          %845 = sbr.rel (%p843) target = $region364
        $region363: #{forward.22} parent=355 // pred_region
          _
        $region364: #{forward.22} parent=355 // pred_fallthru
          _
        %s846 = sand.u32 %s83, 1
        %s847 = sand.u32 %s83, 1
        %s848 = smul.addr %s847, 16
        %s849 = scalar_lea.vmem [#allocation4], %s848
        // Predicated region
        $region365: #{forward.22} parent=355 // pred_check
          %p850 = pneg %p96
        $region366: #{forward.22} parent=355 // pred_check_branch
          %852 = sbr.rel (%p850) target = $region368
        $region367: #{forward.22} parent=355 // pred_region
          _
        $region368: #{forward.22} parent=355 // pred_fallthru
          _
        %s853 = sand.u32 %s111, 1
        %s854 = sand.u32 %s111, 1
        %s855 = smul.addr %s854, 16
        %s856 = scalar_lea.vmem [#allocation5], %s855
        // Predicated region
        $region369: #{forward.22} parent=355 // pred_check
          %p857 = pneg %p124
        $region370: #{forward.22} parent=355 // pred_check_branch
          %859 = sbr.rel (%p857) target = $region372
        $region371: #{forward.22} parent=355 // pred_region
          _
        $region372: #{forward.22} parent=355 // pred_fallthru
          _
        %s860 = sand.u32 %s137, 1
        %s861 = sand.u32 %s137, 1
        %s862 = smul.addr %s861, 16
        %s863 = scalar_lea.vmem [#allocation6], %s862
        // Predicated region
        $region373: #{forward.22} parent=355 // pred_check
          %p864 = pneg %p150
        $region374: #{forward.22} parent=355 // pred_check_branch
          %866 = sbr.rel (%p864) target = $region376
        $region375: #{forward.22} parent=355 // pred_region
          _
        $region376: #{forward.22} parent=355 // pred_fallthru
          _
        %s867 = sand.u32 %s165, 1
        %s868 = sand.u32 %s165, 1
        %s869 = smul.addr %s868, 16
        %s870 = scalar_lea.vmem [#allocation7], %s869
        // Predicated region
        $region377: #{forward.22} parent=355 // pred_check
          %p871 = pneg %p178
        $region378: #{forward.22} parent=355 // pred_check_branch
          %873 = sbr.rel (%p871) target = $region380
        $region379: #{forward.22} parent=355 // pred_region
          _
        $region380: #{forward.22} parent=355 // pred_fallthru
          _
        %s874 = sand.u32 %s191, 1
        %s875 = sand.u32 %s191, 1
        %s876 = smul.addr %s875, 16
        %s877 = scalar_lea.vmem [#allocation8], %s876
        // Predicated region
        $region381: #{forward.22} parent=355 // pred_check
          %p878 = pneg %p204
        $region382: #{forward.22} parent=355 // pred_check_branch
          %880 = sbr.rel (%p878) target = $region384
        $region383: #{forward.22} parent=355 // pred_region
          _
        $region384: #{forward.22} parent=355 // pred_fallthru
          _
        %s881 = sand.u32 %s219, 1
        %s882 = sand.u32 %s219, 1
        %s883 = smul.addr %s882, 16
        %s884 = scalar_lea.vmem [#allocation9], %s883
        // Predicated region
        $region385: #{forward.22} parent=355 // pred_check
          %p885 = pneg %p232
        $region386: #{forward.22} parent=355 // pred_check_branch
          %887 = sbr.rel (%p885) target = $region388
        $region387: #{forward.22} parent=355 // pred_region
          _
        $region388: #{forward.22} parent=355 // pred_fallthru
          _
        %s888 = sand.u32 %s29, 1
        %s889 = sand.u32 %s29, 1
        %s890 = smul.addr %s889, 16
        %s891 = scalar_lea.vmem [#allocation2], %s890
        %p892 = pneg %p42
        %p893 = pneg %p39
        %s894 = sand.u32 %s57, 1
        %s895 = sand.u32 %s57, 1
        %s896 = smul.addr %s895, 16
        %s897 = scalar_lea.vmem [#allocation3], %s896
        %p898 = pneg %p70
        %p899 = pneg %p67
        %s900 = sand.u32 %s83, 1
        %s901 = sand.u32 %s83, 1
        %s902 = smul.addr %s901, 16
        %s903 = scalar_lea.vmem [#allocation4], %s902
        %p904 = pneg %p96
        %p905 = pneg %p93
        %s906 = sand.u32 %s111, 1
        %s907 = sand.u32 %s111, 1
        %s908 = smul.addr %s907, 16
        %s909 = scalar_lea.vmem [#allocation5], %s908
        %p910 = pneg %p124
        %p911 = pneg %p121
        %s912 = sand.u32 %s137, 1
        %s913 = sand.u32 %s137, 1
        %s914 = smul.addr %s913, 16
        %s915 = scalar_lea.vmem [#allocation6], %s914
        %p916 = pneg %p150
        %p917 = pneg %p147
        %s918 = sand.u32 %s165, 1
        %s919 = sand.u32 %s165, 1
        %s920 = smul.addr %s919, 16
        %s921 = scalar_lea.vmem [#allocation7], %s920
        %p922 = pneg %p178
        %p923 = pneg %p175
        %s924 = sand.u32 %s191, 1
        %s925 = sand.u32 %s191, 1
        %s926 = smul.addr %s925, 16
        %s927 = scalar_lea.vmem [#allocation8], %s926
        %p928 = pneg %p204
        %p929 = pneg %p201
        %s930 = sand.u32 %s219, 1
        %s931 = sand.u32 %s219, 1
        %s932 = smul.addr %s931, 16
        %s933 = scalar_lea.vmem [#allocation9], %s932
        %p934 = pneg %p232
        %p935 = pneg %p229
        %p936 = pneg %p253
        %p937 = pneg %p250
        %p938 = pneg %p274
        %p939 = pneg %p271
        %p940 = pneg %p300
        %p941 = pneg %p297
        %s942 = sand.u32 %s287, 1
        %s943 = sand.u32 %s287, 1
        %s944 = smul.addr %s943, 16
        %s945 = scalar_lea.vmem [#allocation10], %s944
        %s946 = sadd.s32 %s21, 1
        %s947 = sadd.s32 %s21, 1
        %s948 = sadd.s32 %s21, 1
        %s949 = sadd.s32 %s21, 1
        %v951 = vld [vmem:[%s835] sm:$0xf]
        %v952 = vld [vmem:[%s835 + $0x4] sm:$0xf]
        %v953 = vld [vmem:[%s835 + $0x8] sm:$0xf]
        %v954 = vld [vmem:[%s835 + $0xc] sm:$0xf]
        %v955 = vld [vmem:[%s842] sm:$0xf]
        %v956 = vld [vmem:[%s842 + $0x4] sm:$0xf]
        %v957 = vld [vmem:[%s842 + $0x8] sm:$0xf]
        %v958 = vld [vmem:[%s842 + $0xc] sm:$0xf]
        %v963 = vunpack.c.l.b16 %v951
        %v964 = vunpack.c.l.b16 %v952
        %v965 = vunpack.c.l.b16 %v953
        %v966 = vunpack.c.l.b16 %v954
        %v967 = vpack.c.b16 %v964, %v963
        %v968 = vpack.c.b16 %v966, %v965
        %v975 = vunpack.c.l.b16 %v955
        %v976 = vunpack.c.l.b16 %v956
        %v977 = vunpack.c.l.b16 %v957
        %v978 = vunpack.c.l.b16 %v958
        %v979 = vpack.c.b16 %v976, %v975
        %v980 = vpack.c.b16 %v978, %v977
        %v981 = vld [vmem:[%s849] sm:$0xf]
        %v982 = vld [vmem:[%s849 + $0x4] sm:$0xf]
        %v983 = vld [vmem:[%s849 + $0x8] sm:$0xf]
        %v984 = vld [vmem:[%s849 + $0xc] sm:$0xf]
        %v985 = vld [vmem:[%s856] sm:$0xf]
        %v986 = vld [vmem:[%s856 + $0x4] sm:$0xf]
        %v987 = vld [vmem:[%s856 + $0x8] sm:$0xf]
        %v988 = vld [vmem:[%s856 + $0xc] sm:$0xf]
        %v993 = vunpack.c.l.b16 %v981
        %v994 = vunpack.c.l.b16 %v982
        %v995 = vunpack.c.l.b16 %v983
        %v996 = vunpack.c.l.b16 %v984
        %v997 = vpack.c.b16 %v994, %v993
        %v998 = vpack.c.b16 %v996, %v995
        %v1005 = vunpack.c.l.b16 %v985
        %v1006 = vunpack.c.l.b16 %v986
        %v1007 = vunpack.c.l.b16 %v987
        %v1008 = vunpack.c.l.b16 %v988
        %v1009 = vpack.c.b16 %v1006, %v1005
        %v1010 = vpack.c.b16 %v1008, %v1007
        %v1011 = vld [vmem:[%s863] sm:$0xf]
        %v1012 = vld [vmem:[%s863 + $0x4] sm:$0xf]
        %v1013 = vld [vmem:[%s863 + $0x8] sm:$0xf]
        %v1014 = vld [vmem:[%s863 + $0xc] sm:$0xf]
        %v1015 = vld [vmem:[%s870] sm:$0xf]
        %v1016 = vld [vmem:[%s870 + $0x4] sm:$0xf]
        %v1017 = vld [vmem:[%s870 + $0x8] sm:$0xf]
        %v1018 = vld [vmem:[%s870 + $0xc] sm:$0xf]
        %v1023 = vunpack.c.l.b16 %v1011
        %v1024 = vunpack.c.l.b16 %v1012
        %v1025 = vunpack.c.l.b16 %v1013
        %v1026 = vunpack.c.l.b16 %v1014
        %v1027 = vpack.c.b16 %v1024, %v1023
        %v1028 = vpack.c.b16 %v1026, %v1025
        %v1035 = vunpack.c.l.b16 %v1015
        %v1036 = vunpack.c.l.b16 %v1016
        %v1037 = vunpack.c.l.b16 %v1017
        %v1038 = vunpack.c.l.b16 %v1018
        %v1039 = vpack.c.b16 %v1036, %v1035
        %v1040 = vpack.c.b16 %v1038, %v1037
        %v1041 = vld [vmem:[%s877] sm:$0xf]
        %v1042 = vld [vmem:[%s877 + $0x4] sm:$0xf]
        %v1043 = vld [vmem:[%s877 + $0x8] sm:$0xf]
        %v1044 = vld [vmem:[%s877 + $0xc] sm:$0xf]
        %v1045 = vld [vmem:[%s884] sm:$0xf]
        %v1046 = vld [vmem:[%s884 + $0x4] sm:$0xf]
        %v1047 = vld [vmem:[%s884 + $0x8] sm:$0xf]
        %v1048 = vld [vmem:[%s884 + $0xc] sm:$0xf]
        %v1053 = vunpack.c.l.b16 %v1041
        %v1054 = vunpack.c.l.b16 %v1042
        %v1055 = vunpack.c.l.b16 %v1043
        %v1056 = vunpack.c.l.b16 %v1044
        %v1057 = vpack.c.b16 %v1054, %v1053
        %v1058 = vpack.c.b16 %v1056, %v1055
        %v1065 = vunpack.c.l.b16 %v1045
        %v1066 = vunpack.c.l.b16 %v1046
        %v1067 = vunpack.c.l.b16 %v1047
        %v1068 = vunpack.c.l.b16 %v1048
        %v1069 = vpack.c.b16 %v1066, %v1065
        %v1070 = vpack.c.b16 %v1068, %v1067
        %v1071 = vld [vmem:[%s8] sm:$0xff]
        %v1072 = vld [vmem:[%s8 + $0x8] sm:$0xff]
        %v1073 = vld [vmem:[%s8 + $0x10] sm:$0xff]
        %v1074 = vld [vmem:[%s8 + $0x18] sm:$0xff]
        %v1075 = vld [vmem:[%s8 + $0x20] sm:$0xff]
        %v1076 = vld [vmem:[%s8 + $0x28] sm:$0xff]
        %v1077 = vld [vmem:[%s8 + $0x30] sm:$0xff]
        %v1078 = vld [vmem:[%s8 + $0x38] sm:$0xff]
        %1079 = vrot.lane.b32.xlu0 %v967, 127
        %v1080 = vpop.permute.xlu0 %1079
        %1081 = vrot.lane.b32.xlu0 %v979, 127
        %v1082 = vpop.permute.xlu0 %1081
        %1083 = vrot.lane.b32.xlu0 %v968, 127
        %v1084 = vpop.permute.xlu0 %1083
        %1085 = vrot.lane.b32.xlu0 %v980, 127
        %v1086 = vpop.permute.xlu0 %1085
        %vm1087 = vcmask 1039360
        %v1088 = vsel %vm1087, %v1080, %v1082
        %v1089 = vsel %vm1087, %v1084, %v1086
        %1092 = vrot.lane.b32.xlu0 %v967, 119
        %v1093 = vpop.permute.xlu0 %1092
        %1094 = vrot.lane.b32.xlu0 %v979, 119
        %v1095 = vpop.permute.xlu0 %1094
        %1096 = vrot.lane.b32.xlu0 %v968, 119
        %v1097 = vpop.permute.xlu0 %1096
        %1098 = vrot.lane.b32.xlu0 %v980, 119
        %v1099 = vpop.permute.xlu0 %1098
        %vm1100 = vcmask 973824
        %v1101 = vsel %vm1100, %v1093, %v1095
        %v1102 = vsel %vm1100, %v1097, %v1099
        %1105 = vrot.lane.b32.xlu0 %v967, 118
        %v1106 = vpop.permute.xlu0 %1105
        %1107 = vrot.lane.b32.xlu0 %v979, 118
        %v1108 = vpop.permute.xlu0 %1107
        %1109 = vrot.lane.b32.xlu0 %v968, 118
        %v1110 = vpop.permute.xlu0 %1109
        %1111 = vrot.lane.b32.xlu0 %v980, 118
        %v1112 = vpop.permute.xlu0 %1111
        %vm1113 = vcmask 965632
        %v1114 = vsel %vm1113, %v1106, %v1108
        %v1115 = vsel %vm1113, %v1110, %v1112
        %1118 = vrot.lane.b32.xlu0 %v997, 127
        %v1119 = vpop.permute.xlu0 %1118
        %1120 = vrot.lane.b32.xlu0 %v1009, 127
        %v1121 = vpop.permute.xlu0 %1120
        %1122 = vrot.lane.b32.xlu0 %v998, 127
        %v1123 = vpop.permute.xlu0 %1122
        %1124 = vrot.lane.b32.xlu0 %v1010, 127
        %v1125 = vpop.permute.xlu0 %1124
        %v1126 = vsel %vm1087, %v1119, %v1121
        %v1127 = vsel %vm1087, %v1123, %v1125
        %1130 = vrot.lane.b32.xlu0 %v997, 119
        %v1131 = vpop.permute.xlu0 %1130
        %1132 = vrot.lane.b32.xlu0 %v1009, 119
        %v1133 = vpop.permute.xlu0 %1132
        %1134 = vrot.lane.b32.xlu0 %v998, 119
        %v1135 = vpop.permute.xlu0 %1134
        %1136 = vrot.lane.b32.xlu0 %v1010, 119
        %v1137 = vpop.permute.xlu0 %1136
        %v1138 = vsel %vm1100, %v1131, %v1133
        %v1139 = vsel %vm1100, %v1135, %v1137
        %1142 = vrot.lane.b32.xlu0 %v997, 118
        %v1143 = vpop.permute.xlu0 %1142
        %1144 = vrot.lane.b32.xlu0 %v1009, 118
        %v1145 = vpop.permute.xlu0 %1144
        %1146 = vrot.lane.b32.xlu0 %v998, 118
        %v1147 = vpop.permute.xlu0 %1146
        %1148 = vrot.lane.b32.xlu0 %v1010, 118
        %v1149 = vpop.permute.xlu0 %1148
        %v1150 = vsel %vm1113, %v1143, %v1145
        %v1151 = vsel %vm1113, %v1147, %v1149
        %1154 = vrot.lane.b32.xlu0 %v1027, 127
        %v1155 = vpop.permute.xlu0 %1154
        %1156 = vrot.lane.b32.xlu0 %v1039, 127
        %v1157 = vpop.permute.xlu0 %1156
        %1158 = vrot.lane.b32.xlu0 %v1028, 127
        %v1159 = vpop.permute.xlu0 %1158
        %1160 = vrot.lane.b32.xlu0 %v1040, 127
        %v1161 = vpop.permute.xlu0 %1160
        %v1162 = vsel %vm1087, %v1155, %v1157
        %v1163 = vsel %vm1087, %v1159, %v1161
        %1166 = vrot.lane.b32.xlu0 %v1027, 119
        %v1167 = vpop.permute.xlu0 %1166
        %1168 = vrot.lane.b32.xlu0 %v1039, 119
        %v1169 = vpop.permute.xlu0 %1168
        %1170 = vrot.lane.b32.xlu0 %v1028, 119
        %v1171 = vpop.permute.xlu0 %1170
        %1172 = vrot.lane.b32.xlu0 %v1040, 119
        %v1173 = vpop.permute.xlu0 %1172
        %v1174 = vsel %vm1100, %v1167, %v1169
        %v1175 = vsel %vm1100, %v1171, %v1173
        %1178 = vrot.lane.b32.xlu0 %v1027, 118
        %v1179 = vpop.permute.xlu0 %1178
        %1180 = vrot.lane.b32.xlu0 %v1039, 118
        %v1181 = vpop.permute.xlu0 %1180
        %1182 = vrot.lane.b32.xlu0 %v1028, 118
        %v1183 = vpop.permute.xlu0 %1182
        %1184 = vrot.lane.b32.xlu0 %v1040, 118
        %v1185 = vpop.permute.xlu0 %1184
        %v1186 = vsel %vm1113, %v1179, %v1181
        %v1187 = vsel %vm1113, %v1183, %v1185
        %1190 = vrot.lane.b32.xlu0 %v1057, 127
        %v1191 = vpop.permute.xlu0 %1190
        %1192 = vrot.lane.b32.xlu0 %v1069, 127
        %v1193 = vpop.permute.xlu0 %1192
        %1194 = vrot.lane.b32.xlu0 %v1058, 127
        %v1195 = vpop.permute.xlu0 %1194
        %1196 = vrot.lane.b32.xlu0 %v1070, 127
        %v1197 = vpop.permute.xlu0 %1196
        %v1198 = vsel %vm1087, %v1191, %v1193
        %v1199 = vsel %vm1087, %v1195, %v1197
        %1202 = vrot.lane.b32.xlu0 %v1057, 119
        %v1203 = vpop.permute.xlu0 %1202
        %1204 = vrot.lane.b32.xlu0 %v1069, 119
        %v1205 = vpop.permute.xlu0 %1204
        %1206 = vrot.lane.b32.xlu0 %v1058, 119
        %v1207 = vpop.permute.xlu0 %1206
        %1208 = vrot.lane.b32.xlu0 %v1070, 119
        %v1209 = vpop.permute.xlu0 %1208
        %v1210 = vsel %vm1100, %v1203, %v1205
        %v1211 = vsel %vm1100, %v1207, %v1209
        %1214 = vrot.lane.b32.xlu0 %v1057, 118
        %v1215 = vpop.permute.xlu0 %1214
        %1216 = vrot.lane.b32.xlu0 %v1069, 118
        %v1217 = vpop.permute.xlu0 %1216
        %1218 = vrot.lane.b32.xlu0 %v1058, 118
        %v1219 = vpop.permute.xlu0 %1218
        %1220 = vrot.lane.b32.xlu0 %v1070, 118
        %v1221 = vpop.permute.xlu0 %1220
        %v1222 = vsel %vm1113, %v1215, %v1217
        %v1223 = vsel %vm1113, %v1219, %v1221
        %v1226 = vld [vmem:[%s9] sm:$0xff]
        %v1227 = vld [vmem:[%s9 + $0x8] sm:$0xff]
        %v1228 = vld [vmem:[%s9 + $0x10] sm:$0xff]
        %v1229 = vld [vmem:[%s9 + $0x18] sm:$0xff]
        %1231 = vset.pattern.permute.xlu0 0
        %1232 = vperm.xlu0 %1231, %v1226
        %v1233 = vpop.permute.xlu0 %1232
        %1236 = vset.pattern.permute.xlu0 0
        %1237 = vperm.xlu0 %1236, %v1227
        %v1238 = vpop.permute.xlu0 %1237
        %1241 = vset.pattern.permute.xlu0 0
        %1242 = vperm.xlu0 %1241, %v1228
        %v1243 = vpop.permute.xlu0 %1242
        %1246 = vset.pattern.permute.xlu0 0
        %1247 = vperm.xlu0 %1246, %v1229
        %v1248 = vpop.permute.xlu0 %1247
        %v1258 = vunpack.c.l.b16 %v1071
        %v1259 = vunpack.c.h.b16 %v1071
        %v1260 = vunpack.c.l.b16 %v1072
        %v1261 = vunpack.c.h.b16 %v1072
        %v1262 = vunpack.c.l.b16 %v1073
        %v1263 = vunpack.c.h.b16 %v1073
        %v1264 = vunpack.c.l.b16 %v1074
        %v1265 = vunpack.c.h.b16 %v1074
        %v1266 = vunpack.c.l.b16 %v1075
        %v1267 = vunpack.c.h.b16 %v1075
        %v1268 = vunpack.c.l.b16 %v1076
        %v1269 = vunpack.c.h.b16 %v1076
        %v1270 = vunpack.c.l.b16 %v1077
        %v1271 = vunpack.c.h.b16 %v1077
        %v1272 = vunpack.c.l.b16 %v1078
        %v1273 = vunpack.c.h.b16 %v1078
        %v1274 = vpack.c.b16 %v1262, %v1258
        %v1275 = vpack.c.b16 %v1263, %v1259
        %v1276 = vpack.c.b16 %v1264, %v1260
        %v1277 = vpack.c.b16 %v1265, %v1261
        %v1278 = vpack.c.b16 %v1270, %v1266
        %v1279 = vpack.c.b16 %v1271, %v1267
        %v1280 = vpack.c.b16 %v1272, %v1268
        %v1281 = vpack.c.b16 %v1273, %v1269
        %1290 = vmatprep.subr.bf16.mxu0 0
        %1291 = vmatpush1.bf16.msra.mxu0 %v1115
        %1292 = vmatprep.subr.bf16.mxu0 0
        %1293 = vmatpush1.bf16.msra.mxu0 %v1114
        %1294 = vmatprep.subr.bf16.mxu0 0
        %1295 = vmatpush1.bf16.msra.mxu0 %v1102
        %1296 = vmatprep.subr.bf16.mxu0 0
        %1297 = vmatpush1.bf16.msra.mxu0 %v1101
        %1298 = vmatprep.subr.bf16.mxu0 0
        %1299 = vmatpush1.bf16.msra.mxu0 %v1089
        %1300 = vmatprep.subr.bf16.mxu0 0
        %1301 = vmatpush1.bf16.msra.mxu0 %v1088
        %1302 = vmatprep.subr.bf16.mxu0 0
        %1303 = vmatpush1.bf16.msra.mxu0 %v968
        %1304 = vmatprep.subr.bf16.mxu0 0
        %1305 = vmatpush1.bf16.msra.mxu0 %v967
        %1306 = vmatprep.subr.bf16.mxu0 0
        %1307 = vmatpush2.bf16.msra.mxu0 %v1151
        %1308 = vmatprep.subr.bf16.mxu0 0
        %1309 = vmatpush2.bf16.msra.mxu0 %v1150
        %1310 = vmatprep.subr.bf16.mxu0 0
        %1311 = vmatpush2.bf16.msra.mxu0 %v1139
        %1312 = vmatprep.subr.bf16.mxu0 0
        %1313 = vmatpush2.bf16.msra.mxu0 %v1138
        %1314 = vmatprep.subr.bf16.mxu0 0
        %1315 = vmatpush2.bf16.msra.mxu0 %v1127
        %1316 = vmatprep.subr.bf16.mxu0 0
        %1317 = vmatpush2.bf16.msra.mxu0 %v1126
        %1318 = vmatprep.subr.bf16.mxu0 0
        %1319 = vmatpush2.bf16.msra.mxu0 %v998
        %1320 = vmatprep.subr.bf16.mxu0 0
        %1321 = vmatpush2.bf16.msra.mxu0 %v997
        %1322 = vmatprep.mubr.bf16.mxu0 %v1275
        %1323 = vmatmul.mubr.bf16.gmra.mxu0 %v1274
        %v1324 = vpop.f32.mrf.mxu0
        %v1325 = vadd.f32 %v1233, %v1324
        %v1326 = vpop.f32.mrf.mxu0
        %v1327 = vpop.f32.mrf.mxu0
        %v1328 = vadd.f32 %v1238, %v1327
        %v1329 = vpop.f32.mrf.mxu0
        %1330 = vmatprep.mubr.bf16.mxu0 %v1279
        %1331 = vmatmul.mubr.bf16.gmra.mxu0 %v1278
        %v1332 = vpop.f32.mrf.mxu0
        %v1333 = vadd.f32 %v1243, %v1332
        %v1334 = vpop.f32.mrf.mxu0
        %v1335 = vpop.f32.mrf.mxu0
        %v1336 = vadd.f32 %v1248, %v1335
        %v1337 = vpop.f32.mrf.mxu0
        %1338 = vdwg.mxu0
        %1339 = vmatprep.subr.bf16.mxu0 0
        %1340 = vmatpush1.bf16.msra.mxu0 %v1187
        %1341 = vmatprep.subr.bf16.mxu0 0
        %1342 = vmatpush1.bf16.msra.mxu0 %v1186
        %1343 = vmatprep.subr.bf16.mxu0 0
        %1344 = vmatpush1.bf16.msra.mxu0 %v1175
        %1345 = vmatprep.subr.bf16.mxu0 0
        %1346 = vmatpush1.bf16.msra.mxu0 %v1174
        %1347 = vmatprep.subr.bf16.mxu0 0
        %1348 = vmatpush1.bf16.msra.mxu0 %v1163
        %1349 = vmatprep.subr.bf16.mxu0 0
        %1350 = vmatpush1.bf16.msra.mxu0 %v1162
        %1351 = vmatprep.subr.bf16.mxu0 0
        %1352 = vmatpush1.bf16.msra.mxu0 %v1028
        %1353 = vmatprep.subr.bf16.mxu0 0
        %1354 = vmatpush1.bf16.msra.mxu0 %v1027
        %1355 = vmatprep.subr.bf16.mxu0 0
        %1356 = vmatpush2.bf16.msra.mxu0 %v1223
        %1357 = vmatprep.subr.bf16.mxu0 0
        %1358 = vmatpush2.bf16.msra.mxu0 %v1222
        %1359 = vmatprep.subr.bf16.mxu0 0
        %1360 = vmatpush2.bf16.msra.mxu0 %v1211
        %1361 = vmatprep.subr.bf16.mxu0 0
        %1362 = vmatpush2.bf16.msra.mxu0 %v1210
        %1363 = vmatprep.subr.bf16.mxu0 0
        %1364 = vmatpush2.bf16.msra.mxu0 %v1199
        %1365 = vmatprep.subr.bf16.mxu0 0
        %1366 = vmatpush2.bf16.msra.mxu0 %v1198
        %1367 = vmatprep.subr.bf16.mxu0 0
        %1368 = vmatpush2.bf16.msra.mxu0 %v1058
        %1369 = vmatprep.subr.bf16.mxu0 0
        %1370 = vmatpush2.bf16.msra.mxu0 %v1057
        %1371 = vmatprep.mubr.bf16.mxu0 %v1277
        %1372 = vmatmul.mubr.bf16.gmra.mxu0 %v1276
        %v1373 = vpop.f32.mrf.mxu0
        %v1374 = vadd.f32 %v1325, %v1373
        %v1375 = vpop.f32.mrf.mxu0
        %v1376 = vpop.f32.mrf.mxu0
        %v1377 = vadd.f32 %v1328, %v1376
        %v1378 = vpop.f32.mrf.mxu0
        %1379 = vmatprep.mubr.bf16.mxu0 %v1281
        %1380 = vmatmul.mubr.bf16.gmra.mxu0 %v1280
        %v1381 = vpop.f32.mrf.mxu0
        %v1382 = vadd.f32 %v1333, %v1381
        %v1383 = vpop.f32.mrf.mxu0
        %v1384 = vpop.f32.mrf.mxu0
        %v1385 = vadd.f32 %v1336, %v1384
        %v1386 = vpop.f32.mrf.mxu0
        %1387 = vdwg.mxu0
        %v1388 = vpack.c.bf16 %v1377, %v1374
        %v1389 = vpack.c.bf16 %v1385, %v1382
        %v1392 = vunpack.c.l.b16 %v1388
        %v1393 = vunpack.c.h.b16 %v1388
        %v1394 = vunpack.c.l.b16 %v1389
        %v1395 = vunpack.c.h.b16 %v1389
        %v1396 = vpack.c.b16 %v1392, %v1392
        %v1397 = vpack.c.b16 %v1393, %v1393
        %v1398 = vpack.c.b16 %v1394, %v1394
        %v1399 = vpack.c.b16 %v1395, %v1395
        %1404 = vst [vmem:[%s945] sm:$0xf] %v1396
        %1405 = vst [vmem:[%s945 + $0x4] sm:$0xf] %v1397
        %1406 = vst [vmem:[%s945 + $0x8] sm:$0xf] %v1398
        %1407 = vst [vmem:[%s945 + $0xc] sm:$0xf] %v1399
        %s1408 = sand.u32 %s287, 1
        %s1409 = sand.u32 %s287, 1
        %s1410 = smul.addr %s1409, 16
        %s1411 = scalar_lea.vmem [#allocation10], %s1410
        // Predicated region
        $region389: #{forward.22} parent=355 // pred_check
          %p1412 = pneg %p297
        $region390: #{forward.22} parent=355 // pred_check_branch
          %1414 = sbr.rel (%p1412) target = $region392
        $region391: #{forward.22} parent=355 // pred_region
          %s1415 = smul.addr %s21, 4
          %s1416 = scalar_lea.vmem %s10, %s1415
          // Predicated region
          $region393: #{forward.22} parent=391 // pred_check
            _
          $region394: #{forward.22} parent=391 // pred_check_branch
            %1418 = sbr.rel (0) target = $region396
          $region395: #{forward.22} parent=391 // pred_region
            // Predicated region
            $region397: #{forward.22} parent=395 // pred_check
              _
            $region398: #{forward.22} parent=395 // pred_check_branch
              %1420 = sbr.rel target = $region400
            $region399: #{forward.22} parent=395 // pred_region
              // Predicated region
              $region412: #{forward.22} parent=399 // pred_check
                _
              $region413: #{forward.22} parent=399 // pred_check_branch
                %1442 = sbr.rel (0) target = $region415
              $region414: #{forward.22} parent=399 // pred_region
                loop: start=0, step=1, limit=1
                $region416: #{forward.22} parent=414 // loop_pre_header
                  _
                $region417: #{forward.22} parent=414 // loop_header
                  %s1444 = sphi 0, %s1448
                  %p1445 = scmp.ge.s32.totalorder %s1444, 1
                  %s1449 = sphi %s1411, %s1411
                  %s1450 = sphi %s1416, %s1416
                $region418: #{forward.22} parent=414 // loop_header_branch
                  %1447 = sbr.rel (%p1445) target = $region422
                $region419: #{forward.22} parent=414 // loop_body
                  _
                $region420: #{forward.22} parent=414 // loop_footer
                  %s1448 = sadd.s32 1, %s1444
                $region421: #{forward.22} parent=414 // loop_footer_branch
                  %1443 = sbr.rel target = $region417
                $region422: #{forward.22} parent=414 // loop_exit
                  _
                %s1452 = ssub.s32 16, 1
                loop: start=0, step=1, limit=1
                $region423: #{forward.22} parent=414 // loop_pre_header
                  _
                $region424: #{forward.22} parent=414 // loop_header
                  %s1454 = sphi 0, %s1458
                  %p1455 = scmp.ge.s32.totalorder %s1454, 1
                  %s1459 = sphi %s1411, %s1411
                  %s1460 = sphi %s1416, %s1416
                $region425: #{forward.22} parent=414 // loop_header_branch
                  %1457 = sbr.rel (%p1455) target = $region429
                $region426: #{forward.22} parent=414 // loop_body
                  %v1461 = vld [vmem:[%s1459] sm:%s1452]
                  %1462 = vst [vmem:[%s1460] sm:%s1452] %v1461
                  %v1463 = vld [vmem:[%s1459 + $0x4] sm:%s1452]
                  %1464 = vst [vmem:[%s1460 + $0x8] sm:%s1452] %v1463
                  %v1465 = vld [vmem:[%s1459 + $0x8] sm:%s1452]
                  %1466 = vst [vmem:[%s1460 + $0x10] sm:%s1452] %v1465
                  %v1467 = vld [vmem:[%s1459 + $0xc] sm:%s1452]
                  %1468 = vst [vmem:[%s1460 + $0x18] sm:%s1452] %v1467
                $region427: #{forward.22} parent=414 // loop_footer
                  %s1458 = sadd.s32 1, %s1454
                $region428: #{forward.22} parent=414 // loop_footer_branch
                  %1453 = sbr.rel target = $region424
                $region429: #{forward.22} parent=414 // loop_exit
                  _
              $region415: #{forward.22} parent=399 // pred_fallthru
                _
            $region400: #{forward.22} parent=395 // pred_fallthru
              _
            // Predicated region
            $region401: #{forward.22} parent=395 // pred_check
              _
            $region402: #{forward.22} parent=395 // pred_check_branch
              %1422 = sbr.rel (0) target = $region404
            $region403: #{forward.22} parent=395 // pred_region
              %s1424 = ssub.s32 16, 1
              loop: start=0, step=1, limit=1
              $region405: #{forward.22} parent=403 // loop_pre_header
                _
              $region406: #{forward.22} parent=403 // loop_header
                %s1426 = sphi 0, %s1430
                %p1427 = scmp.ge.s32.totalorder %s1426, 1
                %s1431 = sphi %s1411, %s1411
                %s1432 = sphi %s1416, %s1416
              $region407: #{forward.22} parent=403 // loop_header_branch
                %1429 = sbr.rel (%p1427) target = $region411
              $region408: #{forward.22} parent=403 // loop_body
                %v1433 = vld [vmem:[%s1431] sm:%s1424]
                %1434 = vst [vmem:[%s1432] sm:%s1424] %v1433
                %v1435 = vld [vmem:[%s1431 + $0x4] sm:%s1424]
                %1436 = vst [vmem:[%s1432 + $0x8] sm:%s1424] %v1435
                %v1437 = vld [vmem:[%s1431 + $0x8] sm:%s1424]
                %1438 = vst [vmem:[%s1432 + $0x10] sm:%s1424] %v1437
                %v1439 = vld [vmem:[%s1431 + $0xc] sm:%s1424]
                %1440 = vst [vmem:[%s1432 + $0x18] sm:%s1424] %v1439
              $region409: #{forward.22} parent=403 // loop_footer
                %s1430 = sadd.s32 1, %s1426
              $region410: #{forward.22} parent=403 // loop_footer_branch
                %1425 = sbr.rel target = $region406
              $region411: #{forward.22} parent=403 // loop_exit
                _
            $region404: #{forward.22} parent=395 // pred_fallthru
              _
          $region396: #{forward.22} parent=391 // pred_fallthru
            _
          %1469 = vnop
        $region392: #{forward.22} parent=355 // pred_fallthru
          _
      $region356: #{forward.22} parent=5 // pred_fallthru
        _
      %p1470 = scmp.le.s32.totalorder 2, %s16
      // Predicated region
      $region430: #{forward.22} parent=5 // pred_check
        %p1471 = pneg %p1470
      $region431: #{forward.22} parent=5 // pred_check_branch
        %1473 = sbr.rel (%p1471) target = $region433
      $region432: #{forward.22} parent=5 // pred_region
        %s1474 = ssub.s32 %s16, 2
        // Predicated region
        $region434: #{forward.22} parent=432 // pred_check
          %p1475 = pneg %p303
        $region435: #{forward.22} parent=432 // pred_check_branch
          %1477 = sbr.rel (%p1475) target = $region437
        $region436: #{forward.22} parent=432 // pred_region
          %s1478 = sand.u32 %s288, 1
          %s1479 = sand.u32 %s288, 1
          %s1480 = smul.addr %s1479, 16
          %s1481 = scalar_lea.vmem [#allocation10], %s1480
        $region437: #{forward.22} parent=432 // pred_fallthru
          _
      $region433: #{forward.22} parent=5 // pred_fallthru
        _
    $region6: #{forward.22} parent=1 // loop_footer
      %s20 = sadd.s32 1, %s16
    $region7: #{forward.22} parent=1 // loop_footer_branch
      %15 = sbr.rel target = $region3
    $region8: #{forward.22} parent=1 // loop_exit
      _

// kernel: forward.23
$region0: #{forward.23}
  #allocation0 [shape = 'u32[]', space=smem, size = 0x4, offset = 0x4, fixed_abs, tag = 'smem constant byte address 0x4 - core index']
  #allocation1 [shape = 'u32[144,128]{1,0:T(1,128)}', space=vmem, size = 0x12000, scoped, tag = 'internal scratch']
  %s0 = inlined_call_operand.vmem [shape: bf16[32,384], index: 0, kind: input, shape index: {}, may-alias: {0,1}]
  %s1 = inlined_call_operand.vmem [shape: bf16[32,384], index: 1, kind: input, shape index: {}, may-alias: {0,1}]
  %s2 = inlined_call_operand.vmem [shape: bf16[32,288], index: 2, kind: input, shape index: {}]
  %s3 = inlined_call_operand.vmem [shape: bf16[32,256], index: 3, kind: output, shape index: {}]
  %s4 = sld [smem:[#allocation0]]
  $region164: #{forward.23} parent=0
    _
  %s6 = ssub.s32 1, %s4
  %s7 = scalar_select 0, %s6, %s4
  $region1: #{forward.23} parent=0
    #allocation2 [shape = 'u8[16384]{0}', space=vmem, size = 0x4000, scoped, tag = 'input window, operand 0']
    #allocation3 [shape = 'u8[16384]{0}', space=vmem, size = 0x4000, scoped, tag = 'input window, operand 1']
    #allocation4 [shape = 'u8[16384]{0}', space=vmem, size = 0x4000, scoped, tag = 'output window, operand 0']
    loop: start=0, step=1, limit=4
    $region2: #{forward.23} parent=1 // loop_pre_header
      _
    $region3: #{forward.23} parent=1 // loop_header
      %s9 = sphi 0, %s13
      %p10 = scmp.ge.s32.totalorder %s9, 4
      %s19 = sphi 0, %s21
      %s22 = sphi 0, %s19
      %s23 = sphi 0, %s22
      %s39 = sphi 0, %s23
      %s47 = sphi 0, %s49
      %s50 = sphi 0, %s47
      %s51 = sphi 0, %s50
      %s67 = sphi 0, %s51
      %s71 = sphi 0, %s71
      %s73 = sphi 0, %s71
      %s74 = sphi 0, %s73
      %s88 = sphi 0, %s74
      %s94 = sphi 0, %s96
      %s97 = sphi 0, %s94
      %s98 = sphi 0, %s97
      %s114 = sphi 0, %s98
    $region4: #{forward.23} parent=1 // loop_header_branch
      %12 = sbr.rel (%p10) target = $region8
    $region5: #{forward.23} parent=1 // loop_body
      %s14 = ssub.s32 %s9, 1
      %s15 = ssub.s32 %s9, 2
      %s16 = sadd.s32 %s9, 1
      %s17 = ssub.s32 %s9, %s16
      %p18 = scmp.eq.s32.totalorder %s17, 0
      %s20 = sadd.s32 %s19, 1
      %s21 = scalar_select %p18, %s19, %s20
      %p24 = pneg %p18
      %p25 = scmp.eq.s32.totalorder %s9, 1
      %p26 = por %p24, %p25
      %p27 = scmp.ne.s32.totalorder %s19, %s22
      %p28 = scmp.eq.s32.totalorder %s9, 0
      %p29 = por %p27, %p28
      %p30 = scmp.ne.s32.totalorder %s19, %s22
      %p31 = scmp.eq.s32.totalorder %s14, 1
      %p32 = por %p30, %p31
      %p33 = scmp.ne.s32.totalorder %s22, %s23
      %p34 = scmp.eq.s32.totalorder %s14, 0
      %p35 = por %p33, %p34
      %p36 = scmp.ne.s32.totalorder %s22, %s23
      %p37 = scmp.eq.s32.totalorder %s15, 1
      %p38 = por %p36, %p37
      %p40 = scmp.ne.s32.totalorder %s23, %s39
      %p41 = scmp.eq.s32.totalorder %s15, 0
      %p42 = por %p40, %p41
      %s43 = sadd.s32 %s9, 1
      %s44 = sadd.s32 %s16, 1
      %s45 = ssub.s32 %s43, %s44
      %p46 = scmp.eq.s32.totalorder %s45, 0
      %s48 = sadd.s32 %s47, 1
      %s49 = scalar_select %p46, %s47, %s48
      %p52 = pneg %p46
      %p53 = scmp.eq.s32.totalorder %s9, 1
      %p54 = por %p52, %p53
      %p55 = scmp.ne.s32.totalorder %s47, %s50
      %p56 = scmp.eq.s32.totalorder %s9, 0
      %p57 = por %p55, %p56
      %p58 = scmp.ne.s32.totalorder %s47, %s50
      %p59 = scmp.eq.s32.totalorder %s14, 1
      %p60 = por %p58, %p59
      %p61 = scmp.ne.s32.totalorder %s50, %s51
      %p62 = scmp.eq.s32.totalorder %s14, 0
      %p63 = por %p61, %p62
      %p64 = scmp.ne.s32.totalorder %s50, %s51
      %p65 = scmp.eq.s32.totalorder %s15, 1
      %p66 = por %p64, %p65
      %p68 = scmp.ne.s32.totalorder %s51, %s67
      %p69 = scmp.eq.s32.totalorder %s15, 0
      %p70 = por %p68, %p69
      %s72 = sadd.s32 %s71, 1
      %p75 = scmp.eq.s32.totalorder %s9, 1
      %p76 = scmp.ne.s32.totalorder %s71, %s73
      %p77 = scmp.eq.s32.totalorder %s9, 0
      %p78 = por %p76, %p77
      %p79 = scmp.ne.s32.totalorder %s71, %s73
      %p80 = scmp.eq.s32.totalorder %s14, 1
      %p81 = por %p79, %p80
      %p82 = scmp.ne.s32.totalorder %s73, %s74
      %p83 = scmp.eq.s32.totalorder %s14, 0
      %p84 = por %p82, %p83
      %p85 = scmp.ne.s32.totalorder %s73, %s74
      %p86 = scmp.eq.s32.totalorder %s15, 1
      %p87 = por %p85, %p86
      %p89 = scmp.ne.s32.totalorder %s74, %s88
      %p90 = scmp.eq.s32.totalorder %s15, 0
      %p91 = por %p89, %p90
      %s92 = ssub.s32 %s9, %s16
      %p93 = scmp.eq.s32.totalorder %s92, 0
      %s95 = sadd.s32 %s94, 1
      %s96 = scalar_select %p93, %s94, %s95
      %p99 = pneg %p93
      %p100 = scmp.eq.s32.totalorder %s9, 1
      %p101 = por %p99, %p100
      %p102 = scmp.ne.s32.totalorder %s94, %s97
      %p103 = scmp.eq.s32.totalorder %s9, 0
      %p104 = por %p102, %p103
      %p105 = scmp.ne.s32.totalorder %s94, %s97
      %p106 = scmp.eq.s32.totalorder %s14, 1
      %p107 = por %p105, %p106
      %p108 = scmp.ne.s32.totalorder %s97, %s98
      %p109 = scmp.eq.s32.totalorder %s14, 0
      %p110 = por %p108, %p109
      %p111 = scmp.ne.s32.totalorder %s97, %s98
      %p112 = scmp.eq.s32.totalorder %s15, 1
      %p113 = por %p111, %p112
      %p115 = scmp.ne.s32.totalorder %s98, %s114
      %p116 = scmp.eq.s32.totalorder %s15, 0
      %p117 = por %p115, %p116
      %p118 = scmp.le.s32.totalorder 1, %s9
      %p119 = scmp.lt.s32.totalorder %s9, 3
      %p120 = pnand %p118, %p119
      %p121 = pneg %p120
      // Predicated region
      $region9: #{forward.23} parent=5 // pred_check
        _
      $region10: #{forward.23} parent=5 // pred_check_branch
        %123 = sbr.rel (%p120) target = $region12
      $region11: #{forward.23} parent=5 // pred_region
        %s124 = ssub.s32 %s9, 1
        // Predicated region
        $region13: #{forward.23} parent=11 // pred_check
          %p125 = pneg %p84
        $region14: #{forward.23} parent=11 // pred_check_branch
          %127 = sbr.rel (%p125) target = $region16
        $region15: #{forward.23} parent=11 // pred_region
          _
        $region16: #{forward.23} parent=11 // pred_fallthru
          _
      $region12: #{forward.23} parent=5 // pred_fallthru
        _
      %p128 = scmp.lt.s32.totalorder %s9, 2
      // Predicated region
      $region17: #{forward.23} parent=5 // pred_check
        %p129 = pneg %p128
      $region18: #{forward.23} parent=5 // pred_check_branch
        %131 = sbr.rel (%p129) target = $region20
      $region19: #{forward.23} parent=5 // pred_region
        // Predicated region
        $region21: #{forward.23} parent=19 // pred_check
          %p132 = pneg %p29
        $region22: #{forward.23} parent=19 // pred_check_branch
          %134 = sbr.rel (%p132) target = $region24
        $region23: #{forward.23} parent=19 // pred_region
          %s135 = sand.u32 %s19, 1
          %s136 = sand.u32 %s19, 1
          %s137 = smul.addr %s136, 16
          %s138 = scalar_lea.vmem [#allocation2], %s137
          %s139 = smul.addr %s9, 4
          %s140 = scalar_lea.vmem %s0, %s139
          // Predicated region
          $region25: #{forward.23} parent=23 // pred_check
            _
          $region26: #{forward.23} parent=23 // pred_check_branch
            %142 = sbr.rel (0) target = $region28
          $region27: #{forward.23} parent=23 // pred_region
            // Predicated region
            $region29: #{forward.23} parent=27 // pred_check
              _
            $region30: #{forward.23} parent=27 // pred_check_branch
              %144 = sbr.rel target = $region32
            $region31: #{forward.23} parent=27 // pred_region
              // Predicated region
              $region44: #{forward.23} parent=31 // pred_check
                _
              $region45: #{forward.23} parent=31 // pred_check_branch
                %166 = sbr.rel (0) target = $region47
              $region46: #{forward.23} parent=31 // pred_region
                loop: start=0, step=1, limit=1
                $region48: #{forward.23} parent=46 // loop_pre_header
                  _
                $region49: #{forward.23} parent=46 // loop_header
                  %s168 = sphi 0, %s172
                  %p169 = scmp.ge.s32.totalorder %s168, 1
                  %s173 = sphi %s140, %s140
                  %s174 = sphi %s138, %s138
                $region50: #{forward.23} parent=46 // loop_header_branch
                  %171 = sbr.rel (%p169) target = $region54
                $region51: #{forward.23} parent=46 // loop_body
                  _
                $region52: #{forward.23} parent=46 // loop_footer
                  %s172 = sadd.s32 1, %s168
                $region53: #{forward.23} parent=46 // loop_footer_branch
                  %167 = sbr.rel target = $region49
                $region54: #{forward.23} parent=46 // loop_exit
                  _
                %s176 = ssub.s32 16, 1
                loop: start=0, step=1, limit=1
                $region55: #{forward.23} parent=46 // loop_pre_header
                  _
                $region56: #{forward.23} parent=46 // loop_header
                  %s178 = sphi 0, %s182
                  %p179 = scmp.ge.s32.totalorder %s178, 1
                  %s183 = sphi %s140, %s140
                  %s184 = sphi %s138, %s138
                $region57: #{forward.23} parent=46 // loop_header_branch
                  %181 = sbr.rel (%p179) target = $region61
                $region58: #{forward.23} parent=46 // loop_body
                  %v185 = vld [vmem:[%s183] sm:%s176]
                  %186 = vst [vmem:[%s184] sm:%s176] %v185
                  %v187 = vld [vmem:[%s183 + $0xc] sm:%s176]
                  %188 = vst [vmem:[%s184 + $0x4] sm:%s176] %v187
                  %v189 = vld [vmem:[%s183 + $0x18] sm:%s176]
                  %190 = vst [vmem:[%s184 + $0x8] sm:%s176] %v189
                  %v191 = vld [vmem:[%s183 + $0x24] sm:%s176]
                  %192 = vst [vmem:[%s184 + $0xc] sm:%s176] %v191
                $region59: #{forward.23} parent=46 // loop_footer
                  %s182 = sadd.s32 1, %s178
                $region60: #{forward.23} parent=46 // loop_footer_branch
                  %177 = sbr.rel target = $region56
                $region61: #{forward.23} parent=46 // loop_exit
                  _
              $region47: #{forward.23} parent=31 // pred_fallthru
                _
            $region32: #{forward.23} parent=27 // pred_fallthru
              _
            // Predicated region
            $region33: #{forward.23} parent=27 // pred_check
              _
            $region34: #{forward.23} parent=27 // pred_check_branch
              %146 = sbr.rel (0) target = $region36
            $region35: #{forward.23} parent=27 // pred_region
              %s148 = ssub.s32 16, 1
              loop: start=0, step=1, limit=1
              $region37: #{forward.23} parent=35 // loop_pre_header
                _
              $region38: #{forward.23} parent=35 // loop_header
                %s150 = sphi 0, %s154
                %p151 = scmp.ge.s32.totalorder %s150, 1
                %s155 = sphi %s140, %s140
                %s156 = sphi %s138, %s138
              $region39: #{forward.23} parent=35 // loop_header_branch
                %153 = sbr.rel (%p151) target = $region43
              $region40: #{forward.23} parent=35 // loop_body
                %v157 = vld [vmem:[%s155] sm:%s148]
                %158 = vst [vmem:[%s156] sm:%s148] %v157
                %v159 = vld [vmem:[%s155 + $0xc] sm:%s148]
                %160 = vst [vmem:[%s156 + $0x4] sm:%s148] %v159
                %v161 = vld [vmem:[%s155 + $0x18] sm:%s148]
                %162 = vst [vmem:[%s156 + $0x8] sm:%s148] %v161
                %v163 = vld [vmem:[%s155 + $0x24] sm:%s148]
                %164 = vst [vmem:[%s156 + $0xc] sm:%s148] %v163
              $region41: #{forward.23} parent=35 // loop_footer
                %s154 = sadd.s32 1, %s150
              $region42: #{forward.23} parent=35 // loop_footer_branch
                %149 = sbr.rel target = $region38
              $region43: #{forward.23} parent=35 // loop_exit
                _
            $region36: #{forward.23} parent=27 // pred_fallthru
              _
          $region28: #{forward.23} parent=23 // pred_fallthru
            _
          %193 = vnop
        $region24: #{forward.23} parent=19 // pred_fallthru
          _
        // Predicated region
        $region62: #{forward.23} parent=19 // pred_check
          %p194 = pneg %p57
        $region63: #{forward.23} parent=19 // pred_check_branch
          %196 = sbr.rel (%p194) target = $region65
        $region64: #{forward.23} parent=19 // pred_region
          %s197 = sand.u32 %s47, 1
          %s198 = sand.u32 %s47, 1
          %s199 = smul.addr %s198, 16
          %s200 = scalar_lea.vmem [#allocation3], %s199
          %s201 = sadd.s32 %s9, 1
          %s202 = smul.addr %s201, 4
          %s203 = scalar_lea.vmem %s1, %s202
          // Predicated region
          $region66: #{forward.23} parent=64 // pred_check
            _
          $region67: #{forward.23} parent=64 // pred_check_branch
            %205 = sbr.rel (0) target = $region69
          $region68: #{forward.23} parent=64 // pred_region
            // Predicated region
            $region70: #{forward.23} parent=68 // pred_check
              _
            $region71: #{forward.23} parent=68 // pred_check_branch
              %207 = sbr.rel target = $region73
            $region72: #{forward.23} parent=68 // pred_region
              // Predicated region
              $region85: #{forward.23} parent=72 // pred_check
                _
              $region86: #{forward.23} parent=72 // pred_check_branch
                %229 = sbr.rel (0) target = $region88
              $region87: #{forward.23} parent=72 // pred_region
                loop: start=0, step=1, limit=1
                $region89: #{forward.23} parent=87 // loop_pre_header
                  _
                $region90: #{forward.23} parent=87 // loop_header
                  %s231 = sphi 0, %s235
                  %p232 = scmp.ge.s32.totalorder %s231, 1
                  %s236 = sphi %s203, %s203
                  %s237 = sphi %s200, %s200
                $region91: #{forward.23} parent=87 // loop_header_branch
                  %234 = sbr.rel (%p232) target = $region95
                $region92: #{forward.23} parent=87 // loop_body
                  _
                $region93: #{forward.23} parent=87 // loop_footer
                  %s235 = sadd.s32 1, %s231
                $region94: #{forward.23} parent=87 // loop_footer_branch
                  %230 = sbr.rel target = $region90
                $region95: #{forward.23} parent=87 // loop_exit
                  _
                %s239 = ssub.s32 16, 1
                loop: start=0, step=1, limit=1
                $region96: #{forward.23} parent=87 // loop_pre_header
                  _
                $region97: #{forward.23} parent=87 // loop_header
                  %s241 = sphi 0, %s245
                  %p242 = scmp.ge.s32.totalorder %s241, 1
                  %s246 = sphi %s203, %s203
                  %s247 = sphi %s200, %s200
                $region98: #{forward.23} parent=87 // loop_header_branch
                  %244 = sbr.rel (%p242) target = $region102
                $region99: #{forward.23} parent=87 // loop_body
                  %v248 = vld [vmem:[%s246] sm:%s239]
                  %249 = vst [vmem:[%s247] sm:%s239] %v248
                  %v250 = vld [vmem:[%s246 + $0xc] sm:%s239]
                  %251 = vst [vmem:[%s247 + $0x4] sm:%s239] %v250
                  %v252 = vld [vmem:[%s246 + $0x18] sm:%s239]
                  %253 = vst [vmem:[%s247 + $0x8] sm:%s239] %v252
                  %v254 = vld [vmem:[%s246 + $0x24] sm:%s239]
                  %255 = vst [vmem:[%s247 + $0xc] sm:%s239] %v254
                $region100: #{forward.23} parent=87 // loop_footer
                  %s245 = sadd.s32 1, %s241
                $region101: #{forward.23} parent=87 // loop_footer_branch
                  %240 = sbr.rel target = $region97
                $region102: #{forward.23} parent=87 // loop_exit
                  _
              $region88: #{forward.23} parent=72 // pred_fallthru
                _
            $region73: #{forward.23} parent=68 // pred_fallthru
              _
            // Predicated region
            $region74: #{forward.23} parent=68 // pred_check
              _
            $region75: #{forward.23} parent=68 // pred_check_branch
              %209 = sbr.rel (0) target = $region77
            $region76: #{forward.23} parent=68 // pred_region
              %s211 = ssub.s32 16, 1
              loop: start=0, step=1, limit=1
              $region78: #{forward.23} parent=76 // loop_pre_header
                _
              $region79: #{forward.23} parent=76 // loop_header
                %s213 = sphi 0, %s217
                %p214 = scmp.ge.s32.totalorder %s213, 1
                %s218 = sphi %s203, %s203
                %s219 = sphi %s200, %s200
              $region80: #{forward.23} parent=76 // loop_header_branch
                %216 = sbr.rel (%p214) target = $region84
              $region81: #{forward.23} parent=76 // loop_body
                %v220 = vld [vmem:[%s218] sm:%s211]
                %221 = vst [vmem:[%s219] sm:%s211] %v220
                %v222 = vld [vmem:[%s218 + $0xc] sm:%s211]
                %223 = vst [vmem:[%s219 + $0x4] sm:%s211] %v222
                %v224 = vld [vmem:[%s218 + $0x18] sm:%s211]
                %225 = vst [vmem:[%s219 + $0x8] sm:%s211] %v224
                %v226 = vld [vmem:[%s218 + $0x24] sm:%s211]
                %227 = vst [vmem:[%s219 + $0xc] sm:%s211] %v226
              $region82: #{forward.23} parent=76 // loop_footer
                %s217 = sadd.s32 1, %s213
              $region83: #{forward.23} parent=76 // loop_footer_branch
                %212 = sbr.rel target = $region79
              $region84: #{forward.23} parent=76 // loop_exit
                _
            $region77: #{forward.23} parent=68 // pred_fallthru
              _
          $region69: #{forward.23} parent=64 // pred_fallthru
            _
          %256 = vnop
        $region65: #{forward.23} parent=19 // pred_fallthru
          _
      $region20: #{forward.23} parent=5 // pred_fallthru
        _
      %p257 = scmp.le.s32.totalorder 1, %s9
      %p258 = scmp.lt.s32.totalorder %s9, 3
      %p259 = pnand %p257, %p258
      %p260 = pneg %p259
      // Predicated region
      $region103: #{forward.23} parent=5 // pred_check
        _
      $region104: #{forward.23} parent=5 // pred_check_branch
        %262 = sbr.rel (%p259) target = $region106
      $region105: #{forward.23} parent=5 // pred_region
        %s263 = ssub.s32 %s9, 1
        %s264 = sand.u32 %s22, 1
        %s265 = sand.u32 %s22, 1
        %s266 = smul.addr %s265, 16
        %s267 = scalar_lea.vmem [#allocation2], %s266
        // Predicated region
        $region107: #{forward.23} parent=105 // pred_check
          %p268 = pneg %p35
        $region108: #{forward.23} parent=105 // pred_check_branch
          %270 = sbr.rel (%p268) target = $region110
        $region109: #{forward.23} parent=105 // pred_region
          _
        $region110: #{forward.23} parent=105 // pred_fallthru
          _
        %s271 = sand.u32 %s50, 1
        %s272 = sand.u32 %s50, 1
        %s273 = smul.addr %s272, 16
        %s274 = scalar_lea.vmem [#allocation3], %s273
        // Predicated region
        $region111: #{forward.23} parent=105 // pred_check
          %p275 = pneg %p63
        $region112: #{forward.23} parent=105 // pred_check_branch
          %277 = sbr.rel (%p275) target = $region114
        $region113: #{forward.23} parent=105 // pred_region
          _
        $region114: #{forward.23} parent=105 // pred_fallthru
          _
        %s278 = sand.u32 %s22, 1
        %s279 = sand.u32 %s22, 1
        %s280 = smul.addr %s279, 16
        %s281 = scalar_lea.vmem [#allocation2], %s280
        %p282 = pneg %p35
        %p283 = pneg %p32
        %s284 = sand.u32 %s50, 1
        %s285 = sand.u32 %s50, 1
        %s286 = smul.addr %s285, 16
        %s287 = scalar_lea.vmem [#allocation3], %s286
        %p288 = pneg %p63
        %p289 = pneg %p60
        %p290 = pneg %p84
        %p291 = pneg %p81
        %p292 = pneg %p110
        %p293 = pneg %p107
        %s294 = sand.u32 %s97, 1
        %s295 = sand.u32 %s97, 1
        %s296 = smul.addr %s295, 16
        %s297 = scalar_lea.vmem [#allocation4], %s296
        %s298 = sadd.s32 %s14, 1
        %v300 = vld [vmem:[%s267] sm:$0xf]
        %v301 = vld [vmem:[%s267 + $0x4] sm:$0xf]
        %v302 = vld [vmem:[%s267 + $0x8] sm:$0xf]
        %v303 = vld [vmem:[%s267 + $0xc] sm:$0xf]
        %v304 = vld [vmem:[%s274] sm:$0xf]
        %v305 = vld [vmem:[%s274 + $0x4] sm:$0xf]
        %v306 = vld [vmem:[%s274 + $0x8] sm:$0xf]
        %v307 = vld [vmem:[%s274 + $0xc] sm:$0xf]
        %v312 = vunpack.c.l.b16 %v300
        %v313 = vunpack.c.l.b16 %v301
        %v314 = vunpack.c.l.b16 %v302
        %v315 = vunpack.c.l.b16 %v303
        %v316 = vpack.c.b16 %v313, %v312
        %v317 = vpack.c.b16 %v315, %v314
        %v324 = vunpack.c.l.b16 %v304
        %v325 = vunpack.c.l.b16 %v305
        %v326 = vunpack.c.l.b16 %v306
        %v327 = vunpack.c.l.b16 %v307
        %v328 = vpack.c.b16 %v325, %v324
        %v329 = vpack.c.b16 %v327, %v326
        %v330 = vld [vmem:[%s2] sm:$0xff]
        %v331 = vld [vmem:[%s2 + $0x8] sm:$0xf]
        %v332 = vld [vmem:[%s2 + $0xc] sm:$0xff]
        %v333 = vld [vmem:[%s2 + $0x14] sm:$0xf]
        %v334 = vld [vmem:[%s2 + $0x18] sm:$0xff]
        %v335 = vld [vmem:[%s2 + $0x20] sm:$0xf]
        %v336 = vld [vmem:[%s2 + $0x24] sm:$0xff]
        %v337 = vld [vmem:[%s2 + $0x2c] sm:$0xf]
        %338 = vrot.lane.b32.xlu0 %v316, 127
        %v339 = vpop.permute.xlu0 %338
        %340 = vrot.lane.b32.xlu0 %v328, 127
        %v341 = vpop.permute.xlu0 %340
        %342 = vrot.lane.b32.xlu0 %v317, 127
        %v343 = vpop.permute.xlu0 %342
        %344 = vrot.lane.b32.xlu0 %v329, 127
        %v345 = vpop.permute.xlu0 %344
        %vm346 = vcmask 1039360
        %v347 = vsel %vm346, %v339, %v341
        %v348 = vsel %vm346, %v343, %v345
        %351 = vrot.lane.b32.xlu0 %v316, 126
        %v352 = vpop.permute.xlu0 %351
        %353 = vrot.lane.b32.xlu0 %v328, 126
        %v354 = vpop.permute.xlu0 %353
        %355 = vrot.lane.b32.xlu0 %v317, 126
        %v356 = vpop.permute.xlu0 %355
        %357 = vrot.lane.b32.xlu0 %v329, 126
        %v358 = vpop.permute.xlu0 %357
        %vm359 = vcmask 1031168
        %v360 = vsel %vm359, %v352, %v354
        %v361 = vsel %vm359, %v356, %v358
        %364 = vrot.lane.b32.xlu0 %v316, 118
        %v365 = vpop.permute.xlu0 %364
        %366 = vrot.lane.b32.xlu0 %v328, 118
        %v367 = vpop.permute.xlu0 %366
        %368 = vrot.lane.b32.xlu0 %v317, 118
        %v369 = vpop.permute.xlu0 %368
        %370 = vrot.lane.b32.xlu0 %v329, 118
        %v371 = vpop.permute.xlu0 %370
        %vm372 = vcmask 965632
        %v373 = vsel %vm372, %v365, %v367
        %v374 = vsel %vm372, %v369, %v371
        %377 = vrot.lane.b32.xlu0 %v316, 117
        %v378 = vpop.permute.xlu0 %377
        %379 = vrot.lane.b32.xlu0 %v328, 117
        %v380 = vpop.permute.xlu0 %379
        %381 = vrot.lane.b32.xlu0 %v317, 117
        %v382 = vpop.permute.xlu0 %381
        %383 = vrot.lane.b32.xlu0 %v329, 117
        %v384 = vpop.permute.xlu0 %383
        %vm385 = vcmask 957440
        %v386 = vsel %vm385, %v378, %v380
        %v387 = vsel %vm385, %v382, %v384
        %390 = vrot.lane.b32.xlu0 %v316, 116
        %v391 = vpop.permute.xlu0 %390
        %392 = vrot.lane.b32.xlu0 %v328, 116
        %v393 = vpop.permute.xlu0 %392
        %394 = vrot.lane.b32.xlu0 %v317, 116
        %v395 = vpop.permute.xlu0 %394
        %396 = vrot.lane.b32.xlu0 %v329, 116
        %v397 = vpop.permute.xlu0 %396
        %vm398 = vcmask 949248
        %v399 = vsel %vm398, %v391, %v393
        %v400 = vsel %vm398, %v395, %v397
        %403 = vrot.lane.b32.xlu0 %v316, 108
        %v404 = vpop.permute.xlu0 %403
        %405 = vrot.lane.b32.xlu0 %v328, 108
        %v406 = vpop.permute.xlu0 %405
        %407 = vrot.lane.b32.xlu0 %v317, 108
        %v408 = vpop.permute.xlu0 %407
        %409 = vrot.lane.b32.xlu0 %v329, 108
        %v410 = vpop.permute.xlu0 %409
        %vm411 = vcmask 883712
        %v412 = vsel %vm411, %v404, %v406
        %v413 = vsel %vm411, %v408, %v410
        %416 = vrot.lane.b32.xlu0 %v316, 107
        %v417 = vpop.permute.xlu0 %416
        %418 = vrot.lane.b32.xlu0 %v328, 107
        %v419 = vpop.permute.xlu0 %418
        %420 = vrot.lane.b32.xlu0 %v317, 107
        %v421 = vpop.permute.xlu0 %420
        %422 = vrot.lane.b32.xlu0 %v329, 107
        %v423 = vpop.permute.xlu0 %422
        %vm424 = vcmask 875520
        %v425 = vsel %vm424, %v417, %v419
        %v426 = vsel %vm424, %v421, %v423
        %429 = vrot.lane.b32.xlu0 %v316, 106
        %v430 = vpop.permute.xlu0 %429
        %431 = vrot.lane.b32.xlu0 %v328, 106
        %v432 = vpop.permute.xlu0 %431
        %433 = vrot.lane.b32.xlu0 %v317, 106
        %v434 = vpop.permute.xlu0 %433
        %435 = vrot.lane.b32.xlu0 %v329, 106
        %v436 = vpop.permute.xlu0 %435
        %vm437 = vcmask 867328
        %v438 = vsel %vm437, %v430, %v432
        %v439 = vsel %vm437, %v434, %v436
        %v450 = vunpack.c.l.b16 %v330
        %v451 = vunpack.c.h.b16 %v330
        %v452 = vunpack.c.l.b16 %v331
        %v453 = vunpack.c.l.b16 %v332
        %v454 = vunpack.c.h.b16 %v332
        %v455 = vunpack.c.l.b16 %v333
        %v456 = vunpack.c.l.b16 %v334
        %v457 = vunpack.c.h.b16 %v334
        %v458 = vunpack.c.l.b16 %v335
        %v459 = vunpack.c.l.b16 %v336
        %v460 = vunpack.c.h.b16 %v336
        %v461 = vunpack.c.l.b16 %v337
        %v462 = vpack.c.b16 %v453, %v450
        %v463 = vpack.c.b16 %v454, %v451
        %v464 = vpack.c.b16 %v455, %v452
        %v465 = vpack.c.b16 %v459, %v456
        %v466 = vpack.c.b16 %v460, %v457
        %v467 = vpack.c.b16 %v461, %v458
        %vm472 = vcmask 261120
        %v474 = vsel %vm472, %v464, 0
        %v477 = vsel %vm472, %v467, 0
        %479 = vmatprep.subr.bf16.mxu0 0
        %480 = vmatpush1.bf16.msra.mxu0 %v374
        %481 = vmatprep.subr.bf16.mxu0 0
        %482 = vmatpush1.bf16.msra.mxu0 %v373
        %483 = vmatprep.subr.bf16.mxu0 0
        %484 = vmatpush1.bf16.msra.mxu0 %v361
        %485 = vmatprep.subr.bf16.mxu0 0
        %486 = vmatpush1.bf16.msra.mxu0 %v360
        %487 = vmatprep.subr.bf16.mxu0 0
        %488 = vmatpush1.bf16.msra.mxu0 %v348
        %489 = vmatprep.subr.bf16.mxu0 0
        %490 = vmatpush1.bf16.msra.mxu0 %v347
        %491 = vmatprep.subr.bf16.mxu0 0
        %492 = vmatpush1.bf16.msra.mxu0 %v317
        %493 = vmatprep.subr.bf16.mxu0 0
        %494 = vmatpush1.bf16.msra.mxu0 %v316
        %495 = vmatprep.subr.bf16.mxu0 0
        %496 = vmatpush2.bf16.msra.mxu0 %v426
        %497 = vmatprep.subr.bf16.mxu0 0
        %498 = vmatpush2.bf16.msra.mxu0 %v425
        %499 = vmatprep.subr.bf16.mxu0 0
        %500 = vmatpush2.bf16.msra.mxu0 %v413
        %501 = vmatprep.subr.bf16.mxu0 0
        %502 = vmatpush2.bf16.msra.mxu0 %v412
        %503 = vmatprep.subr.bf16.mxu0 0
        %504 = vmatpush2.bf16.msra.mxu0 %v400
        %505 = vmatprep.subr.bf16.mxu0 0
        %506 = vmatpush2.bf16.msra.mxu0 %v399
        %507 = vmatprep.subr.bf16.mxu0 0
        %508 = vmatpush2.bf16.msra.mxu0 %v387
        %509 = vmatprep.subr.bf16.mxu0 0
        %510 = vmatpush2.bf16.msra.mxu0 %v386
        %511 = vmatprep.mubr.bf16.mxu0 %v463
        %512 = vmatmul.mubr.bf16.gmra.mxu0 %v462
        %v513 = vpop.f32.mrf.mxu0
        %v514 = vadd.f32 0.0, %v513
        %v515 = vpop.f32.mrf.mxu0
        %v516 = vpop.f32.mrf.mxu0
        %v517 = vadd.f32 0.0, %v516
        %v518 = vpop.f32.mrf.mxu0
        %519 = vmatprep.mubr.bf16.mxu0 %v466
        %520 = vmatmul.mubr.bf16.gmra.mxu0 %v465
        %v521 = vpop.f32.mrf.mxu0
        %v522 = vadd.f32 0.0, %v521
        %v523 = vpop.f32.mrf.mxu0
        %v524 = vpop.f32.mrf.mxu0
        %v525 = vadd.f32 0.0, %v524
        %v526 = vpop.f32.mrf.mxu0
        %527 = vdwg.mxu0
        %528 = vmatprep.subr.bf16.mxu0 0
        %529 = vmatpush1.bf16.msra.mxu0 0
        %530 = vmatprep.subr.bf16.mxu0 0
        %531 = vmatpush1.bf16.msra.mxu0 0
        %532 = vmatprep.subr.bf16.mxu0 0
        %533 = vmatpush1.bf16.msra.mxu0 0
        %534 = vmatprep.subr.bf16.mxu0 0
        %535 = vmatpush1.bf16.msra.mxu0 0
        %536 = vmatprep.subr.bf16.mxu0 0
        %537 = vmatpush1.bf16.msra.mxu0 0
        %538 = vmatprep.subr.bf16.mxu0 0
        %539 = vmatpush1.bf16.msra.mxu0 0
        %540 = vmatprep.subr.bf16.mxu0 0
        %541 = vmatpush1.bf16.msra.mxu0 %v439
        %542 = vmatprep.subr.bf16.mxu0 0
        %543 = vmatpush1.bf16.msra.mxu0 %v438
        %544 = vmatprep.subr.bf16.mxu0 0
        %545 = vmatpush2.bf16.msra.mxu0 0
        %546 = vmatprep.subr.bf16.mxu0 0
        %547 = vmatpush2.bf16.msra.mxu0 0
        %548 = vmatprep.subr.bf16.mxu0 0
        %549 = vmatpush2.bf16.msra.mxu0 0
        %550 = vmatprep.subr.bf16.mxu0 0
        %551 = vmatpush2.bf16.msra.mxu0 0
        %552 = vmatprep.subr.bf16.mxu0 0
        %553 = vmatpush2.bf16.msra.mxu0 0
        %554 = vmatprep.subr.bf16.mxu0 0
        %555 = vmatpush2.bf16.msra.mxu0 0
        %556 = vmatprep.subr.bf16.mxu0 0
        %557 = vmatpush2.bf16.msra.mxu0 0
        %558 = vmatprep.subr.bf16.mxu0 0
        %559 = vmatpush2.bf16.msra.mxu0 0
        %560 = vmatprep.mubr.bf16.mxu0 0
        %561 = vmatmul.mubr.bf16.gmra.mxu0 %v474
        %v562 = vpop.f32.mrf.mxu0
        %v563 = vadd.f32 %v514, %v562
        %v564 = vpop.f32.mrf.mxu0
        %v565 = vpop.f32.mrf.mxu0
        %v566 = vadd.f32 %v517, %v565
        %v567 = vpop.f32.mrf.mxu0
        %568 = vmatprep.mubr.bf16.mxu0 0
        %569 = vmatmul.mubr.bf16.gmra.mxu0 %v477
        %v570 = vpop.f32.mrf.mxu0
        %v571 = vadd.f32 %v522, %v570
        %v572 = vpop.f32.mrf.mxu0
        %v573 = vpop.f32.mrf.mxu0
        %v574 = vadd.f32 %v525, %v573
        %v575 = vpop.f32.mrf.mxu0
        %576 = vdwg.mxu0
        %v577 = vmax.f32 %v563, 0.0
        %v578 = vmax.f32 %v566, 0.0
        %v579 = vmax.f32 %v571, 0.0
        %v580 = vmax.f32 %v574, 0.0
        %v581 = vpack.c.bf16 %v578, %v577
        %v582 = vpack.c.bf16 %v580, %v579
        %v585 = vunpack.c.l.b16 %v581
        %v586 = vunpack.c.h.b16 %v581
        %v587 = vunpack.c.l.b16 %v582
        %v588 = vunpack.c.h.b16 %v582
        %v589 = vpack.c.b16 %v585, %v585
        %v590 = vpack.c.b16 %v586, %v586
        %v591 = vpack.c.b16 %v587, %v587
        %v592 = vpack.c.b16 %v588, %v588
        %597 = vst [vmem:[%s297] sm:$0xf] %v589
        %598 = vst [vmem:[%s297 + $0x4] sm:$0xf] %v590
        %599 = vst [vmem:[%s297 + $0x8] sm:$0xf] %v591
        %600 = vst [vmem:[%s297 + $0xc] sm:$0xf] %v592
        %s601 = sand.u32 %s97, 1
        %s602 = sand.u32 %s97, 1
        %s603 = smul.addr %s602, 16
        %s604 = scalar_lea.vmem [#allocation4], %s603
        // Predicated region
        $region115: #{forward.23} parent=105 // pred_check
          %p605 = pneg %p107
        $region116: #{forward.23} parent=105 // pred_check_branch
          %607 = sbr.rel (%p605) target = $region118
        $region117: #{forward.23} parent=105 // pred_region
          %s608 = smul.addr %s14, 4
          %s609 = scalar_lea.vmem %s3, %s608
          // Predicated region
          $region119: #{forward.23} parent=117 // pred_check
            _
          $region120: #{forward.23} parent=117 // pred_check_branch
            %611 = sbr.rel (0) target = $region122
          $region121: #{forward.23} parent=117 // pred_region
            // Predicated region
            $region123: #{forward.23} parent=121 // pred_check
              _
            $region124: #{forward.23} parent=121 // pred_check_branch
              %613 = sbr.rel target = $region126
            $region125: #{forward.23} parent=121 // pred_region
              // Predicated region
              $region138: #{forward.23} parent=125 // pred_check
                _
              $region139: #{forward.23} parent=125 // pred_check_branch
                %635 = sbr.rel (0) target = $region141
              $region140: #{forward.23} parent=125 // pred_region
                loop: start=0, step=1, limit=1
                $region142: #{forward.23} parent=140 // loop_pre_header
                  _
                $region143: #{forward.23} parent=140 // loop_header
                  %s637 = sphi 0, %s641
                  %p638 = scmp.ge.s32.totalorder %s637, 1
                  %s642 = sphi %s604, %s604
                  %s643 = sphi %s609, %s609
                $region144: #{forward.23} parent=140 // loop_header_branch
                  %640 = sbr.rel (%p638) target = $region148
                $region145: #{forward.23} parent=140 // loop_body
                  _
                $region146: #{forward.23} parent=140 // loop_footer
                  %s641 = sadd.s32 1, %s637
                $region147: #{forward.23} parent=140 // loop_footer_branch
                  %636 = sbr.rel target = $region143
                $region148: #{forward.23} parent=140 // loop_exit
                  _
                %s645 = ssub.s32 16, 1
                loop: start=0, step=1, limit=1
                $region149: #{forward.23} parent=140 // loop_pre_header
                  _
                $region150: #{forward.23} parent=140 // loop_header
                  %s647 = sphi 0, %s651
                  %p648 = scmp.ge.s32.totalorder %s647, 1
                  %s652 = sphi %s604, %s604
                  %s653 = sphi %s609, %s609
                $region151: #{forward.23} parent=140 // loop_header_branch
                  %650 = sbr.rel (%p648) target = $region155
                $region152: #{forward.23} parent=140 // loop_body
                  %v654 = vld [vmem:[%s652] sm:%s645]
                  %655 = vst [vmem:[%s653] sm:%s645] %v654
                  %v656 = vld [vmem:[%s652 + $0x4] sm:%s645]
                  %657 = vst [vmem:[%s653 + $0x8] sm:%s645] %v656
                  %v658 = vld [vmem:[%s652 + $0x8] sm:%s645]
                  %659 = vst [vmem:[%s653 + $0x10] sm:%s645] %v658
                  %v660 = vld [vmem:[%s652 + $0xc] sm:%s645]
                  %661 = vst [vmem:[%s653 + $0x18] sm:%s645] %v660
                $region153: #{forward.23} parent=140 // loop_footer
                  %s651 = sadd.s32 1, %s647
                $region154: #{forward.23} parent=140 // loop_footer_branch
                  %646 = sbr.rel target = $region150
                $region155: #{forward.23} parent=140 // loop_exit
                  _
              $region141: #{forward.23} parent=125 // pred_fallthru
                _
            $region126: #{forward.23} parent=121 // pred_fallthru
              _
            // Predicated region
            $region127: #{forward.23} parent=121 // pred_check
              _
            $region128: #{forward.23} parent=121 // pred_check_branch
              %615 = sbr.rel (0) target = $region130
            $region129: #{forward.23} parent=121 // pred_region
              %s617 = ssub.s32 16, 1
              loop: start=0, step=1, limit=1
              $region131: #{forward.23} parent=129 // loop_pre_header
                _
              $region132: #{forward.23} parent=129 // loop_header
                %s619 = sphi 0, %s623
                %p620 = scmp.ge.s32.totalorder %s619, 1
                %s624 = sphi %s604, %s604
                %s625 = sphi %s609, %s609
              $region133: #{forward.23} parent=129 // loop_header_branch
                %622 = sbr.rel (%p620) target = $region137
              $region134: #{forward.23} parent=129 // loop_body
                %v626 = vld [vmem:[%s624] sm:%s617]
                %627 = vst [vmem:[%s625] sm:%s617] %v626
                %v628 = vld [vmem:[%s624 + $0x4] sm:%s617]
                %629 = vst [vmem:[%s625 + $0x8] sm:%s617] %v628
                %v630 = vld [vmem:[%s624 + $0x8] sm:%s617]
                %631 = vst [vmem:[%s625 + $0x10] sm:%s617] %v630
                %v632 = vld [vmem:[%s624 + $0xc] sm:%s617]
                %633 = vst [vmem:[%s625 + $0x18] sm:%s617] %v632
              $region135: #{forward.23} parent=129 // loop_footer
                %s623 = sadd.s32 1, %s619
              $region136: #{forward.23} parent=129 // loop_footer_branch
                %618 = sbr.rel target = $region132
              $region137: #{forward.23} parent=129 // loop_exit
                _
            $region130: #{forward.23} parent=121 // pred_fallthru
              _
          $region122: #{forward.23} parent=117 // pred_fallthru
            _
          %662 = vnop
        $region118: #{forward.23} parent=105 // pred_fallthru
          _
      $region106: #{forward.23} parent=5 // pred_fallthru
        _
      %p663 = scmp.le.s32.totalorder 2, %s9
      // Predicated region
      $region156: #{forward.23} parent=5 // pred_check
        %p664 = pneg %p663
      $region157: #{forward.23} parent=5 // pred_check_branch
        %666 = sbr.rel (%p664) target = $region159
      $region158: #{forward.23} parent=5 // pred_region
        %s667 = ssub.s32 %s9, 2
        // Predicated region
        $region160: #{forward.23} parent=158 // pred_check
          %p668 = pneg %p113
        $region161: #{forward.23} parent=158 // pred_check_branch
          %670 = sbr.rel (%p668) target = $region163
        $region162: #{forward.23} parent=158 // pred_region
          %s671 = sand.u32 %s98, 1
          %s672 = sand.u32 %s98, 1
          %s673 = smul.addr %s672, 16
          %s674 = scalar_lea.vmem [#allocation4], %s673
        $region163: #{forward.23} parent=158 // pred_fallthru
          _
      $region159: #{forward.23} parent=5 // pred_fallthru
        _
    $region6: #{forward.23} parent=1 // loop_footer
      %s13 = sadd.s32 1, %s9
    $region7: #{forward.23} parent=1 // loop_footer_branch
      %8 = sbr.rel target = $region3
    $region8: #{forward.23} parent=1 // loop_exit
      _

// kernel: forward.25
$region0: #{forward.25}
  #allocation0 [shape = 'u32[]', space=smem, size = 0x4, offset = 0x4, fixed_abs, tag = 'smem constant byte address 0x4 - core index']
  #allocation1 [shape = 'u32[144,128]{1,0:T(1,128)}', space=vmem, size = 0x12000, scoped, tag = 'internal scratch']
  %s0 = inlined_call_operand.vmem [shape: bf16[32,128], index: 0, kind: input, shape index: {}]
  %s1 = inlined_call_operand.vmem [shape: bf16[32,128], index: 1, kind: input, shape index: {}]
  %s2 = inlined_call_operand.vmem [shape: bf16[32,128], index: 2, kind: input, shape index: {}]
  %s3 = inlined_call_operand.vmem [shape: bf16[32,96], index: 3, kind: input, shape index: {}]
  %s4 = inlined_call_operand.vmem [shape: bf16[32,128], index: 4, kind: output, shape index: {}]
  %s5 = sld [smem:[#allocation0]]
  $region26: #{forward.25} parent=0
    _
  %s7 = ssub.s32 1, %s5
  %s8 = scalar_select 0, %s7, %s5
  // Predicated region
  $region2: #{forward.25} parent=0 // pred_check
    _
  $region3: #{forward.25} parent=0 // pred_check_branch
    %10 = sbr.rel (0) target = $region5
  $region4: #{forward.25} parent=0 // pred_region
    _
  $region5: #{forward.25} parent=0 // pred_fallthru
    _
  // Predicated region
  $region6: #{forward.25} parent=0 // pred_check
    _
  $region7: #{forward.25} parent=0 // pred_check_branch
    %12 = sbr.rel (0) target = $region9
  $region8: #{forward.25} parent=0 // pred_region
    _
  $region9: #{forward.25} parent=0 // pred_fallthru
    _
  // Predicated region
  $region10: #{forward.25} parent=0 // pred_check
    _
  $region11: #{forward.25} parent=0 // pred_check_branch
    %14 = sbr.rel (0) target = $region13
  $region12: #{forward.25} parent=0 // pred_region
    _
  $region13: #{forward.25} parent=0 // pred_fallthru
    _
  // Predicated region
  $region14: #{forward.25} parent=0 // pred_check
    _
  $region15: #{forward.25} parent=0 // pred_check_branch
    %16 = sbr.rel (0) target = $region17
  $region16: #{forward.25} parent=0 // pred_region
    _
  $region17: #{forward.25} parent=0 // pred_fallthru
    _
  %v18 = vld [vmem:[%s0] sm:$0xf]
  %v19 = vld [vmem:[%s0 + $0x4] sm:$0xf]
  %v20 = vld [vmem:[%s0 + $0x8] sm:$0xf]
  %v21 = vld [vmem:[%s0 + $0xc] sm:$0xf]
  %v22 = vld [vmem:[%s1] sm:$0xf]
  %v23 = vld [vmem:[%s1 + $0x4] sm:$0xf]
  %v24 = vld [vmem:[%s1 + $0x8] sm:$0xf]
  %v25 = vld [vmem:[%s1 + $0xc] sm:$0xf]
  %v26 = vld [vmem:[%s2] sm:$0xf]
  %v27 = vld [vmem:[%s2 + $0x4] sm:$0xf]
  %v28 = vld [vmem:[%s2 + $0x8] sm:$0xf]
  %v29 = vld [vmem:[%s2 + $0xc] sm:$0xf]
  %v30 = vld [vmem:[%s3] sm:$0xf]
  %v31 = vld [vmem:[%s3 + $0x4] sm:$0xf]
  %v32 = vld [vmem:[%s3 + $0x8] sm:$0xf]
  %v33 = vld [vmem:[%s3 + $0xc] sm:$0xf]
  %v38 = vunpack.c.l.b16 %v18
  %v39 = vunpack.c.l.b16 %v19
  %v40 = vunpack.c.l.b16 %v20
  %v41 = vunpack.c.l.b16 %v21
  %v42 = vpack.c.b16 %v39, %v38
  %v43 = vpack.c.b16 %v41, %v40
  %v50 = vunpack.c.l.b16 %v22
  %v51 = vunpack.c.l.b16 %v23
  %v52 = vunpack.c.l.b16 %v24
  %v53 = vunpack.c.l.b16 %v25
  %v54 = vpack.c.b16 %v51, %v50
  %v55 = vpack.c.b16 %v53, %v52
  %v62 = vunpack.c.l.b16 %v26
  %v63 = vunpack.c.l.b16 %v27
  %v64 = vunpack.c.l.b16 %v28
  %v65 = vunpack.c.l.b16 %v29
  %v66 = vpack.c.b16 %v63, %v62
  %v67 = vpack.c.b16 %v65, %v64
  %v74 = vunpack.c.l.b16 %v30
  %v75 = vunpack.c.l.b16 %v31
  %v76 = vunpack.c.l.b16 %v32
  %v77 = vunpack.c.l.b16 %v33
  %v78 = vpack.c.b16 %v75, %v74
  %v79 = vpack.c.b16 %v77, %v76
  %vm80 = vcmask 785408
  %v82 = vsel %vm80, %v78, 0
  %v85 = vsel %vm80, %v79, 0
  %87 = vmatprep.subr.bf16.mxu0 0
  %88 = vmatpush1.bf16.msra.mxu0 0
  %89 = vmatprep.subr.bf16.mxu0 0
  %90 = vmatpush1.bf16.msra.mxu0 0
  %91 = vmatprep.subr.bf16.mxu0 0
  %92 = vmatpush1.bf16.msra.mxu0 %v67
  %93 = vmatprep.subr.bf16.mxu0 0
  %94 = vmatpush1.bf16.msra.mxu0 %v66
  %95 = vmatprep.subr.bf16.mxu0 0
  %96 = vmatpush1.bf16.msra.mxu0 %v55
  %97 = vmatprep.subr.bf16.mxu0 0
  %98 = vmatpush1.bf16.msra.mxu0 %v54
  %99 = vmatprep.subr.bf16.mxu0 0
  %100 = vmatpush1.bf16.msra.mxu0 %v43
  %101 = vmatprep.subr.bf16.mxu0 0
  %102 = vmatpush1.bf16.msra.mxu0 %v42
  %103 = vmatprep.subr.bf16.mxu0 0
  %104 = vmatpush2.bf16.msra.mxu0 0
  %105 = vmatprep.subr.bf16.mxu0 0
  %106 = vmatpush2.bf16.msra.mxu0 0
  %107 = vmatprep.subr.bf16.mxu0 0
  %108 = vmatpush2.bf16.msra.mxu0 0
  %109 = vmatprep.subr.bf16.mxu0 0
  %110 = vmatpush2.bf16.msra.mxu0 0
  %111 = vmatprep.subr.bf16.mxu0 0
  %112 = vmatpush2.bf16.msra.mxu0 0
  %113 = vmatprep.subr.bf16.mxu0 0
  %114 = vmatpush2.bf16.msra.mxu0 0
  %115 = vmatprep.subr.bf16.mxu0 0
  %116 = vmatpush2.bf16.msra.mxu0 0
  %117 = vmatprep.subr.bf16.mxu0 0
  %118 = vmatpush2.bf16.msra.mxu0 0
  %119 = vmatprep.mubr.bf16.mxu0 0
  %120 = vmatmul.mubr.bf16.gmra.mxu0 %v82
  %v121 = vpop.f32.mrf.mxu0
  %v122 = vadd.f32 0.0, %v121
  %v123 = vpop.f32.mrf.mxu0
  %v124 = vpop.f32.mrf.mxu0
  %v125 = vadd.f32 0.0, %v124
  %v126 = vpop.f32.mrf.mxu0
  %127 = vmatprep.mubr.bf16.mxu0 0
  %128 = vmatmul.mubr.bf16.gmra.mxu0 %v85
  %v129 = vpop.f32.mrf.mxu0
  %v130 = vadd.f32 0.0, %v129
  %v131 = vpop.f32.mrf.mxu0
  %v132 = vpop.f32.mrf.mxu0
  %v133 = vadd.f32 0.0, %v132
  %v134 = vpop.f32.mrf.mxu0
  %135 = vdwg.mxu0
  %v136 = vpack.c.bf16 %v125, %v122
  %v137 = vpack.c.bf16 %v133, %v130
  %v140 = vunpack.c.l.b16 %v136
  %v141 = vunpack.c.h.b16 %v136
  %v142 = vunpack.c.l.b16 %v137
  %v143 = vunpack.c.h.b16 %v137
  %v144 = vpack.c.b16 %v140, %v140
  %v145 = vpack.c.b16 %v141, %v141
  %v146 = vpack.c.b16 %v142, %v142
  %v147 = vpack.c.b16 %v143, %v143
  %152 = vst [vmem:[%s4] sm:$0xf] %v144
  %153 = vst [vmem:[%s4 + $0x4] sm:$0xf] %v145
  %154 = vst [vmem:[%s4 + $0x8] sm:$0xf] %v146
  %155 = vst [vmem:[%s4 + $0xc] sm:$0xf] %v147
  // Predicated region
  $region18: #{forward.25} parent=0 // pred_check
    _
  $region19: #{forward.25} parent=0 // pred_check_branch
    %157 = sbr.rel (0) target = $region21
  $region20: #{forward.25} parent=0 // pred_region
    _
  $region21: #{forward.25} parent=0 // pred_fallthru
    _
  // Predicated region
  $region22: #{forward.25} parent=0 // pred_check
    _
  $region23: #{forward.25} parent=0 // pred_check_branch
    %159 = sbr.rel (0) target = $region25
  $region24: #{forward.25} parent=0 // pred_region
    _
  $region25: #{forward.25} parent=0 // pred_fallthru
    _

// kernel: forward.24
$region0: #{forward.24}
  #allocation0 [shape = 'u32[]', space=smem, size = 0x4, offset = 0x4, fixed_abs, tag = 'smem constant byte address 0x4 - core index']
  #allocation1 [shape = 'u32[144,128]{1,0:T(1,128)}', space=vmem, size = 0x12000, scoped, tag = 'internal scratch']
  %s0 = inlined_call_operand.vmem [shape: bf16[32,384], index: 0, kind: input, shape index: {}, may-alias: {0,1}]
  %s1 = inlined_call_operand.vmem [shape: bf16[32,384], index: 1, kind: input, shape index: {}, may-alias: {0,1}]
  %s2 = inlined_call_operand.vmem [shape: bf16[32,384], index: 2, kind: input, shape index: {}, may-alias: {2,3}]
  %s3 = inlined_call_operand.vmem [shape: bf16[32,384], index: 3, kind: input, shape index: {}, may-alias: {2,3}]
  %s4 = inlined_call_operand.vmem [shape: bf16[32,576], index: 4, kind: input, shape index: {}]
  %s5 = inlined_call_operand.vmem [shape: bf16[32,256], index: 5, kind: output, shape index: {}]
  %s6 = sld [smem:[#allocation0]]
  $region254: #{forward.24} parent=0
    _
  %s8 = ssub.s32 1, %s6
  %s9 = scalar_select 0, %s8, %s6
  $region1: #{forward.24} parent=0
    #allocation2 [shape = 'u8[16384]{0}', space=vmem, size = 0x4000, scoped, tag = 'input window, operand 0']
    #allocation3 [shape = 'u8[16384]{0}', space=vmem, size = 0x4000, scoped, tag = 'input window, operand 1']
    #allocation4 [shape = 'u8[16384]{0}', space=vmem, size = 0x4000, scoped, tag = 'input window, operand 2']
    #allocation5 [shape = 'u8[16384]{0}', space=vmem, size = 0x4000, scoped, tag = 'input window, operand 3']
    #allocation6 [shape = 'u8[16384]{0}', space=vmem, size = 0x4000, scoped, tag = 'output window, operand 0']
    loop: start=0, step=1, limit=4
    $region2: #{forward.24} parent=1 // loop_pre_header
      _
    $region3: #{forward.24} parent=1 // loop_header
      %s11 = sphi 0, %s15
      %p12 = scmp.ge.s32.totalorder %s11, 4
      %s21 = sphi 0, %s23
      %s24 = sphi 0, %s21
      %s25 = sphi 0, %s24
      %s41 = sphi 0, %s25
      %s49 = sphi 0, %s51
      %s52 = sphi 0, %s49
      %s53 = sphi 0, %s52
      %s69 = sphi 0, %s53
      %s75 = sphi 0, %s77
      %s78 = sphi 0, %s75
      %s79 = sphi 0, %s78
      %s95 = sphi 0, %s79
      %s103 = sphi 0, %s105
      %s106 = sphi 0, %s103
      %s107 = sphi 0, %s106
      %s123 = sphi 0, %s107
      %s127 = sphi 0, %s127
      %s129 = sphi 0, %s127
      %s130 = sphi 0, %s129
      %s144 = sphi 0, %s130
      %s150 = sphi 0, %s152
      %s153 = sphi 0, %s150
      %s154 = sphi 0, %s153
      %s170 = sphi 0, %s154
    $region4: #{forward.24} parent=1 // loop_header_branch
      %14 = sbr.rel (%p12) target = $region8
    $region5: #{forward.24} parent=1 // loop_body
      %s16 = ssub.s32 %s11, 1
      %s17 = ssub.s32 %s11, 2
      %s18 = sadd.s32 %s11, 1
      %s19 = ssub.s32 %s11, %s18
      %p20 = scmp.eq.s32.totalorder %s19, 0
      %s22 = sadd.s32 %s21, 1
      %s23 = scalar_select %p20, %s21, %s22
      %p26 = pneg %p20
      %p27 = scmp.eq.s32.totalorder %s11, 1
      %p28 = por %p26, %p27
      %p29 = scmp.ne.s32.totalorder %s21, %s24
      %p30 = scmp.eq.s32.totalorder %s11, 0
      %p31 = por %p29, %p30
      %p32 = scmp.ne.s32.totalorder %s21, %s24
      %p33 = scmp.eq.s32.totalorder %s16, 1
      %p34 = por %p32, %p33
      %p35 = scmp.ne.s32.totalorder %s24, %s25
      %p36 = scmp.eq.s32.totalorder %s16, 0
      %p37 = por %p35, %p36
      %p38 = scmp.ne.s32.totalorder %s24, %s25
      %p39 = scmp.eq.s32.totalorder %s17, 1
      %p40 = por %p38, %p39
      %p42 = scmp.ne.s32.totalorder %s25, %s41
      %p43 = scmp.eq.s32.totalorder %s17, 0
      %p44 = por %p42, %p43
      %s45 = sadd.s32 %s11, 1
      %s46 = sadd.s32 %s18, 1
      %s47 = ssub.s32 %s45, %s46
      %p48 = scmp.eq.s32.totalorder %s47, 0
      %s50 = sadd.s32 %s49, 1
      %s51 = scalar_select %p48, %s49, %s50
      %p54 = pneg %p48
      %p55 = scmp.eq.s32.totalorder %s11, 1
      %p56 = por %p54, %p55
      %p57 = scmp.ne.s32.totalorder %s49, %s52
      %p58 = scmp.eq.s32.totalorder %s11, 0
      %p59 = por %p57, %p58
      %p60 = scmp.ne.s32.totalorder %s49, %s52
      %p61 = scmp.eq.s32.totalorder %s16, 1
      %p62 = por %p60, %p61
      %p63 = scmp.ne.s32.totalorder %s52, %s53
      %p64 = scmp.eq.s32.totalorder %s16, 0
      %p65 = por %p63, %p64
      %p66 = scmp.ne.s32.totalorder %s52, %s53
      %p67 = scmp.eq.s32.totalorder %s17, 1
      %p68 = por %p66, %p67
      %p70 = scmp.ne.s32.totalorder %s53, %s69
      %p71 = scmp.eq.s32.totalorder %s17, 0
      %p72 = por %p70, %p71
      %s73 = ssub.s32 %s11, %s18
      %p74 = scmp.eq.s32.totalorder %s73, 0
      %s76 = sadd.s32 %s75, 1
      %s77 = scalar_select %p74, %s75, %s76
      %p80 = pneg %p74
      %p81 = scmp.eq.s32.totalorder %s11, 1
      %p82 = por %p80, %p81
      %p83 = scmp.ne.s32.totalorder %s75, %s78
      %p84 = scmp.eq.s32.totalorder %s11, 0
      %p85 = por %p83, %p84
      %p86 = scmp.ne.s32.totalorder %s75, %s78
      %p87 = scmp.eq.s32.totalorder %s16, 1
      %p88 = por %p86, %p87
      %p89 = scmp.ne.s32.totalorder %s78, %s79
      %p90 = scmp.eq.s32.totalorder %s16, 0
      %p91 = por %p89, %p90
      %p92 = scmp.ne.s32.totalorder %s78, %s79
      %p93 = scmp.eq.s32.totalorder %s17, 1
      %p94 = por %p92, %p93
      %p96 = scmp.ne.s32.totalorder %s79, %s95
      %p97 = scmp.eq.s32.totalorder %s17, 0
      %p98 = por %p96, %p97
      %s99 = sadd.s32 %s11, 1
      %s100 = sadd.s32 %s18, 1
      %s101 = ssub.s32 %s99, %s100
      %p102 = scmp.eq.s32.totalorder %s101, 0
      %s104 = sadd.s32 %s103, 1
      %s105 = scalar_select %p102, %s103, %s104
      %p108 = pneg %p102
      %p109 = scmp.eq.s32.totalorder %s11, 1
      %p110 = por %p108, %p109
      %p111 = scmp.ne.s32.totalorder %s103, %s106
      %p112 = scmp.eq.s32.totalorder %s11, 0
      %p113 = por %p111, %p112
      %p114 = scmp.ne.s32.totalorder %s103, %s106
      %p115 = scmp.eq.s32.totalorder %s16, 1
      %p116 = por %p114, %p115
      %p117 = scmp.ne.s32.totalorder %s106, %s107
      %p118 = scmp.eq.s32.totalorder %s16, 0
      %p119 = por %p117, %p118
      %p120 = scmp.ne.s32.totalorder %s106, %s107
      %p121 = scmp.eq.s32.totalorder %s17, 1
      %p122 = por %p120, %p121
      %p124 = scmp.ne.s32.totalorder %s107, %s123
      %p125 = scmp.eq.s32.totalorder %s17, 0
      %p126 = por %p124, %p125
      %s128 = sadd.s32 %s127, 1
      %p131 = scmp.eq.s32.totalorder %s11, 1
      %p132 = scmp.ne.s32.totalorder %s127, %s129
      %p133 = scmp.eq.s32.totalorder %s11, 0
      %p134 = por %p132, %p133
      %p135 = scmp.ne.s32.totalorder %s127, %s129
      %p136 = scmp.eq.s32.totalorder %s16, 1
      %p137 = por %p135, %p136
      %p138 = scmp.ne.s32.totalorder %s129, %s130
      %p139 = scmp.eq.s32.totalorder %s16, 0
      %p140 = por %p138, %p139
      %p141 = scmp.ne.s32.totalorder %s129, %s130
      %p142 = scmp.eq.s32.totalorder %s17, 1
      %p143 = por %p141, %p142
      %p145 = scmp.ne.s32.totalorder %s130, %s144
      %p146 = scmp.eq.s32.totalorder %s17, 0
      %p147 = por %p145, %p146
      %s148 = ssub.s32 %s11, %s18
      %p149 = scmp.eq.s32.totalorder %s148, 0
      %s151 = sadd.s32 %s150, 1
      %s152 = scalar_select %p149, %s150, %s151
      %p155 = pneg %p149
      %p156 = scmp.eq.s32.totalorder %s11, 1
      %p157 = por %p155, %p156
      %p158 = scmp.ne.s32.totalorder %s150, %s153
      %p159 = scmp.eq.s32.totalorder %s11, 0
      %p160 = por %p158, %p159
      %p161 = scmp.ne.s32.totalorder %s150, %s153
      %p162 = scmp.eq.s32.totalorder %s16, 1
      %p163 = por %p161, %p162
      %p164 = scmp.ne.s32.totalorder %s153, %s154
      %p165 = scmp.eq.s32.totalorder %s16, 0
      %p166 = por %p164, %p165
      %p167 = scmp.ne.s32.totalorder %s153, %s154
      %p168 = scmp.eq.s32.totalorder %s17, 1
      %p169 = por %p167, %p168
      %p171 = scmp.ne.s32.totalorder %s154, %s170
      %p172 = scmp.eq.s32.totalorder %s17, 0
      %p173 = por %p171, %p172
      %p174 = scmp.le.s32.totalorder 1, %s11
      %p175 = scmp.lt.s32.totalorder %s11, 3
      %p176 = pnand %p174, %p175
      %p177 = pneg %p176
      // Predicated region
      $region9: #{forward.24} parent=5 // pred_check
        _
      $region10: #{forward.24} parent=5 // pred_check_branch
        %179 = sbr.rel (%p176) target = $region12
      $region11: #{forward.24} parent=5 // pred_region
        %s180 = ssub.s32 %s11, 1
        // Predicated region
        $region13: #{forward.24} parent=11 // pred_check
          %p181 = pneg %p140
        $region14: #{forward.24} parent=11 // pred_check_branch
          %183 = sbr.rel (%p181) target = $region16
        $region15: #{forward.24} parent=11 // pred_region
          _
        $region16: #{forward.24} parent=11 // pred_fallthru
          _
      $region12: #{forward.24} parent=5 // pred_fallthru
        _
      %p184 = scmp.lt.s32.totalorder %s11, 2
      // Predicated region
      $region17: #{forward.24} parent=5 // pred_check
        %p185 = pneg %p184
      $region18: #{forward.24} parent=5 // pred_check_branch
        %187 = sbr.rel (%p185) target = $region20
      $region19: #{forward.24} parent=5 // pred_region
        // Predicated region
        $region21: #{forward.24} parent=19 // pred_check
          %p188 = pneg %p31
        $region22: #{forward.24} parent=19 // pred_check_branch
          %190 = sbr.rel (%p188) target = $region24
        $region23: #{forward.24} parent=19 // pred_region
          %s191 = sand.u32 %s21, 1
          %s192 = sand.u32 %s21, 1
          %s193 = smul.addr %s192, 16
          %s194 = scalar_lea.vmem [#allocation2], %s193
          %s195 = smul.addr %s11, 4
          %s196 = scalar_lea.vmem %s0, %s195
          // Predicated region
          $region25: #{forward.24} parent=23 // pred_check
            _
          $region26: #{forward.24} parent=23 // pred_check_branch
            %198 = sbr.rel (0) target = $region28
          $region27: #{forward.24} parent=23 // pred_region
            // Predicated region
            $region29: #{forward.24} parent=27 // pred_check
              _
            $region30: #{forward.24} parent=27 // pred_check_branch
              %200 = sbr.rel target = $region32
            $region31: #{forward.24} parent=27 // pred_region
              // Predicated region
              $region44: #{forward.24} parent=31 // pred_check
                _
              $region45: #{forward.24} parent=31 // pred_check_branch
                %222 = sbr.rel (0) target = $region47
              $region46: #{forward.24} parent=31 // pred_region
                loop: start=0, step=1, limit=1
                $region48: #{forward.24} parent=46 // loop_pre_header
                  _
                $region49: #{forward.24} parent=46 // loop_header
                  %s224 = sphi 0, %s228
                  %p225 = scmp.ge.s32.totalorder %s224, 1
                  %s229 = sphi %s196, %s196
                  %s230 = sphi %s194, %s194
                $region50: #{forward.24} parent=46 // loop_header_branch
                  %227 = sbr.rel (%p225) target = $region54
                $region51: #{forward.24} parent=46 // loop_body
                  _
                $region52: #{forward.24} parent=46 // loop_footer
                  %s228 = sadd.s32 1, %s224
                $region53: #{forward.24} parent=46 // loop_footer_branch
                  %223 = sbr.rel target = $region49
                $region54: #{forward.24} parent=46 // loop_exit
                  _
                %s232 = ssub.s32 16, 1
                loop: start=0, step=1, limit=1
                $region55: #{forward.24} parent=46 // loop_pre_header
                  _
                $region56: #{forward.24} parent=46 // loop_header
                  %s234 = sphi 0, %s238
                  %p235 = scmp.ge.s32.totalorder %s234, 1
                  %s239 = sphi %s196, %s196
                  %s240 = sphi %s194, %s194
                $region57: #{forward.24} parent=46 // loop_header_branch
                  %237 = sbr.rel (%p235) target = $region61
                $region58: #{forward.24} parent=46 // loop_body
                  %v241 = vld [vmem:[%s239] sm:%s232]
                  %242 = vst [vmem:[%s240] sm:%s232] %v241
                  %v243 = vld [vmem:[%s239 + $0xc] sm:%s232]
                  %244 = vst [vmem:[%s240 + $0x4] sm:%s232] %v243
                  %v245 = vld [vmem:[%s239 + $0x18] sm:%s232]
                  %246 = vst [vmem:[%s240 + $0x8] sm:%s232] %v245
                  %v247 = vld [vmem:[%s239 + $0x24] sm:%s232]
                  %248 = vst [vmem:[%s240 + $0xc] sm:%s232] %v247
                $region59: #{forward.24} parent=46 // loop_footer
                  %s238 = sadd.s32 1, %s234
                $region60: #{forward.24} parent=46 // loop_footer_branch
                  %233 = sbr.rel target = $region56
                $region61: #{forward.24} parent=46 // loop_exit
                  _
              $region47: #{forward.24} parent=31 // pred_fallthru
                _
            $region32: #{forward.24} parent=27 // pred_fallthru
              _
            // Predicated region
            $region33: #{forward.24} parent=27 // pred_check
              _
            $region34: #{forward.24} parent=27 // pred_check_branch
              %202 = sbr.rel (0) target = $region36
            $region35: #{forward.24} parent=27 // pred_region
              %s204 = ssub.s32 16, 1
              loop: start=0, step=1, limit=1
              $region37: #{forward.24} parent=35 // loop_pre_header
                _
              $region38: #{forward.24} parent=35 // loop_header
                %s206 = sphi 0, %s210
                %p207 = scmp.ge.s32.totalorder %s206, 1
                %s211 = sphi %s196, %s196
                %s212 = sphi %s194, %s194
              $region39: #{forward.24} parent=35 // loop_header_branch
                %209 = sbr.rel (%p207) target = $region43
              $region40: #{forward.24} parent=35 // loop_body
                %v213 = vld [vmem:[%s211] sm:%s204]
                %214 = vst [vmem:[%s212] sm:%s204] %v213
                %v215 = vld [vmem:[%s211 + $0xc] sm:%s204]
                %216 = vst [vmem:[%s212 + $0x4] sm:%s204] %v215
                %v217 = vld [vmem:[%s211 + $0x18] sm:%s204]
                %218 = vst [vmem:[%s212 + $0x8] sm:%s204] %v217
                %v219 = vld [vmem:[%s211 + $0x24] sm:%s204]
                %220 = vst [vmem:[%s212 + $0xc] sm:%s204] %v219
              $region41: #{forward.24} parent=35 // loop_footer
                %s210 = sadd.s32 1, %s206
              $region42: #{forward.24} parent=35 // loop_footer_branch
                %205 = sbr.rel target = $region38
              $region43: #{forward.24} parent=35 // loop_exit
                _
            $region36: #{forward.24} parent=27 // pred_fallthru
              _
          $region28: #{forward.24} parent=23 // pred_fallthru
            _
          %249 = vnop
        $region24: #{forward.24} parent=19 // pred_fallthru
          _
        // Predicated region
        $region62: #{forward.24} parent=19 // pred_check
          %p250 = pneg %p59
        $region63: #{forward.24} parent=19 // pred_check_branch
          %252 = sbr.rel (%p250) target = $region65
        $region64: #{forward.24} parent=19 // pred_region
          %s253 = sand.u32 %s49, 1
          %s254 = sand.u32 %s49, 1
          %s255 = smul.addr %s254, 16
          %s256 = scalar_lea.vmem [#allocation3], %s255
          %s257 = sadd.s32 %s11, 1
          %s258 = smul.addr %s257, 4
          %s259 = scalar_lea.vmem %s1, %s258
          // Predicated region
          $region66: #{forward.24} parent=64 // pred_check
            _
          $region67: #{forward.24} parent=64 // pred_check_branch
            %261 = sbr.rel (0) target = $region69
          $region68: #{forward.24} parent=64 // pred_region
            // Predicated region
            $region70: #{forward.24} parent=68 // pred_check
              _
            $region71: #{forward.24} parent=68 // pred_check_branch
              %263 = sbr.rel target = $region73
            $region72: #{forward.24} parent=68 // pred_region
              // Predicated region
              $region85: #{forward.24} parent=72 // pred_check
                _
              $region86: #{forward.24} parent=72 // pred_check_branch
                %285 = sbr.rel (0) target = $region88
              $region87: #{forward.24} parent=72 // pred_region
                loop: start=0, step=1, limit=1
                $region89: #{forward.24} parent=87 // loop_pre_header
                  _
                $region90: #{forward.24} parent=87 // loop_header
                  %s287 = sphi 0, %s291
                  %p288 = scmp.ge.s32.totalorder %s287, 1
                  %s292 = sphi %s259, %s259
                  %s293 = sphi %s256, %s256
                $region91: #{forward.24} parent=87 // loop_header_branch
                  %290 = sbr.rel (%p288) target = $region95
                $region92: #{forward.24} parent=87 // loop_body
                  _
                $region93: #{forward.24} parent=87 // loop_footer
                  %s291 = sadd.s32 1, %s287
                $region94: #{forward.24} parent=87 // loop_footer_branch
                  %286 = sbr.rel target = $region90
                $region95: #{forward.24} parent=87 // loop_exit
                  _
                %s295 = ssub.s32 16, 1
                loop: start=0, step=1, limit=1
                $region96: #{forward.24} parent=87 // loop_pre_header
                  _
                $region97: #{forward.24} parent=87 // loop_header
                  %s297 = sphi 0, %s301
                  %p298 = scmp.ge.s32.totalorder %s297, 1
                  %s302 = sphi %s259, %s259
                  %s303 = sphi %s256, %s256
                $region98: #{forward.24} parent=87 // loop_header_branch
                  %300 = sbr.rel (%p298) target = $region102
                $region99: #{forward.24} parent=87 // loop_body
                  %v304 = vld [vmem:[%s302] sm:%s295]
                  %305 = vst [vmem:[%s303] sm:%s295] %v304
                  %v306 = vld [vmem:[%s302 + $0xc] sm:%s295]
                  %307 = vst [vmem:[%s303 + $0x4] sm:%s295] %v306
                  %v308 = vld [vmem:[%s302 + $0x18] sm:%s295]
                  %309 = vst [vmem:[%s303 + $0x8] sm:%s295] %v308
                  %v310 = vld [vmem:[%s302 + $0x24] sm:%s295]
                  %311 = vst [vmem:[%s303 + $0xc] sm:%s295] %v310
                $region100: #{forward.24} parent=87 // loop_footer
                  %s301 = sadd.s32 1, %s297
                $region101: #{forward.24} parent=87 // loop_footer_branch
                  %296 = sbr.rel target = $region97
                $region102: #{forward.24} parent=87 // loop_exit
                  _
              $region88: #{forward.24} parent=72 // pred_fallthru
                _
            $region73: #{forward.24} parent=68 // pred_fallthru
              _
            // Predicated region
            $region74: #{forward.24} parent=68 // pred_check
              _
            $region75: #{forward.24} parent=68 // pred_check_branch
              %265 = sbr.rel (0) target = $region77
            $region76: #{forward.24} parent=68 // pred_region
              %s267 = ssub.s32 16, 1
              loop: start=0, step=1, limit=1
              $region78: #{forward.24} parent=76 // loop_pre_header
                _
              $region79: #{forward.24} parent=76 // loop_header
                %s269 = sphi 0, %s273
                %p270 = scmp.ge.s32.totalorder %s269, 1
                %s274 = sphi %s259, %s259
                %s275 = sphi %s256, %s256
              $region80: #{forward.24} parent=76 // loop_header_branch
                %272 = sbr.rel (%p270) target = $region84
              $region81: #{forward.24} parent=76 // loop_body
                %v276 = vld [vmem:[%s274] sm:%s267]
                %277 = vst [vmem:[%s275] sm:%s267] %v276
                %v278 = vld [vmem:[%s274 + $0xc] sm:%s267]
                %279 = vst [vmem:[%s275 + $0x4] sm:%s267] %v278
                %v280 = vld [vmem:[%s274 + $0x18] sm:%s267]
                %281 = vst [vmem:[%s275 + $0x8] sm:%s267] %v280
                %v282 = vld [vmem:[%s274 + $0x24] sm:%s267]
                %283 = vst [vmem:[%s275 + $0xc] sm:%s267] %v282
              $region82: #{forward.24} parent=76 // loop_footer
                %s273 = sadd.s32 1, %s269
              $region83: #{forward.24} parent=76 // loop_footer_branch
                %268 = sbr.rel target = $region79
              $region84: #{forward.24} parent=76 // loop_exit
                _
            $region77: #{forward.24} parent=68 // pred_fallthru
              _
          $region69: #{forward.24} parent=64 // pred_fallthru
            _
          %312 = vnop
        $region65: #{forward.24} parent=19 // pred_fallthru
          _
        // Predicated region
        $region103: #{forward.24} parent=19 // pred_check
          %p313 = pneg %p85
        $region104: #{forward.24} parent=19 // pred_check_branch
          %315 = sbr.rel (%p313) target = $region106
        $region105: #{forward.24} parent=19 // pred_region
          %s316 = sand.u32 %s75, 1
          %s317 = sand.u32 %s75, 1
          %s318 = smul.addr %s317, 16
          %s319 = scalar_lea.vmem [#allocation4], %s318
          %s320 = smul.addr %s11, 4
          %s321 = scalar_lea.vmem %s2, %s320
          // Predicated region
          $region107: #{forward.24} parent=105 // pred_check
            _
          $region108: #{forward.24} parent=105 // pred_check_branch
            %323 = sbr.rel (0) target = $region110
          $region109: #{forward.24} parent=105 // pred_region
            // Predicated region
            $region111: #{forward.24} parent=109 // pred_check
              _
            $region112: #{forward.24} parent=109 // pred_check_branch
              %325 = sbr.rel target = $region114
            $region113: #{forward.24} parent=109 // pred_region
              // Predicated region
              $region126: #{forward.24} parent=113 // pred_check
                _
              $region127: #{forward.24} parent=113 // pred_check_branch
                %347 = sbr.rel (0) target = $region129
              $region128: #{forward.24} parent=113 // pred_region
                loop: start=0, step=1, limit=1
                $region130: #{forward.24} parent=128 // loop_pre_header
                  _
                $region131: #{forward.24} parent=128 // loop_header
                  %s349 = sphi 0, %s353
                  %p350 = scmp.ge.s32.totalorder %s349, 1
                  %s354 = sphi %s321, %s321
                  %s355 = sphi %s319, %s319
                $region132: #{forward.24} parent=128 // loop_header_branch
                  %352 = sbr.rel (%p350) target = $region136
                $region133: #{forward.24} parent=128 // loop_body
                  _
                $region134: #{forward.24} parent=128 // loop_footer
                  %s353 = sadd.s32 1, %s349
                $region135: #{forward.24} parent=128 // loop_footer_branch
                  %348 = sbr.rel target = $region131
                $region136: #{forward.24} parent=128 // loop_exit
                  _
                %s357 = ssub.s32 16, 1
                loop: start=0, step=1, limit=1
                $region137: #{forward.24} parent=128 // loop_pre_header
                  _
                $region138: #{forward.24} parent=128 // loop_header
                  %s359 = sphi 0, %s363
                  %p360 = scmp.ge.s32.totalorder %s359, 1
                  %s364 = sphi %s321, %s321
                  %s365 = sphi %s319, %s319
                $region139: #{forward.24} parent=128 // loop_header_branch
                  %362 = sbr.rel (%p360) target = $region143
                $region140: #{forward.24} parent=128 // loop_body
                  %v366 = vld [vmem:[%s364] sm:%s357]
                  %367 = vst [vmem:[%s365] sm:%s357] %v366
                  %v368 = vld [vmem:[%s364 + $0xc] sm:%s357]
                  %369 = vst [vmem:[%s365 + $0x4] sm:%s357] %v368
                  %v370 = vld [vmem:[%s364 + $0x18] sm:%s357]
                  %371 = vst [vmem:[%s365 + $0x8] sm:%s357] %v370
                  %v372 = vld [vmem:[%s364 + $0x24] sm:%s357]
                  %373 = vst [vmem:[%s365 + $0xc] sm:%s357] %v372
                $region141: #{forward.24} parent=128 // loop_footer
                  %s363 = sadd.s32 1, %s359
                $region142: #{forward.24} parent=128 // loop_footer_branch
                  %358 = sbr.rel target = $region138
                $region143: #{forward.24} parent=128 // loop_exit
                  _
              $region129: #{forward.24} parent=113 // pred_fallthru
                _
            $region114: #{forward.24} parent=109 // pred_fallthru
              _
            // Predicated region
            $region115: #{forward.24} parent=109 // pred_check
              _
            $region116: #{forward.24} parent=109 // pred_check_branch
              %327 = sbr.rel (0) target = $region118
            $region117: #{forward.24} parent=109 // pred_region
              %s329 = ssub.s32 16, 1
              loop: start=0, step=1, limit=1
              $region119: #{forward.24} parent=117 // loop_pre_header
                _
              $region120: #{forward.24} parent=117 // loop_header
                %s331 = sphi 0, %s335
                %p332 = scmp.ge.s32.totalorder %s331, 1
                %s336 = sphi %s321, %s321
                %s337 = sphi %s319, %s319
              $region121: #{forward.24} parent=117 // loop_header_branch
                %334 = sbr.rel (%p332) target = $region125
              $region122: #{forward.24} parent=117 // loop_body
                %v338 = vld [vmem:[%s336] sm:%s329]
                %339 = vst [vmem:[%s337] sm:%s329] %v338
                %v340 = vld [vmem:[%s336 + $0xc] sm:%s329]
                %341 = vst [vmem:[%s337 + $0x4] sm:%s329] %v340
                %v342 = vld [vmem:[%s336 + $0x18] sm:%s329]
                %343 = vst [vmem:[%s337 + $0x8] sm:%s329] %v342
                %v344 = vld [vmem:[%s336 + $0x24] sm:%s329]
                %345 = vst [vmem:[%s337 + $0xc] sm:%s329] %v344
              $region123: #{forward.24} parent=117 // loop_footer
                %s335 = sadd.s32 1, %s331
              $region124: #{forward.24} parent=117 // loop_footer_branch
                %330 = sbr.rel target = $region120
              $region125: #{forward.24} parent=117 // loop_exit
                _
            $region118: #{forward.24} parent=109 // pred_fallthru
              _
          $region110: #{forward.24} parent=105 // pred_fallthru
            _
          %374 = vnop
        $region106: #{forward.24} parent=19 // pred_fallthru
          _
        // Predicated region
        $region144: #{forward.24} parent=19 // pred_check
          %p375 = pneg %p113
        $region145: #{forward.24} parent=19 // pred_check_branch
          %377 = sbr.rel (%p375) target = $region147
        $region146: #{forward.24} parent=19 // pred_region
          %s378 = sand.u32 %s103, 1
          %s379 = sand.u32 %s103, 1
          %s380 = smul.addr %s379, 16
          %s381 = scalar_lea.vmem [#allocation5], %s380
          %s382 = sadd.s32 %s11, 1
          %s383 = smul.addr %s382, 4
          %s384 = scalar_lea.vmem %s3, %s383
          // Predicated region
          $region148: #{forward.24} parent=146 // pred_check
            _
          $region149: #{forward.24} parent=146 // pred_check_branch
            %386 = sbr.rel (0) target = $region151
          $region150: #{forward.24} parent=146 // pred_region
            // Predicated region
            $region152: #{forward.24} parent=150 // pred_check
              _
            $region153: #{forward.24} parent=150 // pred_check_branch
              %388 = sbr.rel target = $region155
            $region154: #{forward.24} parent=150 // pred_region
              // Predicated region
              $region167: #{forward.24} parent=154 // pred_check
                _
              $region168: #{forward.24} parent=154 // pred_check_branch
                %410 = sbr.rel (0) target = $region170
              $region169: #{forward.24} parent=154 // pred_region
                loop: start=0, step=1, limit=1
                $region171: #{forward.24} parent=169 // loop_pre_header
                  _
                $region172: #{forward.24} parent=169 // loop_header
                  %s412 = sphi 0, %s416
                  %p413 = scmp.ge.s32.totalorder %s412, 1
                  %s417 = sphi %s384, %s384
                  %s418 = sphi %s381, %s381
                $region173: #{forward.24} parent=169 // loop_header_branch
                  %415 = sbr.rel (%p413) target = $region177
                $region174: #{forward.24} parent=169 // loop_body
                  _
                $region175: #{forward.24} parent=169 // loop_footer
                  %s416 = sadd.s32 1, %s412
                $region176: #{forward.24} parent=169 // loop_footer_branch
                  %411 = sbr.rel target = $region172
                $region177: #{forward.24} parent=169 // loop_exit
                  _
                %s420 = ssub.s32 16, 1
                loop: start=0, step=1, limit=1
                $region178: #{forward.24} parent=169 // loop_pre_header
                  _
                $region179: #{forward.24} parent=169 // loop_header
                  %s422 = sphi 0, %s426
                  %p423 = scmp.ge.s32.totalorder %s422, 1
                  %s427 = sphi %s384, %s384
                  %s428 = sphi %s381, %s381
                $region180: #{forward.24} parent=169 // loop_header_branch
                  %425 = sbr.rel (%p423) target = $region184
                $region181: #{forward.24} parent=169 // loop_body
                  %v429 = vld [vmem:[%s427] sm:%s420]
                  %430 = vst [vmem:[%s428] sm:%s420] %v429
                  %v431 = vld [vmem:[%s427 + $0xc] sm:%s420]
                  %432 = vst [vmem:[%s428 + $0x4] sm:%s420] %v431
                  %v433 = vld [vmem:[%s427 + $0x18] sm:%s420]
                  %434 = vst [vmem:[%s428 + $0x8] sm:%s420] %v433
                  %v435 = vld [vmem:[%s427 + $0x24] sm:%s420]
                  %436 = vst [vmem:[%s428 + $0xc] sm:%s420] %v435
                $region182: #{forward.24} parent=169 // loop_footer
                  %s426 = sadd.s32 1, %s422
                $region183: #{forward.24} parent=169 // loop_footer_branch
                  %421 = sbr.rel target = $region179
                $region184: #{forward.24} parent=169 // loop_exit
                  _
              $region170: #{forward.24} parent=154 // pred_fallthru
                _
            $region155: #{forward.24} parent=150 // pred_fallthru
              _
            // Predicated region
            $region156: #{forward.24} parent=150 // pred_check
              _
            $region157: #{forward.24} parent=150 // pred_check_branch
              %390 = sbr.rel (0) target = $region159
            $region158: #{forward.24} parent=150 // pred_region
              %s392 = ssub.s32 16, 1
              loop: start=0, step=1, limit=1
              $region160: #{forward.24} parent=158 // loop_pre_header
                _
              $region161: #{forward.24} parent=158 // loop_header
                %s394 = sphi 0, %s398
                %p395 = scmp.ge.s32.totalorder %s394, 1
                %s399 = sphi %s384, %s384
                %s400 = sphi %s381, %s381
              $region162: #{forward.24} parent=158 // loop_header_branch
                %397 = sbr.rel (%p395) target = $region166
              $region163: #{forward.24} parent=158 // loop_body
                %v401 = vld [vmem:[%s399] sm:%s392]
                %402 = vst [vmem:[%s400] sm:%s392] %v401
                %v403 = vld [vmem:[%s399 + $0xc] sm:%s392]
                %404 = vst [vmem:[%s400 + $0x4] sm:%s392] %v403
                %v405 = vld [vmem:[%s399 + $0x18] sm:%s392]
                %406 = vst [vmem:[%s400 + $0x8] sm:%s392] %v405
                %v407 = vld [vmem:[%s399 + $0x24] sm:%s392]
                %408 = vst [vmem:[%s400 + $0xc] sm:%s392] %v407
              $region164: #{forward.24} parent=158 // loop_footer
                %s398 = sadd.s32 1, %s394
              $region165: #{forward.24} parent=158 // loop_footer_branch
                %393 = sbr.rel target = $region161
              $region166: #{forward.24} parent=158 // loop_exit
                _
            $region159: #{forward.24} parent=150 // pred_fallthru
              _
          $region151: #{forward.24} parent=146 // pred_fallthru
            _
          %437 = vnop
        $region147: #{forward.24} parent=19 // pred_fallthru
          _
      $region20: #{forward.24} parent=5 // pred_fallthru
        _
      %p438 = scmp.le.s32.totalorder 1, %s11
      %p439 = scmp.lt.s32.totalorder %s11, 3
      %p440 = pnand %p438, %p439
      %p441 = pneg %p440
      // Predicated region
      $region185: #{forward.24} parent=5 // pred_check
        _
      $region186: #{forward.24} parent=5 // pred_check_branch
        %443 = sbr.rel (%p440) target = $region188
      $region187: #{forward.24} parent=5 // pred_region
        %s444 = ssub.s32 %s11, 1
        %s445 = sand.u32 %s24, 1
        %s446 = sand.u32 %s24, 1
        %s447 = smul.addr %s446, 16
        %s448 = scalar_lea.vmem [#allocation2], %s447
        // Predicated region
        $region189: #{forward.24} parent=187 // pred_check
          %p449 = pneg %p37
        $region190: #{forward.24} parent=187 // pred_check_branch
          %451 = sbr.rel (%p449) target = $region192
        $region191: #{forward.24} parent=187 // pred_region
          _
        $region192: #{forward.24} parent=187 // pred_fallthru
          _
        %s452 = sand.u32 %s52, 1
        %s453 = sand.u32 %s52, 1
        %s454 = smul.addr %s453, 16
        %s455 = scalar_lea.vmem [#allocation3], %s454
        // Predicated region
        $region193: #{forward.24} parent=187 // pred_check
          %p456 = pneg %p65
        $region194: #{forward.24} parent=187 // pred_check_branch
          %458 = sbr.rel (%p456) target = $region196
        $region195: #{forward.24} parent=187 // pred_region
          _
        $region196: #{forward.24} parent=187 // pred_fallthru
          _
        %s459 = sand.u32 %s78, 1
        %s460 = sand.u32 %s78, 1
        %s461 = smul.addr %s460, 16
        %s462 = scalar_lea.vmem [#allocation4], %s461
        // Predicated region
        $region197: #{forward.24} parent=187 // pred_check
          %p463 = pneg %p91
        $region198: #{forward.24} parent=187 // pred_check_branch
          %465 = sbr.rel (%p463) target = $region200
        $region199: #{forward.24} parent=187 // pred_region
          _
        $region200: #{forward.24} parent=187 // pred_fallthru
          _
        %s466 = sand.u32 %s106, 1
        %s467 = sand.u32 %s106, 1
        %s468 = smul.addr %s467, 16
        %s469 = scalar_lea.vmem [#allocation5], %s468
        // Predicated region
        $region201: #{forward.24} parent=187 // pred_check
          %p470 = pneg %p119
        $region202: #{forward.24} parent=187 // pred_check_branch
          %472 = sbr.rel (%p470) target = $region204
        $region203: #{forward.24} parent=187 // pred_region
          _
        $region204: #{forward.24} parent=187 // pred_fallthru
          _
        %s473 = sand.u32 %s24, 1
        %s474 = sand.u32 %s24, 1
        %s475 = smul.addr %s474, 16
        %s476 = scalar_lea.vmem [#allocation2], %s475
        %p477 = pneg %p37
        %p478 = pneg %p34
        %s479 = sand.u32 %s52, 1
        %s480 = sand.u32 %s52, 1
        %s481 = smul.addr %s480, 16
        %s482 = scalar_lea.vmem [#allocation3], %s481
        %p483 = pneg %p65
        %p484 = pneg %p62
        %s485 = sand.u32 %s78, 1
        %s486 = sand.u32 %s78, 1
        %s487 = smul.addr %s486, 16
        %s488 = scalar_lea.vmem [#allocation4], %s487
        %p489 = pneg %p91
        %p490 = pneg %p88
        %s491 = sand.u32 %s106, 1
        %s492 = sand.u32 %s106, 1
        %s493 = smul.addr %s492, 16
        %s494 = scalar_lea.vmem [#allocation5], %s493
        %p495 = pneg %p119
        %p496 = pneg %p116
        %p497 = pneg %p140
        %p498 = pneg %p137
        %p499 = pneg %p166
        %p500 = pneg %p163
        %s501 = sand.u32 %s153, 1
        %s502 = sand.u32 %s153, 1
        %s503 = smul.addr %s502, 16
        %s504 = scalar_lea.vmem [#allocation6], %s503
        %s505 = sadd.s32 %s16, 1
        %s506 = sadd.s32 %s16, 1
        %v508 = vld [vmem:[%s448] sm:$0xf]
        %v509 = vld [vmem:[%s448 + $0x4] sm:$0xf]
        %v510 = vld [vmem:[%s448 + $0x8] sm:$0xf]
        %v511 = vld [vmem:[%s448 + $0xc] sm:$0xf]
        %v512 = vld [vmem:[%s455] sm:$0xf]
        %v513 = vld [vmem:[%s455 + $0x4] sm:$0xf]
        %v514 = vld [vmem:[%s455 + $0x8] sm:$0xf]
        %v515 = vld [vmem:[%s455 + $0xc] sm:$0xf]
        %v520 = vunpack.c.l.b16 %v508
        %v521 = vunpack.c.l.b16 %v509
        %v522 = vunpack.c.l.b16 %v510
        %v523 = vunpack.c.l.b16 %v511
        %v524 = vpack.c.b16 %v521, %v520
        %v525 = vpack.c.b16 %v523, %v522
        %v532 = vunpack.c.l.b16 %v512
        %v533 = vunpack.c.l.b16 %v513
        %v534 = vunpack.c.l.b16 %v514
        %v535 = vunpack.c.l.b16 %v515
        %v536 = vpack.c.b16 %v533, %v532
        %v537 = vpack.c.b16 %v535, %v534
        %v538 = vld [vmem:[%s462] sm:$0xf]
        %v539 = vld [vmem:[%s462 + $0x4] sm:$0xf]
        %v540 = vld [vmem:[%s462 + $0x8] sm:$0xf]
        %v541 = vld [vmem:[%s462 + $0xc] sm:$0xf]
        %v542 = vld [vmem:[%s469] sm:$0xf]
        %v543 = vld [vmem:[%s469 + $0x4] sm:$0xf]
        %v544 = vld [vmem:[%s469 + $0x8] sm:$0xf]
        %v545 = vld [vmem:[%s469 + $0xc] sm:$0xf]
        %v550 = vunpack.c.l.b16 %v538
        %v551 = vunpack.c.l.b16 %v539
        %v552 = vunpack.c.l.b16 %v540
        %v553 = vunpack.c.l.b16 %v541
        %v554 = vpack.c.b16 %v551, %v550
        %v555 = vpack.c.b16 %v553, %v552
        %v562 = vunpack.c.l.b16 %v542
        %v563 = vunpack.c.l.b16 %v543
        %v564 = vunpack.c.l.b16 %v544
        %v565 = vunpack.c.l.b16 %v545
        %v566 = vpack.c.b16 %v563, %v562
        %v567 = vpack.c.b16 %v565, %v564
        %v568 = vld [vmem:[%s4] sm:$0xff]
        %v569 = vld [vmem:[%s4 + $0x8] sm:$0xff]
        %v570 = vld [vmem:[%s4 + $0x10] sm:$0xf]
        %v571 = vld [vmem:[%s4 + $0x14] sm:$0xff]
        %v572 = vld [vmem:[%s4 + $0x1c] sm:$0xff]
        %v573 = vld [vmem:[%s4 + $0x24] sm:$0xf]
        %v574 = vld [vmem:[%s4 + $0x28] sm:$0xff]
        %v575 = vld [vmem:[%s4 + $0x30] sm:$0xff]
        %v576 = vld [vmem:[%s4 + $0x38] sm:$0xf]
        %v577 = vld [vmem:[%s4 + $0x3c] sm:$0xff]
        %v578 = vld [vmem:[%s4 + $0x44] sm:$0xff]
        %v579 = vld [vmem:[%s4 + $0x4c] sm:$0xf]
        %580 = vrot.lane.b32.xlu0 %v524, 127
        %v581 = vpop.permute.xlu0 %580
        %582 = vrot.lane.b32.xlu0 %v536, 127
        %v583 = vpop.permute.xlu0 %582
        %584 = vrot.lane.b32.xlu0 %v525, 127
        %v585 = vpop.permute.xlu0 %584
        %586 = vrot.lane.b32.xlu0 %v537, 127
        %v587 = vpop.permute.xlu0 %586
        %vm588 = vcmask 1039360
        %v589 = vsel %vm588, %v581, %v583
        %v590 = vsel %vm588, %v585, %v587
        %593 = vrot.lane.b32.xlu0 %v524, 126
        %v594 = vpop.permute.xlu0 %593
        %595 = vrot.lane.b32.xlu0 %v536, 126
        %v596 = vpop.permute.xlu0 %595
        %597 = vrot.lane.b32.xlu0 %v525, 126
        %v598 = vpop.permute.xlu0 %597
        %599 = vrot.lane.b32.xlu0 %v537, 126
        %v600 = vpop.permute.xlu0 %599
        %vm601 = vcmask 1031168
        %v602 = vsel %vm601, %v594, %v596
        %v603 = vsel %vm601, %v598, %v600
        %606 = vrot.lane.b32.xlu0 %v524, 118
        %v607 = vpop.permute.xlu0 %606
        %608 = vrot.lane.b32.xlu0 %v536, 118
        %v609 = vpop.permute.xlu0 %608
        %610 = vrot.lane.b32.xlu0 %v525, 118
        %v611 = vpop.permute.xlu0 %610
        %612 = vrot.lane.b32.xlu0 %v537, 118
        %v613 = vpop.permute.xlu0 %612
        %vm614 = vcmask 965632
        %v615 = vsel %vm614, %v607, %v609
        %v616 = vsel %vm614, %v611, %v613
        %619 = vrot.lane.b32.xlu0 %v524, 117
        %v620 = vpop.permute.xlu0 %619
        %621 = vrot.lane.b32.xlu0 %v536, 117
        %v622 = vpop.permute.xlu0 %621
        %623 = vrot.lane.b32.xlu0 %v525, 117
        %v624 = vpop.permute.xlu0 %623
        %625 = vrot.lane.b32.xlu0 %v537, 117
        %v626 = vpop.permute.xlu0 %625
        %vm627 = vcmask 957440
        %v628 = vsel %vm627, %v620, %v622
        %v629 = vsel %vm627, %v624, %v626
        %632 = vrot.lane.b32.xlu0 %v524, 116
        %v633 = vpop.permute.xlu0 %632
        %634 = vrot.lane.b32.xlu0 %v536, 116
        %v635 = vpop.permute.xlu0 %634
        %636 = vrot.lane.b32.xlu0 %v525, 116
        %v637 = vpop.permute.xlu0 %636
        %638 = vrot.lane.b32.xlu0 %v537, 116
        %v639 = vpop.permute.xlu0 %638
        %vm640 = vcmask 949248
        %v641 = vsel %vm640, %v633, %v635
        %v642 = vsel %vm640, %v637, %v639
        %645 = vrot.lane.b32.xlu0 %v524, 108
        %v646 = vpop.permute.xlu0 %645
        %647 = vrot.lane.b32.xlu0 %v536, 108
        %v648 = vpop.permute.xlu0 %647
        %649 = vrot.lane.b32.xlu0 %v525, 108
        %v650 = vpop.permute.xlu0 %649
        %651 = vrot.lane.b32.xlu0 %v537, 108
        %v652 = vpop.permute.xlu0 %651
        %vm653 = vcmask 883712
        %v654 = vsel %vm653, %v646, %v648
        %v655 = vsel %vm653, %v650, %v652
        %658 = vrot.lane.b32.xlu0 %v524, 107
        %v659 = vpop.permute.xlu0 %658
        %660 = vrot.lane.b32.xlu0 %v536, 107
        %v661 = vpop.permute.xlu0 %660
        %662 = vrot.lane.b32.xlu0 %v525, 107
        %v663 = vpop.permute.xlu0 %662
        %664 = vrot.lane.b32.xlu0 %v537, 107
        %v665 = vpop.permute.xlu0 %664
        %vm666 = vcmask 875520
        %v667 = vsel %vm666, %v659, %v661
        %v668 = vsel %vm666, %v663, %v665
        %671 = vrot.lane.b32.xlu0 %v524, 106
        %v672 = vpop.permute.xlu0 %671
        %673 = vrot.lane.b32.xlu0 %v536, 106
        %v674 = vpop.permute.xlu0 %673
        %675 = vrot.lane.b32.xlu0 %v525, 106
        %v676 = vpop.permute.xlu0 %675
        %677 = vrot.lane.b32.xlu0 %v537, 106
        %v678 = vpop.permute.xlu0 %677
        %vm679 = vcmask 867328
        %v680 = vsel %vm679, %v672, %v674
        %v681 = vsel %vm679, %v676, %v678
        %684 = vrot.lane.b32.xlu0 %v554, 127
        %v685 = vpop.permute.xlu0 %684
        %686 = vrot.lane.b32.xlu0 %v566, 127
        %v687 = vpop.permute.xlu0 %686
        %688 = vrot.lane.b32.xlu0 %v555, 127
        %v689 = vpop.permute.xlu0 %688
        %690 = vrot.lane.b32.xlu0 %v567, 127
        %v691 = vpop.permute.xlu0 %690
        %v692 = vsel %vm588, %v685, %v687
        %v693 = vsel %vm588, %v689, %v691
        %696 = vrot.lane.b32.xlu0 %v554, 126
        %v697 = vpop.permute.xlu0 %696
        %698 = vrot.lane.b32.xlu0 %v566, 126
        %v699 = vpop.permute.xlu0 %698
        %700 = vrot.lane.b32.xlu0 %v555, 126
        %v701 = vpop.permute.xlu0 %700
        %702 = vrot.lane.b32.xlu0 %v567, 126
        %v703 = vpop.permute.xlu0 %702
        %v704 = vsel %vm601, %v697, %v699
        %v705 = vsel %vm601, %v701, %v703
        %708 = vrot.lane.b32.xlu0 %v554, 118
        %v709 = vpop.permute.xlu0 %708
        %710 = vrot.lane.b32.xlu0 %v566, 118
        %v711 = vpop.permute.xlu0 %710
        %712 = vrot.lane.b32.xlu0 %v555, 118
        %v713 = vpop.permute.xlu0 %712
        %714 = vrot.lane.b32.xlu0 %v567, 118
        %v715 = vpop.permute.xlu0 %714
        %v716 = vsel %vm614, %v709, %v711
        %v717 = vsel %vm614, %v713, %v715
        %720 = vrot.lane.b32.xlu0 %v554, 117
        %v721 = vpop.permute.xlu0 %720
        %722 = vrot.lane.b32.xlu0 %v566, 117
        %v723 = vpop.permute.xlu0 %722
        %724 = vrot.lane.b32.xlu0 %v555, 117
        %v725 = vpop.permute.xlu0 %724
        %726 = vrot.lane.b32.xlu0 %v567, 117
        %v727 = vpop.permute.xlu0 %726
        %v728 = vsel %vm627, %v721, %v723
        %v729 = vsel %vm627, %v725, %v727
        %732 = vrot.lane.b32.xlu0 %v554, 116
        %v733 = vpop.permute.xlu0 %732
        %734 = vrot.lane.b32.xlu0 %v566, 116
        %v735 = vpop.permute.xlu0 %734
        %736 = vrot.lane.b32.xlu0 %v555, 116
        %v737 = vpop.permute.xlu0 %736
        %738 = vrot.lane.b32.xlu0 %v567, 116
        %v739 = vpop.permute.xlu0 %738
        %v740 = vsel %vm640, %v733, %v735
        %v741 = vsel %vm640, %v737, %v739
        %744 = vrot.lane.b32.xlu0 %v554, 108
        %v745 = vpop.permute.xlu0 %744
        %746 = vrot.lane.b32.xlu0 %v566, 108
        %v747 = vpop.permute.xlu0 %746
        %748 = vrot.lane.b32.xlu0 %v555, 108
        %v749 = vpop.permute.xlu0 %748
        %750 = vrot.lane.b32.xlu0 %v567, 108
        %v751 = vpop.permute.xlu0 %750
        %v752 = vsel %vm653, %v745, %v747
        %v753 = vsel %vm653, %v749, %v751
        %756 = vrot.lane.b32.xlu0 %v554, 107
        %v757 = vpop.permute.xlu0 %756
        %758 = vrot.lane.b32.xlu0 %v566, 107
        %v759 = vpop.permute.xlu0 %758
        %760 = vrot.lane.b32.xlu0 %v555, 107
        %v761 = vpop.permute.xlu0 %760
        %762 = vrot.lane.b32.xlu0 %v567, 107
        %v763 = vpop.permute.xlu0 %762
        %764 = vrot.lane.b32.xlu0 %v692, 107
        %v765 = vpop.permute.xlu0 %764
        %766 = vrot.lane.b32.xlu0 %v687, 107
        %v767 = vpop.permute.xlu0 %766
        %768 = vrot.lane.b32.xlu0 %v693, 107
        %v769 = vpop.permute.xlu0 %768
        %770 = vrot.lane.b32.xlu0 %v691, 107
        %v771 = vpop.permute.xlu0 %770
        %v772 = vsel %vm666, %v757, %v759
        %v773 = vsel %vm666, %v761, %v763
        %v774 = vsel %vm666, %v765, %v767
        %v775 = vsel %vm666, %v769, %v771
        %v792 = vunpack.c.l.b16 %v568
        %v793 = vunpack.c.h.b16 %v568
        %v794 = vunpack.c.l.b16 %v569
        %v795 = vunpack.c.h.b16 %v569
        %v796 = vunpack.c.l.b16 %v570
        %v797 = vunpack.c.l.b16 %v571
        %v798 = vunpack.c.h.b16 %v571
        %v799 = vunpack.c.l.b16 %v572
        %v800 = vunpack.c.h.b16 %v572
        %v801 = vunpack.c.l.b16 %v573
        %v802 = vunpack.c.l.b16 %v574
        %v803 = vunpack.c.h.b16 %v574
        %v804 = vunpack.c.l.b16 %v575
        %v805 = vunpack.c.h.b16 %v575
        %v806 = vunpack.c.l.b16 %v576
        %v807 = vunpack.c.l.b16 %v577
        %v808 = vunpack.c.h.b16 %v577
        %v809 = vunpack.c.l.b16 %v578
        %v810 = vunpack.c.h.b16 %v578
        %v811 = vunpack.c.l.b16 %v579
        %v812 = vpack.c.b16 %v797, %v792
        %v813 = vpack.c.b16 %v798, %v793
        %v814 = vpack.c.b16 %v799, %v794
        %v815 = vpack.c.b16 %v800, %v795
        %v816 = vpack.c.b16 %v801, %v796
        %v817 = vpack.c.b16 %v807, %v802
        %v818 = vpack.c.b16 %v808, %v803
        %v819 = vpack.c.b16 %v809, %v804
        %v820 = vpack.c.b16 %v810, %v805
        %v821 = vpack.c.b16 %v811, %v806
        %vm830 = vcmask 523264
        %v832 = vsel %vm830, %v816, 0
        %v835 = vsel %vm830, %v821, 0
        %837 = vmatprep.subr.bf16.mxu0 0
        %838 = vmatpush1.bf16.msra.mxu0 %v616
        %839 = vmatprep.subr.bf16.mxu0 0
        %840 = vmatpush1.bf16.msra.mxu0 %v615
        %841 = vmatprep.subr.bf16.mxu0 0
        %842 = vmatpush1.bf16.msra.mxu0 %v603
        %843 = vmatprep.subr.bf16.mxu0 0
        %844 = vmatpush1.bf16.msra.mxu0 %v602
        %845 = vmatprep.subr.bf16.mxu0 0
        %846 = vmatpush1.bf16.msra.mxu0 %v590
        %847 = vmatprep.subr.bf16.mxu0 0
        %848 = vmatpush1.bf16.msra.mxu0 %v589
        %849 = vmatprep.subr.bf16.mxu0 0
        %850 = vmatpush1.bf16.msra.mxu0 %v525
        %851 = vmatprep.subr.bf16.mxu0 0
        %852 = vmatpush1.bf16.msra.mxu0 %v524
        %853 = vmatprep.subr.bf16.mxu0 0
        %854 = vmatpush2.bf16.msra.mxu0 %v668
        %855 = vmatprep.subr.bf16.mxu0 0
        %856 = vmatpush2.bf16.msra.mxu0 %v667
        %857 = vmatprep.subr.bf16.mxu0 0
        %858 = vmatpush2.bf16.msra.mxu0 %v655
        %859 = vmatprep.subr.bf16.mxu0 0
        %860 = vmatpush2.bf16.msra.mxu0 %v654
        %861 = vmatprep.subr.bf16.mxu0 0
        %862 = vmatpush2.bf16.msra.mxu0 %v642
        %863 = vmatprep.subr.bf16.mxu0 0
        %864 = vmatpush2.bf16.msra.mxu0 %v641
        %865 = vmatprep.subr.bf16.mxu0 0
        %866 = vmatpush2.bf16.msra.mxu0 %v629
        %867 = vmatprep.subr.bf16.mxu0 0
        %868 = vmatpush2.bf16.msra.mxu0 %v628
        %869 = vmatprep.mubr.bf16.mxu0 %v813
        %870 = vmatmul.mubr.bf16.gmra.mxu0 %v812
        %v871 = vpop.f32.mrf.mxu0
        %v872 = vadd.f32 0.0, %v871
        %v873 = vpop.f32.mrf.mxu0
        %v874 = vpop.f32.mrf.mxu0
        %v875 = vadd.f32 0.0, %v874
        %v876 = vpop.f32.mrf.mxu0
        %877 = vmatprep.mubr.bf16.mxu0 %v818
        %878 = vmatmul.mubr.bf16.gmra.mxu0 %v817
        %v879 = vpop.f32.mrf.mxu0
        %v880 = vadd.f32 0.0, %v879
        %v881 = vpop.f32.mrf.mxu0
        %v882 = vpop.f32.mrf.mxu0
        %v883 = vadd.f32 0.0, %v882
        %v884 = vpop.f32.mrf.mxu0
        %885 = vdwg.mxu0
        %886 = vmatprep.subr.bf16.mxu0 0
        %887 = vmatpush1.bf16.msra.mxu0 %v705
        %888 = vmatprep.subr.bf16.mxu0 0
        %889 = vmatpush1.bf16.msra.mxu0 %v704
        %890 = vmatprep.subr.bf16.mxu0 0
        %891 = vmatpush1.bf16.msra.mxu0 %v693
        %892 = vmatprep.subr.bf16.mxu0 0
        %893 = vmatpush1.bf16.msra.mxu0 %v692
        %894 = vmatprep.subr.bf16.mxu0 0
        %895 = vmatpush1.bf16.msra.mxu0 %v555
        %896 = vmatprep.subr.bf16.mxu0 0
        %897 = vmatpush1.bf16.msra.mxu0 %v554
        %898 = vmatprep.subr.bf16.mxu0 0
        %899 = vmatpush1.bf16.msra.mxu0 %v681
        %900 = vmatprep.subr.bf16.mxu0 0
        %901 = vmatpush1.bf16.msra.mxu0 %v680
        %902 = vmatprep.subr.bf16.mxu0 0
        %903 = vmatpush2.bf16.msra.mxu0 %v753
        %904 = vmatprep.subr.bf16.mxu0 0
        %905 = vmatpush2.bf16.msra.mxu0 %v752
        %906 = vmatprep.subr.bf16.mxu0 0
        %907 = vmatpush2.bf16.msra.mxu0 %v741
        %908 = vmatprep.subr.bf16.mxu0 0
        %909 = vmatpush2.bf16.msra.mxu0 %v740
        %910 = vmatprep.subr.bf16.mxu0 0
        %911 = vmatpush2.bf16.msra.mxu0 %v729
        %912 = vmatprep.subr.bf16.mxu0 0
        %913 = vmatpush2.bf16.msra.mxu0 %v728
        %914 = vmatprep.subr.bf16.mxu0 0
        %915 = vmatpush2.bf16.msra.mxu0 %v717
        %916 = vmatprep.subr.bf16.mxu0 0
        %917 = vmatpush2.bf16.msra.mxu0 %v716
        %918 = vmatprep.mubr.bf16.mxu0 %v815
        %919 = vmatmul.mubr.bf16.gmra.mxu0 %v814
        %v920 = vpop.f32.mrf.mxu0
        %v921 = vadd.f32 %v872, %v920
        %v922 = vpop.f32.mrf.mxu0
        %v923 = vpop.f32.mrf.mxu0
        %v924 = vadd.f32 %v875, %v923
        %v925 = vpop.f32.mrf.mxu0
        %926 = vmatprep.mubr.bf16.mxu0 %v820
        %927 = vmatmul.mubr.bf16.gmra.mxu0 %v819
        %v928 = vpop.f32.mrf.mxu0
        %v929 = vadd.f32 %v880, %v928
        %v930 = vpop.f32.mrf.mxu0
        %v931 = vpop.f32.mrf.mxu0
        %v932 = vadd.f32 %v883, %v931
        %v933 = vpop.f32.mrf.mxu0
        %934 = vdwg.mxu0
        %935 = vmatprep.subr.bf16.mxu0 0
        %936 = vmatpush1.bf16.msra.mxu0 0
        %937 = vmatprep.subr.bf16.mxu0 0
        %938 = vmatpush1.bf16.msra.mxu0 0
        %939 = vmatprep.subr.bf16.mxu0 0
        %940 = vmatpush1.bf16.msra.mxu0 0
        %941 = vmatprep.subr.bf16.mxu0 0
        %942 = vmatpush1.bf16.msra.mxu0 0
        %943 = vmatprep.subr.bf16.mxu0 0
        %944 = vmatpush1.bf16.msra.mxu0 %v775
        %945 = vmatprep.subr.bf16.mxu0 0
        %946 = vmatpush1.bf16.msra.mxu0 %v774
        %947 = vmatprep.subr.bf16.mxu0 0
        %948 = vmatpush1.bf16.msra.mxu0 %v773
        %949 = vmatprep.subr.bf16.mxu0 0
        %950 = vmatpush1.bf16.msra.mxu0 %v772
        %951 = vmatprep.subr.bf16.mxu0 0
        %952 = vmatpush2.bf16.msra.mxu0 0
        %953 = vmatprep.subr.bf16.mxu0 0
        %954 = vmatpush2.bf16.msra.mxu0 0
        %955 = vmatprep.subr.bf16.mxu0 0
        %956 = vmatpush2.bf16.msra.mxu0 0
        %957 = vmatprep.subr.bf16.mxu0 0
        %958 = vmatpush2.bf16.msra.mxu0 0
        %959 = vmatprep.subr.bf16.mxu0 0
        %960 = vmatpush2.bf16.msra.mxu0 0
        %961 = vmatprep.subr.bf16.mxu0 0
        %962 = vmatpush2.bf16.msra.mxu0 0
        %963 = vmatprep.subr.bf16.mxu0 0
        %964 = vmatpush2.bf16.msra.mxu0 0
        %965 = vmatprep.subr.bf16.mxu0 0
        %966 = vmatpush2.bf16.msra.mxu0 0
        %967 = vmatprep.mubr.bf16.mxu0 0
        %968 = vmatmul.mubr.bf16.gmra.mxu0 %v832
        %v969 = vpop.f32.mrf.mxu0
        %v970 = vadd.f32 %v921, %v969
        %v971 = vpop.f32.mrf.mxu0
        %v972 = vpop.f32.mrf.mxu0
        %v973 = vadd.f32 %v924, %v972
        %v974 = vpop.f32.mrf.mxu0
        %975 = vmatprep.mubr.bf16.mxu0 0
        %976 = vmatmul.mubr.bf16.gmra.mxu0 %v835
        %v977 = vpop.f32.mrf.mxu0
        %v978 = vadd.f32 %v929, %v977
        %v979 = vpop.f32.mrf.mxu0
        %v980 = vpop.f32.mrf.mxu0
        %v981 = vadd.f32 %v932, %v980
        %v982 = vpop.f32.mrf.mxu0
        %983 = vdwg.mxu0
        %v984 = vmax.f32 %v970, 0.0
        %v985 = vmax.f32 %v973, 0.0
        %v986 = vmax.f32 %v978, 0.0
        %v987 = vmax.f32 %v981, 0.0
        %v988 = vpack.c.bf16 %v985, %v984
        %v989 = vpack.c.bf16 %v987, %v986
        %v992 = vunpack.c.l.b16 %v988
        %v993 = vunpack.c.h.b16 %v988
        %v994 = vunpack.c.l.b16 %v989
        %v995 = vunpack.c.h.b16 %v989
        %v996 = vpack.c.b16 %v992, %v992
        %v997 = vpack.c.b16 %v993, %v993
        %v998 = vpack.c.b16 %v994, %v994
        %v999 = vpack.c.b16 %v995, %v995
        %1004 = vst [vmem:[%s504] sm:$0xf] %v996
        %1005 = vst [vmem:[%s504 + $0x4] sm:$0xf] %v997
        %1006 = vst [vmem:[%s504 + $0x8] sm:$0xf] %v998
        %1007 = vst [vmem:[%s504 + $0xc] sm:$0xf] %v999
        %s1008 = sand.u32 %s153, 1
        %s1009 = sand.u32 %s153, 1
        %s1010 = smul.addr %s1009, 16
        %s1011 = scalar_lea.vmem [#allocation6], %s1010
        // Predicated region
        $region205: #{forward.24} parent=187 // pred_check
          %p1012 = pneg %p163
        $region206: #{forward.24} parent=187 // pred_check_branch
          %1014 = sbr.rel (%p1012) target = $region208
        $region207: #{forward.24} parent=187 // pred_region
          %s1015 = smul.addr %s16, 4
          %s1016 = scalar_lea.vmem %s5, %s1015
          // Predicated region
          $region209: #{forward.24} parent=207 // pred_check
            _
          $region210: #{forward.24} parent=207 // pred_check_branch
            %1018 = sbr.rel (0) target = $region212
          $region211: #{forward.24} parent=207 // pred_region
            // Predicated region
            $region213: #{forward.24} parent=211 // pred_check
              _
            $region214: #{forward.24} parent=211 // pred_check_branch
              %1020 = sbr.rel target = $region216
            $region215: #{forward.24} parent=211 // pred_region
              // Predicated region
              $region228: #{forward.24} parent=215 // pred_check
                _
              $region229: #{forward.24} parent=215 // pred_check_branch
                %1042 = sbr.rel (0) target = $region231
              $region230: #{forward.24} parent=215 // pred_region
                loop: start=0, step=1, limit=1
                $region232: #{forward.24} parent=230 // loop_pre_header
                  _
                $region233: #{forward.24} parent=230 // loop_header
                  %s1044 = sphi 0, %s1048
                  %p1045 = scmp.ge.s32.totalorder %s1044, 1
                  %s1049 = sphi %s1011, %s1011
                  %s1050 = sphi %s1016, %s1016
                $region234: #{forward.24} parent=230 // loop_header_branch
                  %1047 = sbr.rel (%p1045) target = $region238
                $region235: #{forward.24} parent=230 // loop_body
                  _
                $region236: #{forward.24} parent=230 // loop_footer
                  %s1048 = sadd.s32 1, %s1044
                $region237: #{forward.24} parent=230 // loop_footer_branch
                  %1043 = sbr.rel target = $region233
                $region238: #{forward.24} parent=230 // loop_exit
                  _
                %s1052 = ssub.s32 16, 1
                loop: start=0, step=1, limit=1
                $region239: #{forward.24} parent=230 // loop_pre_header
                  _
                $region240: #{forward.24} parent=230 // loop_header
                  %s1054 = sphi 0, %s1058
                  %p1055 = scmp.ge.s32.totalorder %s1054, 1
                  %s1059 = sphi %s1011, %s1011
                  %s1060 = sphi %s1016, %s1016
                $region241: #{forward.24} parent=230 // loop_header_branch
                  %1057 = sbr.rel (%p1055) target = $region245
                $region242: #{forward.24} parent=230 // loop_body
                  %v1061 = vld [vmem:[%s1059] sm:%s1052]
                  %1062 = vst [vmem:[%s1060] sm:%s1052] %v1061
                  %v1063 = vld [vmem:[%s1059 + $0x4] sm:%s1052]
                  %1064 = vst [vmem:[%s1060 + $0x8] sm:%s1052] %v1063
                  %v1065 = vld [vmem:[%s1059 + $0x8] sm:%s1052]
                  %1066 = vst [vmem:[%s1060 + $0x10] sm:%s1052] %v1065
                  %v1067 = vld [vmem:[%s1059 + $0xc] sm:%s1052]
                  %1068 = vst [vmem:[%s1060 + $0x18] sm:%s1052] %v1067
                $region243: #{forward.24} parent=230 // loop_footer
                  %s1058 = sadd.s32 1, %s1054
                $region244: #{forward.24} parent=230 // loop_footer_branch
                  %1053 = sbr.rel target = $region240
                $region245: #{forward.24} parent=230 // loop_exit
                  _
              $region231: #{forward.24} parent=215 // pred_fallthru
                _
            $region216: #{forward.24} parent=211 // pred_fallthru
              _
            // Predicated region
            $region217: #{forward.24} parent=211 // pred_check
              _
            $region218: #{forward.24} parent=211 // pred_check_branch
              %1022 = sbr.rel (0) target = $region220
            $region219: #{forward.24} parent=211 // pred_region
              %s1024 = ssub.s32 16, 1
              loop: start=0, step=1, limit=1
              $region221: #{forward.24} parent=219 // loop_pre_header
                _
              $region222: #{forward.24} parent=219 // loop_header
                %s1026 = sphi 0, %s1030
                %p1027 = scmp.ge.s32.totalorder %s1026, 1
                %s1031 = sphi %s1011, %s1011
                %s1032 = sphi %s1016, %s1016
              $region223: #{forward.24} parent=219 // loop_header_branch
                %1029 = sbr.rel (%p1027) target = $region227
              $region224: #{forward.24} parent=219 // loop_body
                %v1033 = vld [vmem:[%s1031] sm:%s1024]
                %1034 = vst [vmem:[%s1032] sm:%s1024] %v1033
                %v1035 = vld [vmem:[%s1031 + $0x4] sm:%s1024]
                %1036 = vst [vmem:[%s1032 + $0x8] sm:%s1024] %v1035
                %v1037 = vld [vmem:[%s1031 + $0x8] sm:%s1024]
                %1038 = vst [vmem:[%s1032 + $0x10] sm:%s1024] %v1037
                %v1039 = vld [vmem:[%s1031 + $0xc] sm:%s1024]
                %1040 = vst [vmem:[%s1032 + $0x18] sm:%s1024] %v1039
              $region225: #{forward.24} parent=219 // loop_footer
                %s1030 = sadd.s32 1, %s1026
              $region226: #{forward.24} parent=219 // loop_footer_branch
                %1025 = sbr.rel target = $region222
              $region227: #{forward.24} parent=219 // loop_exit
                _
            $region220: #{forward.24} parent=211 // pred_fallthru
              _
          $region212: #{forward.24} parent=207 // pred_fallthru
            _
          %1069 = vnop
        $region208: #{forward.24} parent=187 // pred_fallthru
          _
      $region188: #{forward.24} parent=5 // pred_fallthru
        _
      %p1070 = scmp.le.s32.totalorder 2, %s11
      // Predicated region
      $region246: #{forward.24} parent=5 // pred_check
        %p1071 = pneg %p1070
      $region247: #{forward.24} parent=5 // pred_check_branch
        %1073 = sbr.rel (%p1071) target = $region249
      $region248: #{forward.24} parent=5 // pred_region
        %s1074 = ssub.s32 %s11, 2
        // Predicated region
        $region250: #{forward.24} parent=248 // pred_check
          %p1075 = pneg %p169
        $region251: #{forward.24} parent=248 // pred_check_branch
          %1077 = sbr.rel (%p1075) target = $region253
        $region252: #{forward.24} parent=248 // pred_region
          %s1078 = sand.u32 %s154, 1
          %s1079 = sand.u32 %s154, 1
          %s1080 = smul.addr %s1079, 16
          %s1081 = scalar_lea.vmem [#allocation6], %s1080
        $region253: #{forward.24} parent=248 // pred_fallthru
          _
      $region249: #{forward.24} parent=5 // pred_fallthru
        _
    $region6: #{forward.24} parent=1 // loop_footer
      %s15 = sadd.s32 1, %s11
    $region7: #{forward.24} parent=1 // loop_footer_branch
      %10 = sbr.rel target = $region3
    $region8: #{forward.24} parent=1 // loop_exit
      _

// kernel: forward.29
$region0: #{forward.29}
  #allocation0 [shape = 'u32[]', space=smem, size = 0x4, offset = 0x4, fixed_abs, tag = 'smem constant byte address 0x4 - core index']
  #allocation1 [shape = 'u32[144,128]{1,0:T(1,128)}', space=vmem, size = 0x12000, scoped, tag = 'internal scratch']
  %s0 = inlined_call_operand.vmem [shape: bf16[32,128], index: 0, kind: input, shape index: {}]
  %s1 = inlined_call_operand.vmem [shape: bf16[32,128], index: 1, kind: input, shape index: {}]
  %s2 = inlined_call_operand.vmem [shape: bf16[32,64], index: 2, kind: input, shape index: {}]
  %s3 = inlined_call_operand.vmem [shape: f32[32,1], index: 3, kind: input, shape index: {}]
  %s4 = inlined_call_operand.vmem [shape: bf16[32,128], index: 4, kind: output, shape index: {}]
  %s5 = sld [smem:[#allocation0]]
  $region26: #{forward.29} parent=0
    _
  %s7 = ssub.s32 1, %s5
  %s8 = scalar_select 0, %s7, %s5
  // Predicated region
  $region2: #{forward.29} parent=0 // pred_check
    _
  $region3: #{forward.29} parent=0 // pred_check_branch
    %10 = sbr.rel (0) target = $region5
  $region4: #{forward.29} parent=0 // pred_region
    _
  $region5: #{forward.29} parent=0 // pred_fallthru
    _
  // Predicated region
  $region6: #{forward.29} parent=0 // pred_check
    _
  $region7: #{forward.29} parent=0 // pred_check_branch
    %12 = sbr.rel (0) target = $region9
  $region8: #{forward.29} parent=0 // pred_region
    _
  $region9: #{forward.29} parent=0 // pred_fallthru
    _
  // Predicated region
  $region10: #{forward.29} parent=0 // pred_check
    _
  $region11: #{forward.29} parent=0 // pred_check_branch
    %14 = sbr.rel (0) target = $region13
  $region12: #{forward.29} parent=0 // pred_region
    _
  $region13: #{forward.29} parent=0 // pred_fallthru
    _
  // Predicated region
  $region14: #{forward.29} parent=0 // pred_check
    _
  $region15: #{forward.29} parent=0 // pred_check_branch
    %16 = sbr.rel (0) target = $region17
  $region16: #{forward.29} parent=0 // pred_region
    _
  $region17: #{forward.29} parent=0 // pred_fallthru
    _
  %v18 = vld [vmem:[%s0] sm:$0xf]
  %v19 = vld [vmem:[%s0 + $0x4] sm:$0xf]
  %v20 = vld [vmem:[%s0 + $0x8] sm:$0xf]
  %v21 = vld [vmem:[%s0 + $0xc] sm:$0xf]
  %v22 = vld [vmem:[%s1] sm:$0xf]
  %v23 = vld [vmem:[%s1 + $0x4] sm:$0xf]
  %v24 = vld [vmem:[%s1 + $0x8] sm:$0xf]
  %v25 = vld [vmem:[%s1 + $0xc] sm:$0xf]
  %v26 = vld [vmem:[%s2] sm:$0xf]
  %v27 = vld [vmem:[%s2 + $0x4] sm:$0xf]
  %v28 = vld [vmem:[%s2 + $0x8] sm:$0xf]
  %v29 = vld [vmem:[%s2 + $0xc] sm:$0xf]
  %v34 = vunpack.c.l.b16 %v18
  %v35 = vunpack.c.l.b16 %v19
  %v36 = vunpack.c.l.b16 %v20
  %v37 = vunpack.c.l.b16 %v21
  %v38 = vpack.c.b16 %v35, %v34
  %v39 = vpack.c.b16 %v37, %v36
  %v46 = vunpack.c.l.b16 %v22
  %v47 = vunpack.c.l.b16 %v23
  %v48 = vunpack.c.l.b16 %v24
  %v49 = vunpack.c.l.b16 %v25
  %v50 = vpack.c.b16 %v47, %v46
  %v51 = vpack.c.b16 %v49, %v48
  %v54 = vld [vmem:[%s3] sm:$0xff]
  %v55 = vld [vmem:[%s3 + $0x8] sm:$0xff]
  %v56 = vld [vmem:[%s3 + $0x10] sm:$0xff]
  %v57 = vld [vmem:[%s3 + $0x18] sm:$0xff]
  %59 = vset.pattern.permute.xlu0 0
  %60 = vperm.xlu0 %59, %v54
  %v61 = vpop.permute.xlu0 %60
  %64 = vset.pattern.permute.xlu0 0
  %65 = vperm.xlu0 %64, %v55
  %v66 = vpop.permute.xlu0 %65
  %69 = vset.pattern.permute.xlu0 0
  %70 = vperm.xlu0 %69, %v56
  %v71 = vpop.permute.xlu0 %70
  %74 = vset.pattern.permute.xlu0 0
  %75 = vperm.xlu0 %74, %v57
  %v76 = vpop.permute.xlu0 %75
  %v82 = vunpack.c.l.b16 %v26
  %v83 = vunpack.c.l.b16 %v27
  %v84 = vunpack.c.l.b16 %v28
  %v85 = vunpack.c.l.b16 %v29
  %v86 = vpack.c.b16 %v83, %v82
  %v87 = vpack.c.b16 %v85, %v84
  %vm88 = vcmask 523264
  %v90 = vsel %vm88, %v86, 0
  %v93 = vsel %vm88, %v87, 0
  %95 = vmatprep.subr.bf16.mxu0 0
  %96 = vmatpush1.bf16.msra.mxu0 0
  %97 = vmatprep.subr.bf16.mxu0 0
  %98 = vmatpush1.bf16.msra.mxu0 0
  %99 = vmatprep.subr.bf16.mxu0 0
  %100 = vmatpush1.bf16.msra.mxu0 0
  %101 = vmatprep.subr.bf16.mxu0 0
  %102 = vmatpush1.bf16.msra.mxu0 0
  %103 = vmatprep.subr.bf16.mxu0 0
  %104 = vmatpush1.bf16.msra.mxu0 %v51
  %105 = vmatprep.subr.bf16.mxu0 0
  %106 = vmatpush1.bf16.msra.mxu0 %v50
  %107 = vmatprep.subr.bf16.mxu0 0
  %108 = vmatpush1.bf16.msra.mxu0 %v39
  %109 = vmatprep.subr.bf16.mxu0 0
  %110 = vmatpush1.bf16.msra.mxu0 %v38
  %111 = vmatprep.subr.bf16.mxu0 0
  %112 = vmatpush2.bf16.msra.mxu0 0
  %113 = vmatprep.subr.bf16.mxu0 0
  %114 = vmatpush2.bf16.msra.mxu0 0
  %115 = vmatprep.subr.bf16.mxu0 0
  %116 = vmatpush2.bf16.msra.mxu0 0
  %117 = vmatprep.subr.bf16.mxu0 0
  %118 = vmatpush2.bf16.msra.mxu0 0
  %119 = vmatprep.subr.bf16.mxu0 0
  %120 = vmatpush2.bf16.msra.mxu0 0
  %121 = vmatprep.subr.bf16.mxu0 0
  %122 = vmatpush2.bf16.msra.mxu0 0
  %123 = vmatprep.subr.bf16.mxu0 0
  %124 = vmatpush2.bf16.msra.mxu0 0
  %125 = vmatprep.subr.bf16.mxu0 0
  %126 = vmatpush2.bf16.msra.mxu0 0
  %127 = vmatprep.mubr.bf16.mxu0 0
  %128 = vmatmul.mubr.bf16.gmra.mxu0 %v90
  %v129 = vpop.f32.mrf.mxu0
  %v130 = vadd.f32 %v61, %v129
  %v131 = vpop.f32.mrf.mxu0
  %v132 = vpop.f32.mrf.mxu0
  %v133 = vadd.f32 %v66, %v132
  %v134 = vpop.f32.mrf.mxu0
  %135 = vmatprep.mubr.bf16.mxu0 0
  %136 = vmatmul.mubr.bf16.gmra.mxu0 %v93
  %v137 = vpop.f32.mrf.mxu0
  %v138 = vadd.f32 %v71, %v137
  %v139 = vpop.f32.mrf.mxu0
  %v140 = vpop.f32.mrf.mxu0
  %v141 = vadd.f32 %v76, %v140
  %v142 = vpop.f32.mrf.mxu0
  %143 = vdwg.mxu0
  %v144 = vpack.c.bf16 %v133, %v130
  %v145 = vpack.c.bf16 %v141, %v138
  %v148 = vunpack.c.l.b16 %v144
  %v149 = vunpack.c.h.b16 %v144
  %v150 = vunpack.c.l.b16 %v145
  %v151 = vunpack.c.h.b16 %v145
  %v152 = vpack.c.b16 %v148, %v148
  %v153 = vpack.c.b16 %v149, %v149
  %v154 = vpack.c.b16 %v150, %v150
  %v155 = vpack.c.b16 %v151, %v151
  %160 = vst [vmem:[%s4] sm:$0xf] %v152
  %161 = vst [vmem:[%s4 + $0x4] sm:$0xf] %v153
  %162 = vst [vmem:[%s4 + $0x8] sm:$0xf] %v154
  %163 = vst [vmem:[%s4 + $0xc] sm:$0xf] %v155
  // Predicated region
  $region18: #{forward.29} parent=0 // pred_check
    _
  $region19: #{forward.29} parent=0 // pred_check_branch
    %165 = sbr.rel (0) target = $region21
  $region20: #{forward.29} parent=0 // pred_region
    _
  $region21: #{forward.29} parent=0 // pred_fallthru
    _
  // Predicated region
  $region22: #{forward.29} parent=0 // pred_check
    _
  $region23: #{forward.29} parent=0 // pred_check_branch
    %167 = sbr.rel (0) target = $region25
  $region24: #{forward.29} parent=0 // pred_region
    _
  $region25: #{forward.29} parent=0 // pred_fallthru
    _

// kernel: forward.37
$region0: #{forward.37}
  #allocation0 [shape = 'u32[]', space=smem, size = 0x4, offset = 0x4, fixed_abs, tag = 'smem constant byte address 0x4 - core index']
  #allocation1 [shape = 'u32[144,128]{1,0:T(1,128)}', space=vmem, size = 0x12000, scoped, tag = 'internal scratch']
  %s0 = inlined_call_operand.vmem [shape: bf16[32,384], index: 0, kind: input, shape index: {}, may-alias: {0,1}]
  %s1 = inlined_call_operand.vmem [shape: bf16[32,384], index: 1, kind: input, shape index: {}, may-alias: {0,1}]
  %s2 = inlined_call_operand.vmem [shape: bf16[32,128], index: 2, kind: input, shape index: {}]
  %s3 = inlined_call_operand.vmem [shape: f32[32,1], index: 3, kind: input, shape index: {}]
  %s4 = inlined_call_operand.vmem [shape: bf16[32,256], index: 4, kind: output, shape index: {}]
  %s5 = sld [smem:[#allocation0]]
  $region168: #{forward.37} parent=0
    _
  %s7 = ssub.s32 1, %s5
  %s8 = scalar_select 0, %s7, %s5
  $region1: #{forward.37} parent=0
    #allocation2 [shape = 'u8[16384]{0}', space=vmem, size = 0x4000, scoped, tag = 'input window, operand 0']
    #allocation3 [shape = 'u8[16384]{0}', space=vmem, size = 0x4000, scoped, tag = 'input window, operand 1']
    #allocation4 [shape = 'u8[16384]{0}', space=vmem, size = 0x4000, scoped, tag = 'output window, operand 0']
    loop: start=0, step=1, limit=4
    $region2: #{forward.37} parent=1 // loop_pre_header
      _
    $region3: #{forward.37} parent=1 // loop_header
      %s10 = sphi 0, %s14
      %p11 = scmp.ge.s32.totalorder %s10, 4
      %s20 = sphi 0, %s22
      %s23 = sphi 0, %s20
      %s24 = sphi 0, %s23
      %s40 = sphi 0, %s24
      %s48 = sphi 0, %s50
      %s51 = sphi 0, %s48
      %s52 = sphi 0, %s51
      %s68 = sphi 0, %s52
      %s72 = sphi 0, %s72
      %s74 = sphi 0, %s72
      %s75 = sphi 0, %s74
      %s89 = sphi 0, %s75
      %s93 = sphi 0, %s93
      %s95 = sphi 0, %s93
      %s96 = sphi 0, %s95
      %s110 = sphi 0, %s96
      %s116 = sphi 0, %s118
      %s119 = sphi 0, %s116
      %s120 = sphi 0, %s119
      %s136 = sphi 0, %s120
    $region4: #{forward.37} parent=1 // loop_header_branch
      %13 = sbr.rel (%p11) target = $region8
    $region5: #{forward.37} parent=1 // loop_body
      %s15 = ssub.s32 %s10, 1
      %s16 = ssub.s32 %s10, 2
      %s17 = sadd.s32 %s10, 1
      %s18 = ssub.s32 %s10, %s17
      %p19 = scmp.eq.s32.totalorder %s18, 0
      %s21 = sadd.s32 %s20, 1
      %s22 = scalar_select %p19, %s20, %s21
      %p25 = pneg %p19
      %p26 = scmp.eq.s32.totalorder %s10, 1
      %p27 = por %p25, %p26
      %p28 = scmp.ne.s32.totalorder %s20, %s23
      %p29 = scmp.eq.s32.totalorder %s10, 0
      %p30 = por %p28, %p29
      %p31 = scmp.ne.s32.totalorder %s20, %s23
      %p32 = scmp.eq.s32.totalorder %s15, 1
      %p33 = por %p31, %p32
      %p34 = scmp.ne.s32.totalorder %s23, %s24
      %p35 = scmp.eq.s32.totalorder %s15, 0
      %p36 = por %p34, %p35
      %p37 = scmp.ne.s32.totalorder %s23, %s24
      %p38 = scmp.eq.s32.totalorder %s16, 1
      %p39 = por %p37, %p38
      %p41 = scmp.ne.s32.totalorder %s24, %s40
      %p42 = scmp.eq.s32.totalorder %s16, 0
      %p43 = por %p41, %p42
      %s44 = sadd.s32 %s10, 1
      %s45 = sadd.s32 %s17, 1
      %s46 = ssub.s32 %s44, %s45
      %p47 = scmp.eq.s32.totalorder %s46, 0
      %s49 = sadd.s32 %s48, 1
      %s50 = scalar_select %p47, %s48, %s49
      %p53 = pneg %p47
      %p54 = scmp.eq.s32.totalorder %s10, 1
      %p55 = por %p53, %p54
      %p56 = scmp.ne.s32.totalorder %s48, %s51
      %p57 = scmp.eq.s32.totalorder %s10, 0
      %p58 = por %p56, %p57
      %p59 = scmp.ne.s32.totalorder %s48, %s51
      %p60 = scmp.eq.s32.totalorder %s15, 1
      %p61 = por %p59, %p60
      %p62 = scmp.ne.s32.totalorder %s51, %s52
      %p63 = scmp.eq.s32.totalorder %s15, 0
      %p64 = por %p62, %p63
      %p65 = scmp.ne.s32.totalorder %s51, %s52
      %p66 = scmp.eq.s32.totalorder %s16, 1
      %p67 = por %p65, %p66
      %p69 = scmp.ne.s32.totalorder %s52, %s68
      %p70 = scmp.eq.s32.totalorder %s16, 0
      %p71 = por %p69, %p70
      %s73 = sadd.s32 %s72, 1
      %p76 = scmp.eq.s32.totalorder %s10, 1
      %p77 = scmp.ne.s32.totalorder %s72, %s74
      %p78 = scmp.eq.s32.totalorder %s10, 0
      %p79 = por %p77, %p78
      %p80 = scmp.ne.s32.totalorder %s72, %s74
      %p81 = scmp.eq.s32.totalorder %s15, 1
      %p82 = por %p80, %p81
      %p83 = scmp.ne.s32.totalorder %s74, %s75
      %p84 = scmp.eq.s32.totalorder %s15, 0
      %p85 = por %p83, %p84
      %p86 = scmp.ne.s32.totalorder %s74, %s75
      %p87 = scmp.eq.s32.totalorder %s16, 1
      %p88 = por %p86, %p87
      %p90 = scmp.ne.s32.totalorder %s75, %s89
      %p91 = scmp.eq.s32.totalorder %s16, 0
      %p92 = por %p90, %p91
      %s94 = sadd.s32 %s93, 1
      %p97 = scmp.eq.s32.totalorder %s10, 1
      %p98 = scmp.ne.s32.totalorder %s93, %s95
      %p99 = scmp.eq.s32.totalorder %s10, 0
      %p100 = por %p98, %p99
      %p101 = scmp.ne.s32.totalorder %s93, %s95
      %p102 = scmp.eq.s32.totalorder %s15, 1
      %p103 = por %p101, %p102
      %p104 = scmp.ne.s32.totalorder %s95, %s96
      %p105 = scmp.eq.s32.totalorder %s15, 0
      %p106 = por %p104, %p105
      %p107 = scmp.ne.s32.totalorder %s95, %s96
      %p108 = scmp.eq.s32.totalorder %s16, 1
      %p109 = por %p107, %p108
      %p111 = scmp.ne.s32.totalorder %s96, %s110
      %p112 = scmp.eq.s32.totalorder %s16, 0
      %p113 = por %p111, %p112
      %s114 = ssub.s32 %s10, %s17
      %p115 = scmp.eq.s32.totalorder %s114, 0
      %s117 = sadd.s32 %s116, 1
      %s118 = scalar_select %p115, %s116, %s117
      %p121 = pneg %p115
      %p122 = scmp.eq.s32.totalorder %s10, 1
      %p123 = por %p121, %p122
      %p124 = scmp.ne.s32.totalorder %s116, %s119
      %p125 = scmp.eq.s32.totalorder %s10, 0
      %p126 = por %p124, %p125
      %p127 = scmp.ne.s32.totalorder %s116, %s119
      %p128 = scmp.eq.s32.totalorder %s15, 1
      %p129 = por %p127, %p128
      %p130 = scmp.ne.s32.totalorder %s119, %s120
      %p131 = scmp.eq.s32.totalorder %s15, 0
      %p132 = por %p130, %p131
      %p133 = scmp.ne.s32.totalorder %s119, %s120
      %p134 = scmp.eq.s32.totalorder %s16, 1
      %p135 = por %p133, %p134
      %p137 = scmp.ne.s32.totalorder %s120, %s136
      %p138 = scmp.eq.s32.totalorder %s16, 0
      %p139 = por %p137, %p138
      %p140 = scmp.le.s32.totalorder 1, %s10
      %p141 = scmp.lt.s32.totalorder %s10, 3
      %p142 = pnand %p140, %p141
      %p143 = pneg %p142
      // Predicated region
      $region9: #{forward.37} parent=5 // pred_check
        _
      $region10: #{forward.37} parent=5 // pred_check_branch
        %145 = sbr.rel (%p142) target = $region12
      $region11: #{forward.37} parent=5 // pred_region
        %s146 = ssub.s32 %s10, 1
        // Predicated region
        $region13: #{forward.37} parent=11 // pred_check
          %p147 = pneg %p85
        $region14: #{forward.37} parent=11 // pred_check_branch
          %149 = sbr.rel (%p147) target = $region16
        $region15: #{forward.37} parent=11 // pred_region
          _
        $region16: #{forward.37} parent=11 // pred_fallthru
          _
        // Predicated region
        $region17: #{forward.37} parent=11 // pred_check
          %p150 = pneg %p106
        $region18: #{forward.37} parent=11 // pred_check_branch
          %152 = sbr.rel (%p150) target = $region20
        $region19: #{forward.37} parent=11 // pred_region
          _
        $region20: #{forward.37} parent=11 // pred_fallthru
          _
      $region12: #{forward.37} parent=5 // pred_fallthru
        _
      %p153 = scmp.lt.s32.totalorder %s10, 2
      // Predicated region
      $region21: #{forward.37} parent=5 // pred_check
        %p154 = pneg %p153
      $region22: #{forward.37} parent=5 // pred_check_branch
        %156 = sbr.rel (%p154) target = $region24
      $region23: #{forward.37} parent=5 // pred_region
        // Predicated region
        $region25: #{forward.37} parent=23 // pred_check
          %p157 = pneg %p30
        $region26: #{forward.37} parent=23 // pred_check_branch
          %159 = sbr.rel (%p157) target = $region28
        $region27: #{forward.37} parent=23 // pred_region
          %s160 = sand.u32 %s20, 1
          %s161 = sand.u32 %s20, 1
          %s162 = smul.addr %s161, 16
          %s163 = scalar_lea.vmem [#allocation2], %s162
          %s164 = smul.addr %s10, 4
          %s165 = scalar_lea.vmem %s0, %s164
          // Predicated region
          $region29: #{forward.37} parent=27 // pred_check
            _
          $region30: #{forward.37} parent=27 // pred_check_branch
            %167 = sbr.rel (0) target = $region32
          $region31: #{forward.37} parent=27 // pred_region
            // Predicated region
            $region33: #{forward.37} parent=31 // pred_check
              _
            $region34: #{forward.37} parent=31 // pred_check_branch
              %169 = sbr.rel target = $region36
            $region35: #{forward.37} parent=31 // pred_region
              // Predicated region
              $region48: #{forward.37} parent=35 // pred_check
                _
              $region49: #{forward.37} parent=35 // pred_check_branch
                %191 = sbr.rel (0) target = $region51
              $region50: #{forward.37} parent=35 // pred_region
                loop: start=0, step=1, limit=1
                $region52: #{forward.37} parent=50 // loop_pre_header
                  _
                $region53: #{forward.37} parent=50 // loop_header
                  %s193 = sphi 0, %s197
                  %p194 = scmp.ge.s32.totalorder %s193, 1
                  %s198 = sphi %s165, %s165
                  %s199 = sphi %s163, %s163
                $region54: #{forward.37} parent=50 // loop_header_branch
                  %196 = sbr.rel (%p194) target = $region58
                $region55: #{forward.37} parent=50 // loop_body
                  _
                $region56: #{forward.37} parent=50 // loop_footer
                  %s197 = sadd.s32 1, %s193
                $region57: #{forward.37} parent=50 // loop_footer_branch
                  %192 = sbr.rel target = $region53
                $region58: #{forward.37} parent=50 // loop_exit
                  _
                %s201 = ssub.s32 16, 1
                loop: start=0, step=1, limit=1
                $region59: #{forward.37} parent=50 // loop_pre_header
                  _
                $region60: #{forward.37} parent=50 // loop_header
                  %s203 = sphi 0, %s207
                  %p204 = scmp.ge.s32.totalorder %s203, 1
                  %s208 = sphi %s165, %s165
                  %s209 = sphi %s163, %s163
                $region61: #{forward.37} parent=50 // loop_header_branch
                  %206 = sbr.rel (%p204) target = $region65
                $region62: #{forward.37} parent=50 // loop_body
                  %v210 = vld [vmem:[%s208] sm:%s201]
                  %211 = vst [vmem:[%s209] sm:%s201] %v210
                  %v212 = vld [vmem:[%s208 + $0xc] sm:%s201]
                  %213 = vst [vmem:[%s209 + $0x4] sm:%s201] %v212
                  %v214 = vld [vmem:[%s208 + $0x18] sm:%s201]
                  %215 = vst [vmem:[%s209 + $0x8] sm:%s201] %v214
                  %v216 = vld [vmem:[%s208 + $0x24] sm:%s201]
                  %217 = vst [vmem:[%s209 + $0xc] sm:%s201] %v216
                $region63: #{forward.37} parent=50 // loop_footer
                  %s207 = sadd.s32 1, %s203
                $region64: #{forward.37} parent=50 // loop_footer_branch
                  %202 = sbr.rel target = $region60
                $region65: #{forward.37} parent=50 // loop_exit
                  _
              $region51: #{forward.37} parent=35 // pred_fallthru
                _
            $region36: #{forward.37} parent=31 // pred_fallthru
              _
            // Predicated region
            $region37: #{forward.37} parent=31 // pred_check
              _
            $region38: #{forward.37} parent=31 // pred_check_branch
              %171 = sbr.rel (0) target = $region40
            $region39: #{forward.37} parent=31 // pred_region
              %s173 = ssub.s32 16, 1
              loop: start=0, step=1, limit=1
              $region41: #{forward.37} parent=39 // loop_pre_header
                _
              $region42: #{forward.37} parent=39 // loop_header
                %s175 = sphi 0, %s179
                %p176 = scmp.ge.s32.totalorder %s175, 1
                %s180 = sphi %s165, %s165
                %s181 = sphi %s163, %s163
              $region43: #{forward.37} parent=39 // loop_header_branch
                %178 = sbr.rel (%p176) target = $region47
              $region44: #{forward.37} parent=39 // loop_body
                %v182 = vld [vmem:[%s180] sm:%s173]
                %183 = vst [vmem:[%s181] sm:%s173] %v182
                %v184 = vld [vmem:[%s180 + $0xc] sm:%s173]
                %185 = vst [vmem:[%s181 + $0x4] sm:%s173] %v184
                %v186 = vld [vmem:[%s180 + $0x18] sm:%s173]
                %187 = vst [vmem:[%s181 + $0x8] sm:%s173] %v186
                %v188 = vld [vmem:[%s180 + $0x24] sm:%s173]
                %189 = vst [vmem:[%s181 + $0xc] sm:%s173] %v188
              $region45: #{forward.37} parent=39 // loop_footer
                %s179 = sadd.s32 1, %s175
              $region46: #{forward.37} parent=39 // loop_footer_branch
                %174 = sbr.rel target = $region42
              $region47: #{forward.37} parent=39 // loop_exit
                _
            $region40: #{forward.37} parent=31 // pred_fallthru
              _
          $region32: #{forward.37} parent=27 // pred_fallthru
            _
          %218 = vnop
        $region28: #{forward.37} parent=23 // pred_fallthru
          _
        // Predicated region
        $region66: #{forward.37} parent=23 // pred_check
          %p219 = pneg %p58
        $region67: #{forward.37} parent=23 // pred_check_branch
          %221 = sbr.rel (%p219) target = $region69
        $region68: #{forward.37} parent=23 // pred_region
          %s222 = sand.u32 %s48, 1
          %s223 = sand.u32 %s48, 1
          %s224 = smul.addr %s223, 16
          %s225 = scalar_lea.vmem [#allocation3], %s224
          %s226 = sadd.s32 %s10, 1
          %s227 = smul.addr %s226, 4
          %s228 = scalar_lea.vmem %s1, %s227
          // Predicated region
          $region70: #{forward.37} parent=68 // pred_check
            _
          $region71: #{forward.37} parent=68 // pred_check_branch
            %230 = sbr.rel (0) target = $region73
          $region72: #{forward.37} parent=68 // pred_region
            // Predicated region
            $region74: #{forward.37} parent=72 // pred_check
              _
            $region75: #{forward.37} parent=72 // pred_check_branch
              %232 = sbr.rel target = $region77
            $region76: #{forward.37} parent=72 // pred_region
              // Predicated region
              $region89: #{forward.37} parent=76 // pred_check
                _
              $region90: #{forward.37} parent=76 // pred_check_branch
                %254 = sbr.rel (0) target = $region92
              $region91: #{forward.37} parent=76 // pred_region
                loop: start=0, step=1, limit=1
                $region93: #{forward.37} parent=91 // loop_pre_header
                  _
                $region94: #{forward.37} parent=91 // loop_header
                  %s256 = sphi 0, %s260
                  %p257 = scmp.ge.s32.totalorder %s256, 1
                  %s261 = sphi %s228, %s228
                  %s262 = sphi %s225, %s225
                $region95: #{forward.37} parent=91 // loop_header_branch
                  %259 = sbr.rel (%p257) target = $region99
                $region96: #{forward.37} parent=91 // loop_body
                  _
                $region97: #{forward.37} parent=91 // loop_footer
                  %s260 = sadd.s32 1, %s256
                $region98: #{forward.37} parent=91 // loop_footer_branch
                  %255 = sbr.rel target = $region94
                $region99: #{forward.37} parent=91 // loop_exit
                  _
                %s264 = ssub.s32 16, 1
                loop: start=0, step=1, limit=1
                $region100: #{forward.37} parent=91 // loop_pre_header
                  _
                $region101: #{forward.37} parent=91 // loop_header
                  %s266 = sphi 0, %s270
                  %p267 = scmp.ge.s32.totalorder %s266, 1
                  %s271 = sphi %s228, %s228
                  %s272 = sphi %s225, %s225
                $region102: #{forward.37} parent=91 // loop_header_branch
                  %269 = sbr.rel (%p267) target = $region106
                $region103: #{forward.37} parent=91 // loop_body
                  %v273 = vld [vmem:[%s271] sm:%s264]
                  %274 = vst [vmem:[%s272] sm:%s264] %v273
                  %v275 = vld [vmem:[%s271 + $0xc] sm:%s264]
                  %276 = vst [vmem:[%s272 + $0x4] sm:%s264] %v275
                  %v277 = vld [vmem:[%s271 + $0x18] sm:%s264]
                  %278 = vst [vmem:[%s272 + $0x8] sm:%s264] %v277
                  %v279 = vld [vmem:[%s271 + $0x24] sm:%s264]
                  %280 = vst [vmem:[%s272 + $0xc] sm:%s264] %v279
                $region104: #{forward.37} parent=91 // loop_footer
                  %s270 = sadd.s32 1, %s266
                $region105: #{forward.37} parent=91 // loop_footer_branch
                  %265 = sbr.rel target = $region101
                $region106: #{forward.37} parent=91 // loop_exit
                  _
              $region92: #{forward.37} parent=76 // pred_fallthru
                _
            $region77: #{forward.37} parent=72 // pred_fallthru
              _
            // Predicated region
            $region78: #{forward.37} parent=72 // pred_check
              _
            $region79: #{forward.37} parent=72 // pred_check_branch
              %234 = sbr.rel (0) target = $region81
            $region80: #{forward.37} parent=72 // pred_region
              %s236 = ssub.s32 16, 1
              loop: start=0, step=1, limit=1
              $region82: #{forward.37} parent=80 // loop_pre_header
                _
              $region83: #{forward.37} parent=80 // loop_header
                %s238 = sphi 0, %s242
                %p239 = scmp.ge.s32.totalorder %s238, 1
                %s243 = sphi %s228, %s228
                %s244 = sphi %s225, %s225
              $region84: #{forward.37} parent=80 // loop_header_branch
                %241 = sbr.rel (%p239) target = $region88
              $region85: #{forward.37} parent=80 // loop_body
                %v245 = vld [vmem:[%s243] sm:%s236]
                %246 = vst [vmem:[%s244] sm:%s236] %v245
                %v247 = vld [vmem:[%s243 + $0xc] sm:%s236]
                %248 = vst [vmem:[%s244 + $0x4] sm:%s236] %v247
                %v249 = vld [vmem:[%s243 + $0x18] sm:%s236]
                %250 = vst [vmem:[%s244 + $0x8] sm:%s236] %v249
                %v251 = vld [vmem:[%s243 + $0x24] sm:%s236]
                %252 = vst [vmem:[%s244 + $0xc] sm:%s236] %v251
              $region86: #{forward.37} parent=80 // loop_footer
                %s242 = sadd.s32 1, %s238
              $region87: #{forward.37} parent=80 // loop_footer_branch
                %237 = sbr.rel target = $region83
              $region88: #{forward.37} parent=80 // loop_exit
                _
            $region81: #{forward.37} parent=72 // pred_fallthru
              _
          $region73: #{forward.37} parent=68 // pred_fallthru
            _
          %281 = vnop
        $region69: #{forward.37} parent=23 // pred_fallthru
          _
      $region24: #{forward.37} parent=5 // pred_fallthru
        _
      %p282 = scmp.le.s32.totalorder 1, %s10
      %p283 = scmp.lt.s32.totalorder %s10, 3
      %p284 = pnand %p282, %p283
      %p285 = pneg %p284
      // Predicated region
      $region107: #{forward.37} parent=5 // pred_check
        _
      $region108: #{forward.37} parent=5 // pred_check_branch
        %287 = sbr.rel (%p284) target = $region110
      $region109: #{forward.37} parent=5 // pred_region
        %s288 = ssub.s32 %s10, 1
        %s289 = sand.u32 %s23, 1
        %s290 = sand.u32 %s23, 1
        %s291 = smul.addr %s290, 16
        %s292 = scalar_lea.vmem [#allocation2], %s291
        // Predicated region
        $region111: #{forward.37} parent=109 // pred_check
          %p293 = pneg %p36
        $region112: #{forward.37} parent=109 // pred_check_branch
          %295 = sbr.rel (%p293) target = $region114
        $region113: #{forward.37} parent=109 // pred_region
          _
        $region114: #{forward.37} parent=109 // pred_fallthru
          _
        %s296 = sand.u32 %s51, 1
        %s297 = sand.u32 %s51, 1
        %s298 = smul.addr %s297, 16
        %s299 = scalar_lea.vmem [#allocation3], %s298
        // Predicated region
        $region115: #{forward.37} parent=109 // pred_check
          %p300 = pneg %p64
        $region116: #{forward.37} parent=109 // pred_check_branch
          %302 = sbr.rel (%p300) target = $region118
        $region117: #{forward.37} parent=109 // pred_region
          _
        $region118: #{forward.37} parent=109 // pred_fallthru
          _
        %s303 = sand.u32 %s23, 1
        %s304 = sand.u32 %s23, 1
        %s305 = smul.addr %s304, 16
        %s306 = scalar_lea.vmem [#allocation2], %s305
        %p307 = pneg %p36
        %p308 = pneg %p33
        %s309 = sand.u32 %s51, 1
        %s310 = sand.u32 %s51, 1
        %s311 = smul.addr %s310, 16
        %s312 = scalar_lea.vmem [#allocation3], %s311
        %p313 = pneg %p64
        %p314 = pneg %p61
        %p315 = pneg %p85
        %p316 = pneg %p82
        %p317 = pneg %p106
        %p318 = pneg %p103
        %p319 = pneg %p132
        %p320 = pneg %p129
        %s321 = sand.u32 %s119, 1
        %s322 = sand.u32 %s119, 1
        %s323 = smul.addr %s322, 16
        %s324 = scalar_lea.vmem [#allocation4], %s323
        %s325 = sadd.s32 %s15, 1
        %v327 = vld [vmem:[%s292] sm:$0xf]
        %v328 = vld [vmem:[%s292 + $0x4] sm:$0xf]
        %v329 = vld [vmem:[%s292 + $0x8] sm:$0xf]
        %v330 = vld [vmem:[%s292 + $0xc] sm:$0xf]
        %v331 = vld [vmem:[%s299] sm:$0xf]
        %v332 = vld [vmem:[%s299 + $0x4] sm:$0xf]
        %v333 = vld [vmem:[%s299 + $0x8] sm:$0xf]
        %v334 = vld [vmem:[%s299 + $0xc] sm:$0xf]
        %v339 = vunpack.c.l.b16 %v327
        %v340 = vunpack.c.l.b16 %v328
        %v341 = vunpack.c.l.b16 %v329
        %v342 = vunpack.c.l.b16 %v330
        %v343 = vpack.c.b16 %v340, %v339
        %v344 = vpack.c.b16 %v342, %v341
        %v351 = vunpack.c.l.b16 %v331
        %v352 = vunpack.c.l.b16 %v332
        %v353 = vunpack.c.l.b16 %v333
        %v354 = vunpack.c.l.b16 %v334
        %v355 = vpack.c.b16 %v352, %v351
        %v356 = vpack.c.b16 %v354, %v353
        %v357 = vld [vmem:[%s2] sm:$0xf]
        %v358 = vld [vmem:[%s2 + $0x4] sm:$0xf]
        %v359 = vld [vmem:[%s2 + $0x8] sm:$0xf]
        %v360 = vld [vmem:[%s2 + $0xc] sm:$0xf]
        %361 = vrot.lane.b32.xlu0 %v343, 127
        %v362 = vpop.permute.xlu0 %361
        %363 = vrot.lane.b32.xlu0 %v355, 127
        %v364 = vpop.permute.xlu0 %363
        %365 = vrot.lane.b32.xlu0 %v344, 127
        %v366 = vpop.permute.xlu0 %365
        %367 = vrot.lane.b32.xlu0 %v356, 127
        %v368 = vpop.permute.xlu0 %367
        %vm369 = vcmask 1039360
        %v370 = vsel %vm369, %v362, %v364
        %v371 = vsel %vm369, %v366, %v368
        %374 = vrot.lane.b32.xlu0 %v343, 119
        %v375 = vpop.permute.xlu0 %374
        %376 = vrot.lane.b32.xlu0 %v355, 119
        %v377 = vpop.permute.xlu0 %376
        %378 = vrot.lane.b32.xlu0 %v344, 119
        %v379 = vpop.permute.xlu0 %378
        %380 = vrot.lane.b32.xlu0 %v356, 119
        %v381 = vpop.permute.xlu0 %380
        %vm382 = vcmask 973824
        %v383 = vsel %vm382, %v375, %v377
        %v384 = vsel %vm382, %v379, %v381
        %387 = vrot.lane.b32.xlu0 %v343, 118
        %v388 = vpop.permute.xlu0 %387
        %389 = vrot.lane.b32.xlu0 %v355, 118
        %v390 = vpop.permute.xlu0 %389
        %391 = vrot.lane.b32.xlu0 %v344, 118
        %v392 = vpop.permute.xlu0 %391
        %393 = vrot.lane.b32.xlu0 %v356, 118
        %v394 = vpop.permute.xlu0 %393
        %vm395 = vcmask 965632
        %v396 = vsel %vm395, %v388, %v390
        %v397 = vsel %vm395, %v392, %v394
        %v400 = vld [vmem:[%s3] sm:$0xff]
        %v401 = vld [vmem:[%s3 + $0x8] sm:$0xff]
        %v402 = vld [vmem:[%s3 + $0x10] sm:$0xff]
        %v403 = vld [vmem:[%s3 + $0x18] sm:$0xff]
        %405 = vset.pattern.permute.xlu0 0
        %406 = vperm.xlu0 %405, %v400
        %v407 = vpop.permute.xlu0 %406
        %410 = vset.pattern.permute.xlu0 0
        %411 = vperm.xlu0 %410, %v401
        %v412 = vpop.permute.xlu0 %411
        %415 = vset.pattern.permute.xlu0 0
        %416 = vperm.xlu0 %415, %v402
        %v417 = vpop.permute.xlu0 %416
        %420 = vset.pattern.permute.xlu0 0
        %421 = vperm.xlu0 %420, %v403
        %v422 = vpop.permute.xlu0 %421
        %v428 = vunpack.c.l.b16 %v357
        %v429 = vunpack.c.l.b16 %v358
        %v430 = vunpack.c.l.b16 %v359
        %v431 = vunpack.c.l.b16 %v360
        %v432 = vpack.c.b16 %v429, %v428
        %v433 = vpack.c.b16 %v431, %v430
        %436 = vmatprep.subr.bf16.mxu0 0
        %437 = vmatpush1.bf16.msra.mxu0 %v397
        %438 = vmatprep.subr.bf16.mxu0 0
        %439 = vmatpush1.bf16.msra.mxu0 %v396
        %440 = vmatprep.subr.bf16.mxu0 0
        %441 = vmatpush1.bf16.msra.mxu0 %v384
        %442 = vmatprep.subr.bf16.mxu0 0
        %443 = vmatpush1.bf16.msra.mxu0 %v383
        %444 = vmatprep.subr.bf16.mxu0 0
        %445 = vmatpush1.bf16.msra.mxu0 %v371
        %446 = vmatprep.subr.bf16.mxu0 0
        %447 = vmatpush1.bf16.msra.mxu0 %v370
        %448 = vmatprep.subr.bf16.mxu0 0
        %449 = vmatpush1.bf16.msra.mxu0 %v344
        %450 = vmatprep.subr.bf16.mxu0 0
        %451 = vmatpush1.bf16.msra.mxu0 %v343
        %452 = vmatprep.subr.bf16.mxu0 0
        %453 = vmatpush2.bf16.msra.mxu0 0
        %454 = vmatprep.subr.bf16.mxu0 0
        %455 = vmatpush2.bf16.msra.mxu0 0
        %456 = vmatprep.subr.bf16.mxu0 0
        %457 = vmatpush2.bf16.msra.mxu0 0
        %458 = vmatprep.subr.bf16.mxu0 0
        %459 = vmatpush2.bf16.msra.mxu0 0
        %460 = vmatprep.subr.bf16.mxu0 0
        %461 = vmatpush2.bf16.msra.mxu0 0
        %462 = vmatprep.subr.bf16.mxu0 0
        %463 = vmatpush2.bf16.msra.mxu0 0
        %464 = vmatprep.subr.bf16.mxu0 0
        %465 = vmatpush2.bf16.msra.mxu0 0
        %466 = vmatprep.subr.bf16.mxu0 0
        %467 = vmatpush2.bf16.msra.mxu0 0
        %468 = vmatprep.mubr.bf16.mxu0 0
        %469 = vmatmul.mubr.bf16.gmra.mxu0 %v432
        %v470 = vpop.f32.mrf.mxu0
        %v471 = vadd.f32 %v407, %v470
        %v472 = vpop.f32.mrf.mxu0
        %v473 = vpop.f32.mrf.mxu0
        %v474 = vadd.f32 %v412, %v473
        %v475 = vpop.f32.mrf.mxu0
        %476 = vmatprep.mubr.bf16.mxu0 0
        %477 = vmatmul.mubr.bf16.gmra.mxu0 %v433
        %v478 = vpop.f32.mrf.mxu0
        %v479 = vadd.f32 %v417, %v478
        %v480 = vpop.f32.mrf.mxu0
        %v481 = vpop.f32.mrf.mxu0
        %v482 = vadd.f32 %v422, %v481
        %v483 = vpop.f32.mrf.mxu0
        %484 = vdwg.mxu0
        %v485 = vpack.c.bf16 %v474, %v471
        %v486 = vpack.c.bf16 %v482, %v479
        %v489 = vunpack.c.l.b16 %v485
        %v490 = vunpack.c.h.b16 %v485
        %v491 = vunpack.c.l.b16 %v486
        %v492 = vunpack.c.h.b16 %v486
        %v493 = vpack.c.b16 %v489, %v489
        %v494 = vpack.c.b16 %v490, %v490
        %v495 = vpack.c.b16 %v491, %v491
        %v496 = vpack.c.b16 %v492, %v492
        %501 = vst [vmem:[%s324] sm:$0xf] %v493
        %502 = vst [vmem:[%s324 + $0x4] sm:$0xf] %v494
        %503 = vst [vmem:[%s324 + $0x8] sm:$0xf] %v495
        %504 = vst [vmem:[%s324 + $0xc] sm:$0xf] %v496
        %s505 = sand.u32 %s119, 1
        %s506 = sand.u32 %s119, 1
        %s507 = smul.addr %s506, 16
        %s508 = scalar_lea.vmem [#allocation4], %s507
        // Predicated region
        $region119: #{forward.37} parent=109 // pred_check
          %p509 = pneg %p129
        $region120: #{forward.37} parent=109 // pred_check_branch
          %511 = sbr.rel (%p509) target = $region122
        $region121: #{forward.37} parent=109 // pred_region
          %s512 = smul.addr %s15, 4
          %s513 = scalar_lea.vmem %s4, %s512
          // Predicated region
          $region123: #{forward.37} parent=121 // pred_check
            _
          $region124: #{forward.37} parent=121 // pred_check_branch
            %515 = sbr.rel (0) target = $region126
          $region125: #{forward.37} parent=121 // pred_region
            // Predicated region
            $region127: #{forward.37} parent=125 // pred_check
              _
            $region128: #{forward.37} parent=125 // pred_check_branch
              %517 = sbr.rel target = $region130
            $region129: #{forward.37} parent=125 // pred_region
              // Predicated region
              $region142: #{forward.37} parent=129 // pred_check
                _
              $region143: #{forward.37} parent=129 // pred_check_branch
                %539 = sbr.rel (0) target = $region145
              $region144: #{forward.37} parent=129 // pred_region
                loop: start=0, step=1, limit=1
                $region146: #{forward.37} parent=144 // loop_pre_header
                  _
                $region147: #{forward.37} parent=144 // loop_header
                  %s541 = sphi 0, %s545
                  %p542 = scmp.ge.s32.totalorder %s541, 1
                  %s546 = sphi %s508, %s508
                  %s547 = sphi %s513, %s513
                $region148: #{forward.37} parent=144 // loop_header_branch
                  %544 = sbr.rel (%p542) target = $region152
                $region149: #{forward.37} parent=144 // loop_body
                  _
                $region150: #{forward.37} parent=144 // loop_footer
                  %s545 = sadd.s32 1, %s541
                $region151: #{forward.37} parent=144 // loop_footer_branch
                  %540 = sbr.rel target = $region147
                $region152: #{forward.37} parent=144 // loop_exit
                  _
                %s549 = ssub.s32 16, 1
                loop: start=0, step=1, limit=1
                $region153: #{forward.37} parent=144 // loop_pre_header
                  _
                $region154: #{forward.37} parent=144 // loop_header
                  %s551 = sphi 0, %s555
                  %p552 = scmp.ge.s32.totalorder %s551, 1
                  %s556 = sphi %s508, %s508
                  %s557 = sphi %s513, %s513
                $region155: #{forward.37} parent=144 // loop_header_branch
                  %554 = sbr.rel (%p552) target = $region159
                $region156: #{forward.37} parent=144 // loop_body
                  %v558 = vld [vmem:[%s556] sm:%s549]
                  %559 = vst [vmem:[%s557] sm:%s549] %v558
                  %v560 = vld [vmem:[%s556 + $0x4] sm:%s549]
                  %561 = vst [vmem:[%s557 + $0x8] sm:%s549] %v560
                  %v562 = vld [vmem:[%s556 + $0x8] sm:%s549]
                  %563 = vst [vmem:[%s557 + $0x10] sm:%s549] %v562
                  %v564 = vld [vmem:[%s556 + $0xc] sm:%s549]
                  %565 = vst [vmem:[%s557 + $0x18] sm:%s549] %v564
                $region157: #{forward.37} parent=144 // loop_footer
                  %s555 = sadd.s32 1, %s551
                $region158: #{forward.37} parent=144 // loop_footer_branch
                  %550 = sbr.rel target = $region154
                $region159: #{forward.37} parent=144 // loop_exit
                  _
              $region145: #{forward.37} parent=129 // pred_fallthru
                _
            $region130: #{forward.37} parent=125 // pred_fallthru
              _
            // Predicated region
            $region131: #{forward.37} parent=125 // pred_check
              _
            $region132: #{forward.37} parent=125 // pred_check_branch
              %519 = sbr.rel (0) target = $region134
            $region133: #{forward.37} parent=125 // pred_region
              %s521 = ssub.s32 16, 1
              loop: start=0, step=1, limit=1
              $region135: #{forward.37} parent=133 // loop_pre_header
                _
              $region136: #{forward.37} parent=133 // loop_header
                %s523 = sphi 0, %s527
                %p524 = scmp.ge.s32.totalorder %s523, 1
                %s528 = sphi %s508, %s508
                %s529 = sphi %s513, %s513
              $region137: #{forward.37} parent=133 // loop_header_branch
                %526 = sbr.rel (%p524) target = $region141
              $region138: #{forward.37} parent=133 // loop_body
                %v530 = vld [vmem:[%s528] sm:%s521]
                %531 = vst [vmem:[%s529] sm:%s521] %v530
                %v532 = vld [vmem:[%s528 + $0x4] sm:%s521]
                %533 = vst [vmem:[%s529 + $0x8] sm:%s521] %v532
                %v534 = vld [vmem:[%s528 + $0x8] sm:%s521]
                %535 = vst [vmem:[%s529 + $0x10] sm:%s521] %v534
                %v536 = vld [vmem:[%s528 + $0xc] sm:%s521]
                %537 = vst [vmem:[%s529 + $0x18] sm:%s521] %v536
              $region139: #{forward.37} parent=133 // loop_footer
                %s527 = sadd.s32 1, %s523
              $region140: #{forward.37} parent=133 // loop_footer_branch
                %522 = sbr.rel target = $region136
              $region141: #{forward.37} parent=133 // loop_exit
                _
            $region134: #{forward.37} parent=125 // pred_fallthru
              _
          $region126: #{forward.37} parent=121 // pred_fallthru
            _
          %566 = vnop
        $region122: #{forward.37} parent=109 // pred_fallthru
          _
      $region110: #{forward.37} parent=5 // pred_fallthru
        _
      %p567 = scmp.le.s32.totalorder 2, %s10
      // Predicated region
      $region160: #{forward.37} parent=5 // pred_check
        %p568 = pneg %p567
      $region161: #{forward.37} parent=5 // pred_check_branch
        %570 = sbr.rel (%p568) target = $region163
      $region162: #{forward.37} parent=5 // pred_region
        %s571 = ssub.s32 %s10, 2
        // Predicated region
        $region164: #{forward.37} parent=162 // pred_check
          %p572 = pneg %p135
        $region165: #{forward.37} parent=162 // pred_check_branch
          %574 = sbr.rel (%p572) target = $region167
        $region166: #{forward.37} parent=162 // pred_region
          %s575 = sand.u32 %s120, 1
          %s576 = sand.u32 %s120, 1
          %s577 = smul.addr %s576, 16
          %s578 = scalar_lea.vmem [#allocation4], %s577
        $region167: #{forward.37} parent=162 // pred_fallthru
          _
      $region163: #{forward.37} parent=5 // pred_fallthru
        _
    $region6: #{forward.37} parent=1 // loop_footer
      %s14 = sadd.s32 1, %s10
    $region7: #{forward.37} parent=1 // loop_footer_branch
      %9 = sbr.rel target = $region3
    $region8: #{forward.37} parent=1 // loop_exit
      _

// kernel: forward.41
$region0: #{forward.41}
  #allocation0 [shape = 'u32[]', space=smem, size = 0x4, offset = 0x4, fixed_abs, tag = 'smem constant byte address 0x4 - core index']
  #allocation1 [shape = 'u32[144,128]{1,0:T(1,128)}', space=vmem, size = 0x12000, scoped, tag = 'internal scratch']
  %s0 = inlined_call_operand.vmem [shape: bf16[32,1024], index: 0, kind: input, shape index: {}, may-alias: {0,1}]
  %s1 = inlined_call_operand.vmem [shape: bf16[32,1024], index: 1, kind: input, shape index: {}, may-alias: {0,1}]
  %s2 = inlined_call_operand.vmem [shape: bf16[4,288], index: 2, kind: input, shape index: {}]
  %s3 = inlined_call_operand.vmem [shape: f32[4,1], index: 3, kind: input, shape index: {}]
  %s4 = inlined_call_operand.vmem [shape: bf16[4,768], index: 4, kind: output, shape index: {}]
  %s5 = sld [smem:[#allocation0]]
  $region128: #{forward.41} parent=0
    _
  %s7 = ssub.s32 1, %s5
  %s8 = scalar_select 0, %s7, %s5
  $region1: #{forward.41} parent=0
    #allocation2 [shape = 'u8[32768]{0}', space=vmem, size = 0x8000, scoped, tag = 'input window, operand 0']
    #allocation3 [shape = 'u8[16384]{0}', space=vmem, size = 0x4000, scoped, tag = 'input window, operand 1']
    loop: start=0, step=1, limit=5
    $region2: #{forward.41} parent=1 // loop_pre_header
      _
    $region3: #{forward.41} parent=1 // loop_header
      %s10 = sphi 0, %s14
      %p11 = scmp.ge.s32.totalorder %s10, 5
      %s20 = sphi 0, %s22
      %s23 = sphi 0, %s20
      %s24 = sphi 0, %s23
      %s40 = sphi 0, %s24
      %s50 = sphi 0, %s52
      %s53 = sphi 0, %s50
      %s54 = sphi 0, %s53
      %s70 = sphi 0, %s54
      %s74 = sphi 0, %s74
      %s76 = sphi 0, %s74
      %s77 = sphi 0, %s76
      %s91 = sphi 0, %s77
      %s95 = sphi 0, %s95
      %s97 = sphi 0, %s95
      %s98 = sphi 0, %s97
      %s112 = sphi 0, %s98
      %s118 = sphi 0, %s120
      %s121 = sphi 0, %s118
      %s122 = sphi 0, %s121
      %s138 = sphi 0, %s122
    $region4: #{forward.41} parent=1 // loop_header_branch
      %13 = sbr.rel (%p11) target = $region8
    $region5: #{forward.41} parent=1 // loop_body
      %s15 = ssub.s32 %s10, 1
      %s16 = ssub.s32 %s10, 2
      %s17 = sadd.s32 %s10, 1
      %s18 = ssub.s32 %s10, %s17
      %p19 = scmp.eq.s32.totalorder %s18, 0
      %s21 = sadd.s32 %s20, 1
      %s22 = scalar_select %p19, %s20, %s21
      %p25 = pneg %p19
      %p26 = scmp.eq.s32.totalorder %s10, 2
      %p27 = por %p25, %p26
      %p28 = scmp.ne.s32.totalorder %s20, %s23
      %p29 = scmp.eq.s32.totalorder %s10, 0
      %p30 = por %p28, %p29
      %p31 = scmp.ne.s32.totalorder %s20, %s23
      %p32 = scmp.eq.s32.totalorder %s15, 2
      %p33 = por %p31, %p32
      %p34 = scmp.ne.s32.totalorder %s23, %s24
      %p35 = scmp.eq.s32.totalorder %s15, 0
      %p36 = por %p34, %p35
      %p37 = scmp.ne.s32.totalorder %s23, %s24
      %p38 = scmp.eq.s32.totalorder %s16, 2
      %p39 = por %p37, %p38
      %p41 = scmp.ne.s32.totalorder %s24, %s40
      %p42 = scmp.eq.s32.totalorder %s16, 0
      %p43 = por %p41, %p42
      %s44 = sadd.s32 %s10, 1
      %s45 = smul.u32 %s44, 2
      %s46 = sadd.s32 %s17, 1
      %s47 = smul.u32 %s46, 2
      %s48 = ssub.s32 %s45, %s47
      %p49 = scmp.eq.s32.totalorder %s48, 0
      %s51 = sadd.s32 %s50, 1
      %s52 = scalar_select %p49, %s50, %s51
      %p55 = pneg %p49
      %p56 = scmp.eq.s32.totalorder %s10, 2
      %p57 = por %p55, %p56
      %p58 = scmp.ne.s32.totalorder %s50, %s53
      %p59 = scmp.eq.s32.totalorder %s10, 0
      %p60 = por %p58, %p59
      %p61 = scmp.ne.s32.totalorder %s50, %s53
      %p62 = scmp.eq.s32.totalorder %s15, 2
      %p63 = por %p61, %p62
      %p64 = scmp.ne.s32.totalorder %s53, %s54
      %p65 = scmp.eq.s32.totalorder %s15, 0
      %p66 = por %p64, %p65
      %p67 = scmp.ne.s32.totalorder %s53, %s54
      %p68 = scmp.eq.s32.totalorder %s16, 2
      %p69 = por %p67, %p68
      %p71 = scmp.ne.s32.totalorder %s54, %s70
      %p72 = scmp.eq.s32.totalorder %s16, 0
      %p73 = por %p71, %p72
      %s75 = sadd.s32 %s74, 1
      %p78 = scmp.eq.s32.totalorder %s10, 2
      %p79 = scmp.ne.s32.totalorder %s74, %s76
      %p80 = scmp.eq.s32.totalorder %s10, 0
      %p81 = por %p79, %p80
      %p82 = scmp.ne.s32.totalorder %s74, %s76
      %p83 = scmp.eq.s32.totalorder %s15, 2
      %p84 = por %p82, %p83
      %p85 = scmp.ne.s32.totalorder %s76, %s77
      %p86 = scmp.eq.s32.totalorder %s15, 0
      %p87 = por %p85, %p86
      %p88 = scmp.ne.s32.totalorder %s76, %s77
      %p89 = scmp.eq.s32.totalorder %s16, 2
      %p90 = por %p88, %p89
      %p92 = scmp.ne.s32.totalorder %s77, %s91
      %p93 = scmp.eq.s32.totalorder %s16, 0
      %p94 = por %p92, %p93
      %s96 = sadd.s32 %s95, 1
      %p99 = scmp.eq.s32.totalorder %s10, 2
      %p100 = scmp.ne.s32.totalorder %s95, %s97
      %p101 = scmp.eq.s32.totalorder %s10, 0
      %p102 = por %p100, %p101
      %p103 = scmp.ne.s32.totalorder %s95, %s97
      %p104 = scmp.eq.s32.totalorder %s15, 2
      %p105 = por %p103, %p104
      %p106 = scmp.ne.s32.totalorder %s97, %s98
      %p107 = scmp.eq.s32.totalorder %s15, 0
      %p108 = por %p106, %p107
      %p109 = scmp.ne.s32.totalorder %s97, %s98
      %p110 = scmp.eq.s32.totalorder %s16, 2
      %p111 = por %p109, %p110
      %p113 = scmp.ne.s32.totalorder %s98, %s112
      %p114 = scmp.eq.s32.totalorder %s16, 0
      %p115 = por %p113, %p114
      %s116 = ssub.s32 %s10, %s17
      %p117 = scmp.eq.s32.totalorder %s116, 0
      %s119 = sadd.s32 %s118, 1
      %s120 = scalar_select %p117, %s118, %s119
      %p123 = pneg %p117
      %p124 = scmp.eq.s32.totalorder %s10, 2
      %p125 = por %p123, %p124
      %p126 = scmp.ne.s32.totalorder %s118, %s121
      %p127 = scmp.eq.s32.totalorder %s10, 0
      %p128 = por %p126, %p127
      %p129 = scmp.ne.s32.totalorder %s118, %s121
      %p130 = scmp.eq.s32.totalorder %s15, 2
      %p131 = por %p129, %p130
      %p132 = scmp.ne.s32.totalorder %s121, %s122
      %p133 = scmp.eq.s32.totalorder %s15, 0
      %p134 = por %p132, %p133
      %p135 = scmp.ne.s32.totalorder %s121, %s122
      %p136 = scmp.eq.s32.totalorder %s16, 2
      %p137 = por %p135, %p136
      %p139 = scmp.ne.s32.totalorder %s122, %s138
      %p140 = scmp.eq.s32.totalorder %s16, 0
      %p141 = por %p139, %p140
      %p142 = scmp.le.s32.totalorder 1, %s10
      %p143 = scmp.lt.s32.totalorder %s10, 4
      %p144 = pnand %p142, %p143
      %p145 = pneg %p144
      // Predicated region
      $region9: #{forward.41} parent=5 // pred_check
        _
      $region10: #{forward.41} parent=5 // pred_check_branch
        %147 = sbr.rel (%p144) target = $region12
      $region11: #{forward.41} parent=5 // pred_region
        %s148 = ssub.s32 %s10, 1
        // Predicated region
        $region13: #{forward.41} parent=11 // pred_check
          %p149 = pneg %p87
        $region14: #{forward.41} parent=11 // pred_check_branch
          %151 = sbr.rel (%p149) target = $region16
        $region15: #{forward.41} parent=11 // pred_region
          _
        $region16: #{forward.41} parent=11 // pred_fallthru
          _
        // Predicated region
        $region17: #{forward.41} parent=11 // pred_check
          %p152 = pneg %p108
        $region18: #{forward.41} parent=11 // pred_check_branch
          %154 = sbr.rel (%p152) target = $region20
        $region19: #{forward.41} parent=11 // pred_region
          _
        $region20: #{forward.41} parent=11 // pred_fallthru
          _
      $region12: #{forward.41} parent=5 // pred_fallthru
        _
      %p155 = scmp.lt.s32.totalorder %s10, 3
      // Predicated region
      $region21: #{forward.41} parent=5 // pred_check
        %p156 = pneg %p155
      $region22: #{forward.41} parent=5 // pred_check_branch
        %158 = sbr.rel (%p156) target = $region24
      $region23: #{forward.41} parent=5 // pred_region
        // Predicated region
        $region25: #{forward.41} parent=23 // pred_check
          %p159 = pneg %p30
        $region26: #{forward.41} parent=23 // pred_check_branch
          %161 = sbr.rel (%p159) target = $region28
        $region27: #{forward.41} parent=23 // pred_region
          %s162 = sand.u32 %s20, 1
          %s163 = sand.u32 %s20, 1
          %s164 = smul.addr %s163, 32
          %s165 = scalar_lea.vmem [#allocation2], %s164
          %s166 = smul.u32 2, %s10
          %s167 = smul.addr %s166, 4
          %s168 = scalar_lea.vmem %s0, %s167
          // Predicated region
          $region29: #{forward.41} parent=27 // pred_check
            _
          $region30: #{forward.41} parent=27 // pred_check_branch
            %170 = sbr.rel (0) target = $region32
          $region31: #{forward.41} parent=27 // pred_region
            // Predicated region
            $region33: #{forward.41} parent=31 // pred_check
              _
            $region34: #{forward.41} parent=31 // pred_check_branch
              %172 = sbr.rel (0) target = $region36
            $region35: #{forward.41} parent=31 // pred_region
              // Predicated region
              $region48: #{forward.41} parent=35 // pred_check
                _
              $region49: #{forward.41} parent=35 // pred_check_branch
                %194 = sbr.rel (0) target = $region51
              $region50: #{forward.41} parent=35 // pred_region
                loop: start=0, step=1, limit=1
                $region52: #{forward.41} parent=50 // loop_pre_header
                  _
                $region53: #{forward.41} parent=50 // loop_header
                  %s196 = sphi 0, %s200
                  %p197 = scmp.ge.s32.totalorder %s196, 1
                  %s201 = sphi %s168, %s168
                  %s202 = sphi %s165, %s165
                $region54: #{forward.41} parent=50 // loop_header_branch
                  %199 = sbr.rel (%p197) target = $region58
                $region55: #{forward.41} parent=50 // loop_body
                  %v203 = vld [vmem:[%s201] sm:$0xff]
                  %204 = vst [vmem:[%s202] sm:$0xff] %v203
                  %v205 = vld [vmem:[%s201 + $0x20] sm:$0xff]
                  %206 = vst [vmem:[%s202 + $0x8] sm:$0xff] %v205
                  %v207 = vld [vmem:[%s201 + $0x40] sm:$0xff]
                  %208 = vst [vmem:[%s202 + $0x10] sm:$0xff] %v207
                  %v209 = vld [vmem:[%s201 + $0x60] sm:$0xff]
                  %210 = vst [vmem:[%s202 + $0x18] sm:$0xff] %v209
                $region56: #{forward.41} parent=50 // loop_footer
                  %s200 = sadd.s32 1, %s196
                $region57: #{forward.41} parent=50 // loop_footer_branch
                  %195 = sbr.rel target = $region53
                $region58: #{forward.41} parent=50 // loop_exit
                  _
              $region51: #{forward.41} parent=35 // pred_fallthru
                _
              // Predicated region
              $region59: #{forward.41} parent=35 // pred_check
                _
              $region60: #{forward.41} parent=35 // pred_check_branch
                %212 = sbr.rel target = $region62
              $region61: #{forward.41} parent=35 // pred_region
                _
              $region62: #{forward.41} parent=35 // pred_fallthru
                _
            $region36: #{forward.41} parent=31 // pred_fallthru
              _
            // Predicated region
            $region37: #{forward.41} parent=31 // pred_check
              _
            $region38: #{forward.41} parent=31 // pred_check_branch
              %174 = sbr.rel target = $region40
            $region39: #{forward.41} parent=31 // pred_region
              %s176 = ssub.s32 256, 1
              loop: start=0, step=1, limit=1
              $region41: #{forward.41} parent=39 // loop_pre_header
                _
              $region42: #{forward.41} parent=39 // loop_header
                %s178 = sphi 0, %s182
                %p179 = scmp.ge.s32.totalorder %s178, 1
                %s183 = sphi %s168, %s168
                %s184 = sphi %s165, %s165
              $region43: #{forward.41} parent=39 // loop_header_branch
                %181 = sbr.rel (%p179) target = $region47
              $region44: #{forward.41} parent=39 // loop_body
                %v185 = vld [vmem:[%s183] sm:%s176]
                %186 = vst [vmem:[%s184] sm:%s176] %v185
                %v187 = vld [vmem:[%s183 + $0x20] sm:%s176]
                %188 = vst [vmem:[%s184 + $0x8] sm:%s176] %v187
                %v189 = vld [vmem:[%s183 + $0x40] sm:%s176]
                %190 = vst [vmem:[%s184 + $0x10] sm:%s176] %v189
                %v191 = vld [vmem:[%s183 + $0x60] sm:%s176]
                %192 = vst [vmem:[%s184 + $0x18] sm:%s176] %v191
              $region45: #{forward.41} parent=39 // loop_footer
                %s182 = sadd.s32 1, %s178
              $region46: #{forward.41} parent=39 // loop_footer_branch
                %177 = sbr.rel target = $region42
              $region47: #{forward.41} parent=39 // loop_exit
                _
            $region40: #{forward.41} parent=31 // pred_fallthru
              _
          $region32: #{forward.41} parent=27 // pred_fallthru
            _
          %213 = vnop
        $region28: #{forward.41} parent=23 // pred_fallthru
          _
        // Predicated region
        $region63: #{forward.41} parent=23 // pred_check
          %p214 = pneg %p60
        $region64: #{forward.41} parent=23 // pred_check_branch
          %216 = sbr.rel (%p214) target = $region66
        $region65: #{forward.41} parent=23 // pred_region
          %s217 = sand.u32 %s50, 1
          %s218 = sand.u32 %s50, 1
          %s219 = smul.addr %s218, 16
          %s220 = scalar_lea.vmem [#allocation3], %s219
          %s221 = sadd.s32 %s10, 1
          %s222 = smul.u32 %s221, 2
          %s223 = smul.addr %s222, 4
          %s224 = scalar_lea.vmem %s1, %s223
          // Predicated region
          $region67: #{forward.41} parent=65 // pred_check
            _
          $region68: #{forward.41} parent=65 // pred_check_branch
            %226 = sbr.rel (0) target = $region70
          $region69: #{forward.41} parent=65 // pred_region
            // Predicated region
            $region71: #{forward.41} parent=69 // pred_check
              _
            $region72: #{forward.41} parent=69 // pred_check_branch
              %228 = sbr.rel target = $region74
            $region73: #{forward.41} parent=69 // pred_region
              // Predicated region
              $region86: #{forward.41} parent=73 // pred_check
                _
              $region87: #{forward.41} parent=73 // pred_check_branch
                %250 = sbr.rel (0) target = $region89
              $region88: #{forward.41} parent=73 // pred_region
                loop: start=0, step=1, limit=1
                $region90: #{forward.41} parent=88 // loop_pre_header
                  _
                $region91: #{forward.41} parent=88 // loop_header
                  %s252 = sphi 0, %s256
                  %p253 = scmp.ge.s32.totalorder %s252, 1
                  %s257 = sphi %s224, %s224
                  %s258 = sphi %s220, %s220
                $region92: #{forward.41} parent=88 // loop_header_branch
                  %255 = sbr.rel (%p253) target = $region96
                $region93: #{forward.41} parent=88 // loop_body
                  _
                $region94: #{forward.41} parent=88 // loop_footer
                  %s256 = sadd.s32 1, %s252
                $region95: #{forward.41} parent=88 // loop_footer_branch
                  %251 = sbr.rel target = $region91
                $region96: #{forward.41} parent=88 // loop_exit
                  _
                %s260 = ssub.s32 16, 1
                loop: start=0, step=1, limit=1
                $region97: #{forward.41} parent=88 // loop_pre_header
                  _
                $region98: #{forward.41} parent=88 // loop_header
                  %s262 = sphi 0, %s266
                  %p263 = scmp.ge.s32.totalorder %s262, 1
                  %s267 = sphi %s224, %s224
                  %s268 = sphi %s220, %s220
                $region99: #{forward.41} parent=88 // loop_header_branch
                  %265 = sbr.rel (%p263) target = $region103
                $region100: #{forward.41} parent=88 // loop_body
                  %v269 = vld [vmem:[%s267] sm:%s260]
                  %270 = vst [vmem:[%s268] sm:%s260] %v269
                  %v271 = vld [vmem:[%s267 + $0x20] sm:%s260]
                  %272 = vst [vmem:[%s268 + $0x4] sm:%s260] %v271
                  %v273 = vld [vmem:[%s267 + $0x40] sm:%s260]
                  %274 = vst [vmem:[%s268 + $0x8] sm:%s260] %v273
                  %v275 = vld [vmem:[%s267 + $0x60] sm:%s260]
                  %276 = vst [vmem:[%s268 + $0xc] sm:%s260] %v275
                $region101: #{forward.41} parent=88 // loop_footer
                  %s266 = sadd.s32 1, %s262
                $region102: #{forward.41} parent=88 // loop_footer_branch
                  %261 = sbr.rel target = $region98
                $region103: #{forward.41} parent=88 // loop_exit
                  _
              $region89: #{forward.41} parent=73 // pred_fallthru
                _
            $region74: #{forward.41} parent=69 // pred_fallthru
              _
            // Predicated region
            $region75: #{forward.41} parent=69 // pred_check
              _
            $region76: #{forward.41} parent=69 // pred_check_branch
              %230 = sbr.rel (0) target = $region78
            $region77: #{forward.41} parent=69 // pred_region
              %s232 = ssub.s32 16, 1
              loop: start=0, step=1, limit=1
              $region79: #{forward.41} parent=77 // loop_pre_header
                _
              $region80: #{forward.41} parent=77 // loop_header
                %s234 = sphi 0, %s238
                %p235 = scmp.ge.s32.totalorder %s234, 1
                %s239 = sphi %s224, %s224
                %s240 = sphi %s220, %s220
              $region81: #{forward.41} parent=77 // loop_header_branch
                %237 = sbr.rel (%p235) target = $region85
              $region82: #{forward.41} parent=77 // loop_body
                %v241 = vld [vmem:[%s239] sm:%s232]
                %242 = vst [vmem:[%s240] sm:%s232] %v241
                %v243 = vld [vmem:[%s239 + $0x20] sm:%s232]
                %244 = vst [vmem:[%s240 + $0x4] sm:%s232] %v243
                %v245 = vld [vmem:[%s239 + $0x40] sm:%s232]
                %246 = vst [vmem:[%s240 + $0x8] sm:%s232] %v245
                %v247 = vld [vmem:[%s239 + $0x60] sm:%s232]
                %248 = vst [vmem:[%s240 + $0xc] sm:%s232] %v247
              $region83: #{forward.41} parent=77 // loop_footer
                %s238 = sadd.s32 1, %s234
              $region84: #{forward.41} parent=77 // loop_footer_branch
                %233 = sbr.rel target = $region80
              $region85: #{forward.41} parent=77 // loop_exit
                _
            $region78: #{forward.41} parent=69 // pred_fallthru
              _
          $region70: #{forward.41} parent=65 // pred_fallthru
            _
          %277 = vnop
        $region66: #{forward.41} parent=23 // pred_fallthru
          _
      $region24: #{forward.41} parent=5 // pred_fallthru
        _
      %p278 = scmp.le.s32.totalorder 1, %s10
      %p279 = scmp.lt.s32.totalorder %s10, 4
      %p280 = pnand %p278, %p279
      %p281 = pneg %p280
      // Predicated region
      $region104: #{forward.41} parent=5 // pred_check
        _
      $region105: #{forward.41} parent=5 // pred_check_branch
        %283 = sbr.rel (%p280) target = $region107
      $region106: #{forward.41} parent=5 // pred_region
        %s284 = ssub.s32 %s10, 1
        %s285 = sand.u32 %s23, 1
        %s286 = sand.u32 %s23, 1
        %s287 = smul.addr %s286, 32
        %s288 = scalar_lea.vmem [#allocation2], %s287
        // Predicated region
        $region108: #{forward.41} parent=106 // pred_check
          %p289 = pneg %p36
        $region109: #{forward.41} parent=106 // pred_check_branch
          %291 = sbr.rel (%p289) target = $region111
        $region110: #{forward.41} parent=106 // pred_region
          _
        $region111: #{forward.41} parent=106 // pred_fallthru
          _
        %s292 = sand.u32 %s53, 1
        %s293 = sand.u32 %s53, 1
        %s294 = smul.addr %s293, 16
        %s295 = scalar_lea.vmem [#allocation3], %s294
        // Predicated region
        $region112: #{forward.41} parent=106 // pred_check
          %p296 = pneg %p66
        $region113: #{forward.41} parent=106 // pred_check_branch
          %298 = sbr.rel (%p296) target = $region115
        $region114: #{forward.41} parent=106 // pred_region
          _
        $region115: #{forward.41} parent=106 // pred_fallthru
          _
        %s299 = sand.u32 %s23, 1
        %s300 = sand.u32 %s23, 1
        %s301 = smul.addr %s300, 32
        %s302 = scalar_lea.vmem [#allocation2], %s301
        %p303 = pneg %p36
        %p304 = pneg %p33
        %s305 = sand.u32 %s53, 1
        %s306 = sand.u32 %s53, 1
        %s307 = smul.addr %s306, 16
        %s308 = scalar_lea.vmem [#allocation3], %s307
        %p309 = pneg %p66
        %p310 = pneg %p63
        %p311 = pneg %p87
        %p312 = pneg %p84
        %p313 = pneg %p108
        %p314 = pneg %p105
        %p315 = pneg %p134
        %p316 = pneg %p131
        %s317 = smul.u32 2, %s15
        %p318 = scmp.lt.s32.totalorder %s317, 5
        %s319 = scalar_select %p318, %s317, 5
        %s320 = smul.addr %s319, 2
        %s321 = scalar_lea.vmem %s4, %s320
        %s322 = smul.u32 2, %s15
        %s323 = sadd.s32 %s15, 1
        %s324 = smul.u32 %s323, 2
        %s325 = smul.u32 2, %s15
        %p326 = scmp.lt.s32.totalorder %s325, 5
        %s327 = scalar_select %p326, %s325, 5
        %s328 = smul.addr %s327, 2
        %s329 = scalar_lea.vmem %s4, %s328
        %s330 = smul.u32 2, %s15
        %v332 = vld [vmem:[%s288] sm:$0xff]
        %v333 = vld [vmem:[%s288 + $0x8] sm:$0xff]
        %v334 = vld [vmem:[%s288 + $0x10] sm:$0xff]
        %v335 = vld [vmem:[%s288 + $0x18] sm:$0xff]
        %v336 = vld [vmem:[%s295] sm:$0xf]
        %v337 = vld [vmem:[%s295 + $0x4] sm:$0xf]
        %v338 = vld [vmem:[%s295 + $0x8] sm:$0xf]
        %v339 = vld [vmem:[%s295 + $0xc] sm:$0xf]
        %v344 = vunpack.c.l.b16 %v332
        %v345 = vunpack.c.h.b16 %v332
        %v346 = vunpack.c.l.b16 %v333
        %v347 = vunpack.c.h.b16 %v333
        %v348 = vunpack.c.l.b16 %v334
        %v349 = vunpack.c.h.b16 %v334
        %v350 = vunpack.c.l.b16 %v335
        %v351 = vunpack.c.h.b16 %v335
        %v352 = vpack.c.b16 %v346, %v344
        %v353 = vpack.c.b16 %v347, %v345
        %v354 = vpack.c.b16 %v350, %v348
        %v355 = vpack.c.b16 %v351, %v349
        %v364 = vunpack.c.l.b16 %v336
        %v365 = vunpack.c.l.b16 %v337
        %v366 = vunpack.c.l.b16 %v338
        %v367 = vunpack.c.l.b16 %v339
        %v368 = vpack.c.b16 %v365, %v364
        %v369 = vpack.c.b16 %v367, %v366
        %v370 = vld [vmem:[%s2] sm:$0x3f]
        %371 = vrot.lane.b32.xlu0 %v352, 127
        %v372 = vpop.permute.xlu0 %371
        %373 = vrot.lane.b32.xlu0 %v353, 127
        %v374 = vpop.permute.xlu0 %373
        %375 = vrot.lane.b32.xlu0 %v368, 127
        %v376 = vpop.permute.xlu0 %375
        %377 = vrot.lane.b32.xlu0 %v354, 127
        %v378 = vpop.permute.xlu0 %377
        %379 = vrot.lane.b32.xlu0 %v355, 127
        %v380 = vpop.permute.xlu0 %379
        %381 = vrot.lane.b32.xlu0 %v369, 127
        %v382 = vpop.permute.xlu0 %381
        %vm383 = vcmask 1039360
        %v384 = vsel %vm383, %v372, %v374
        %v385 = vsel %vm383, %v374, %v376
        %v386 = vsel %vm383, %v378, %v380
        %v387 = vsel %vm383, %v380, %v382
        %392 = vrot.lane.b32.xlu0 %v352, 126
        %v393 = vpop.permute.xlu0 %392
        %394 = vrot.lane.b32.xlu0 %v353, 126
        %v395 = vpop.permute.xlu0 %394
        %396 = vrot.lane.b32.xlu0 %v368, 126
        %v397 = vpop.permute.xlu0 %396
        %398 = vrot.lane.b32.xlu0 %v354, 126
        %v399 = vpop.permute.xlu0 %398
        %400 = vrot.lane.b32.xlu0 %v355, 126
        %v401 = vpop.permute.xlu0 %400
        %402 = vrot.lane.b32.xlu0 %v369, 126
        %v403 = vpop.permute.xlu0 %402
        %vm404 = vcmask 1031168
        %v405 = vsel %vm404, %v393, %v395
        %v406 = vsel %vm404, %v395, %v397
        %v407 = vsel %vm404, %v399, %v401
        %v408 = vsel %vm404, %v401, %v403
        %413 = vrot.lane.b32.xlu0 %v352, 110
        %v414 = vpop.permute.xlu0 %413
        %415 = vrot.lane.b32.xlu0 %v353, 110
        %v416 = vpop.permute.xlu0 %415
        %417 = vrot.lane.b32.xlu0 %v368, 110
        %v418 = vpop.permute.xlu0 %417
        %419 = vrot.lane.b32.xlu0 %v354, 110
        %v420 = vpop.permute.xlu0 %419
        %421 = vrot.lane.b32.xlu0 %v355, 110
        %v422 = vpop.permute.xlu0 %421
        %423 = vrot.lane.b32.xlu0 %v369, 110
        %v424 = vpop.permute.xlu0 %423
        %vm425 = vcmask 900096
        %v426 = vsel %vm425, %v414, %v416
        %v427 = vsel %vm425, %v416, %v418
        %v428 = vsel %vm425, %v420, %v422
        %v429 = vsel %vm425, %v422, %v424
        %434 = vrot.lane.b32.xlu0 %v352, 109
        %v435 = vpop.permute.xlu0 %434
        %436 = vrot.lane.b32.xlu0 %v353, 109
        %v437 = vpop.permute.xlu0 %436
        %438 = vrot.lane.b32.xlu0 %v368, 109
        %v439 = vpop.permute.xlu0 %438
        %440 = vrot.lane.b32.xlu0 %v354, 109
        %v441 = vpop.permute.xlu0 %440
        %442 = vrot.lane.b32.xlu0 %v355, 109
        %v443 = vpop.permute.xlu0 %442
        %444 = vrot.lane.b32.xlu0 %v369, 109
        %v445 = vpop.permute.xlu0 %444
        %vm446 = vcmask 891904
        %v447 = vsel %vm446, %v435, %v437
        %v448 = vsel %vm446, %v437, %v439
        %v449 = vsel %vm446, %v441, %v443
        %v450 = vsel %vm446, %v443, %v445
        %455 = vrot.lane.b32.xlu0 %v352, 108
        %v456 = vpop.permute.xlu0 %455
        %457 = vrot.lane.b32.xlu0 %v353, 108
        %v458 = vpop.permute.xlu0 %457
        %459 = vrot.lane.b32.xlu0 %v368, 108
        %v460 = vpop.permute.xlu0 %459
        %461 = vrot.lane.b32.xlu0 %v354, 108
        %v462 = vpop.permute.xlu0 %461
        %463 = vrot.lane.b32.xlu0 %v355, 108
        %v464 = vpop.permute.xlu0 %463
        %465 = vrot.lane.b32.xlu0 %v369, 108
        %v466 = vpop.permute.xlu0 %465
        %vm467 = vcmask 883712
        %v468 = vsel %vm467, %v456, %v458
        %v469 = vsel %vm467, %v458, %v460
        %v470 = vsel %vm467, %v462, %v464
        %v471 = vsel %vm467, %v464, %v466
        %476 = vrot.lane.b32.xlu0 %v352, 92
        %v477 = vpop.permute.xlu0 %476
        %478 = vrot.lane.b32.xlu0 %v353, 92
        %v479 = vpop.permute.xlu0 %478
        %480 = vrot.lane.b32.xlu0 %v368, 92
        %v481 = vpop.permute.xlu0 %480
        %482 = vrot.lane.b32.xlu0 %v354, 92
        %v483 = vpop.permute.xlu0 %482
        %484 = vrot.lane.b32.xlu0 %v355, 92
        %v485 = vpop.permute.xlu0 %484
        %486 = vrot.lane.b32.xlu0 %v369, 92
        %v487 = vpop.permute.xlu0 %486
        %vm488 = vcmask 752640
        %v489 = vsel %vm488, %v477, %v479
        %v490 = vsel %vm488, %v479, %v481
        %v491 = vsel %vm488, %v483, %v485
        %v492 = vsel %vm488, %v485, %v487
        %497 = vrot.lane.b32.xlu0 %v352, 91
        %v498 = vpop.permute.xlu0 %497
        %499 = vrot.lane.b32.xlu0 %v353, 91
        %v500 = vpop.permute.xlu0 %499
        %501 = vrot.lane.b32.xlu0 %v368, 91
        %v502 = vpop.permute.xlu0 %501
        %503 = vrot.lane.b32.xlu0 %v354, 91
        %v504 = vpop.permute.xlu0 %503
        %505 = vrot.lane.b32.xlu0 %v355, 91
        %v506 = vpop.permute.xlu0 %505
        %507 = vrot.lane.b32.xlu0 %v369, 91
        %v508 = vpop.permute.xlu0 %507
        %vm509 = vcmask 744448
        %v510 = vsel %vm509, %v498, %v500
        %v511 = vsel %vm509, %v500, %v502
        %v512 = vsel %vm509, %v504, %v506
        %v513 = vsel %vm509, %v506, %v508
        %518 = vrot.lane.b32.xlu0 %v352, 90
        %v519 = vpop.permute.xlu0 %518
        %520 = vrot.lane.b32.xlu0 %v353, 90
        %v521 = vpop.permute.xlu0 %520
        %522 = vrot.lane.b32.xlu0 %v368, 90
        %v523 = vpop.permute.xlu0 %522
        %524 = vrot.lane.b32.xlu0 %v354, 90
        %v525 = vpop.permute.xlu0 %524
        %526 = vrot.lane.b32.xlu0 %v355, 90
        %v527 = vpop.permute.xlu0 %526
        %528 = vrot.lane.b32.xlu0 %v369, 90
        %v529 = vpop.permute.xlu0 %528
        %vm530 = vcmask 736256
        %v531 = vsel %vm530, %v519, %v521
        %v532 = vsel %vm530, %v521, %v523
        %v533 = vsel %vm530, %v525, %v527
        %v534 = vsel %vm530, %v527, %v529
        %v539 = vld [vmem:[%s3] sm:$0xf]
        %541 = vset.pattern.permute.xlu0 0
        %542 = vperm.xlu0 %541, %v539
        %v543 = vpop.permute.xlu0 %542
        %v546 = vcombine.high %v370, %v370
        %v548 = vunpack.c.l.s4 1983009808
        %v549 = vunpack.c.0.s8 %v548
        %v550 = vlaneseq
        %v551 = vshrl.u32 %v550, 7
        %v552 = vsub.s32 %v549, %v551
        %v553 = vrot.slane %v370, %v552
        %v555 = vunpack.c.l.s4 1983009808
        %v556 = vunpack.c.0.s8 %v555
        %v557 = vlaneseq
        %v558 = vshrl.u32 %v557, 7
        %v559 = vsub.s32 %v556, %v558
        %v560 = vrot.slane %v546, %v559
        %v561 = vcombine.high %v553, %v553
        %vm564 = vcmask 261120
        %v566 = vsel %vm564, %v560, 0
        %568 = vmatprep.subr.bf16.mxu0 %v429
        %569 = vmatpush1.bf16.msra.mxu0 %v428
        %570 = vmatprep.subr.bf16.mxu0 %v427
        %571 = vmatpush1.bf16.msra.mxu0 %v426
        %572 = vmatprep.subr.bf16.mxu0 %v408
        %573 = vmatpush1.bf16.msra.mxu0 %v407
        %574 = vmatprep.subr.bf16.mxu0 %v406
        %575 = vmatpush1.bf16.msra.mxu0 %v405
        %576 = vmatprep.subr.bf16.mxu0 %v387
        %577 = vmatpush1.bf16.msra.mxu0 %v386
        %578 = vmatprep.subr.bf16.mxu0 %v385
        %579 = vmatpush1.bf16.msra.mxu0 %v384
        %580 = vmatprep.subr.bf16.mxu0 %v355
        %581 = vmatpush1.bf16.msra.mxu0 %v354
        %582 = vmatprep.subr.bf16.mxu0 %v353
        %583 = vmatpush1.bf16.msra.mxu0 %v352
        %584 = vmatprep.subr.bf16.mxu0 %v513
        %585 = vmatpush2.bf16.msra.mxu0 %v512
        %586 = vmatprep.subr.bf16.mxu0 %v511
        %587 = vmatpush2.bf16.msra.mxu0 %v510
        %588 = vmatprep.subr.bf16.mxu0 %v492
        %589 = vmatpush2.bf16.msra.mxu0 %v491
        %590 = vmatprep.subr.bf16.mxu0 %v490
        %591 = vmatpush2.bf16.msra.mxu0 %v489
        %592 = vmatprep.subr.bf16.mxu0 %v471
        %593 = vmatpush2.bf16.msra.mxu0 %v470
        %594 = vmatprep.subr.bf16.mxu0 %v469
        %595 = vmatpush2.bf16.msra.mxu0 %v468
        %596 = vmatprep.subr.bf16.mxu0 %v450
        %597 = vmatpush2.bf16.msra.mxu0 %v449
        %598 = vmatprep.subr.bf16.mxu0 %v448
        %599 = vmatpush2.bf16.msra.mxu0 %v447
        %600 = vmatprep.mubr.bf16.mxu0 %v561
        %601 = vmatmul.mubr.bf16.gmra.mxu0 %v553
        %v602 = vpop.f32.mrf.mxu0
        %v603 = vadd.f32 %v543, %v602
        %v604 = vpop.f32.mrf.mxu0
        %v605 = vadd.f32 %v543, %v604
        %v606 = vpop.f32.mrf.mxu0
        %v607 = vpop.f32.mrf.mxu0
        %608 = vdwg.mxu0
        %609 = vmatprep.subr.bf16.mxu0 0
        %610 = vmatpush1.bf16.msra.mxu0 0
        %611 = vmatprep.subr.bf16.mxu0 0
        %612 = vmatpush1.bf16.msra.mxu0 0
        %613 = vmatprep.subr.bf16.mxu0 0
        %614 = vmatpush1.bf16.msra.mxu0 0
        %615 = vmatprep.subr.bf16.mxu0 0
        %616 = vmatpush1.bf16.msra.mxu0 0
        %617 = vmatprep.subr.bf16.mxu0 0
        %618 = vmatpush1.bf16.msra.mxu0 0
        %619 = vmatprep.subr.bf16.mxu0 0
        %620 = vmatpush1.bf16.msra.mxu0 0
        %621 = vmatprep.subr.bf16.mxu0 %v534
        %622 = vmatpush1.bf16.msra.mxu0 %v533
        %623 = vmatprep.subr.bf16.mxu0 %v532
        %624 = vmatpush1.bf16.msra.mxu0 %v531
        %625 = vmatprep.subr.bf16.mxu0 0
        %626 = vmatpush2.bf16.msra.mxu0 0
        %627 = vmatprep.subr.bf16.mxu0 0
        %628 = vmatpush2.bf16.msra.mxu0 0
        %629 = vmatprep.subr.bf16.mxu0 0
        %630 = vmatpush2.bf16.msra.mxu0 0
        %631 = vmatprep.subr.bf16.mxu0 0
        %632 = vmatpush2.bf16.msra.mxu0 0
        %633 = vmatprep.subr.bf16.mxu0 0
        %634 = vmatpush2.bf16.msra.mxu0 0
        %635 = vmatprep.subr.bf16.mxu0 0
        %636 = vmatpush2.bf16.msra.mxu0 0
        %637 = vmatprep.subr.bf16.mxu0 0
        %638 = vmatpush2.bf16.msra.mxu0 0
        %639 = vmatprep.subr.bf16.mxu0 0
        %640 = vmatpush2.bf16.msra.mxu0 0
        %641 = vmatprep.mubr.bf16.mxu0 0
        %642 = vmatmul.mubr.bf16.gmra.mxu0 %v566
        %v643 = vpop.f32.mrf.mxu0
        %v644 = vadd.f32 %v603, %v643
        %v645 = vpop.f32.mrf.mxu0
        %v646 = vadd.f32 %v605, %v645
        %v647 = vpop.f32.mrf.mxu0
        %v648 = vpop.f32.mrf.mxu0
        %649 = vdwg.mxu0
        %v650 = vpack.c.bf16 %v644, %v644
        %v651 = vpack.c.bf16 %v646, %v646
        %v654 = vcombine.low %v650, %v651
        %v656 = vunpack.c.l.s4 1983009808
        %v657 = vunpack.c.0.s8 %v656
        %v658 = vlaneseq
        %v659 = vshrl.u32 %v658, 7
        %v660 = vsub.s32 %v657, %v659
        %v661 = vrot.slane %v654, %v660
        %663 = vst [vmem:[%s329] sm:$0xf] %v661
        %s664 = smul.u32 2, %s15
        %p665 = scmp.lt.s32.totalorder %s664, 5
        %s666 = scalar_select %p665, %s664, 5
        %s667 = smul.addr %s666, 2
        %s668 = scalar_lea.vmem %s4, %s667
        // Predicated region
        $region116: #{forward.41} parent=106 // pred_check
          %p669 = pneg %p131
        $region117: #{forward.41} parent=106 // pred_check_branch
          %671 = sbr.rel (%p669) target = $region119
        $region118: #{forward.41} parent=106 // pred_region
          %s672 = smul.u32 2, %s15
        $region119: #{forward.41} parent=106 // pred_fallthru
          _
      $region107: #{forward.41} parent=5 // pred_fallthru
        _
      %p673 = scmp.le.s32.totalorder 2, %s10
      // Predicated region
      $region120: #{forward.41} parent=5 // pred_check
        %p674 = pneg %p673
      $region121: #{forward.41} parent=5 // pred_check_branch
        %676 = sbr.rel (%p674) target = $region123
      $region122: #{forward.41} parent=5 // pred_region
        %s677 = ssub.s32 %s10, 2
        // Predicated region
        $region124: #{forward.41} parent=122 // pred_check
          %p678 = pneg %p137
        $region125: #{forward.41} parent=122 // pred_check_branch
          %680 = sbr.rel (%p678) target = $region127
        $region126: #{forward.41} parent=122 // pred_region
          %s681 = smul.u32 2, %s16
          %p682 = scmp.lt.s32.totalorder %s681, 5
          %s683 = scalar_select %p682, %s681, 5
          %s684 = smul.addr %s683, 2
          %s685 = scalar_lea.vmem %s4, %s684
        $region127: #{forward.41} parent=122 // pred_fallthru
          _
      $region123: #{forward.41} parent=5 // pred_fallthru
        _
    $region6: #{forward.41} parent=1 // loop_footer
      %s14 = sadd.s32 1, %s10
    $region7: #{forward.41} parent=1 // loop_footer_branch
      %9 = sbr.rel target = $region3
    $region8: #{forward.41} parent=1 // loop_exit
      _

</llo_original>
